<compile_context>
chip_gen: v7x
topology: tpu7x:2x2x1
jax: 0.10.0
libtpu: 0.0.40
codegen_flags: <defaults>
</compile_context>

<pallas_src>
import functools

import jax
import jax.numpy as jnp
from jax import lax
from jax.experimental import pallas as pl
from jax.experimental.pallas import tpu as pltpu

F32 = jnp.float32
BF16 = jnp.bfloat16
LN_EPS = 1e-5


# --------------------------------------------------------------- in-kernel helpers
def _layernorm(x, g, b, eps=LN_EPS):
    mu = jnp.mean(x, axis=-1, keepdims=True)
    xc = x - mu
    var = jnp.mean(xc * xc, axis=-1, keepdims=True)
    return xc * lax.rsqrt(var + eps) * g + b


def _token_shift(xln, shift_row):
    # prev[t] = xln[t-1] for t>0, prev[0] = carried shift state.   xln: (T, C)
    rolled = pltpu.roll(xln, shift=1, axis=0)          # XLU sublane rotate
    row = lax.broadcasted_iota(jnp.int32, xln.shape, 0)
    prev = jnp.where(row == 0, shift_row, rolled)
    return prev - xln


def _rep_spec(arr):
    """Weight replicated across the grid (full-array block, index 0)."""
    nd = arr.ndim
    return pl.BlockSpec(arr.shape, lambda *g: (0,) * nd)


# -------------------------------------------- 1. TimeMix pre-recurrence (fused)
def _tmix_prep_kernel(x_ref, shift_ref,
                      ln0g_ref, ln0b_ref, ln1g_ref, ln1b_ref,
                      maa_x_ref, maa5_ref, maa_w1_ref, maa_w2_ref,
                      wr_ref, wk_ref, wv_ref, wg_ref,
                      dw1_ref, dw2_ref, decay_ref,
                      x0_ref, r_ref, k_ref, v_ref, g_ref, lw_ref, sh_out_ref):
    x = x_ref[0].astype(F32)                                    # (T, C)
    x0 = _layernorm(x, ln0g_ref[...], ln0b_ref[...])            # ln0 (layer 0)
    x0_ref[0] = x0
    xln = _layernorm(x0, ln1g_ref[...], ln1b_ref[...])          # ln1
    xx = _token_shift(xln, shift_ref[0])                        # (T, C)
    sh_out_ref[0] = xln[-1:, :]                                 # new tmix shift state

    # 5-branch low-rank token-mix lora (branch order: w, k, v, r, g).
    xxx = (xln + xx * maa_x_ref[...]).astype(BF16)
    mixed = []
    for i in range(5):
        tm = jnp.tanh(jnp.dot(xxx, maa_w1_ref[i],
                              preferred_element_type=F32))      # (T, d_mix)
        m = jnp.dot(tm.astype(BF16), maa_w2_ref[i],
                    preferred_element_type=F32)                 # (T, C)
        mixed.append(xln + xx * (maa5_ref[i:i + 1, :] + m))
    xw, xk, xv, xr, xg = mixed

    # big projections on the MXU in bf16, f32 accumulation.
    r_ref[0] = jnp.dot(xr.astype(BF16), wr_ref[...], preferred_element_type=F32)
    k_ref[0] = jnp.dot(xk.astype(BF16), wk_ref[...], preferred_element_type=F32)
    v_ref[0] = jnp.dot(xv.astype(BF16), wv_ref[...], preferred_element_type=F32)
    gp = jnp.dot(xg.astype(BF16), wg_ref[...], preferred_element_type=F32)
    g_ref[0] = gp * jax.nn.sigmoid(gp)                          # SiLU gate

    # decay lora kept in f32; emit LOG decay  logw = -exp(decay + lora(xw)).
    ww = jnp.dot(jnp.tanh(jnp.dot(xw, dw1_ref[...], preferred_element_type=F32)),
                 dw2_ref[...], preferred_element_type=F32)
    lw_ref[0] = -jnp.exp(decay_ref[...] + ww)


def tmix_prep(x, shift, p):
    B, T, C = x.shape
    btc = pl.BlockSpec((1, T, C), lambda b: (b, 0, 0))
    row = pl.BlockSpec((1, 1, C), lambda b: (b, 0, 0))
    weights = (p['ln0_g'], p['ln0_b'], p['ln1_g'], p['ln1_b'],
               p['maa_x'], p['maa5'], p['maa_w1'], p['maa_w2'],
               p['Wr'], p['Wk'], p['Wv'], p['Wg'],
               p['dec_w1'], p['dec_w2'], p['decay'])
    out_shape = (jax.ShapeDtypeStruct((B, T, C), F32),) * 6 + \
                (jax.ShapeDtypeStruct((B, 1, C), F32),)
    return pl.pallas_call(
        _tmix_prep_kernel,
        grid=(B,),
        in_specs=[btc, row] + [_rep_spec(w) for w in weights],
        out_specs=(btc,) * 6 + (row,),
        out_shape=out_shape,
        compiler_params=pltpu.CompilerParams(dimension_semantics=("parallel",)),
    )(x, shift, *weights)


# ---------------------------------------- 2. WKV6 recurrence, chunked (MXU form)
def _wkv6_kernel(u_ref, r_ref, k_ref, v_ref, lw_ref, s0_ref,
                 y_ref, sT_ref, s_scr, *, H, N):
    L = r_ref.shape[1]

    @pl.when(pl.program_id(1) == 0)
    def _():
        s_scr[...] = s0_ref[0]                       # (H, N, N) [key, value]

    # (L, L) helpers: strictly-lower mask, diagonal mask, inclusive-cumsum matrix.
    t_idx = lax.broadcasted_iota(jnp.int32, (L, L), 0)
    s_idx = lax.broadcasted_iota(jnp.int32, (L, L), 1)
    lower = t_idx > s_idx
    diag = t_idx == s_idx
    tri_incl = (t_idx >= s_idx).astype(F32)
    ones_row = jnp.ones((1, N), F32)

    r_blk = r_ref[0]
    k_blk = k_ref[0]
    v_blk = v_ref[0]
    lw_blk = lw_ref[0]
    u_row = u_ref[...]                               # (1, C)

    for h in range(H):
        sl = slice(h * N, (h + 1) * N)
        r = r_blk[:, sl]
        k = k_blk[:, sl]
        v = v_blk[:, sl]
        lw = lw_blk[:, sl]                           # per-token log decay
        u = u_row[:, sl]                             # (1, N)
        s_in = s_scr[h]                              # (N, N)

        cum_in = jnp.dot(tri_incl, lw, preferred_element_type=F32)   # inclusive cumsum
        cum_ex = cum_in - lw                                          # exclusive cumsum
        r_hat = r * jnp.exp(cum_ex)
        k_hat = k * jnp.exp(-cum_in)

        # intra-chunk attention:  P[t,s<t] = r_hat[t].k_hat[s],  P[t,t] = r[t].(u*k[t])
        scores = lax.dot_general(r_hat, k_hat, (((1,), (1,)), ((), ())),
                                 preferred_element_type=F32)          # (L, L)
        dterm = jnp.sum(r * u * k, axis=-1, keepdims=True)            # (L, 1)
        pmat = jnp.where(lower, scores, 0.0)
        pmat = jnp.where(diag, dterm, pmat)

        y = (jnp.dot(pmat, v, preferred_element_type=F32) +
             jnp.dot(r_hat, s_in, preferred_element_type=F32))        # (L, N)
        y_ref[0, :, sl] = y

        # carry state to the next chunk:  S <- diag(D_total) S + sum_s diag(d_s) k_s v_s^T
        d_end = jnp.exp(cum_in[L - 1:L, :])                           # (1, N)
        k_tld = k * jnp.exp(cum_in[L - 1:L, :] - cum_in)              # (L, N)
        kv = lax.dot_general(k_tld, v, (((0,), (0,)), ((), ())),
                             preferred_element_type=F32)              # (N, N)
        # broadcast D_total onto the key (sublane) axis via a rank-1 contraction.
        d_bcast = lax.dot_general(d_end, ones_row, (((0,), (0,)), ((), ())),
                                  preferred_element_type=F32)         # (N, N)
        s_scr[h] = d_bcast * s_in + kv

    sT_ref[0] = s_scr[...]


def wkv6(u, r, k, v, lw, s0, *, H, N, L):
    B, T, C = r.shape
    assert T % L == 0
    nc = T // L
    chunk = pl.BlockSpec((1, L, C), lambda b, c: (b, c, 0))
    state = pl.BlockSpec((1, H, N, N), lambda b, c: (b, 0, 0, 0))
    u_spec = pl.BlockSpec((1, C), lambda b, c: (0, 0))
    return pl.pallas_call(
        functools.partial(_wkv6_kernel, H=H, N=N),
        grid=(B, nc),
        in_specs=[u_spec, chunk, chunk, chunk, chunk, state],
        out_specs=(chunk, state),
        out_shape=(jax.ShapeDtypeStruct((B, T, C), F32),
                   jax.ShapeDtypeStruct((B, H, N, N), F32)),
        scratch_shapes=[pltpu.VMEM((H, N, N), F32)],
        compiler_params=pltpu.CompilerParams(
            dimension_semantics=("parallel", "arbitrary")),
    )(u, r, k, v, lw, s0)


# -------------------------- 3. TimeMix output: GroupNorm + gate + Wo + residual
def _tmix_out_kernel(y_ref, g_ref, x0_ref, lnxg_ref, lnxb_ref, wo_ref,
                     o_ref, yn_scr, *, H, N, eps):
    y = y_ref[0]                                     # (T, C) f32
    for h in range(H):                               # per-head GroupNorm stats
        sl = slice(h * N, (h + 1) * N)
        yh = y[:, sl]
        mu = jnp.mean(yh, axis=-1, keepdims=True)
        yc = yh - mu
        var = jnp.mean(yc * yc, axis=-1, keepdims=True)
        yn_scr[:, sl] = yc * lax.rsqrt(var + eps)
    yn = yn_scr[...] * lnxg_ref[...] + lnxb_ref[...]
    att = jnp.dot((yn * g_ref[0]).astype(BF16), wo_ref[...],
                  preferred_element_type=F32)
    o_ref[0] = x0_ref[0] + att                       # fused residual


def tmix_out(y, g, x0, p, *, H, N, gn_eps):
    B, T, C = y.shape
    btc = pl.BlockSpec((1, T, C), lambda b: (b, 0, 0))
    weights = (p['lnx_g'], p['lnx_b'], p['Wo'])
    return pl.pallas_call(
        functools.partial(_tmix_out_kernel, H=H, N=N, eps=gn_eps),
        grid=(B,),
        in_specs=[btc, btc, btc] + [_rep_spec(w) for w in weights],
        out_specs=btc,
        out_shape=jax.ShapeDtypeStruct((B, T, C), F32),
        scratch_shapes=[pltpu.VMEM((T, C), F32)],
        compiler_params=pltpu.CompilerParams(dimension_semantics=("parallel",)),
    )(y, g, x0, *weights)


# --------------------------------------------------- 4. ChannelMix (fused + residual)
def _cmix_kernel(x_ref, shift_ref, ln2g_ref, ln2b_ref, mk_ref, mr_ref,
                 wk_ref, wv_ref, wr_ref, o_ref, sh_out_ref):
    x = x_ref[0]                                     # (T, C) residual stream
    xln = _layernorm(x, ln2g_ref[...], ln2b_ref[...])
    xx = _token_shift(xln, shift_ref[0])
    sh_out_ref[0] = xln[-1:, :]
    xk = (xln + xx * mk_ref[...]).astype(BF16)
    xr = (xln + xx * mr_ref[...]).astype(BF16)
    kk = jnp.dot(xk, wk_ref[...], preferred_element_type=F32)
    kk = jnp.square(jnp.maximum(kk, 0.0))            # relu(k)**2
    kv = jnp.dot(kk.astype(BF16), wv_ref[...], preferred_element_type=F32)
    rr = jax.nn.sigmoid(jnp.dot(xr, wr_ref[...], preferred_element_type=F32))
    o_ref[0] = x + rr * kv                           # fused residual


def cmix(x, shift, p):
    B, T, C = x.shape
    btc = pl.BlockSpec((1, T, C), lambda b: (b, 0, 0))
    row = pl.BlockSpec((1, 1, C), lambda b: (b, 0, 0))
    weights = (p['ln2_g'], p['ln2_b'], p['c_maa_k'], p['c_maa_r'],
               p['cWk'], p['cWv'], p['cWr'])
    return pl.pallas_call(
        _cmix_kernel,
        grid=(B,),
        in_specs=[btc, row] + [_rep_spec(w) for w in weights],
        out_specs=(btc, row),
        out_shape=(jax.ShapeDtypeStruct((B, T, C), F32),
                   jax.ShapeDtypeStruct((B, 1, C), F32)),
        compiler_params=pltpu.CompilerParams(dimension_semantics=("parallel",)),
    )(x, shift, *weights)


# ----------------------------------------------------------------- Block forward
def block_forward(x, state, p, cfg):
    B, T, C = x.shape
    H, N = cfg['n_head'], cfg['head_size']
    L = cfg['chunk']

    # state_encoder (EncoderDecoder): eval mode, encode.weight == eye, so
    # x.bf16() @ eye == bf16 round-trip cast of the WKV state (bit-identical).
    # TODO(synk): if encode.weight is trained away from identity, reinstate a small
    #             (N, N) bf16 matmul here (encode_ln / encode_dropout are unused in
    #             the reference eval forward and are intentionally not applied).
    s0 = state['tmix_wkv'].astype(BF16).astype(F32)

    x0, r, k, v, g, lw, t_shift = tmix_prep(
        x, state['tmix_shift'].reshape(B, 1, C), p)
    y, sT = wkv6(p['u'].reshape(1, C), r, k, v, lw, s0, H=H, N=N, L=L)
    x_att = tmix_out(y, g, x0, p, H=H, N=N, gn_eps=cfg['gn_eps'])
    x_out, c_shift = cmix(x_att, state['cmix_shift'].reshape(B, 1, C), p)

    new_state = dict(state)
    new_state['tmix_shift'] = t_shift.reshape(B, C)
    new_state['tmix_wkv'] = sT
    new_state['cmix_shift'] = c_shift.reshape(B, C)
    return x_out, new_state


# --------------------------------------------------------------------- param init
def init_params(key, C, H, N, d_mix, d_decay, ffn):
    ks = jax.random.split(key, 12)

    def nrm(k, shape, s=0.05, dtype=F32):
        return (jax.random.normal(k, shape, F32) * s).astype(dtype)

    ddd = jnp.arange(C, dtype=F32) / C
    p = {}
    for name in ('ln0', 'ln1', 'ln2'):
        p[f'{name}_g'] = jnp.ones((1, C), F32)
        p[f'{name}_b'] = jnp.zeros((1, C), F32)
    p['lnx_g'] = jnp.ones((1, C), F32)          # GroupNorm(H, C) affine
    p['lnx_b'] = jnp.zeros((1, C), F32)
    # TimeMix
    p['maa_x'] = (1.0 - ddd).reshape(1, C)
    p['maa5'] = jnp.stack([1.0 - ddd ** (0.5 + 0.1 * i) for i in range(5)], 0)  # w,k,v,r,g
    p['maa_w1'] = nrm(ks[0], (5, C, d_mix), dtype=BF16)
    p['maa_w2'] = nrm(ks[1], (5, d_mix, C), dtype=BF16)
    p['dec_w1'] = nrm(ks[2], (C, d_decay))
    p['dec_w2'] = nrm(ks[3], (d_decay, C))
    p['decay'] = (-6.0 + 5.0 * (jnp.arange(C, dtype=F32) / (C - 1)) ** 1.3).reshape(1, C)
    p['u'] = (0.3 + 0.05 * (jnp.arange(C, dtype=F32) % 3 - 1.0)).reshape(H, N)
    for nm, kk in (('Wr', 4), ('Wk', 5), ('Wv', 6), ('Wg', 7), ('Wo', 8)):
        p[nm] = nrm(ks[kk], (C, C), dtype=BF16)
    # ChannelMix
    p['c_maa_k'] = (1.0 - ddd ** 0.7).reshape(1, C)
    p['c_maa_r'] = (1.0 - ddd ** 0.9).reshape(1, C)
    p['cWk'] = nrm(ks[9], (C, ffn), dtype=BF16)
    p['cWv'] = nrm(ks[10], (ffn, C), dtype=BF16)
    p['cWr'] = nrm(ks[11], (C, C), dtype=BF16)
    return p


if __name__ == "__main__":
    B, T, C, N = 2, 8, 128, 64          # batch, seq, n_embd, head_size
    H = C // N                          # 2 heads
    D_MIX, D_DECAY = 32, 64
    FFN = int(C * 3.5 // 32) * 32       # 448, RWKV v6 dim_ffn rule
    L = min(T, 16)                      # WKV chunk length (T % L == 0)
    cfg = dict(n_head=H, head_size=N, gn_eps=1e-5 * (8 ** 2), chunk=L)

    key = jax.random.PRNGKey(0)
    kx, ks1, ks2, ks3, kp = jax.random.split(key, 5)
    params = init_params(kp, C, H, N, D_MIX, D_DECAY, FFN)

    x = jax.random.normal(kx, (B, T, C), F32)
    layer_state = dict(
        tmix_shift=jax.random.normal(ks1, (B, C), F32) * 0.1,
        tmix_wkv=jax.random.normal(ks2, (B, H, N, N), F32) * 0.1,
        cmix_shift=jax.random.normal(ks3, (B, C), F32) * 0.1,
    )

    fwd = jax.jit(functools.partial(block_forward, cfg=cfg))
    out, new_state = fwd(x, layer_state, params)
    jax.block_until_ready(out)
    jax.block_until_ready(new_state['tmix_wkv'])
    assert out.shape == (B, T, C)
    assert new_state['tmix_wkv'].shape == (B, H, N, N)
    assert new_state['tmix_shift'].shape == (B, C)
    assert new_state['cmix_shift'].shape == (B, C)
    print("KERNEL_OK")
</pallas_src>

<mosaic_0001>
module attributes {stable_mosaic.version = 11 : i64} {
  func.func @_tmix_prep_kernel(%arg0: i32, %arg1: memref<1x8x128xf32, #tpu.memory_space<vmem>>, %arg2: memref<1x1x128xf32, #tpu.memory_space<vmem>>, %arg3: memref<1x128xf32, #tpu.memory_space<vmem>>, %arg4: memref<1x128xf32, #tpu.memory_space<vmem>>, %arg5: memref<1x128xf32, #tpu.memory_space<vmem>>, %arg6: memref<1x128xf32, #tpu.memory_space<vmem>>, %arg7: memref<1x128xf32, #tpu.memory_space<vmem>>, %arg8: memref<5x128xf32, #tpu.memory_space<vmem>>, %arg9: memref<5x128x32xbf16, #tpu.memory_space<vmem>>, %arg10: memref<5x32x128xbf16, #tpu.memory_space<vmem>>, %arg11: memref<128x128xbf16, #tpu.memory_space<vmem>>, %arg12: memref<128x128xbf16, #tpu.memory_space<vmem>>, %arg13: memref<128x128xbf16, #tpu.memory_space<vmem>>, %arg14: memref<128x128xbf16, #tpu.memory_space<vmem>>, %arg15: memref<128x64xf32, #tpu.memory_space<vmem>>, %arg16: memref<64x128xf32, #tpu.memory_space<vmem>>, %arg17: memref<1x128xf32, #tpu.memory_space<vmem>>, %arg18: memref<1x8x128xf32, #tpu.memory_space<vmem>>, %arg19: memref<1x8x128xf32, #tpu.memory_space<vmem>>, %arg20: memref<1x8x128xf32, #tpu.memory_space<vmem>>, %arg21: memref<1x8x128xf32, #tpu.memory_space<vmem>>, %arg22: memref<1x8x128xf32, #tpu.memory_space<vmem>>, %arg23: memref<1x8x128xf32, #tpu.memory_space<vmem>>, %arg24: memref<1x1x128xf32, #tpu.memory_space<vmem>>) attributes {dimension_semantics = [#tpu.dimension_semantics<parallel>], iteration_bounds = array<i64: 2>, scalar_prefetch = 0 : i64, scratch_operands = 0 : i64, tpu.core_type = #tpu.core_type<tc>, window_params = [{transform_indices = @transform_0, window_bounds = array<i64: 1, 8, 128>}, {transform_indices = @transform_1, window_bounds = array<i64: 1, 1, 128>}, {pipeline_mode = #tpu.pipeline_mode<synchronous>, transform_indices = @transform_2, window_bounds = array<i64: 1, 128>}, {pipeline_mode = #tpu.pipeline_mode<synchronous>, transform_indices = @transform_3, window_bounds = array<i64: 1, 128>}, {pipeline_mode = #tpu.pipeline_mode<synchronous>, transform_indices = @transform_4, window_bounds = array<i64: 1, 128>}, {pipeline_mode = #tpu.pipeline_mode<synchronous>, transform_indices = @transform_5, window_bounds = array<i64: 1, 128>}, {pipeline_mode = #tpu.pipeline_mode<synchronous>, transform_indices = @transform_6, window_bounds = array<i64: 1, 128>}, {pipeline_mode = #tpu.pipeline_mode<synchronous>, transform_indices = @transform_7, window_bounds = array<i64: 5, 128>}, {pipeline_mode = #tpu.pipeline_mode<synchronous>, transform_indices = @transform_8, window_bounds = array<i64: 5, 128, 32>}, {pipeline_mode = #tpu.pipeline_mode<synchronous>, transform_indices = @transform_9, window_bounds = array<i64: 5, 32, 128>}, {pipeline_mode = #tpu.pipeline_mode<synchronous>, transform_indices = @transform_10, window_bounds = array<i64: 128, 128>}, {pipeline_mode = #tpu.pipeline_mode<synchronous>, transform_indices = @transform_11, window_bounds = array<i64: 128, 128>}, {pipeline_mode = #tpu.pipeline_mode<synchronous>, transform_indices = @transform_12, window_bounds = array<i64: 128, 128>}, {pipeline_mode = #tpu.pipeline_mode<synchronous>, transform_indices = @transform_13, window_bounds = array<i64: 128, 128>}, {pipeline_mode = #tpu.pipeline_mode<synchronous>, transform_indices = @transform_14, window_bounds = array<i64: 128, 64>}, {pipeline_mode = #tpu.pipeline_mode<synchronous>, transform_indices = @transform_15, window_bounds = array<i64: 64, 128>}, {pipeline_mode = #tpu.pipeline_mode<synchronous>, transform_indices = @transform_16, window_bounds = array<i64: 1, 128>}, {transform_indices = @transform_17, window_bounds = array<i64: 1, 8, 128>}, {transform_indices = @transform_18, window_bounds = array<i64: 1, 8, 128>}, {transform_indices = @transform_19, window_bounds = array<i64: 1, 8, 128>}, {transform_indices = @transform_20, window_bounds = array<i64: 1, 8, 128>}, {transform_indices = @transform_21, window_bounds = array<i64: 1, 8, 128>}, {transform_indices = @transform_22, window_bounds = array<i64: 1, 8, 128>}, {transform_indices = @transform_23, window_bounds = array<i64: 1, 1, 128>}]} {
    %c0 = arith.constant 0 : index
    %c0_0 = arith.constant 0 : index
    %c0_1 = arith.constant 0 : index
    %0 = vector.load %arg1[%c0, %c0_0, %c0_1] : memref<1x8x128xf32, #tpu.memory_space<vmem>>, vector<1x8x128xf32>
    %1 = vector.shape_cast %0 : vector<1x8x128xf32> to vector<8x128xf32>
    %c0_2 = arith.constant 0 : index
    %c0_3 = arith.constant 0 : index
    %2 = vector.load %arg3[%c0_2, %c0_3] : memref<1x128xf32, #tpu.memory_space<vmem>>, vector<1x128xf32>
    %c0_4 = arith.constant 0 : index
    %c0_5 = arith.constant 0 : index
    %3 = vector.load %arg4[%c0_4, %c0_5] : memref<1x128xf32, #tpu.memory_space<vmem>>, vector<1x128xf32>
    %cst = arith.constant dense<0.000000e+00> : vector<8xf32>
    %4 = vector.multi_reduction <add>, %1, %cst [1] : vector<8x128xf32> to vector<8xf32>
    %5 = vector.shape_cast %4 : vector<8xf32> to vector<8x1xf32>
    %cst_6 = arith.constant 1.280000e+02 : f32
    %6 = vector.broadcast %cst_6 : f32 to vector<8x1xf32>
    %7 = arith.divf %5, %6 : vector<8x1xf32>
    %8 = vector.broadcast %7 : vector<8x1xf32> to vector<8x128xf32>
    %9 = arith.subf %1, %8 : vector<8x128xf32>
    %10 = arith.mulf %9, %9 : vector<8x128xf32>
    %cst_7 = arith.constant dense<0.000000e+00> : vector<8xf32>
    %11 = vector.multi_reduction <add>, %10, %cst_7 [1] : vector<8x128xf32> to vector<8xf32>
    %12 = vector.shape_cast %11 : vector<8xf32> to vector<8x1xf32>
    %cst_8 = arith.constant 1.280000e+02 : f32
    %13 = vector.broadcast %cst_8 : f32 to vector<8x1xf32>
    %14 = arith.divf %12, %13 : vector<8x1xf32>
    %cst_9 = arith.constant 9.99999974E-6 : f32
    %15 = vector.broadcast %cst_9 : f32 to vector<8x1xf32>
    %16 = arith.addf %14, %15 : vector<8x1xf32>
    %17 = math.rsqrt %16 : vector<8x1xf32>
    %18 = vector.broadcast %17 : vector<8x1xf32> to vector<8x128xf32>
    %19 = arith.mulf %9, %18 : vector<8x128xf32>
    %20 = vector.broadcast %2 : vector<1x128xf32> to vector<8x128xf32>
    %21 = arith.mulf %19, %20 : vector<8x128xf32>
    %22 = vector.broadcast %3 : vector<1x128xf32> to vector<8x128xf32>
    %23 = arith.addf %21, %22 : vector<8x128xf32>
    %c0_10 = arith.constant 0 : index
    %c0_11 = arith.constant 0 : index
    %c0_12 = arith.constant 0 : index
    %24 = vector.load %arg18[%c0_10, %c0_11, %c0_12] : memref<1x8x128xf32, #tpu.memory_space<vmem>>, vector<1x8x128xf32>
    %25 = vector.shape_cast %24 : vector<1x8x128xf32> to vector<8x128xf32>
    %26 = vector.shape_cast %23 : vector<8x128xf32> to vector<1x8x128xf32>
    tpu.vector_store %arg18[%c0_10, %c0_11, %c0_12], %26 {strides = array<i32>} : memref<1x8x128xf32, #tpu.memory_space<vmem>>, vector<1x8x128xf32>,
    %c0_13 = arith.constant 0 : index
    %c0_14 = arith.constant 0 : index
    %27 = vector.load %arg5[%c0_13, %c0_14] : memref<1x128xf32, #tpu.memory_space<vmem>>, vector<1x128xf32>
    %c0_15 = arith.constant 0 : index
    %c0_16 = arith.constant 0 : index
    %28 = vector.load %arg6[%c0_15, %c0_16] : memref<1x128xf32, #tpu.memory_space<vmem>>, vector<1x128xf32>
    %cst_17 = arith.constant dense<0.000000e+00> : vector<8xf32>
    %29 = vector.multi_reduction <add>, %23, %cst_17 [1] : vector<8x128xf32> to vector<8xf32>
    %30 = vector.shape_cast %29 : vector<8xf32> to vector<8x1xf32>
    %cst_18 = arith.constant 1.280000e+02 : f32
    %31 = vector.broadcast %cst_18 : f32 to vector<8x1xf32>
    %32 = arith.divf %30, %31 : vector<8x1xf32>
    %33 = vector.broadcast %32 : vector<8x1xf32> to vector<8x128xf32>
    %34 = arith.subf %23, %33 : vector<8x128xf32>
    %35 = arith.mulf %34, %34 : vector<8x128xf32>
    %cst_19 = arith.constant dense<0.000000e+00> : vector<8xf32>
    %36 = vector.multi_reduction <add>, %35, %cst_19 [1] : vector<8x128xf32> to vector<8xf32>
    %37 = vector.shape_cast %36 : vector<8xf32> to vector<8x1xf32>
    %cst_20 = arith.constant 1.280000e+02 : f32
    %38 = vector.broadcast %cst_20 : f32 to vector<8x1xf32>
    %39 = arith.divf %37, %38 : vector<8x1xf32>
    %cst_21 = arith.constant 9.99999974E-6 : f32
    %40 = vector.broadcast %cst_21 : f32 to vector<8x1xf32>
    %41 = arith.addf %39, %40 : vector<8x1xf32>
    %42 = math.rsqrt %41 : vector<8x1xf32>
    %43 = vector.broadcast %42 : vector<8x1xf32> to vector<8x128xf32>
    %44 = arith.mulf %34, %43 : vector<8x128xf32>
    %45 = vector.broadcast %27 : vector<1x128xf32> to vector<8x128xf32>
    %46 = arith.mulf %44, %45 : vector<8x128xf32>
    %47 = vector.broadcast %28 : vector<1x128xf32> to vector<8x128xf32>
    %48 = arith.addf %46, %47 : vector<8x128xf32>
    %c0_22 = arith.constant 0 : index
    %c0_23 = arith.constant 0 : index
    %c0_24 = arith.constant 0 : index
    %49 = vector.load %arg2[%c0_22, %c0_23, %c0_24] : memref<1x1x128xf32, #tpu.memory_space<vmem>>, vector<1x1x128xf32>
    %50 = vector.shape_cast %49 : vector<1x1x128xf32> to vector<1x128xf32>
    %c1_i32 = arith.constant 1 : i32
    %51 = tpu.dynamic_rotate %48 by %c1_i32 dim 0 : vector<8x128xf32>, i32 -> vector<8x128xf32>
    %52 = tpu.iota {dimensions = array<i32: 0>} : vector<8x128xi32>
    %c0_i32 = arith.constant 0 : i32
    %53 = vector.broadcast %c0_i32 : i32 to vector<8x128xi32>
    %54 = arith.cmpi eq, %52, %53 : vector<8x128xi32>
    %55 = vector.shape_cast %50 : vector<1x128xf32> to vector<1x128xf32>
    %56 = vector.broadcast %55 : vector<1x128xf32> to vector<8x128xf32>
    %57 = arith.select %54, %56, %51 : vector<8x128xi1>, vector<8x128xf32>
    %58 = arith.subf %57, %48 : vector<8x128xf32>
    %59 = vector.extract_strided_slice %48 {offsets = [7, 0], sizes = [1, 128], strides = [1, 1]} : vector<8x128xf32> to vector<1x128xf32>
    %c0_25 = arith.constant 0 : index
    %c0_26 = arith.constant 0 : index
    %c0_27 = arith.constant 0 : index
    %60 = vector.load %arg24[%c0_25, %c0_26, %c0_27] : memref<1x1x128xf32, #tpu.memory_space<vmem>>, vector<1x1x128xf32>
    %61 = vector.shape_cast %60 : vector<1x1x128xf32> to vector<1x128xf32>
    %62 = vector.shape_cast %59 : vector<1x128xf32> to vector<1x1x128xf32>
    tpu.vector_store %arg24[%c0_25, %c0_26, %c0_27], %62 {strides = array<i32>} : memref<1x1x128xf32, #tpu.memory_space<vmem>>, vector<1x1x128xf32>,
    %c0_28 = arith.constant 0 : index
    %c0_29 = arith.constant 0 : index
    %63 = vector.load %arg7[%c0_28, %c0_29] : memref<1x128xf32, #tpu.memory_space<vmem>>, vector<1x128xf32>
    %64 = vector.broadcast %63 : vector<1x128xf32> to vector<8x128xf32>
    %65 = arith.mulf %58, %64 : vector<8x128xf32>
    %66 = arith.addf %48, %65 : vector<8x128xf32>
    %67 = arith.truncf %66 : vector<8x128xf32> to vector<8x128xbf16>
    %c0_30 = arith.constant 0 : index
    %c0_31 = arith.constant 0 : index
    %c0_32 = arith.constant 0 : index
    %68 = vector.load %arg9[%c0_30, %c0_31, %c0_32] : memref<5x128x32xbf16, #tpu.memory_space<vmem>>, vector<1x128x32xbf16>
    %69 = vector.shape_cast %68 : vector<1x128x32xbf16> to vector<128x32xbf16>
    %cst_33 = arith.constant dense<0.000000e+00> : vector<8x32xf32>
    %70 = tpu.matmul %67, %69, %cst_33 {dimension_numbers = #tpu.dot_dimension_numbers<[1], [0], [0], [1], [0, 0, 1, 1], [], []>} : vector<8x128xbf16>, vector<128x32xbf16>, vector<8x32xf32> -> vector<8x32xf32>
    %71 = math.tanh %70 : vector<8x32xf32>
    %72 = arith.truncf %71 : vector<8x32xf32> to vector<8x32xbf16>
    %c0_34 = arith.constant 0 : index
    %c0_35 = arith.constant 0 : index
    %c0_36 = arith.constant 0 : index
    %73 = vector.load %arg10[%c0_34, %c0_35, %c0_36] : memref<5x32x128xbf16, #tpu.memory_space<vmem>>, vector<1x32x128xbf16>
    %74 = vector.shape_cast %73 : vector<1x32x128xbf16> to vector<32x128xbf16>
    %cst_37 = arith.constant dense<0.000000e+00> : vector<8x128xf32>
    %75 = tpu.matmul %72, %74, %cst_37 {dimension_numbers = #tpu.dot_dimension_numbers<[1], [0], [0], [1], [0, 0, 1, 1], [], []>} : vector<8x32xbf16>, vector<32x128xbf16>, vector<8x128xf32> -> vector<8x128xf32>
    %c0_38 = arith.constant 0 : index
    %c0_39 = arith.constant 0 : index
    %76 = vector.load %arg8[%c0_38, %c0_39] : memref<5x128xf32, #tpu.memory_space<vmem>>, vector<1x128xf32>
    %77 = vector.broadcast %76 : vector<1x128xf32> to vector<8x128xf32>
    %78 = arith.addf %77, %75 : vector<8x128xf32>
    %79 = arith.mulf %58, %78 : vector<8x128xf32>
    %80 = arith.addf %48, %79 : vector<8x128xf32>
    %c1 = arith.constant 1 : index
    %c0_40 = arith.constant 0 : index
    %c0_41 = arith.constant 0 : index
    %81 = vector.load %arg9[%c1, %c0_40, %c0_41] : memref<5x128x32xbf16, #tpu.memory_space<vmem>>, vector<1x128x32xbf16>
    %82 = vector.shape_cast %81 : vector<1x128x32xbf16> to vector<128x32xbf16>
    %cst_42 = arith.constant dense<0.000000e+00> : vector<8x32xf32>
    %83 = tpu.matmul %67, %82, %cst_42 {dimension_numbers = #tpu.dot_dimension_numbers<[1], [0], [0], [1], [0, 0, 1, 1], [], []>} : vector<8x128xbf16>, vector<128x32xbf16>, vector<8x32xf32> -> vector<8x32xf32>
    %84 = math.tanh %83 : vector<8x32xf32>
    %85 = arith.truncf %84 : vector<8x32xf32> to vector<8x32xbf16>
    %c1_43 = arith.constant 1 : index
    %c0_44 = arith.constant 0 : index
    %c0_45 = arith.constant 0 : index
    %86 = vector.load %arg10[%c1_43, %c0_44, %c0_45] : memref<5x32x128xbf16, #tpu.memory_space<vmem>>, vector<1x32x128xbf16>
    %87 = vector.shape_cast %86 : vector<1x32x128xbf16> to vector<32x128xbf16>
    %cst_46 = arith.constant dense<0.000000e+00> : vector<8x128xf32>
    %88 = tpu.matmul %85, %87, %cst_46 {dimension_numbers = #tpu.dot_dimension_numbers<[1], [0], [0], [1], [0, 0, 1, 1], [], []>} : vector<8x32xbf16>, vector<32x128xbf16>, vector<8x128xf32> -> vector<8x128xf32>
    %c1_47 = arith.constant 1 : index
    %c0_48 = arith.constant 0 : index
    %89 = vector.load %arg8[%c1_47, %c0_48] : memref<5x128xf32, #tpu.memory_space<vmem>>, vector<1x128xf32>
    %90 = vector.broadcast %89 : vector<1x128xf32> to vector<8x128xf32>
    %91 = arith.addf %90, %88 : vector<8x128xf32>
    %92 = arith.mulf %58, %91 : vector<8x128xf32>
    %93 = arith.addf %48, %92 : vector<8x128xf32>
    %c2 = arith.constant 2 : index
    %c0_49 = arith.constant 0 : index
    %c0_50 = arith.constant 0 : index
    %94 = vector.load %arg9[%c2, %c0_49, %c0_50] : memref<5x128x32xbf16, #tpu.memory_space<vmem>>, vector<1x128x32xbf16>
    %95 = vector.shape_cast %94 : vector<1x128x32xbf16> to vector<128x32xbf16>
    %cst_51 = arith.constant dense<0.000000e+00> : vector<8x32xf32>
    %96 = tpu.matmul %67, %95, %cst_51 {dimension_numbers = #tpu.dot_dimension_numbers<[1], [0], [0], [1], [0, 0, 1, 1], [], []>} : vector<8x128xbf16>, vector<128x32xbf16>, vector<8x32xf32> -> vector<8x32xf32>
    %97 = math.tanh %96 : vector<8x32xf32>
    %98 = arith.truncf %97 : vector<8x32xf32> to vector<8x32xbf16>
    %c2_52 = arith.constant 2 : index
    %c0_53 = arith.constant 0 : index
    %c0_54 = arith.constant 0 : index
    %99 = vector.load %arg10[%c2_52, %c0_53, %c0_54] : memref<5x32x128xbf16, #tpu.memory_space<vmem>>, vector<1x32x128xbf16>
    %100 = vector.shape_cast %99 : vector<1x32x128xbf16> to vector<32x128xbf16>
    %cst_55 = arith.constant dense<0.000000e+00> : vector<8x128xf32>
    %101 = tpu.matmul %98, %100, %cst_55 {dimension_numbers = #tpu.dot_dimension_numbers<[1], [0], [0], [1], [0, 0, 1, 1], [], []>} : vector<8x32xbf16>, vector<32x128xbf16>, vector<8x128xf32> -> vector<8x128xf32>
    %c2_56 = arith.constant 2 : index
    %c0_57 = arith.constant 0 : index
    %102 = vector.load %arg8[%c2_56, %c0_57] : memref<5x128xf32, #tpu.memory_space<vmem>>, vector<1x128xf32>
    %103 = vector.broadcast %102 : vector<1x128xf32> to vector<8x128xf32>
    %104 = arith.addf %103, %101 : vector<8x128xf32>
    %105 = arith.mulf %58, %104 : vector<8x128xf32>
    %106 = arith.addf %48, %105 : vector<8x128xf32>
    %c3 = arith.constant 3 : index
    %c0_58 = arith.constant 0 : index
    %c0_59 = arith.constant 0 : index
    %107 = vector.load %arg9[%c3, %c0_58, %c0_59] : memref<5x128x32xbf16, #tpu.memory_space<vmem>>, vector<1x128x32xbf16>
    %108 = vector.shape_cast %107 : vector<1x128x32xbf16> to vector<128x32xbf16>
    %cst_60 = arith.constant dense<0.000000e+00> : vector<8x32xf32>
    %109 = tpu.matmul %67, %108, %cst_60 {dimension_numbers = #tpu.dot_dimension_numbers<[1], [0], [0], [1], [0, 0, 1, 1], [], []>} : vector<8x128xbf16>, vector<128x32xbf16>, vector<8x32xf32> -> vector<8x32xf32>
    %110 = math.tanh %109 : vector<8x32xf32>
    %111 = arith.truncf %110 : vector<8x32xf32> to vector<8x32xbf16>
    %c3_61 = arith.constant 3 : index
    %c0_62 = arith.constant 0 : index
    %c0_63 = arith.constant 0 : index
    %112 = vector.load %arg10[%c3_61, %c0_62, %c0_63] : memref<5x32x128xbf16, #tpu.memory_space<vmem>>, vector<1x32x128xbf16>
    %113 = vector.shape_cast %112 : vector<1x32x128xbf16> to vector<32x128xbf16>
    %cst_64 = arith.constant dense<0.000000e+00> : vector<8x128xf32>
    %114 = tpu.matmul %111, %113, %cst_64 {dimension_numbers = #tpu.dot_dimension_numbers<[1], [0], [0], [1], [0, 0, 1, 1], [], []>} : vector<8x32xbf16>, vector<32x128xbf16>, vector<8x128xf32> -> vector<8x128xf32>
    %c3_65 = arith.constant 3 : index
    %c0_66 = arith.constant 0 : index
    %115 = vector.load %arg8[%c3_65, %c0_66] : memref<5x128xf32, #tpu.memory_space<vmem>>, vector<1x128xf32>
    %116 = vector.broadcast %115 : vector<1x128xf32> to vector<8x128xf32>
    %117 = arith.addf %116, %114 : vector<8x128xf32>
    %118 = arith.mulf %58, %117 : vector<8x128xf32>
    %119 = arith.addf %48, %118 : vector<8x128xf32>
    %c4 = arith.constant 4 : index
    %c0_67 = arith.constant 0 : index
    %c0_68 = arith.constant 0 : index
    %120 = vector.load %arg9[%c4, %c0_67, %c0_68] : memref<5x128x32xbf16, #tpu.memory_space<vmem>>, vector<1x128x32xbf16>
    %121 = vector.shape_cast %120 : vector<1x128x32xbf16> to vector<128x32xbf16>
    %cst_69 = arith.constant dense<0.000000e+00> : vector<8x32xf32>
    %122 = tpu.matmul %67, %121, %cst_69 {dimension_numbers = #tpu.dot_dimension_numbers<[1], [0], [0], [1], [0, 0, 1, 1], [], []>} : vector<8x128xbf16>, vector<128x32xbf16>, vector<8x32xf32> -> vector<8x32xf32>
    %123 = math.tanh %122 : vector<8x32xf32>
    %124 = arith.truncf %123 : vector<8x32xf32> to vector<8x32xbf16>
    %c4_70 = arith.constant 4 : index
    %c0_71 = arith.constant 0 : index
    %c0_72 = arith.constant 0 : index
    %125 = vector.load %arg10[%c4_70, %c0_71, %c0_72] : memref<5x32x128xbf16, #tpu.memory_space<vmem>>, vector<1x32x128xbf16>
    %126 = vector.shape_cast %125 : vector<1x32x128xbf16> to vector<32x128xbf16>
    %cst_73 = arith.constant dense<0.000000e+00> : vector<8x128xf32>
    %127 = tpu.matmul %124, %126, %cst_73 {dimension_numbers = #tpu.dot_dimension_numbers<[1], [0], [0], [1], [0, 0, 1, 1], [], []>} : vector<8x32xbf16>, vector<32x128xbf16>, vector<8x128xf32> -> vector<8x128xf32>
    %c4_74 = arith.constant 4 : index
    %c0_75 = arith.constant 0 : index
    %128 = vector.load %arg8[%c4_74, %c0_75] : memref<5x128xf32, #tpu.memory_space<vmem>>, vector<1x128xf32>
    %129 = vector.broadcast %128 : vector<1x128xf32> to vector<8x128xf32>
    %130 = arith.addf %129, %127 : vector<8x128xf32>
    %131 = arith.mulf %58, %130 : vector<8x128xf32>
    %132 = arith.addf %48, %131 : vector<8x128xf32>
    %133 = arith.truncf %119 : vector<8x128xf32> to vector<8x128xbf16>
    %c0_76 = arith.constant 0 : index
    %c0_77 = arith.constant 0 : index
    %134 = vector.load %arg11[%c0_76, %c0_77] : memref<128x128xbf16, #tpu.memory_space<vmem>>, vector<128x128xbf16>
    %cst_78 = arith.constant dense<0.000000e+00> : vector<8x128xf32>
    %135 = tpu.matmul %133, %134, %cst_78 {dimension_numbers = #tpu.dot_dimension_numbers<[1], [0], [0], [1], [0, 0, 1, 1], [], []>} : vector<8x128xbf16>, vector<128x128xbf16>, vector<8x128xf32> -> vector<8x128xf32>
    %c0_79 = arith.constant 0 : index
    %c0_80 = arith.constant 0 : index
    %c0_81 = arith.constant 0 : index
    %136 = vector.load %arg19[%c0_79, %c0_80, %c0_81] : memref<1x8x128xf32, #tpu.memory_space<vmem>>, vector<1x8x128xf32>
    %137 = vector.shape_cast %136 : vector<1x8x128xf32> to vector<8x128xf32>
    %138 = vector.shape_cast %135 : vector<8x128xf32> to vector<1x8x128xf32>
    tpu.vector_store %arg19[%c0_79, %c0_80, %c0_81], %138 {strides = array<i32>} : memref<1x8x128xf32, #tpu.memory_space<vmem>>, vector<1x8x128xf32>,
    %139 = arith.truncf %93 : vector<8x128xf32> to vector<8x128xbf16>
    %c0_82 = arith.constant 0 : index
    %c0_83 = arith.constant 0 : index
    %140 = vector.load %arg12[%c0_82, %c0_83] : memref<128x128xbf16, #tpu.memory_space<vmem>>, vector<128x128xbf16>
    %cst_84 = arith.constant dense<0.000000e+00> : vector<8x128xf32>
    %141 = tpu.matmul %139, %140, %cst_84 {dimension_numbers = #tpu.dot_dimension_numbers<[1], [0], [0], [1], [0, 0, 1, 1], [], []>} : vector<8x128xbf16>, vector<128x128xbf16>, vector<8x128xf32> -> vector<8x128xf32>
    %c0_85 = arith.constant 0 : index
    %c0_86 = arith.constant 0 : index
    %c0_87 = arith.constant 0 : index
    %142 = vector.load %arg20[%c0_85, %c0_86, %c0_87] : memref<1x8x128xf32, #tpu.memory_space<vmem>>, vector<1x8x128xf32>
    %143 = vector.shape_cast %142 : vector<1x8x128xf32> to vector<8x128xf32>
    %144 = vector.shape_cast %141 : vector<8x128xf32> to vector<1x8x128xf32>
    tpu.vector_store %arg20[%c0_85, %c0_86, %c0_87], %144 {strides = array<i32>} : memref<1x8x128xf32, #tpu.memory_space<vmem>>, vector<1x8x128xf32>,
    %145 = arith.truncf %106 : vector<8x128xf32> to vector<8x128xbf16>
    %c0_88 = arith.constant 0 : index
    %c0_89 = arith.constant 0 : index
    %146 = vector.load %arg13[%c0_88, %c0_89] : memref<128x128xbf16, #tpu.memory_space<vmem>>, vector<128x128xbf16>
    %cst_90 = arith.constant dense<0.000000e+00> : vector<8x128xf32>
    %147 = tpu.matmul %145, %146, %cst_90 {dimension_numbers = #tpu.dot_dimension_numbers<[1], [0], [0], [1], [0, 0, 1, 1], [], []>} : vector<8x128xbf16>, vector<128x128xbf16>, vector<8x128xf32> -> vector<8x128xf32>
    %c0_91 = arith.constant 0 : index
    %c0_92 = arith.constant 0 : index
    %c0_93 = arith.constant 0 : index
    %148 = vector.load %arg21[%c0_91, %c0_92, %c0_93] : memref<1x8x128xf32, #tpu.memory_space<vmem>>, vector<1x8x128xf32>
    %149 = vector.shape_cast %148 : vector<1x8x128xf32> to vector<8x128xf32>
    %150 = vector.shape_cast %147 : vector<8x128xf32> to vector<1x8x128xf32>
    tpu.vector_store %arg21[%c0_91, %c0_92, %c0_93], %150 {strides = array<i32>} : memref<1x8x128xf32, #tpu.memory_space<vmem>>, vector<1x8x128xf32>,
    %151 = arith.truncf %132 : vector<8x128xf32> to vector<8x128xbf16>
    %c0_94 = arith.constant 0 : index
    %c0_95 = arith.constant 0 : index
    %152 = vector.load %arg14[%c0_94, %c0_95] : memref<128x128xbf16, #tpu.memory_space<vmem>>, vector<128x128xbf16>
    %cst_96 = arith.constant dense<0.000000e+00> : vector<8x128xf32>
    %153 = tpu.matmul %151, %152, %cst_96 {dimension_numbers = #tpu.dot_dimension_numbers<[1], [0], [0], [1], [0, 0, 1, 1], [], []>} : vector<8x128xbf16>, vector<128x128xbf16>, vector<8x128xf32> -> vector<8x128xf32>
    %154 = arith.negf %153 : vector<8x128xf32>
    %155 = math.exp %154 : vector<8x128xf32>
    %cst_97 = arith.constant 1.000000e+00 : f32
    %156 = vector.broadcast %cst_97 : f32 to vector<8x128xf32>
    %157 = arith.addf %156, %155 : vector<8x128xf32>
    %158 = arith.divf %156, %157 : vector<8x128xf32>
    %159 = arith.mulf %153, %158 : vector<8x128xf32>
    %c0_98 = arith.constant 0 : index
    %c0_99 = arith.constant 0 : index
    %c0_100 = arith.constant 0 : index
    %160 = vector.load %arg22[%c0_98, %c0_99, %c0_100] : memref<1x8x128xf32, #tpu.memory_space<vmem>>, vector<1x8x128xf32>
    %161 = vector.shape_cast %160 : vector<1x8x128xf32> to vector<8x128xf32>
    %162 = vector.shape_cast %159 : vector<8x128xf32> to vector<1x8x128xf32>
    tpu.vector_store %arg22[%c0_98, %c0_99, %c0_100], %162 {strides = array<i32>} : memref<1x8x128xf32, #tpu.memory_space<vmem>>, vector<1x8x128xf32>,
    %c0_101 = arith.constant 0 : index
    %c0_102 = arith.constant 0 : index
    %163 = vector.load %arg15[%c0_101, %c0_102] : memref<128x64xf32, #tpu.memory_space<vmem>>, vector<128x64xf32>
    %cst_103 = arith.constant dense<0.000000e+00> : vector<8x64xf32>
    %164 = tpu.matmul %80, %163, %cst_103 {dimension_numbers = #tpu.dot_dimension_numbers<[1], [0], [0], [1], [0, 0, 1, 1], [], []>} : vector<8x128xf32>, vector<128x64xf32>, vector<8x64xf32> -> vector<8x64xf32>
    %165 = math.tanh %164 : vector<8x64xf32>
    %c0_104 = arith.constant 0 : index
    %c0_105 = arith.constant 0 : index
    %166 = vector.load %arg16[%c0_104, %c0_105] : memref<64x128xf32, #tpu.memory_space<vmem>>, vector<64x128xf32>
    %cst_106 = arith.constant dense<0.000000e+00> : vector<8x128xf32>
    %167 = tpu.matmul %165, %166, %cst_106 {dimension_numbers = #tpu.dot_dimension_numbers<[1], [0], [0], [1], [0, 0, 1, 1], [], []>} : vector<8x64xf32>, vector<64x128xf32>, vector<8x128xf32> -> vector<8x128xf32>
    %c0_107 = arith.constant 0 : index
    %c0_108 = arith.constant 0 : index
    %168 = vector.load %arg17[%c0_107, %c0_108] : memref<1x128xf32, #tpu.memory_space<vmem>>, vector<1x128xf32>
    %169 = vector.broadcast %168 : vector<1x128xf32> to vector<8x128xf32>
    %170 = arith.addf %169, %167 : vector<8x128xf32>
    %171 = math.exp %170 : vector<8x128xf32>
    %cst_109 = arith.constant 0.000000e+00 : f32
    %172 = vector.broadcast %cst_109 : f32 to vector<8x128xf32>
    %173 = arith.subf %172, %171 : vector<8x128xf32>
    %c0_110 = arith.constant 0 : index
    %c0_111 = arith.constant 0 : index
    %c0_112 = arith.constant 0 : index
    %174 = vector.load %arg23[%c0_110, %c0_111, %c0_112] : memref<1x8x128xf32, #tpu.memory_space<vmem>>, vector<1x8x128xf32>
    %175 = vector.shape_cast %174 : vector<1x8x128xf32> to vector<8x128xf32>
    %176 = vector.shape_cast %173 : vector<8x128xf32> to vector<1x8x128xf32>
    tpu.vector_store %arg23[%c0_110, %c0_111, %c0_112], %176 {strides = array<i32>} : memref<1x8x128xf32, #tpu.memory_space<vmem>>, vector<1x8x128xf32>,
    return
  }
  func.func @transform_0(%arg0: i32) -> (i32, i32, i32) {
    %c0_i32 = arith.constant 0 : i32
    %c0_i32_0 = arith.constant 0 : i32
    %c0_i32_1 = arith.constant 0 : i32
    return %arg0, %c0_i32, %c0_i32_0 : i32, i32, i32
  }
  func.func @transform_1(%arg0: i32) -> (i32, i32, i32) {
    %c0_i32 = arith.constant 0 : i32
    %c0_i32_0 = arith.constant 0 : i32
    %c0_i32_1 = arith.constant 0 : i32
    return %arg0, %c0_i32, %c0_i32_0 : i32, i32, i32
  }
  func.func @transform_2(%arg0: i32) -> (i32, i32) {
    %c0_i32 = arith.constant 0 : i32
    %c0_i32_0 = arith.constant 0 : i32
    %c0_i32_1 = arith.constant 0 : i32
    return %c0_i32, %c0_i32_0 : i32, i32
  }
  func.func @transform_3(%arg0: i32) -> (i32, i32) {
    %c0_i32 = arith.constant 0 : i32
    %c0_i32_0 = arith.constant 0 : i32
    %c0_i32_1 = arith.constant 0 : i32
    return %c0_i32, %c0_i32_0 : i32, i32
  }
  func.func @transform_4(%arg0: i32) -> (i32, i32) {
    %c0_i32 = arith.constant 0 : i32
    %c0_i32_0 = arith.constant 0 : i32
    %c0_i32_1 = arith.constant 0 : i32
    return %c0_i32, %c0_i32_0 : i32, i32
  }
  func.func @transform_5(%arg0: i32) -> (i32, i32) {
    %c0_i32 = arith.constant 0 : i32
    %c0_i32_0 = arith.constant 0 : i32
    %c0_i32_1 = arith.constant 0 : i32
    return %c0_i32, %c0_i32_0 : i32, i32
  }
  func.func @transform_6(%arg0: i32) -> (i32, i32) {
    %c0_i32 = arith.constant 0 : i32
    %c0_i32_0 = arith.constant 0 : i32
    %c0_i32_1 = arith.constant 0 : i32
    return %c0_i32, %c0_i32_0 : i32, i32
  }
  func.func @transform_7(%arg0: i32) -> (i32, i32) {
    %c0_i32 = arith.constant 0 : i32
    %c0_i32_0 = arith.constant 0 : i32
    %c0_i32_1 = arith.constant 0 : i32
    return %c0_i32, %c0_i32_0 : i32, i32
  }
  func.func @transform_8(%arg0: i32) -> (i32, i32, i32) {
    %c0_i32 = arith.constant 0 : i32
    %c0_i32_0 = arith.constant 0 : i32
    %c0_i32_1 = arith.constant 0 : i32
    %c0_i32_2 = arith.constant 0 : i32
    return %c0_i32, %c0_i32_0, %c0_i32_1 : i32, i32, i32
  }
  func.func @transform_9(%arg0: i32) -> (i32, i32, i32) {
    %c0_i32 = arith.constant 0 : i32
    %c0_i32_0 = arith.constant 0 : i32
    %c0_i32_1 = arith.constant 0 : i32
    %c0_i32_2 = arith.constant 0 : i32
    return %c0_i32, %c0_i32_0, %c0_i32_1 : i32, i32, i32
  }
  func.func @transform_10(%arg0: i32) -> (i32, i32) {
    %c0_i32 = arith.constant 0 : i32
    %c0_i32_0 = arith.constant 0 : i32
    %c0_i32_1 = arith.constant 0 : i32
    return %c0_i32, %c0_i32_0 : i32, i32
  }
  func.func @transform_11(%arg0: i32) -> (i32, i32) {
    %c0_i32 = arith.constant 0 : i32
    %c0_i32_0 = arith.constant 0 : i32
    %c0_i32_1 = arith.constant 0 : i32
    return %c0_i32, %c0_i32_0 : i32, i32
  }
  func.func @transform_12(%arg0: i32) -> (i32, i32) {
    %c0_i32 = arith.constant 0 : i32
    %c0_i32_0 = arith.constant 0 : i32
    %c0_i32_1 = arith.constant 0 : i32
    return %c0_i32, %c0_i32_0 : i32, i32
  }
  func.func @transform_13(%arg0: i32) -> (i32, i32) {
    %c0_i32 = arith.constant 0 : i32
    %c0_i32_0 = arith.constant 0 : i32
    %c0_i32_1 = arith.constant 0 : i32
    return %c0_i32, %c0_i32_0 : i32, i32
  }
  func.func @transform_14(%arg0: i32) -> (i32, i32) {
    %c0_i32 = arith.constant 0 : i32
    %c0_i32_0 = arith.constant 0 : i32
    %c0_i32_1 = arith.constant 0 : i32
    return %c0_i32, %c0_i32_0 : i32, i32
  }
  func.func @transform_15(%arg0: i32) -> (i32, i32) {
    %c0_i32 = arith.constant 0 : i32
    %c0_i32_0 = arith.constant 0 : i32
    %c0_i32_1 = arith.constant 0 : i32
    return %c0_i32, %c0_i32_0 : i32, i32
  }
  func.func @transform_16(%arg0: i32) -> (i32, i32) {
    %c0_i32 = arith.constant 0 : i32
    %c0_i32_0 = arith.constant 0 : i32
    %c0_i32_1 = arith.constant 0 : i32
    return %c0_i32, %c0_i32_0 : i32, i32
  }
  func.func @transform_17(%arg0: i32) -> (i32, i32, i32) {
    %c0_i32 = arith.constant 0 : i32
    %c0_i32_0 = arith.constant 0 : i32
    %c0_i32_1 = arith.constant 0 : i32
    return %arg0, %c0_i32, %c0_i32_0 : i32, i32, i32
  }
  func.func @transform_18(%arg0: i32) -> (i32, i32, i32) {
    %c0_i32 = arith.constant 0 : i32
    %c0_i32_0 = arith.constant 0 : i32
    %c0_i32_1 = arith.constant 0 : i32
    return %arg0, %c0_i32, %c0_i32_0 : i32, i32, i32
  }
  func.func @transform_19(%arg0: i32) -> (i32, i32, i32) {
    %c0_i32 = arith.constant 0 : i32
    %c0_i32_0 = arith.constant 0 : i32
    %c0_i32_1 = arith.constant 0 : i32
    return %arg0, %c0_i32, %c0_i32_0 : i32, i32, i32
  }
  func.func @transform_20(%arg0: i32) -> (i32, i32, i32) {
    %c0_i32 = arith.constant 0 : i32
    %c0_i32_0 = arith.constant 0 : i32
    %c0_i32_1 = arith.constant 0 : i32
    return %arg0, %c0_i32, %c0_i32_0 : i32, i32, i32
  }
  func.func @transform_21(%arg0: i32) -> (i32, i32, i32) {
    %c0_i32 = arith.constant 0 : i32
    %c0_i32_0 = arith.constant 0 : i32
    %c0_i32_1 = arith.constant 0 : i32
    return %arg0, %c0_i32, %c0_i32_0 : i32, i32, i32
  }
  func.func @transform_22(%arg0: i32) -> (i32, i32, i32) {
    %c0_i32 = arith.constant 0 : i32
    %c0_i32_0 = arith.constant 0 : i32
    %c0_i32_1 = arith.constant 0 : i32
    return %arg0, %c0_i32, %c0_i32_0 : i32, i32, i32
  }
  func.func @transform_23(%arg0: i32) -> (i32, i32, i32) {
    %c0_i32 = arith.constant 0 : i32
    %c0_i32_0 = arith.constant 0 : i32
    %c0_i32_1 = arith.constant 0 : i32
    return %arg0, %c0_i32, %c0_i32_0 : i32, i32, i32
  }
}

module attributes {stable_mosaic.version = 11 : i64} {
  func.func @_wkv6_kernel(%arg0: i32, %arg1: i32, %arg2: memref<1x128xf32, #tpu.memory_space<vmem>>, %arg3: memref<1x8x128xf32, #tpu.memory_space<vmem>>, %arg4: memref<1x8x128xf32, #tpu.memory_space<vmem>>, %arg5: memref<1x8x128xf32, #tpu.memory_space<vmem>>, %arg6: memref<1x8x128xf32, #tpu.memory_space<vmem>>, %arg7: memref<1x2x64x64xf32, #tpu.memory_space<vmem>>, %arg8: memref<1x8x128xf32, #tpu.memory_space<vmem>>, %arg9: memref<1x2x64x64xf32, #tpu.memory_space<vmem>>, %arg10: memref<2x64x64xf32, #tpu.memory_space<vmem>>) attributes {dimension_semantics = [#tpu.dimension_semantics<parallel>, #tpu.dimension_semantics<arbitrary>], iteration_bounds = array<i64: 2, 1>, scalar_prefetch = 0 : i64, scratch_operands = 1 : i64, tpu.core_type = #tpu.core_type<tc>, window_params = [{pipeline_mode = #tpu.pipeline_mode<synchronous>, transform_indices = @transform_0, window_bounds = array<i64: 1, 128>}, {transform_indices = @transform_1, window_bounds = array<i64: 1, 8, 128>}, {transform_indices = @transform_2, window_bounds = array<i64: 1, 8, 128>}, {transform_indices = @transform_3, window_bounds = array<i64: 1, 8, 128>}, {transform_indices = @transform_4, window_bounds = array<i64: 1, 8, 128>}, {transform_indices = @transform_5, window_bounds = array<i64: 1, 2, 64, 64>}, {transform_indices = @transform_6, window_bounds = array<i64: 1, 8, 128>}, {transform_indices = @transform_7, window_bounds = array<i64: 1, 2, 64, 64>}]} {
    %c0_i32 = arith.constant 0 : i32
    %0 = arith.cmpi eq, %arg1, %c0_i32 : i32
    %1 = arith.extui %0 : i1 to i32
    %c0_i32_0 = arith.constant 0 : i32
    %2 = arith.cmpi ne, %1, %c0_i32_0 : i32
    scf.if %2 {
      %c0_55 = arith.constant 0 : index
      %c0_56 = arith.constant 0 : index
      %c0_57 = arith.constant 0 : index
      %c0_58 = arith.constant 0 : index
      %116 = vector.load %arg7[%c0_55, %c0_56, %c0_57, %c0_58] : memref<1x2x64x64xf32, #tpu.memory_space<vmem>>, vector<1x2x64x64xf32>
      %117 = vector.shape_cast %116 : vector<1x2x64x64xf32> to vector<2x64x64xf32>
      %c0_59 = arith.constant 0 : index
      %c0_60 = arith.constant 0 : index
      %c0_61 = arith.constant 0 : index
      %118 = vector.load %arg10[%c0_59, %c0_60, %c0_61] : memref<2x64x64xf32, #tpu.memory_space<vmem>>, vector<2x64x64xf32>
      tpu.vector_store %arg10[%c0_59, %c0_60, %c0_61], %117 {strides = array<i32>} : memref<2x64x64xf32, #tpu.memory_space<vmem>>, vector<2x64x64xf32>,
    } else {
    }
    %3 = tpu.iota {dimensions = array<i32: 0>} : vector<8x8xi32>
    %4 = tpu.iota {dimensions = array<i32: 1>} : vector<8x8xi32>
    %5 = arith.cmpi sgt, %3, %4 : vector<8x8xi32>
    %6 = arith.cmpi eq, %3, %4 : vector<8x8xi32>
    %7 = arith.cmpi sge, %3, %4 : vector<8x8xi32>
    %8 = arith.extui %7 : vector<8x8xi1> to vector<8x8xi32>
    %9 = arith.sitofp %8 : vector<8x8xi32> to vector<8x8xf32>
    %cst = arith.constant 1.000000e+00 : f32
    %10 = vector.broadcast %cst : f32 to vector<1x64xf32>
    %c0 = arith.constant 0 : index
    %c0_1 = arith.constant 0 : index
    %c0_2 = arith.constant 0 : index
    %11 = vector.load %arg3[%c0, %c0_1, %c0_2] : memref<1x8x128xf32, #tpu.memory_space<vmem>>, vector<1x8x128xf32>
    %12 = vector.shape_cast %11 : vector<1x8x128xf32> to vector<8x128xf32>
    %c0_3 = arith.constant 0 : index
    %c0_4 = arith.constant 0 : index
    %c0_5 = arith.constant 0 : index
    %13 = vector.load %arg4[%c0_3, %c0_4, %c0_5] : memref<1x8x128xf32, #tpu.memory_space<vmem>>, vector<1x8x128xf32>
    %14 = vector.shape_cast %13 : vector<1x8x128xf32> to vector<8x128xf32>
    %c0_6 = arith.constant 0 : index
    %c0_7 = arith.constant 0 : index
    %c0_8 = arith.constant 0 : index
    %15 = vector.load %arg5[%c0_6, %c0_7, %c0_8] : memref<1x8x128xf32, #tpu.memory_space<vmem>>, vector<1x8x128xf32>
    %16 = vector.shape_cast %15 : vector<1x8x128xf32> to vector<8x128xf32>
    %c0_9 = arith.constant 0 : index
    %c0_10 = arith.constant 0 : index
    %c0_11 = arith.constant 0 : index
    %17 = vector.load %arg6[%c0_9, %c0_10, %c0_11] : memref<1x8x128xf32, #tpu.memory_space<vmem>>, vector<1x8x128xf32>
    %18 = vector.shape_cast %17 : vector<1x8x128xf32> to vector<8x128xf32>
    %c0_12 = arith.constant 0 : index
    %c0_13 = arith.constant 0 : index
    %19 = vector.load %arg2[%c0_12, %c0_13] : memref<1x128xf32, #tpu.memory_space<vmem>>, vector<1x128xf32>
    %20 = vector.extract_strided_slice %12 {offsets = [0, 0], sizes = [8, 64], strides = [1, 1]} : vector<8x128xf32> to vector<8x64xf32>
    %21 = vector.extract_strided_slice %14 {offsets = [0, 0], sizes = [8, 64], strides = [1, 1]} : vector<8x128xf32> to vector<8x64xf32>
    %22 = vector.extract_strided_slice %16 {offsets = [0, 0], sizes = [8, 64], strides = [1, 1]} : vector<8x128xf32> to vector<8x64xf32>
    %23 = vector.extract_strided_slice %18 {offsets = [0, 0], sizes = [8, 64], strides = [1, 1]} : vector<8x128xf32> to vector<8x64xf32>
    %24 = vector.extract_strided_slice %19 {offsets = [0, 0], sizes = [1, 64], strides = [1, 1]} : vector<1x128xf32> to vector<1x64xf32>
    %c0_14 = arith.constant 0 : index
    %c0_15 = arith.constant 0 : index
    %c0_16 = arith.constant 0 : index
    %25 = vector.load %arg10[%c0_14, %c0_15, %c0_16] : memref<2x64x64xf32, #tpu.memory_space<vmem>>, vector<1x64x64xf32>
    %26 = vector.shape_cast %25 : vector<1x64x64xf32> to vector<64x64xf32>
    %cst_17 = arith.constant dense<0.000000e+00> : vector<8x64xf32>
    %27 = tpu.matmul %9, %23, %cst_17 {dimension_numbers = #tpu.dot_dimension_numbers<[1], [0], [0], [1], [0, 0, 1, 1], [], []>} : vector<8x8xf32>, vector<8x64xf32>, vector<8x64xf32> -> vector<8x64xf32>
    %28 = arith.subf %27, %23 : vector<8x64xf32>
    %29 = math.exp %28 : vector<8x64xf32>
    %30 = arith.mulf %20, %29 : vector<8x64xf32>
    %cst_18 = arith.constant 0.000000e+00 : f32
    %31 = vector.broadcast %cst_18 : f32 to vector<8x64xf32>
    %32 = arith.subf %31, %27 : vector<8x64xf32>
    %33 = math.exp %32 : vector<8x64xf32>
    %34 = arith.mulf %21, %33 : vector<8x64xf32>
    %cst_19 = arith.constant dense<0.000000e+00> : vector<8x8xf32>
    %35 = tpu.matmul %30, %34, %cst_19 {dimension_numbers = #tpu.dot_dimension_numbers<[1], [1], [0], [0], [0, 0, 1, 0], [], []>} : vector<8x64xf32>, vector<8x64xf32>, vector<8x8xf32> -> vector<8x8xf32>
    %36 = vector.broadcast %24 : vector<1x64xf32> to vector<8x64xf32>
    %37 = arith.mulf %20, %36 : vector<8x64xf32>
    %38 = arith.mulf %37, %21 : vector<8x64xf32>
    %cst_20 = arith.constant dense<0.000000e+00> : vector<8xf32>
    %39 = vector.multi_reduction <add>, %38, %cst_20 [1] : vector<8x64xf32> to vector<8xf32>
    %40 = vector.shape_cast %39 : vector<8xf32> to vector<8x1xf32>
    %cst_21 = arith.constant 0.000000e+00 : f32
    %41 = vector.broadcast %cst_21 : f32 to vector<8x8xf32>
    %42 = arith.select %5, %35, %41 : vector<8x8xi1>, vector<8x8xf32>
    %43 = vector.shape_cast %40 : vector<8x1xf32> to vector<8x1xf32>
    %44 = vector.broadcast %43 : vector<8x1xf32> to vector<8x8xf32>
    %45 = arith.select %6, %44, %42 : vector<8x8xi1>, vector<8x8xf32>
    %cst_22 = arith.constant dense<0.000000e+00> : vector<8x64xf32>
    %46 = tpu.matmul %45, %22, %cst_22 {dimension_numbers = #tpu.dot_dimension_numbers<[1], [0], [0], [1], [0, 0, 1, 1], [], []>} : vector<8x8xf32>, vector<8x64xf32>, vector<8x64xf32> -> vector<8x64xf32>
    %cst_23 = arith.constant dense<0.000000e+00> : vector<8x64xf32>
    %47 = tpu.matmul %30, %26, %cst_23 {dimension_numbers = #tpu.dot_dimension_numbers<[1], [0], [0], [1], [0, 0, 1, 1], [], []>} : vector<8x64xf32>, vector<64x64xf32>, vector<8x64xf32> -> vector<8x64xf32>
    %48 = arith.addf %46, %47 : vector<8x64xf32>
    %c0_24 = arith.constant 0 : index
    %c0_25 = arith.constant 0 : index
    %c0_26 = arith.constant 0 : index
    %49 = vector.load %arg8[%c0_24, %c0_25, %c0_26] : memref<1x8x128xf32, #tpu.memory_space<vmem>>, vector<1x8x64xf32>
    %50 = vector.shape_cast %49 : vector<1x8x64xf32> to vector<8x64xf32>
    %51 = vector.shape_cast %48 : vector<8x64xf32> to vector<1x8x64xf32>
    tpu.vector_store %arg8[%c0_24, %c0_25, %c0_26], %51 {strides = array<i32>} : memref<1x8x128xf32, #tpu.memory_space<vmem>>, vector<1x8x64xf32>,
    %52 = vector.extract_strided_slice %27 {offsets = [7, 0], sizes = [1, 64], strides = [1, 1]} : vector<8x64xf32> to vector<1x64xf32>
    %53 = math.exp %52 : vector<1x64xf32>
    %54 = vector.extract_strided_slice %27 {offsets = [7, 0], sizes = [1, 64], strides = [1, 1]} : vector<8x64xf32> to vector<1x64xf32>
    %55 = vector.broadcast %54 : vector<1x64xf32> to vector<8x64xf32>
    %56 = arith.subf %55, %27 : vector<8x64xf32>
    %57 = math.exp %56 : vector<8x64xf32>
    %58 = arith.mulf %21, %57 : vector<8x64xf32>
    %cst_27 = arith.constant dense<0.000000e+00> : vector<64x64xf32>
    %59 = tpu.matmul %58, %22, %cst_27 {dimension_numbers = #tpu.dot_dimension_numbers<[0], [0], [1], [1], [0, 1, 1, 1], [], []>} : vector<8x64xf32>, vector<8x64xf32>, vector<64x64xf32> -> vector<64x64xf32>
    %cst_28 = arith.constant dense<0.000000e+00> : vector<64x64xf32>
    %60 = tpu.matmul %53, %10, %cst_28 {dimension_numbers = #tpu.dot_dimension_numbers<[0], [0], [1], [1], [0, 1, 1, 1], [], []>} : vector<1x64xf32>, vector<1x64xf32>, vector<64x64xf32> -> vector<64x64xf32>
    %61 = arith.mulf %60, %26 : vector<64x64xf32>
    %62 = arith.addf %61, %59 : vector<64x64xf32>
    %c0_29 = arith.constant 0 : index
    %c0_30 = arith.constant 0 : index
    %c0_31 = arith.constant 0 : index
    %63 = vector.load %arg10[%c0_29, %c0_30, %c0_31] : memref<2x64x64xf32, #tpu.memory_space<vmem>>, vector<1x64x64xf32>
    %64 = vector.shape_cast %63 : vector<1x64x64xf32> to vector<64x64xf32>
    %65 = vector.shape_cast %62 : vector<64x64xf32> to vector<1x64x64xf32>
    tpu.vector_store %arg10[%c0_29, %c0_30, %c0_31], %65 {strides = array<i32>} : memref<2x64x64xf32, #tpu.memory_space<vmem>>, vector<1x64x64xf32>,
    %66 = vector.extract_strided_slice %12 {offsets = [0, 64], sizes = [8, 64], strides = [1, 1]} : vector<8x128xf32> to vector<8x64xf32>
    %67 = vector.extract_strided_slice %14 {offsets = [0, 64], sizes = [8, 64], strides = [1, 1]} : vector<8x128xf32> to vector<8x64xf32>
    %68 = vector.extract_strided_slice %16 {offsets = [0, 64], sizes = [8, 64], strides = [1, 1]} : vector<8x128xf32> to vector<8x64xf32>
    %69 = vector.extract_strided_slice %18 {offsets = [0, 64], sizes = [8, 64], strides = [1, 1]} : vector<8x128xf32> to vector<8x64xf32>
    %70 = vector.extract_strided_slice %19 {offsets = [0, 64], sizes = [1, 64], strides = [1, 1]} : vector<1x128xf32> to vector<1x64xf32>
    %c1 = arith.constant 1 : index
    %c0_32 = arith.constant 0 : index
    %c0_33 = arith.constant 0 : index
    %71 = vector.load %arg10[%c1, %c0_32, %c0_33] : memref<2x64x64xf32, #tpu.memory_space<vmem>>, vector<1x64x64xf32>
    %72 = vector.shape_cast %71 : vector<1x64x64xf32> to vector<64x64xf32>
    %cst_34 = arith.constant dense<0.000000e+00> : vector<8x64xf32>
    %73 = tpu.matmul %9, %69, %cst_34 {dimension_numbers = #tpu.dot_dimension_numbers<[1], [0], [0], [1], [0, 0, 1, 1], [], []>} : vector<8x8xf32>, vector<8x64xf32>, vector<8x64xf32> -> vector<8x64xf32>
    %74 = arith.subf %73, %69 : vector<8x64xf32>
    %75 = math.exp %74 : vector<8x64xf32>
    %76 = arith.mulf %66, %75 : vector<8x64xf32>
    %cst_35 = arith.constant 0.000000e+00 : f32
    %77 = vector.broadcast %cst_35 : f32 to vector<8x64xf32>
    %78 = arith.subf %77, %73 : vector<8x64xf32>
    %79 = math.exp %78 : vector<8x64xf32>
    %80 = arith.mulf %67, %79 : vector<8x64xf32>
    %cst_36 = arith.constant dense<0.000000e+00> : vector<8x8xf32>
    %81 = tpu.matmul %76, %80, %cst_36 {dimension_numbers = #tpu.dot_dimension_numbers<[1], [1], [0], [0], [0, 0, 1, 0], [], []>} : vector<8x64xf32>, vector<8x64xf32>, vector<8x8xf32> -> vector<8x8xf32>
    %82 = vector.broadcast %70 : vector<1x64xf32> to vector<8x64xf32>
    %83 = arith.mulf %66, %82 : vector<8x64xf32>
    %84 = arith.mulf %83, %67 : vector<8x64xf32>
    %cst_37 = arith.constant dense<0.000000e+00> : vector<8xf32>
    %85 = vector.multi_reduction <add>, %84, %cst_37 [1] : vector<8x64xf32> to vector<8xf32>
    %86 = vector.shape_cast %85 : vector<8xf32> to vector<8x1xf32>
    %cst_38 = arith.constant 0.000000e+00 : f32
    %87 = vector.broadcast %cst_38 : f32 to vector<8x8xf32>
    %88 = arith.select %5, %81, %87 : vector<8x8xi1>, vector<8x8xf32>
    %89 = vector.shape_cast %86 : vector<8x1xf32> to vector<8x1xf32>
    %90 = vector.broadcast %89 : vector<8x1xf32> to vector<8x8xf32>
    %91 = arith.select %6, %90, %88 : vector<8x8xi1>, vector<8x8xf32>
    %cst_39 = arith.constant dense<0.000000e+00> : vector<8x64xf32>
    %92 = tpu.matmul %91, %68, %cst_39 {dimension_numbers = #tpu.dot_dimension_numbers<[1], [0], [0], [1], [0, 0, 1, 1], [], []>} : vector<8x8xf32>, vector<8x64xf32>, vector<8x64xf32> -> vector<8x64xf32>
    %cst_40 = arith.constant dense<0.000000e+00> : vector<8x64xf32>
    %93 = tpu.matmul %76, %72, %cst_40 {dimension_numbers = #tpu.dot_dimension_numbers<[1], [0], [0], [1], [0, 0, 1, 1], [], []>} : vector<8x64xf32>, vector<64x64xf32>, vector<8x64xf32> -> vector<8x64xf32>
    %94 = arith.addf %92, %93 : vector<8x64xf32>
    %c0_41 = arith.constant 0 : index
    %c0_42 = arith.constant 0 : index
    %c64 = arith.constant 64 : index
    %95 = vector.load %arg8[%c0_41, %c0_42, %c64] : memref<1x8x128xf32, #tpu.memory_space<vmem>>, vector<1x8x64xf32>
    %96 = vector.shape_cast %95 : vector<1x8x64xf32> to vector<8x64xf32>
    %97 = vector.shape_cast %94 : vector<8x64xf32> to vector<1x8x64xf32>
    tpu.vector_store %arg8[%c0_41, %c0_42, %c64], %97 {strides = array<i32>} : memref<1x8x128xf32, #tpu.memory_space<vmem>>, vector<1x8x64xf32>,
    %98 = vector.extract_strided_slice %73 {offsets = [7, 0], sizes = [1, 64], strides = [1, 1]} : vector<8x64xf32> to vector<1x64xf32>
    %99 = math.exp %98 : vector<1x64xf32>
    %100 = vector.extract_strided_slice %73 {offsets = [7, 0], sizes = [1, 64], strides = [1, 1]} : vector<8x64xf32> to vector<1x64xf32>
    %101 = vector.broadcast %100 : vector<1x64xf32> to vector<8x64xf32>
    %102 = arith.subf %101, %73 : vector<8x64xf32>
    %103 = math.exp %102 : vector<8x64xf32>
    %104 = arith.mulf %67, %103 : vector<8x64xf32>
    %cst_43 = arith.constant dense<0.000000e+00> : vector<64x64xf32>
    %105 = tpu.matmul %104, %68, %cst_43 {dimension_numbers = #tpu.dot_dimension_numbers<[0], [0], [1], [1], [0, 1, 1, 1], [], []>} : vector<8x64xf32>, vector<8x64xf32>, vector<64x64xf32> -> vector<64x64xf32>
    %cst_44 = arith.constant dense<0.000000e+00> : vector<64x64xf32>
    %106 = tpu.matmul %99, %10, %cst_44 {dimension_numbers = #tpu.dot_dimension_numbers<[0], [0], [1], [1], [0, 1, 1, 1], [], []>} : vector<1x64xf32>, vector<1x64xf32>, vector<64x64xf32> -> vector<64x64xf32>
    %107 = arith.mulf %106, %72 : vector<64x64xf32>
    %108 = arith.addf %107, %105 : vector<64x64xf32>
    %c1_45 = arith.constant 1 : index
    %c0_46 = arith.constant 0 : index
    %c0_47 = arith.constant 0 : index
    %109 = vector.load %arg10[%c1_45, %c0_46, %c0_47] : memref<2x64x64xf32, #tpu.memory_space<vmem>>, vector<1x64x64xf32>
    %110 = vector.shape_cast %109 : vector<1x64x64xf32> to vector<64x64xf32>
    %111 = vector.shape_cast %108 : vector<64x64xf32> to vector<1x64x64xf32>
    tpu.vector_store %arg10[%c1_45, %c0_46, %c0_47], %111 {strides = array<i32>} : memref<2x64x64xf32, #tpu.memory_space<vmem>>, vector<1x64x64xf32>,
    %c0_48 = arith.constant 0 : index
    %c0_49 = arith.constant 0 : index
    %c0_50 = arith.constant 0 : index
    %112 = vector.load %arg10[%c0_48, %c0_49, %c0_50] : memref<2x64x64xf32, #tpu.memory_space<vmem>>, vector<2x64x64xf32>
    %c0_51 = arith.constant 0 : index
    %c0_52 = arith.constant 0 : index
    %c0_53 = arith.constant 0 : index
    %c0_54 = arith.constant 0 : index
    %113 = vector.load %arg9[%c0_51, %c0_52, %c0_53, %c0_54] : memref<1x2x64x64xf32, #tpu.memory_space<vmem>>, vector<1x2x64x64xf32>
    %114 = vector.shape_cast %113 : vector<1x2x64x64xf32> to vector<2x64x64xf32>
    %115 = vector.shape_cast %112 : vector<2x64x64xf32> to vector<1x2x64x64xf32>
    tpu.vector_store %arg9[%c0_51, %c0_52, %c0_53, %c0_54], %115 {strides = array<i32>} : memref<1x2x64x64xf32, #tpu.memory_space<vmem>>, vector<1x2x64x64xf32>,
    return
  }
  func.func @transform_0(%arg0: i32, %arg1: i32) -> (i32, i32) {
    %c0_i32 = arith.constant 0 : i32
    %c0_i32_0 = arith.constant 0 : i32
    %c0_i32_1 = arith.constant 0 : i32
    return %c0_i32, %c0_i32_0 : i32, i32
  }
  func.func @transform_1(%arg0: i32, %arg1: i32) -> (i32, i32, i32) {
    %c0_i32 = arith.constant 0 : i32
    %c0_i32_0 = arith.constant 0 : i32
    return %arg0, %arg1, %c0_i32 : i32, i32, i32
  }
  func.func @transform_2(%arg0: i32, %arg1: i32) -> (i32, i32, i32) {
    %c0_i32 = arith.constant 0 : i32
    %c0_i32_0 = arith.constant 0 : i32
    return %arg0, %arg1, %c0_i32 : i32, i32, i32
  }
  func.func @transform_3(%arg0: i32, %arg1: i32) -> (i32, i32, i32) {
    %c0_i32 = arith.constant 0 : i32
    %c0_i32_0 = arith.constant 0 : i32
    return %arg0, %arg1, %c0_i32 : i32, i32, i32
  }
  func.func @transform_4(%arg0: i32, %arg1: i32) -> (i32, i32, i32) {
    %c0_i32 = arith.constant 0 : i32
    %c0_i32_0 = arith.constant 0 : i32
    return %arg0, %arg1, %c0_i32 : i32, i32, i32
  }
  func.func @transform_5(%arg0: i32, %arg1: i32) -> (i32, i32, i32, i32) {
    %c0_i32 = arith.constant 0 : i32
    %c0_i32_0 = arith.constant 0 : i32
    %c0_i32_1 = arith.constant 0 : i32
    %c0_i32_2 = arith.constant 0 : i32
    return %arg0, %c0_i32, %c0_i32_0, %c0_i32_1 : i32, i32, i32, i32
  }
  func.func @transform_6(%arg0: i32, %arg1: i32) -> (i32, i32, i32) {
    %c0_i32 = arith.constant 0 : i32
    %c0_i32_0 = arith.constant 0 : i32
    return %arg0, %arg1, %c0_i32 : i32, i32, i32
  }
  func.func @transform_7(%arg0: i32, %arg1: i32) -> (i32, i32, i32, i32) {
    %c0_i32 = arith.constant 0 : i32
    %c0_i32_0 = arith.constant 0 : i32
    %c0_i32_1 = arith.constant 0 : i32
    %c0_i32_2 = arith.constant 0 : i32
    return %arg0, %c0_i32, %c0_i32_0, %c0_i32_1 : i32, i32, i32, i32
  }
}

module attributes {stable_mosaic.version = 11 : i64} {
  func.func @_tmix_out_kernel(%arg0: i32, %arg1: memref<1x8x128xf32, #tpu.memory_space<vmem>>, %arg2: memref<1x8x128xf32, #tpu.memory_space<vmem>>, %arg3: memref<1x8x128xf32, #tpu.memory_space<vmem>>, %arg4: memref<1x128xf32, #tpu.memory_space<vmem>>, %arg5: memref<1x128xf32, #tpu.memory_space<vmem>>, %arg6: memref<128x128xbf16, #tpu.memory_space<vmem>>, %arg7: memref<1x8x128xf32, #tpu.memory_space<vmem>>, %arg8: memref<8x128xf32, #tpu.memory_space<vmem>>) attributes {dimension_semantics = [#tpu.dimension_semantics<parallel>], iteration_bounds = array<i64: 2>, scalar_prefetch = 0 : i64, scratch_operands = 1 : i64, tpu.core_type = #tpu.core_type<tc>, window_params = [{transform_indices = @transform_0, window_bounds = array<i64: 1, 8, 128>}, {transform_indices = @transform_1, window_bounds = array<i64: 1, 8, 128>}, {transform_indices = @transform_2, window_bounds = array<i64: 1, 8, 128>}, {pipeline_mode = #tpu.pipeline_mode<synchronous>, transform_indices = @transform_3, window_bounds = array<i64: 1, 128>}, {pipeline_mode = #tpu.pipeline_mode<synchronous>, transform_indices = @transform_4, window_bounds = array<i64: 1, 128>}, {pipeline_mode = #tpu.pipeline_mode<synchronous>, transform_indices = @transform_5, window_bounds = array<i64: 128, 128>}, {transform_indices = @transform_6, window_bounds = array<i64: 1, 8, 128>}]} {
    %c0 = arith.constant 0 : index
    %c0_0 = arith.constant 0 : index
    %c0_1 = arith.constant 0 : index
    %0 = vector.load %arg1[%c0, %c0_0, %c0_1] : memref<1x8x128xf32, #tpu.memory_space<vmem>>, vector<1x8x128xf32>
    %1 = vector.shape_cast %0 : vector<1x8x128xf32> to vector<8x128xf32>
    %2 = vector.extract_strided_slice %1 {offsets = [0, 0], sizes = [8, 64], strides = [1, 1]} : vector<8x128xf32> to vector<8x64xf32>
    %cst = arith.constant dense<0.000000e+00> : vector<8xf32>
    %3 = vector.multi_reduction <add>, %2, %cst [1] : vector<8x64xf32> to vector<8xf32>
    %4 = vector.shape_cast %3 : vector<8xf32> to vector<8x1xf32>
    %cst_2 = arith.constant 6.400000e+01 : f32
    %5 = vector.broadcast %cst_2 : f32 to vector<8x1xf32>
    %6 = arith.divf %4, %5 : vector<8x1xf32>
    %7 = vector.broadcast %6 : vector<8x1xf32> to vector<8x64xf32>
    %8 = arith.subf %2, %7 : vector<8x64xf32>
    %9 = arith.mulf %8, %8 : vector<8x64xf32>
    %cst_3 = arith.constant dense<0.000000e+00> : vector<8xf32>
    %10 = vector.multi_reduction <add>, %9, %cst_3 [1] : vector<8x64xf32> to vector<8xf32>
    %11 = vector.shape_cast %10 : vector<8xf32> to vector<8x1xf32>
    %cst_4 = arith.constant 6.400000e+01 : f32
    %12 = vector.broadcast %cst_4 : f32 to vector<8x1xf32>
    %13 = arith.divf %11, %12 : vector<8x1xf32>
    %cst_5 = arith.constant 6.400000e-04 : f32
    %14 = vector.broadcast %cst_5 : f32 to vector<8x1xf32>
    %15 = arith.addf %13, %14 : vector<8x1xf32>
    %16 = math.rsqrt %15 : vector<8x1xf32>
    %17 = vector.broadcast %16 : vector<8x1xf32> to vector<8x64xf32>
    %18 = arith.mulf %8, %17 : vector<8x64xf32>
    %c0_6 = arith.constant 0 : index
    %c0_7 = arith.constant 0 : index
    %19 = vector.load %arg8[%c0_6, %c0_7] : memref<8x128xf32, #tpu.memory_space<vmem>>, vector<8x64xf32>
    tpu.vector_store %arg8[%c0_6, %c0_7], %18 {strides = array<i32>} : memref<8x128xf32, #tpu.memory_space<vmem>>, vector<8x64xf32>,
    %20 = vector.extract_strided_slice %1 {offsets = [0, 64], sizes = [8, 64], strides = [1, 1]} : vector<8x128xf32> to vector<8x64xf32>
    %cst_8 = arith.constant dense<0.000000e+00> : vector<8xf32>
    %21 = vector.multi_reduction <add>, %20, %cst_8 [1] : vector<8x64xf32> to vector<8xf32>
    %22 = vector.shape_cast %21 : vector<8xf32> to vector<8x1xf32>
    %cst_9 = arith.constant 6.400000e+01 : f32
    %23 = vector.broadcast %cst_9 : f32 to vector<8x1xf32>
    %24 = arith.divf %22, %23 : vector<8x1xf32>
    %25 = vector.broadcast %24 : vector<8x1xf32> to vector<8x64xf32>
    %26 = arith.subf %20, %25 : vector<8x64xf32>
    %27 = arith.mulf %26, %26 : vector<8x64xf32>
    %cst_10 = arith.constant dense<0.000000e+00> : vector<8xf32>
    %28 = vector.multi_reduction <add>, %27, %cst_10 [1] : vector<8x64xf32> to vector<8xf32>
    %29 = vector.shape_cast %28 : vector<8xf32> to vector<8x1xf32>
    %cst_11 = arith.constant 6.400000e+01 : f32
    %30 = vector.broadcast %cst_11 : f32 to vector<8x1xf32>
    %31 = arith.divf %29, %30 : vector<8x1xf32>
    %cst_12 = arith.constant 6.400000e-04 : f32
    %32 = vector.broadcast %cst_12 : f32 to vector<8x1xf32>
    %33 = arith.addf %31, %32 : vector<8x1xf32>
    %34 = math.rsqrt %33 : vector<8x1xf32>
    %35 = vector.broadcast %34 : vector<8x1xf32> to vector<8x64xf32>
    %36 = arith.mulf %26, %35 : vector<8x64xf32>
    %c0_13 = arith.constant 0 : index
    %c64 = arith.constant 64 : index
    %37 = vector.load %arg8[%c0_13, %c64] : memref<8x128xf32, #tpu.memory_space<vmem>>, vector<8x64xf32>
    tpu.vector_store %arg8[%c0_13, %c64], %36 {strides = array<i32>} : memref<8x128xf32, #tpu.memory_space<vmem>>, vector<8x64xf32>,
    %c0_14 = arith.constant 0 : index
    %c0_15 = arith.constant 0 : index
    %38 = vector.load %arg8[%c0_14, %c0_15] : memref<8x128xf32, #tpu.memory_space<vmem>>, vector<8x128xf32>
    %c0_16 = arith.constant 0 : index
    %c0_17 = arith.constant 0 : index
    %39 = vector.load %arg4[%c0_16, %c0_17] : memref<1x128xf32, #tpu.memory_space<vmem>>, vector<1x128xf32>
    %40 = vector.broadcast %39 : vector<1x128xf32> to vector<8x128xf32>
    %41 = arith.mulf %38, %40 : vector<8x128xf32>
    %c0_18 = arith.constant 0 : index
    %c0_19 = arith.constant 0 : index
    %42 = vector.load %arg5[%c0_18, %c0_19] : memref<1x128xf32, #tpu.memory_space<vmem>>, vector<1x128xf32>
    %43 = vector.broadcast %42 : vector<1x128xf32> to vector<8x128xf32>
    %44 = arith.addf %41, %43 : vector<8x128xf32>
    %c0_20 = arith.constant 0 : index
    %c0_21 = arith.constant 0 : index
    %c0_22 = arith.constant 0 : index
    %45 = vector.load %arg2[%c0_20, %c0_21, %c0_22] : memref<1x8x128xf32, #tpu.memory_space<vmem>>, vector<1x8x128xf32>
    %46 = vector.shape_cast %45 : vector<1x8x128xf32> to vector<8x128xf32>
    %47 = arith.mulf %44, %46 : vector<8x128xf32>
    %48 = arith.truncf %47 : vector<8x128xf32> to vector<8x128xbf16>
    %c0_23 = arith.constant 0 : index
    %c0_24 = arith.constant 0 : index
    %49 = vector.load %arg6[%c0_23, %c0_24] : memref<128x128xbf16, #tpu.memory_space<vmem>>, vector<128x128xbf16>
    %cst_25 = arith.constant dense<0.000000e+00> : vector<8x128xf32>
    %50 = tpu.matmul %48, %49, %cst_25 {dimension_numbers = #tpu.dot_dimension_numbers<[1], [0], [0], [1], [0, 0, 1, 1], [], []>} : vector<8x128xbf16>, vector<128x128xbf16>, vector<8x128xf32> -> vector<8x128xf32>
    %c0_26 = arith.constant 0 : index
    %c0_27 = arith.constant 0 : index
    %c0_28 = arith.constant 0 : index
    %51 = vector.load %arg3[%c0_26, %c0_27, %c0_28] : memref<1x8x128xf32, #tpu.memory_space<vmem>>, vector<1x8x128xf32>
    %52 = vector.shape_cast %51 : vector<1x8x128xf32> to vector<8x128xf32>
    %53 = arith.addf %52, %50 : vector<8x128xf32>
    %c0_29 = arith.constant 0 : index
    %c0_30 = arith.constant 0 : index
    %c0_31 = arith.constant 0 : index
    %54 = vector.load %arg7[%c0_29, %c0_30, %c0_31] : memref<1x8x128xf32, #tpu.memory_space<vmem>>, vector<1x8x128xf32>
    %55 = vector.shape_cast %54 : vector<1x8x128xf32> to vector<8x128xf32>
    %56 = vector.shape_cast %53 : vector<8x128xf32> to vector<1x8x128xf32>
    tpu.vector_store %arg7[%c0_29, %c0_30, %c0_31], %56 {strides = array<i32>} : memref<1x8x128xf32, #tpu.memory_space<vmem>>, vector<1x8x128xf32>,
    return
  }
  func.func @transform_0(%arg0: i32) -> (i32, i32, i32) {
    %c0_i32 = arith.constant 0 : i32
    %c0_i32_0 = arith.constant 0 : i32
    %c0_i32_1 = arith.constant 0 : i32
    return %arg0, %c0_i32, %c0_i32_0 : i32, i32, i32
  }
  func.func @transform_1(%arg0: i32) -> (i32, i32, i32) {
    %c0_i32 = arith.constant 0 : i32
    %c0_i32_0 = arith.constant 0 : i32
    %c0_i32_1 = arith.constant 0 : i32
    return %arg0, %c0_i32, %c0_i32_0 : i32, i32, i32
  }
  func.func @transform_2(%arg0: i32) -> (i32, i32, i32) {
    %c0_i32 = arith.constant 0 : i32
    %c0_i32_0 = arith.constant 0 : i32
    %c0_i32_1 = arith.constant 0 : i32
    return %arg0, %c0_i32, %c0_i32_0 : i32, i32, i32
  }
  func.func @transform_3(%arg0: i32) -> (i32, i32) {
    %c0_i32 = arith.constant 0 : i32
    %c0_i32_0 = arith.constant 0 : i32
    %c0_i32_1 = arith.constant 0 : i32
    return %c0_i32, %c0_i32_0 : i32, i32
  }
  func.func @transform_4(%arg0: i32) -> (i32, i32) {
    %c0_i32 = arith.constant 0 : i32
    %c0_i32_0 = arith.constant 0 : i32
    %c0_i32_1 = arith.constant 0 : i32
    return %c0_i32, %c0_i32_0 : i32, i32
  }
  func.func @transform_5(%arg0: i32) -> (i32, i32) {
    %c0_i32 = arith.constant 0 : i32
    %c0_i32_0 = arith.constant 0 : i32
    %c0_i32_1 = arith.constant 0 : i32
    return %c0_i32, %c0_i32_0 : i32, i32
  }
  func.func @transform_6(%arg0: i32) -> (i32, i32, i32) {
    %c0_i32 = arith.constant 0 : i32
    %c0_i32_0 = arith.constant 0 : i32
    %c0_i32_1 = arith.constant 0 : i32
    return %arg0, %c0_i32, %c0_i32_0 : i32, i32, i32
  }
}

module attributes {stable_mosaic.version = 11 : i64} {
  func.func @_cmix_kernel(%arg0: i32, %arg1: memref<1x8x128xf32, #tpu.memory_space<vmem>>, %arg2: memref<1x1x128xf32, #tpu.memory_space<vmem>>, %arg3: memref<1x128xf32, #tpu.memory_space<vmem>>, %arg4: memref<1x128xf32, #tpu.memory_space<vmem>>, %arg5: memref<1x128xf32, #tpu.memory_space<vmem>>, %arg6: memref<1x128xf32, #tpu.memory_space<vmem>>, %arg7: memref<128x448xbf16, #tpu.memory_space<vmem>>, %arg8: memref<448x128xbf16, #tpu.memory_space<vmem>>, %arg9: memref<128x128xbf16, #tpu.memory_space<vmem>>, %arg10: memref<1x8x128xf32, #tpu.memory_space<vmem>>, %arg11: memref<1x1x128xf32, #tpu.memory_space<vmem>>) attributes {dimension_semantics = [#tpu.dimension_semantics<parallel>], iteration_bounds = array<i64: 2>, scalar_prefetch = 0 : i64, scratch_operands = 0 : i64, tpu.core_type = #tpu.core_type<tc>, window_params = [{transform_indices = @transform_0, window_bounds = array<i64: 1, 8, 128>}, {transform_indices = @transform_1, window_bounds = array<i64: 1, 1, 128>}, {pipeline_mode = #tpu.pipeline_mode<synchronous>, transform_indices = @transform_2, window_bounds = array<i64: 1, 128>}, {pipeline_mode = #tpu.pipeline_mode<synchronous>, transform_indices = @transform_3, window_bounds = array<i64: 1, 128>}, {pipeline_mode = #tpu.pipeline_mode<synchronous>, transform_indices = @transform_4, window_bounds = array<i64: 1, 128>}, {pipeline_mode = #tpu.pipeline_mode<synchronous>, transform_indices = @transform_5, window_bounds = array<i64: 1, 128>}, {pipeline_mode = #tpu.pipeline_mode<synchronous>, transform_indices = @transform_6, window_bounds = array<i64: 128, 448>}, {pipeline_mode = #tpu.pipeline_mode<synchronous>, transform_indices = @transform_7, window_bounds = array<i64: 448, 128>}, {pipeline_mode = #tpu.pipeline_mode<synchronous>, transform_indices = @transform_8, window_bounds = array<i64: 128, 128>}, {transform_indices = @transform_9, window_bounds = array<i64: 1, 8, 128>}, {transform_indices = @transform_10, window_bounds = array<i64: 1, 1, 128>}]} {
    %c0 = arith.constant 0 : index
    %c0_0 = arith.constant 0 : index
    %c0_1 = arith.constant 0 : index
    %0 = vector.load %arg1[%c0, %c0_0, %c0_1] : memref<1x8x128xf32, #tpu.memory_space<vmem>>, vector<1x8x128xf32>
    %1 = vector.shape_cast %0 : vector<1x8x128xf32> to vector<8x128xf32>
    %c0_2 = arith.constant 0 : index
    %c0_3 = arith.constant 0 : index
    %2 = vector.load %arg3[%c0_2, %c0_3] : memref<1x128xf32, #tpu.memory_space<vmem>>, vector<1x128xf32>
    %c0_4 = arith.constant 0 : index
    %c0_5 = arith.constant 0 : index
    %3 = vector.load %arg4[%c0_4, %c0_5] : memref<1x128xf32, #tpu.memory_space<vmem>>, vector<1x128xf32>
    %cst = arith.constant dense<0.000000e+00> : vector<8xf32>
    %4 = vector.multi_reduction <add>, %1, %cst [1] : vector<8x128xf32> to vector<8xf32>
    %5 = vector.shape_cast %4 : vector<8xf32> to vector<8x1xf32>
    %cst_6 = arith.constant 1.280000e+02 : f32
    %6 = vector.broadcast %cst_6 : f32 to vector<8x1xf32>
    %7 = arith.divf %5, %6 : vector<8x1xf32>
    %8 = vector.broadcast %7 : vector<8x1xf32> to vector<8x128xf32>
    %9 = arith.subf %1, %8 : vector<8x128xf32>
    %10 = arith.mulf %9, %9 : vector<8x128xf32>
    %cst_7 = arith.constant dense<0.000000e+00> : vector<8xf32>
    %11 = vector.multi_reduction <add>, %10, %cst_7 [1] : vector<8x128xf32> to vector<8xf32>
    %12 = vector.shape_cast %11 : vector<8xf32> to vector<8x1xf32>
    %cst_8 = arith.constant 1.280000e+02 : f32
    %13 = vector.broadcast %cst_8 : f32 to vector<8x1xf32>
    %14 = arith.divf %12, %13 : vector<8x1xf32>
    %cst_9 = arith.constant 9.99999974E-6 : f32
    %15 = vector.broadcast %cst_9 : f32 to vector<8x1xf32>
    %16 = arith.addf %14, %15 : vector<8x1xf32>
    %17 = math.rsqrt %16 : vector<8x1xf32>
    %18 = vector.broadcast %17 : vector<8x1xf32> to vector<8x128xf32>
    %19 = arith.mulf %9, %18 : vector<8x128xf32>
    %20 = vector.broadcast %2 : vector<1x128xf32> to vector<8x128xf32>
    %21 = arith.mulf %19, %20 : vector<8x128xf32>
    %22 = vector.broadcast %3 : vector<1x128xf32> to vector<8x128xf32>
    %23 = arith.addf %21, %22 : vector<8x128xf32>
    %c0_10 = arith.constant 0 : index
    %c0_11 = arith.constant 0 : index
    %c0_12 = arith.constant 0 : index
    %24 = vector.load %arg2[%c0_10, %c0_11, %c0_12] : memref<1x1x128xf32, #tpu.memory_space<vmem>>, vector<1x1x128xf32>
    %25 = vector.shape_cast %24 : vector<1x1x128xf32> to vector<1x128xf32>
    %c1_i32 = arith.constant 1 : i32
    %26 = tpu.dynamic_rotate %23 by %c1_i32 dim 0 : vector<8x128xf32>, i32 -> vector<8x128xf32>
    %27 = tpu.iota {dimensions = array<i32: 0>} : vector<8x128xi32>
    %c0_i32 = arith.constant 0 : i32
    %28 = vector.broadcast %c0_i32 : i32 to vector<8x128xi32>
    %29 = arith.cmpi eq, %27, %28 : vector<8x128xi32>
    %30 = vector.shape_cast %25 : vector<1x128xf32> to vector<1x128xf32>
    %31 = vector.broadcast %30 : vector<1x128xf32> to vector<8x128xf32>
    %32 = arith.select %29, %31, %26 : vector<8x128xi1>, vector<8x128xf32>
    %33 = arith.subf %32, %23 : vector<8x128xf32>
    %34 = vector.extract_strided_slice %23 {offsets = [7, 0], sizes = [1, 128], strides = [1, 1]} : vector<8x128xf32> to vector<1x128xf32>
    %c0_13 = arith.constant 0 : index
    %c0_14 = arith.constant 0 : index
    %c0_15 = arith.constant 0 : index
    %35 = vector.load %arg11[%c0_13, %c0_14, %c0_15] : memref<1x1x128xf32, #tpu.memory_space<vmem>>, vector<1x1x128xf32>
    %36 = vector.shape_cast %35 : vector<1x1x128xf32> to vector<1x128xf32>
    %37 = vector.shape_cast %34 : vector<1x128xf32> to vector<1x1x128xf32>
    tpu.vector_store %arg11[%c0_13, %c0_14, %c0_15], %37 {strides = array<i32>} : memref<1x1x128xf32, #tpu.memory_space<vmem>>, vector<1x1x128xf32>,
    %c0_16 = arith.constant 0 : index
    %c0_17 = arith.constant 0 : index
    %38 = vector.load %arg5[%c0_16, %c0_17] : memref<1x128xf32, #tpu.memory_space<vmem>>, vector<1x128xf32>
    %39 = vector.broadcast %38 : vector<1x128xf32> to vector<8x128xf32>
    %40 = arith.mulf %33, %39 : vector<8x128xf32>
    %41 = arith.addf %23, %40 : vector<8x128xf32>
    %42 = arith.truncf %41 : vector<8x128xf32> to vector<8x128xbf16>
    %c0_18 = arith.constant 0 : index
    %c0_19 = arith.constant 0 : index
    %43 = vector.load %arg6[%c0_18, %c0_19] : memref<1x128xf32, #tpu.memory_space<vmem>>, vector<1x128xf32>
    %44 = vector.broadcast %43 : vector<1x128xf32> to vector<8x128xf32>
    %45 = arith.mulf %33, %44 : vector<8x128xf32>
    %46 = arith.addf %23, %45 : vector<8x128xf32>
    %47 = arith.truncf %46 : vector<8x128xf32> to vector<8x128xbf16>
    %c0_20 = arith.constant 0 : index
    %c0_21 = arith.constant 0 : index
    %48 = vector.load %arg7[%c0_20, %c0_21] : memref<128x448xbf16, #tpu.memory_space<vmem>>, vector<128x448xbf16>
    %cst_22 = arith.constant dense<0.000000e+00> : vector<8x448xf32>
    %49 = tpu.matmul %42, %48, %cst_22 {dimension_numbers = #tpu.dot_dimension_numbers<[1], [0], [0], [1], [0, 0, 1, 1], [], []>} : vector<8x128xbf16>, vector<128x448xbf16>, vector<8x448xf32> -> vector<8x448xf32>
    %cst_23 = arith.constant 0.000000e+00 : f32
    %50 = vector.broadcast %cst_23 : f32 to vector<8x448xf32>
    %51 = arith.maximumf %49, %50 : vector<8x448xf32>
    %52 = arith.mulf %51, %51 : vector<8x448xf32>
    %53 = arith.truncf %52 : vector<8x448xf32> to vector<8x448xbf16>
    %c0_24 = arith.constant 0 : index
    %c0_25 = arith.constant 0 : index
    %54 = vector.load %arg8[%c0_24, %c0_25] : memref<448x128xbf16, #tpu.memory_space<vmem>>, vector<448x128xbf16>
    %cst_26 = arith.constant dense<0.000000e+00> : vector<8x128xf32>
    %55 = tpu.matmul %53, %54, %cst_26 {dimension_numbers = #tpu.dot_dimension_numbers<[1], [0], [0], [1], [0, 0, 1, 1], [], []>} : vector<8x448xbf16>, vector<448x128xbf16>, vector<8x128xf32> -> vector<8x128xf32>
    %c0_27 = arith.constant 0 : index
    %c0_28 = arith.constant 0 : index
    %56 = vector.load %arg9[%c0_27, %c0_28] : memref<128x128xbf16, #tpu.memory_space<vmem>>, vector<128x128xbf16>
    %cst_29 = arith.constant dense<0.000000e+00> : vector<8x128xf32>
    %57 = tpu.matmul %47, %56, %cst_29 {dimension_numbers = #tpu.dot_dimension_numbers<[1], [0], [0], [1], [0, 0, 1, 1], [], []>} : vector<8x128xbf16>, vector<128x128xbf16>, vector<8x128xf32> -> vector<8x128xf32>
    %58 = arith.negf %57 : vector<8x128xf32>
    %59 = math.exp %58 : vector<8x128xf32>
    %cst_30 = arith.constant 1.000000e+00 : f32
    %60 = vector.broadcast %cst_30 : f32 to vector<8x128xf32>
    %61 = arith.addf %60, %59 : vector<8x128xf32>
    %62 = arith.divf %60, %61 : vector<8x128xf32>
    %63 = arith.mulf %62, %55 : vector<8x128xf32>
    %64 = arith.addf %1, %63 : vector<8x128xf32>
    %c0_31 = arith.constant 0 : index
    %c0_32 = arith.constant 0 : index
    %c0_33 = arith.constant 0 : index
    %65 = vector.load %arg10[%c0_31, %c0_32, %c0_33] : memref<1x8x128xf32, #tpu.memory_space<vmem>>, vector<1x8x128xf32>
    %66 = vector.shape_cast %65 : vector<1x8x128xf32> to vector<8x128xf32>
    %67 = vector.shape_cast %64 : vector<8x128xf32> to vector<1x8x128xf32>
    tpu.vector_store %arg10[%c0_31, %c0_32, %c0_33], %67 {strides = array<i32>} : memref<1x8x128xf32, #tpu.memory_space<vmem>>, vector<1x8x128xf32>,
    return
  }
  func.func @transform_0(%arg0: i32) -> (i32, i32, i32) {
    %c0_i32 = arith.constant 0 : i32
    %c0_i32_0 = arith.constant 0 : i32
    %c0_i32_1 = arith.constant 0 : i32
    return %arg0, %c0_i32, %c0_i32_0 : i32, i32, i32
  }
  func.func @transform_1(%arg0: i32) -> (i32, i32, i32) {
    %c0_i32 = arith.constant 0 : i32
    %c0_i32_0 = arith.constant 0 : i32
    %c0_i32_1 = arith.constant 0 : i32
    return %arg0, %c0_i32, %c0_i32_0 : i32, i32, i32
  }
  func.func @transform_2(%arg0: i32) -> (i32, i32) {
    %c0_i32 = arith.constant 0 : i32
    %c0_i32_0 = arith.constant 0 : i32
    %c0_i32_1 = arith.constant 0 : i32
    return %c0_i32, %c0_i32_0 : i32, i32
  }
  func.func @transform_3(%arg0: i32) -> (i32, i32) {
    %c0_i32 = arith.constant 0 : i32
    %c0_i32_0 = arith.constant 0 : i32
    %c0_i32_1 = arith.constant 0 : i32
    return %c0_i32, %c0_i32_0 : i32, i32
  }
  func.func @transform_4(%arg0: i32) -> (i32, i32) {
    %c0_i32 = arith.constant 0 : i32
    %c0_i32_0 = arith.constant 0 : i32
    %c0_i32_1 = arith.constant 0 : i32
    return %c0_i32, %c0_i32_0 : i32, i32
  }
  func.func @transform_5(%arg0: i32) -> (i32, i32) {
    %c0_i32 = arith.constant 0 : i32
    %c0_i32_0 = arith.constant 0 : i32
    %c0_i32_1 = arith.constant 0 : i32
    return %c0_i32, %c0_i32_0 : i32, i32
  }
  func.func @transform_6(%arg0: i32) -> (i32, i32) {
    %c0_i32 = arith.constant 0 : i32
    %c0_i32_0 = arith.constant 0 : i32
    %c0_i32_1 = arith.constant 0 : i32
    return %c0_i32, %c0_i32_0 : i32, i32
  }
  func.func @transform_7(%arg0: i32) -> (i32, i32) {
    %c0_i32 = arith.constant 0 : i32
    %c0_i32_0 = arith.constant 0 : i32
    %c0_i32_1 = arith.constant 0 : i32
    return %c0_i32, %c0_i32_0 : i32, i32
  }
  func.func @transform_8(%arg0: i32) -> (i32, i32) {
    %c0_i32 = arith.constant 0 : i32
    %c0_i32_0 = arith.constant 0 : i32
    %c0_i32_1 = arith.constant 0 : i32
    return %c0_i32, %c0_i32_0 : i32, i32
  }
  func.func @transform_9(%arg0: i32) -> (i32, i32, i32) {
    %c0_i32 = arith.constant 0 : i32
    %c0_i32_0 = arith.constant 0 : i32
    %c0_i32_1 = arith.constant 0 : i32
    return %arg0, %c0_i32, %c0_i32_0 : i32, i32, i32
  }
  func.func @transform_10(%arg0: i32) -> (i32, i32, i32) {
    %c0_i32 = arith.constant 0 : i32
    %c0_i32_0 = arith.constant 0 : i32
    %c0_i32_1 = arith.constant 0 : i32
    return %arg0, %c0_i32, %c0_i32_0 : i32, i32, i32
  }
}

</mosaic_0001>

<llo_original>
// kernel: block_forward.6
$region0: #{block_forward.6}
  #allocation0 [shape = 'u32[]', space=smem, size = 0x4, offset = 0x4, fixed_abs, tag = 'smem constant byte address 0x4 - core index']
  #allocation1 [shape = 'u32[144,128]{1,0:T(1,128)}', space=vmem, size = 0x12000, scoped, tag = 'internal scratch']
  #allocation2 [shape = 'f32[8,128]{1,0:T(8,128)}', space=vmem, size = 0x1000, scoped, tag = 'scratch operand']
  %s0 = inlined_call_operand.vmem [shape: f32[2,8,128], index: 0, kind: input, shape index: {}]
  %s1 = inlined_call_operand.vmem [shape: f32[2,8,128], index: 1, kind: input, shape index: {}]
  %s2 = inlined_call_operand.vmem [shape: f32[2,8,128], index: 2, kind: input, shape index: {}]
  %s3 = inlined_call_operand.vmem [shape: f32[1,128], index: 3, kind: input, shape index: {}]
  %s4 = inlined_call_operand.vmem [shape: f32[1,128], index: 4, kind: input, shape index: {}]
  %s5 = inlined_call_operand.vmem [shape: bf16[128,128], index: 5, kind: input, shape index: {}]
  %s6 = inlined_call_operand.vmem [shape: f32[2,8,128], index: 6, kind: output, shape index: {}]
  %s7 = sld [smem:[#allocation0]]
  $region57: #{block_forward.6} parent=0
    _
  %s9 = ssub.s32 1, %s7
  %s10 = scalar_select 0, %s9, %s7
  loop: start=0, step=1, limit=4
  $region2: #{block_forward.6} parent=0 // loop_pre_header
    _
  $region3: #{block_forward.6} parent=0 // loop_header
    %s12 = sphi 0, %s16
    %p13 = scmp.ge.s32.totalorder %s12, 4
    %s22 = sphi 0, %s24
    %s25 = sphi 0, %s22
    %s26 = sphi 0, %s25
    %s42 = sphi 0, %s26
    %s48 = sphi 0, %s50
    %s51 = sphi 0, %s48
    %s52 = sphi 0, %s51
    %s68 = sphi 0, %s52
    %s74 = sphi 0, %s76
    %s77 = sphi 0, %s74
    %s78 = sphi 0, %s77
    %s94 = sphi 0, %s78
    %s98 = sphi 0, %s98
    %s100 = sphi 0, %s98
    %s101 = sphi 0, %s100
    %s115 = sphi 0, %s101
    %s119 = sphi 0, %s119
    %s121 = sphi 0, %s119
    %s122 = sphi 0, %s121
    %s136 = sphi 0, %s122
    %s140 = sphi 0, %s140
    %s142 = sphi 0, %s140
    %s143 = sphi 0, %s142
    %s157 = sphi 0, %s143
    %s163 = sphi 0, %s165
    %s166 = sphi 0, %s163
    %s167 = sphi 0, %s166
    %s183 = sphi 0, %s167
  $region4: #{block_forward.6} parent=0 // loop_header_branch
    %15 = sbr.rel (%p13) target = $region8
  $region5: #{block_forward.6} parent=0 // loop_body
    %s17 = ssub.s32 %s12, 1
    %s18 = ssub.s32 %s12, 2
    %s19 = sadd.s32 %s12, 1
    %s20 = ssub.s32 %s12, %s19
    %p21 = scmp.eq.s32.totalorder %s20, 0
    %s23 = sadd.s32 %s22, 1
    %s24 = scalar_select %p21, %s22, %s23
    %p27 = pneg %p21
    %p28 = scmp.eq.s32.totalorder %s12, 1
    %p29 = por %p27, %p28
    %p30 = scmp.ne.s32.totalorder %s22, %s25
    %p31 = scmp.eq.s32.totalorder %s12, 0
    %p32 = por %p30, %p31
    %p33 = scmp.ne.s32.totalorder %s22, %s25
    %p34 = scmp.eq.s32.totalorder %s17, 1
    %p35 = por %p33, %p34
    %p36 = scmp.ne.s32.totalorder %s25, %s26
    %p37 = scmp.eq.s32.totalorder %s17, 0
    %p38 = por %p36, %p37
    %p39 = scmp.ne.s32.totalorder %s25, %s26
    %p40 = scmp.eq.s32.totalorder %s18, 1
    %p41 = por %p39, %p40
    %p43 = scmp.ne.s32.totalorder %s26, %s42
    %p44 = scmp.eq.s32.totalorder %s18, 0
    %p45 = por %p43, %p44
    %s46 = ssub.s32 %s12, %s19
    %p47 = scmp.eq.s32.totalorder %s46, 0
    %s49 = sadd.s32 %s48, 1
    %s50 = scalar_select %p47, %s48, %s49
    %p53 = pneg %p47
    %p54 = scmp.eq.s32.totalorder %s12, 1
    %p55 = por %p53, %p54
    %p56 = scmp.ne.s32.totalorder %s48, %s51
    %p57 = scmp.eq.s32.totalorder %s12, 0
    %p58 = por %p56, %p57
    %p59 = scmp.ne.s32.totalorder %s48, %s51
    %p60 = scmp.eq.s32.totalorder %s17, 1
    %p61 = por %p59, %p60
    %p62 = scmp.ne.s32.totalorder %s51, %s52
    %p63 = scmp.eq.s32.totalorder %s17, 0
    %p64 = por %p62, %p63
    %p65 = scmp.ne.s32.totalorder %s51, %s52
    %p66 = scmp.eq.s32.totalorder %s18, 1
    %p67 = por %p65, %p66
    %p69 = scmp.ne.s32.totalorder %s52, %s68
    %p70 = scmp.eq.s32.totalorder %s18, 0
    %p71 = por %p69, %p70
    %s72 = ssub.s32 %s12, %s19
    %p73 = scmp.eq.s32.totalorder %s72, 0
    %s75 = sadd.s32 %s74, 1
    %s76 = scalar_select %p73, %s74, %s75
    %p79 = pneg %p73
    %p80 = scmp.eq.s32.totalorder %s12, 1
    %p81 = por %p79, %p80
    %p82 = scmp.ne.s32.totalorder %s74, %s77
    %p83 = scmp.eq.s32.totalorder %s12, 0
    %p84 = por %p82, %p83
    %p85 = scmp.ne.s32.totalorder %s74, %s77
    %p86 = scmp.eq.s32.totalorder %s17, 1
    %p87 = por %p85, %p86
    %p88 = scmp.ne.s32.totalorder %s77, %s78
    %p89 = scmp.eq.s32.totalorder %s17, 0
    %p90 = por %p88, %p89
    %p91 = scmp.ne.s32.totalorder %s77, %s78
    %p92 = scmp.eq.s32.totalorder %s18, 1
    %p93 = por %p91, %p92
    %p95 = scmp.ne.s32.totalorder %s78, %s94
    %p96 = scmp.eq.s32.totalorder %s18, 0
    %p97 = por %p95, %p96
    %s99 = sadd.s32 %s98, 1
    %p102 = scmp.eq.s32.totalorder %s12, 1
    %p103 = scmp.ne.s32.totalorder %s98, %s100
    %p104 = scmp.eq.s32.totalorder %s12, 0
    %p105 = por %p103, %p104
    %p106 = scmp.ne.s32.totalorder %s98, %s100
    %p107 = scmp.eq.s32.totalorder %s17, 1
    %p108 = por %p106, %p107
    %p109 = scmp.ne.s32.totalorder %s100, %s101
    %p110 = scmp.eq.s32.totalorder %s17, 0
    %p111 = por %p109, %p110
    %p112 = scmp.ne.s32.totalorder %s100, %s101
    %p113 = scmp.eq.s32.totalorder %s18, 1
    %p114 = por %p112, %p113
    %p116 = scmp.ne.s32.totalorder %s101, %s115
    %p117 = scmp.eq.s32.totalorder %s18, 0
    %p118 = por %p116, %p117
    %s120 = sadd.s32 %s119, 1
    %p123 = scmp.eq.s32.totalorder %s12, 1
    %p124 = scmp.ne.s32.totalorder %s119, %s121
    %p125 = scmp.eq.s32.totalorder %s12, 0
    %p126 = por %p124, %p125
    %p127 = scmp.ne.s32.totalorder %s119, %s121
    %p128 = scmp.eq.s32.totalorder %s17, 1
    %p129 = por %p127, %p128
    %p130 = scmp.ne.s32.totalorder %s121, %s122
    %p131 = scmp.eq.s32.totalorder %s17, 0
    %p132 = por %p130, %p131
    %p133 = scmp.ne.s32.totalorder %s121, %s122
    %p134 = scmp.eq.s32.totalorder %s18, 1
    %p135 = por %p133, %p134
    %p137 = scmp.ne.s32.totalorder %s122, %s136
    %p138 = scmp.eq.s32.totalorder %s18, 0
    %p139 = por %p137, %p138
    %s141 = sadd.s32 %s140, 1
    %p144 = scmp.eq.s32.totalorder %s12, 1
    %p145 = scmp.ne.s32.totalorder %s140, %s142
    %p146 = scmp.eq.s32.totalorder %s12, 0
    %p147 = por %p145, %p146
    %p148 = scmp.ne.s32.totalorder %s140, %s142
    %p149 = scmp.eq.s32.totalorder %s17, 1
    %p150 = por %p148, %p149
    %p151 = scmp.ne.s32.totalorder %s142, %s143
    %p152 = scmp.eq.s32.totalorder %s17, 0
    %p153 = por %p151, %p152
    %p154 = scmp.ne.s32.totalorder %s142, %s143
    %p155 = scmp.eq.s32.totalorder %s18, 1
    %p156 = por %p154, %p155
    %p158 = scmp.ne.s32.totalorder %s143, %s157
    %p159 = scmp.eq.s32.totalorder %s18, 0
    %p160 = por %p158, %p159
    %s161 = ssub.s32 %s12, %s19
    %p162 = scmp.eq.s32.totalorder %s161, 0
    %s164 = sadd.s32 %s163, 1
    %s165 = scalar_select %p162, %s163, %s164
    %p168 = pneg %p162
    %p169 = scmp.eq.s32.totalorder %s12, 1
    %p170 = por %p168, %p169
    %p171 = scmp.ne.s32.totalorder %s163, %s166
    %p172 = scmp.eq.s32.totalorder %s12, 0
    %p173 = por %p171, %p172
    %p174 = scmp.ne.s32.totalorder %s163, %s166
    %p175 = scmp.eq.s32.totalorder %s17, 1
    %p176 = por %p174, %p175
    %p177 = scmp.ne.s32.totalorder %s166, %s167
    %p178 = scmp.eq.s32.totalorder %s17, 0
    %p179 = por %p177, %p178
    %p180 = scmp.ne.s32.totalorder %s166, %s167
    %p181 = scmp.eq.s32.totalorder %s18, 1
    %p182 = por %p180, %p181
    %p184 = scmp.ne.s32.totalorder %s167, %s183
    %p185 = scmp.eq.s32.totalorder %s18, 0
    %p186 = por %p184, %p185
    %p187 = scmp.le.s32.totalorder 1, %s12
    %p188 = scmp.lt.s32.totalorder %s12, 3
    %p189 = pnand %p187, %p188
    %p190 = pneg %p189
    // Predicated region
    $region9: #{block_forward.6} parent=5 // pred_check
      _
    $region10: #{block_forward.6} parent=5 // pred_check_branch
      %192 = sbr.rel (%p189) target = $region12
    $region11: #{block_forward.6} parent=5 // pred_region
      %s193 = ssub.s32 %s12, 1
      // Predicated region
      $region13: #{block_forward.6} parent=11 // pred_check
        %p194 = pneg %p111
      $region14: #{block_forward.6} parent=11 // pred_check_branch
        %196 = sbr.rel (%p194) target = $region16
      $region15: #{block_forward.6} parent=11 // pred_region
        _
      $region16: #{block_forward.6} parent=11 // pred_fallthru
        _
      // Predicated region
      $region17: #{block_forward.6} parent=11 // pred_check
        %p197 = pneg %p132
      $region18: #{block_forward.6} parent=11 // pred_check_branch
        %199 = sbr.rel (%p197) target = $region20
      $region19: #{block_forward.6} parent=11 // pred_region
        _
      $region20: #{block_forward.6} parent=11 // pred_fallthru
        _
      // Predicated region
      $region21: #{block_forward.6} parent=11 // pred_check
        %p200 = pneg %p153
      $region22: #{block_forward.6} parent=11 // pred_check_branch
        %202 = sbr.rel (%p200) target = $region24
      $region23: #{block_forward.6} parent=11 // pred_region
        _
      $region24: #{block_forward.6} parent=11 // pred_fallthru
        _
    $region12: #{block_forward.6} parent=5 // pred_fallthru
      _
    %p203 = scmp.lt.s32.totalorder %s12, 2
    // Predicated region
    $region25: #{block_forward.6} parent=5 // pred_check
      %p204 = pneg %p203
    $region26: #{block_forward.6} parent=5 // pred_check_branch
      %206 = sbr.rel (%p204) target = $region28
    $region27: #{block_forward.6} parent=5 // pred_region
      // Predicated region
      $region29: #{block_forward.6} parent=27 // pred_check
        %p207 = pneg %p32
      $region30: #{block_forward.6} parent=27 // pred_check_branch
        %209 = sbr.rel (%p207) target = $region32
      $region31: #{block_forward.6} parent=27 // pred_region
        %p210 = scmp.lt.s32.totalorder %s12, 1
        %s211 = scalar_select %p210, %s12, 1
        %s212 = smul.addr %s211, 8
        %s213 = scalar_lea.vmem %s0, %s212
      $region32: #{block_forward.6} parent=27 // pred_fallthru
        _
      // Predicated region
      $region33: #{block_forward.6} parent=27 // pred_check
        %p214 = pneg %p58
      $region34: #{block_forward.6} parent=27 // pred_check_branch
        %216 = sbr.rel (%p214) target = $region36
      $region35: #{block_forward.6} parent=27 // pred_region
        %p217 = scmp.lt.s32.totalorder %s12, 1
        %s218 = scalar_select %p217, %s12, 1
        %s219 = smul.addr %s218, 8
        %s220 = scalar_lea.vmem %s1, %s219
      $region36: #{block_forward.6} parent=27 // pred_fallthru
        _
      // Predicated region
      $region37: #{block_forward.6} parent=27 // pred_check
        %p221 = pneg %p84
      $region38: #{block_forward.6} parent=27 // pred_check_branch
        %223 = sbr.rel (%p221) target = $region40
      $region39: #{block_forward.6} parent=27 // pred_region
        %p224 = scmp.lt.s32.totalorder %s12, 1
        %s225 = scalar_select %p224, %s12, 1
        %s226 = smul.addr %s225, 8
        %s227 = scalar_lea.vmem %s2, %s226
      $region40: #{block_forward.6} parent=27 // pred_fallthru
        _
    $region28: #{block_forward.6} parent=5 // pred_fallthru
      _
    %p228 = scmp.le.s32.totalorder 1, %s12
    %p229 = scmp.lt.s32.totalorder %s12, 3
    %p230 = pnand %p228, %p229
    %p231 = pneg %p230
    // Predicated region
    $region41: #{block_forward.6} parent=5 // pred_check
      _
    $region42: #{block_forward.6} parent=5 // pred_check_branch
      %233 = sbr.rel (%p230) target = $region44
    $region43: #{block_forward.6} parent=5 // pred_region
      %s234 = ssub.s32 %s12, 1
      %p235 = scmp.lt.s32.totalorder %s17, 1
      %s236 = scalar_select %p235, %s17, 1
      %s237 = smul.addr %s236, 8
      %s238 = scalar_lea.vmem %s0, %s237
      %p239 = pneg %p38
      %p240 = pneg %p35
      %p241 = scmp.lt.s32.totalorder %s17, 1
      %s242 = scalar_select %p241, %s17, 1
      %s243 = smul.addr %s242, 8
      %s244 = scalar_lea.vmem %s1, %s243
      %p245 = pneg %p64
      %p246 = pneg %p61
      %p247 = scmp.lt.s32.totalorder %s17, 1
      %s248 = scalar_select %p247, %s17, 1
      %s249 = smul.addr %s248, 8
      %s250 = scalar_lea.vmem %s2, %s249
      %p251 = pneg %p90
      %p252 = pneg %p87
      %p253 = pneg %p111
      %p254 = pneg %p108
      %p255 = pneg %p132
      %p256 = pneg %p129
      %p257 = pneg %p153
      %p258 = pneg %p150
      %p259 = pneg %p179
      %p260 = pneg %p176
      %p261 = scmp.lt.s32.totalorder %s17, 1
      %s262 = scalar_select %p261, %s17, 1
      %s263 = smul.addr %s262, 8
      %s264 = scalar_lea.vmem %s6, %s263
      %p265 = scmp.lt.s32.totalorder %s17, 1
      %s266 = scalar_select %p265, %s17, 1
      %s267 = smul.addr %s266, 8
      %s268 = scalar_lea.vmem %s0, %s267
      %p269 = scmp.lt.s32.totalorder %s17, 1
      %s270 = scalar_select %p269, %s17, 1
      %s271 = smul.addr %s270, 8
      %s272 = scalar_lea.vmem %s1, %s271
      %p273 = scmp.lt.s32.totalorder %s17, 1
      %s274 = scalar_select %p273, %s17, 1
      %s275 = smul.addr %s274, 8
      %s276 = scalar_lea.vmem %s2, %s275
      %p277 = scmp.lt.s32.totalorder %s17, 1
      %s278 = scalar_select %p277, %s17, 1
      %s279 = smul.addr %s278, 8
      %s280 = scalar_lea.vmem %s6, %s279
      %v282 = vld [vmem:[%s268] sm:$0xff]
      %vm283 = vcmask 523264
      %v284 = vsel %vm283, %v282, 0.0
      %285 = vadd.xlane.f32.xlu0 %v284
      %v286 = vpop.xlane.xlu0 %285
      %v287 = vrcp.pop 64.0
      %v288 = vmul.f32 %v286, %v287
      %v289 = vsub.f32 %v282, %v288
      %v290 = vmul.f32 %v289, %v289
      %v291 = vsel %vm283, %v290, 0.0
      %292 = vadd.xlane.f32.xlu0 %v291
      %v293 = vpop.xlane.xlu0 %292
      %v294 = vmul.f32 %v293, %v287
      %v295 = vadd.f32 %v294, 0.00064
      %v296 = vrsqrt.pop %v295
      %v297 = vmul.f32 %v289, %v296
      %298 = vst.msk [vmem:[#allocation2] sm:$0xff] %vm283, %v297
      %300 = vrot.lane.b32.xlu0 %v282, 64
      %v301 = vpop.permute.xlu0 %300
      %v303 = vsel %vm283, %v301, 0.0
      %304 = vadd.xlane.f32.xlu0 %v303
      %v305 = vpop.xlane.xlu0 %304
      %v306 = vmul.f32 %v305, %v287
      %v307 = vsub.f32 %v282, %v306
      %v308 = vmul.f32 %v307, %v307
      %310 = vrot.lane.b32.xlu0 %v308, 64
      %v311 = vpop.permute.xlu0 %310
      %v313 = vsel %vm283, %v311, 0.0
      %314 = vadd.xlane.f32.xlu0 %v313
      %v315 = vpop.xlane.xlu0 %314
      %v316 = vmul.f32 %v315, %v287
      %v317 = vadd.f32 %v316, 0.00064
      %v318 = vrsqrt.pop %v317
      %v319 = vmul.f32 %v307, %v318
      %vm320 = vcmask 1048064
      %321 = vst.msk [vmem:[#allocation2] sm:$0xff] %vm320, %v319
      %v322 = vld [vmem:[#allocation2] sm:$0xff]
      %v323 = vld [vmem:[%s3] sm:$0x1]
      %v325 = vlaneseq
      %v326 = vshrl.u32 %v325, 7
      %v327 = vsub.s32 0, %v326
      %v328 = vrot.slane %v323, %v327
      %v330 = vmul.f32 %v322, %v328
      %v331 = vld [vmem:[%s4] sm:$0x1]
      %v333 = vlaneseq
      %v334 = vshrl.u32 %v333, 7
      %v335 = vsub.s32 0, %v334
      %v336 = vrot.slane %v331, %v335
      %v338 = vadd.f32 %v330, %v336
      %v339 = vld [vmem:[%s272] sm:$0xff]
      %v340 = vmul.f32 %v338, %v339
      %v341 = vpack.c.bf16 %v340, %v340
      %v342 = vld [vmem:[%s5] sm:$0xf]
      %v343 = vld [vmem:[%s5 + $0x4] sm:$0xf]
      %v344 = vld [vmem:[%s5 + $0x8] sm:$0xf]
      %v345 = vld [vmem:[%s5 + $0xc] sm:$0xf]
      %v346 = vld [vmem:[%s5 + $0x10] sm:$0xf]
      %v347 = vld [vmem:[%s5 + $0x14] sm:$0xf]
      %v348 = vld [vmem:[%s5 + $0x18] sm:$0xf]
      %v349 = vld [vmem:[%s5 + $0x1c] sm:$0xf]
      %v350 = vld [vmem:[%s5 + $0x20] sm:$0xf]
      %v351 = vld [vmem:[%s5 + $0x24] sm:$0xf]
      %v352 = vld [vmem:[%s5 + $0x28] sm:$0xf]
      %v353 = vld [vmem:[%s5 + $0x2c] sm:$0xf]
      %v354 = vld [vmem:[%s5 + $0x30] sm:$0xf]
      %v355 = vld [vmem:[%s5 + $0x34] sm:$0xf]
      %v356 = vld [vmem:[%s5 + $0x38] sm:$0xf]
      %v357 = vld [vmem:[%s5 + $0x3c] sm:$0xf]
      %v374 = vunpack.c.l.b16 %v342
      %v375 = vunpack.c.l.b16 %v343
      %v376 = vunpack.c.l.b16 %v344
      %v377 = vunpack.c.l.b16 %v345
      %v378 = vunpack.c.l.b16 %v346
      %v379 = vunpack.c.l.b16 %v347
      %v380 = vunpack.c.l.b16 %v348
      %v381 = vunpack.c.l.b16 %v349
      %v382 = vunpack.c.l.b16 %v350
      %v383 = vunpack.c.l.b16 %v351
      %v384 = vunpack.c.l.b16 %v352
      %v385 = vunpack.c.l.b16 %v353
      %v386 = vunpack.c.l.b16 %v354
      %v387 = vunpack.c.l.b16 %v355
      %v388 = vunpack.c.l.b16 %v356
      %v389 = vunpack.c.l.b16 %v357
      %v390 = vpack.c.b16 %v375, %v374
      %v391 = vpack.c.b16 %v377, %v376
      %v392 = vpack.c.b16 %v379, %v378
      %v393 = vpack.c.b16 %v381, %v380
      %v394 = vpack.c.b16 %v383, %v382
      %v395 = vpack.c.b16 %v385, %v384
      %v396 = vpack.c.b16 %v387, %v386
      %v397 = vpack.c.b16 %v389, %v388
      %406 = vmatprep.subr.bf16.mxu0 0
      %407 = vmatpush1.bf16.msra.mxu0 %v390
      %408 = vmatprep.subr.bf16.mxu0 0
      %409 = vmatpush1.bf16.msra.mxu0 %v391
      %410 = vmatprep.subr.bf16.mxu0 0
      %411 = vmatpush1.bf16.msra.mxu0 %v392
      %412 = vmatprep.subr.bf16.mxu0 0
      %413 = vmatpush1.bf16.msra.mxu0 %v393
      %414 = vmatprep.subr.bf16.mxu0 0
      %415 = vmatpush1.bf16.msra.mxu0 %v394
      %416 = vmatprep.subr.bf16.mxu0 0
      %417 = vmatpush1.bf16.msra.mxu0 %v395
      %418 = vmatprep.subr.bf16.mxu0 0
      %419 = vmatpush1.bf16.msra.mxu0 %v396
      %420 = vmatprep.subr.bf16.mxu0 0
      %421 = vmatpush1.bf16.msra.mxu0 %v397
      %422 = vmatprep.subr.bf16.mxu0 0
      %423 = vmatpush1.bf16.msra.mxu0 0
      %424 = vmatprep.subr.bf16.mxu0 0
      %425 = vmatpush1.bf16.msra.mxu0 0
      %426 = vmatprep.subr.bf16.mxu0 0
      %427 = vmatpush1.bf16.msra.mxu0 0
      %428 = vmatprep.subr.bf16.mxu0 0
      %429 = vmatpush1.bf16.msra.mxu0 0
      %430 = vmatprep.subr.bf16.mxu0 0
      %431 = vmatpush1.bf16.msra.mxu0 0
      %432 = vmatprep.subr.bf16.mxu0 0
      %433 = vmatpush1.bf16.msra.mxu0 0
      %434 = vmatprep.subr.bf16.mxu0 0
      %435 = vmatpush1.bf16.msra.mxu0 0
      %436 = vmatprep.subr.bf16.mxu0 0
      %437 = vmatpush1.bf16.msra.mxu0 0
      %438 = vmatprep.mubr.bf16.mxu0 0
      %439 = vmatmul.mubr.bf16.gmra.mrb[0].mxu0 %v341
      %v440 = vpop.f32.mrb[0].mxu0
      %v441 = vadd.f32 0.0, %v440
      %v442 = vpop.f32.mrb[0].mxu0
      %v443 = vpop.f32.mrb[0].mxu0
      %v444 = vpop.f32.mrb[0].mxu0
      %445 = vdwg.mxu0
      %v446 = vld [vmem:[%s276] sm:$0xff]
      %v447 = vadd.f32 %v446, %v441
      %448 = vst [vmem:[%s280] sm:$0xff] %v447
      %p449 = scmp.lt.s32.totalorder %s17, 1
      %s450 = scalar_select %p449, %s17, 1
      %s451 = smul.addr %s450, 8
      %s452 = scalar_lea.vmem %s6, %s451
      // Predicated region
      $region45: #{block_forward.6} parent=43 // pred_check
        %p453 = pneg %p176
      $region46: #{block_forward.6} parent=43 // pred_check_branch
        %455 = sbr.rel (%p453) target = $region48
      $region47: #{block_forward.6} parent=43 // pred_region
        _
      $region48: #{block_forward.6} parent=43 // pred_fallthru
        _
    $region44: #{block_forward.6} parent=5 // pred_fallthru
      _
    %p456 = scmp.le.s32.totalorder 2, %s12
    // Predicated region
    $region49: #{block_forward.6} parent=5 // pred_check
      %p457 = pneg %p456
    $region50: #{block_forward.6} parent=5 // pred_check_branch
      %459 = sbr.rel (%p457) target = $region52
    $region51: #{block_forward.6} parent=5 // pred_region
      %s460 = ssub.s32 %s12, 2
      // Predicated region
      $region53: #{block_forward.6} parent=51 // pred_check
        %p461 = pneg %p182
      $region54: #{block_forward.6} parent=51 // pred_check_branch
        %463 = sbr.rel (%p461) target = $region56
      $region55: #{block_forward.6} parent=51 // pred_region
        %p464 = scmp.lt.s32.totalorder %s18, 1
        %s465 = scalar_select %p464, %s18, 1
        %s466 = smul.addr %s465, 8
        %s467 = scalar_lea.vmem %s6, %s466
      $region56: #{block_forward.6} parent=51 // pred_fallthru
        _
    $region52: #{block_forward.6} parent=5 // pred_fallthru
      _
  $region6: #{block_forward.6} parent=0 // loop_footer
    %s16 = sadd.s32 1, %s12
  $region7: #{block_forward.6} parent=0 // loop_footer_branch
    %11 = sbr.rel target = $region3
  $region8: #{block_forward.6} parent=0 // loop_exit
    _

// kernel: block_forward.5
$region0: #{block_forward.5}
  #allocation0 [shape = 'u32[]', space=smem, size = 0x4, offset = 0x4, fixed_abs, tag = 'smem constant byte address 0x4 - core index']
  #allocation1 [shape = 'u32[144,128]{1,0:T(1,128)}', space=vmem, size = 0x12000, scoped, tag = 'internal scratch']
  #allocation2 [shape = 'f32[2,64,64]{2,1,0:T(8,128)}', space=vmem, size = 0x10000, scoped, tag = 'scratch operand']
  %s0 = inlined_call_operand.vmem [shape: f32[1,128], index: 0, kind: input, shape index: {}]
  %s1 = inlined_call_operand.vmem [shape: f32[2,8,128], index: 1, kind: input, shape index: {}]
  %s2 = inlined_call_operand.vmem [shape: f32[2,8,128], index: 2, kind: input, shape index: {}]
  %s3 = inlined_call_operand.vmem [shape: f32[2,8,128], index: 3, kind: input, shape index: {}]
  %s4 = inlined_call_operand.vmem [shape: f32[2,8,128], index: 4, kind: input, shape index: {}]
  %s5 = inlined_call_operand.vmem [shape: f32[2,2,64,64], index: 5, kind: input, shape index: {}]
  %s6 = inlined_call_operand.vmem [shape: f32[2,8,128], index: 6, kind: output, shape index: {0}]
  %s7 = inlined_call_operand.hbm [shape: f32[2,2,64,64], index: 7, kind: output, shape index: {1}]
  %8 = xla_tuple %s6, %s7
  %s9 = sld [smem:[#allocation0]]
  $region69: #{block_forward.5} parent=0
    _
  %s11 = ssub.s32 1, %s9
  %s12 = scalar_select 0, %s11, %s9
  $region1: #{block_forward.5} parent=0
    #allocation3 [shape = 'u8[131072]{0}', space=vmem, size = 0x20000, scoped, tag = 'output window, operand 1']
    #allocation4 [shape = 's32[2]{0}', space=sflag, size = 0x8, scoped, tag = 'scoped memory for block_forward.5']
    %13 = vsyncpa [#allocation4], 0
    %s14 = scalar_lea.sflag [#allocation4], 1
    %15 = vsyncpa %s14, 0
    loop: start=0, step=1, limit=4
    $region2: #{block_forward.5} parent=1 // loop_pre_header
      _
    $region3: #{block_forward.5} parent=1 // loop_header
      %s17 = sphi 0, %s21
      %p18 = scmp.ge.s32.totalorder %s17, 4
      %s24 = sphi 0, %s36
      %s25 = sphi 0, %s32
      %s26 = sphi 0, %s24
      %s27 = sphi 0, %s25
      %s28 = sphi 0, %s26
      %s29 = sphi 0, %s27
      %s37 = sphi 0, %s37
      %s39 = sphi 0, %s37
      %s40 = sphi 0, %s39
      %s54 = sphi 0, %s40
      %s62 = sphi 0, %s64
      %s65 = sphi 0, %s62
      %s66 = sphi 0, %s65
      %s82 = sphi 0, %s66
      %s90 = sphi 0, %s92
      %s93 = sphi 0, %s90
      %s94 = sphi 0, %s93
      %s110 = sphi 0, %s94
      %s118 = sphi 0, %s120
      %s121 = sphi 0, %s118
      %s122 = sphi 0, %s121
      %s138 = sphi 0, %s122
      %s146 = sphi 0, %s148
      %s149 = sphi 0, %s146
      %s150 = sphi 0, %s149
      %s166 = sphi 0, %s150
      %s172 = sphi 0, %s174
      %s175 = sphi 0, %s172
      %s176 = sphi 0, %s175
      %s192 = sphi 0, %s176
      %s200 = sphi 0, %s202
      %s203 = sphi 0, %s200
      %s204 = sphi 0, %s203
      %s220 = sphi 0, %s204
      %s226 = sphi 0, %s228
      %s229 = sphi 0, %s226
      %s230 = sphi 0, %s229
      %s246 = sphi 0, %s230
    $region4: #{block_forward.5} parent=1 // loop_header_branch
      %20 = sbr.rel (%p18) target = $region8
    $region5: #{block_forward.5} parent=1 // loop_body
      %s22 = ssub.s32 %s17, 1
      %s23 = ssub.s32 %s17, 2
      %s30 = sadd.s32 1, %s25
      %p31 = scmp.ge.s32.totalorder %s30, 1
      %s32 = scalar_select %p31, 0, %s30
      %s33 = sadd.s32 1, %s24
      %s34 = scalar_select %p31, %s33, %s24
      %p35 = scmp.ge.s32.totalorder %s34, 2
      %s36 = scalar_select %p35, 0, %s34
      %s38 = sadd.s32 %s37, 1
      %p41 = scmp.eq.s32.totalorder %s17, 1
      %p42 = scmp.ne.s32.totalorder %s37, %s39
      %p43 = scmp.eq.s32.totalorder %s17, 0
      %p44 = por %p42, %p43
      %p45 = scmp.ne.s32.totalorder %s37, %s39
      %p46 = scmp.eq.s32.totalorder %s22, 1
      %p47 = por %p45, %p46
      %p48 = scmp.ne.s32.totalorder %s39, %s40
      %p49 = scmp.eq.s32.totalorder %s22, 0
      %p50 = por %p48, %p49
      %p51 = scmp.ne.s32.totalorder %s39, %s40
      %p52 = scmp.eq.s32.totalorder %s23, 1
      %p53 = por %p51, %p52
      %p55 = scmp.ne.s32.totalorder %s40, %s54
      %p56 = scmp.eq.s32.totalorder %s23, 0
      %p57 = por %p55, %p56
      %s58 = ssub.s32 %s24, %s36
      %s59 = ssub.s32 %s25, %s32
      %s60 = sor.u32 %s58, %s59
      %p61 = scmp.eq.s32.totalorder %s60, 0
      %s63 = sadd.s32 %s62, 1
      %s64 = scalar_select %p61, %s62, %s63
      %p67 = pneg %p61
      %p68 = scmp.eq.s32.totalorder %s17, 1
      %p69 = por %p67, %p68
      %p70 = scmp.ne.s32.totalorder %s62, %s65
      %p71 = scmp.eq.s32.totalorder %s17, 0
      %p72 = por %p70, %p71
      %p73 = scmp.ne.s32.totalorder %s62, %s65
      %p74 = scmp.eq.s32.totalorder %s22, 1
      %p75 = por %p73, %p74
      %p76 = scmp.ne.s32.totalorder %s65, %s66
      %p77 = scmp.eq.s32.totalorder %s22, 0
      %p78 = por %p76, %p77
      %p79 = scmp.ne.s32.totalorder %s65, %s66
      %p80 = scmp.eq.s32.totalorder %s23, 1
      %p81 = por %p79, %p80
      %p83 = scmp.ne.s32.totalorder %s66, %s82
      %p84 = scmp.eq.s32.totalorder %s23, 0
      %p85 = por %p83, %p84
      %s86 = ssub.s32 %s24, %s36
      %s87 = ssub.s32 %s25, %s32
      %s88 = sor.u32 %s86, %s87
      %p89 = scmp.eq.s32.totalorder %s88, 0
      %s91 = sadd.s32 %s90, 1
      %s92 = scalar_select %p89, %s90, %s91
      %p95 = pneg %p89
      %p96 = scmp.eq.s32.totalorder %s17, 1
      %p97 = por %p95, %p96
      %p98 = scmp.ne.s32.totalorder %s90, %s93
      %p99 = scmp.eq.s32.totalorder %s17, 0
      %p100 = por %p98, %p99
      %p101 = scmp.ne.s32.totalorder %s90, %s93
      %p102 = scmp.eq.s32.totalorder %s22, 1
      %p103 = por %p101, %p102
      %p104 = scmp.ne.s32.totalorder %s93, %s94
      %p105 = scmp.eq.s32.totalorder %s22, 0
      %p106 = por %p104, %p105
      %p107 = scmp.ne.s32.totalorder %s93, %s94
      %p108 = scmp.eq.s32.totalorder %s23, 1
      %p109 = por %p107, %p108
      %p111 = scmp.ne.s32.totalorder %s94, %s110
      %p112 = scmp.eq.s32.totalorder %s23, 0
      %p113 = por %p111, %p112
      %s114 = ssub.s32 %s24, %s36
      %s115 = ssub.s32 %s25, %s32
      %s116 = sor.u32 %s114, %s115
      %p117 = scmp.eq.s32.totalorder %s116, 0
      %s119 = sadd.s32 %s118, 1
      %s120 = scalar_select %p117, %s118, %s119
      %p123 = pneg %p117
      %p124 = scmp.eq.s32.totalorder %s17, 1
      %p125 = por %p123, %p124
      %p126 = scmp.ne.s32.totalorder %s118, %s121
      %p127 = scmp.eq.s32.totalorder %s17, 0
      %p128 = por %p126, %p127
      %p129 = scmp.ne.s32.totalorder %s118, %s121
      %p130 = scmp.eq.s32.totalorder %s22, 1
      %p131 = por %p129, %p130
      %p132 = scmp.ne.s32.totalorder %s121, %s122
      %p133 = scmp.eq.s32.totalorder %s22, 0
      %p134 = por %p132, %p133
      %p135 = scmp.ne.s32.totalorder %s121, %s122
      %p136 = scmp.eq.s32.totalorder %s23, 1
      %p137 = por %p135, %p136
      %p139 = scmp.ne.s32.totalorder %s122, %s138
      %p140 = scmp.eq.s32.totalorder %s23, 0
      %p141 = por %p139, %p140
      %s142 = ssub.s32 %s24, %s36
      %s143 = ssub.s32 %s25, %s32
      %s144 = sor.u32 %s142, %s143
      %p145 = scmp.eq.s32.totalorder %s144, 0
      %s147 = sadd.s32 %s146, 1
      %s148 = scalar_select %p145, %s146, %s147
      %p151 = pneg %p145
      %p152 = scmp.eq.s32.totalorder %s17, 1
      %p153 = por %p151, %p152
      %p154 = scmp.ne.s32.totalorder %s146, %s149
      %p155 = scmp.eq.s32.totalorder %s17, 0
      %p156 = por %p154, %p155
      %p157 = scmp.ne.s32.totalorder %s146, %s149
      %p158 = scmp.eq.s32.totalorder %s22, 1
      %p159 = por %p157, %p158
      %p160 = scmp.ne.s32.totalorder %s149, %s150
      %p161 = scmp.eq.s32.totalorder %s22, 0
      %p162 = por %p160, %p161
      %p163 = scmp.ne.s32.totalorder %s149, %s150
      %p164 = scmp.eq.s32.totalorder %s23, 1
      %p165 = por %p163, %p164
      %p167 = scmp.ne.s32.totalorder %s150, %s166
      %p168 = scmp.eq.s32.totalorder %s23, 0
      %p169 = por %p167, %p168
      %s170 = ssub.s32 %s24, %s36
      %p171 = scmp.eq.s32.totalorder %s170, 0
      %s173 = sadd.s32 %s172, 1
      %s174 = scalar_select %p171, %s172, %s173
      %p177 = pneg %p171
      %p178 = scmp.eq.s32.totalorder %s17, 1
      %p179 = por %p177, %p178
      %p180 = scmp.ne.s32.totalorder %s172, %s175
      %p181 = scmp.eq.s32.totalorder %s17, 0
      %p182 = por %p180, %p181
      %p183 = scmp.ne.s32.totalorder %s172, %s175
      %p184 = scmp.eq.s32.totalorder %s22, 1
      %p185 = por %p183, %p184
      %p186 = scmp.ne.s32.totalorder %s175, %s176
      %p187 = scmp.eq.s32.totalorder %s22, 0
      %p188 = por %p186, %p187
      %p189 = scmp.ne.s32.totalorder %s175, %s176
      %p190 = scmp.eq.s32.totalorder %s23, 1
      %p191 = por %p189, %p190
      %p193 = scmp.ne.s32.totalorder %s176, %s192
      %p194 = scmp.eq.s32.totalorder %s23, 0
      %p195 = por %p193, %p194
      %s196 = ssub.s32 %s24, %s36
      %s197 = ssub.s32 %s25, %s32
      %s198 = sor.u32 %s196, %s197
      %p199 = scmp.eq.s32.totalorder %s198, 0
      %s201 = sadd.s32 %s200, 1
      %s202 = scalar_select %p199, %s200, %s201
      %p205 = pneg %p199
      %p206 = scmp.eq.s32.totalorder %s17, 1
      %p207 = por %p205, %p206
      %p208 = scmp.ne.s32.totalorder %s200, %s203
      %p209 = scmp.eq.s32.totalorder %s17, 0
      %p210 = por %p208, %p209
      %p211 = scmp.ne.s32.totalorder %s200, %s203
      %p212 = scmp.eq.s32.totalorder %s22, 1
      %p213 = por %p211, %p212
      %p214 = scmp.ne.s32.totalorder %s203, %s204
      %p215 = scmp.eq.s32.totalorder %s22, 0
      %p216 = por %p214, %p215
      %p217 = scmp.ne.s32.totalorder %s203, %s204
      %p218 = scmp.eq.s32.totalorder %s23, 1
      %p219 = por %p217, %p218
      %p221 = scmp.ne.s32.totalorder %s204, %s220
      %p222 = scmp.eq.s32.totalorder %s23, 0
      %p223 = por %p221, %p222
      %s224 = ssub.s32 %s24, %s36
      %p225 = scmp.eq.s32.totalorder %s224, 0
      %s227 = sadd.s32 %s226, 1
      %s228 = scalar_select %p225, %s226, %s227
      %p231 = pneg %p225
      %p232 = scmp.eq.s32.totalorder %s17, 1
      %p233 = por %p231, %p232
      %p234 = scmp.ne.s32.totalorder %s226, %s229
      %p235 = scmp.eq.s32.totalorder %s17, 0
      %p236 = por %p234, %p235
      %p237 = scmp.ne.s32.totalorder %s226, %s229
      %p238 = scmp.eq.s32.totalorder %s22, 1
      %p239 = por %p237, %p238
      %p240 = scmp.ne.s32.totalorder %s229, %s230
      %p241 = scmp.eq.s32.totalorder %s22, 0
      %p242 = por %p240, %p241
      %p243 = scmp.ne.s32.totalorder %s229, %s230
      %p244 = scmp.eq.s32.totalorder %s23, 1
      %p245 = por %p243, %p244
      %p247 = scmp.ne.s32.totalorder %s230, %s246
      %p248 = scmp.eq.s32.totalorder %s23, 0
      %p249 = por %p247, %p248
      %p250 = scmp.le.s32.totalorder 1, %s17
      %p251 = scmp.lt.s32.totalorder %s17, 3
      %p252 = pnand %p250, %p251
      %p253 = pneg %p252
      // Predicated region
      $region9: #{block_forward.5} parent=5 // pred_check
        _
      $region10: #{block_forward.5} parent=5 // pred_check_branch
        %255 = sbr.rel (%p252) target = $region12
      $region11: #{block_forward.5} parent=5 // pred_region
        %s256 = ssub.s32 %s17, 1
        // Predicated region
        $region13: #{block_forward.5} parent=11 // pred_check
          %p257 = pneg %p50
        $region14: #{block_forward.5} parent=11 // pred_check_branch
          %259 = sbr.rel (%p257) target = $region16
        $region15: #{block_forward.5} parent=11 // pred_region
          _
        $region16: #{block_forward.5} parent=11 // pred_fallthru
          _
      $region12: #{block_forward.5} parent=5 // pred_fallthru
        _
      %p260 = scmp.lt.s32.totalorder %s17, 2
      // Predicated region
      $region17: #{block_forward.5} parent=5 // pred_check
        %p261 = pneg %p260
      $region18: #{block_forward.5} parent=5 // pred_check_branch
        %263 = sbr.rel (%p261) target = $region20
      $region19: #{block_forward.5} parent=5 // pred_region
        // Predicated region
        $region21: #{block_forward.5} parent=19 // pred_check
          %p264 = pneg %p72
        $region22: #{block_forward.5} parent=19 // pred_check_branch
          %266 = sbr.rel (%p264) target = $region24
        $region23: #{block_forward.5} parent=19 // pred_region
          %p267 = scmp.lt.s32.totalorder %s24, 1
          %s268 = scalar_select %p267, %s24, 1
          %p269 = scmp.lt.s32.totalorder %s25, 0
          %s270 = scalar_select %p269, %s25, 0
          %s271 = sadd.s32 %s270, %s268
          %s272 = smul.addr %s271, 8
          %s273 = scalar_lea.vmem %s1, %s272
        $region24: #{block_forward.5} parent=19 // pred_fallthru
          _
        // Predicated region
        $region25: #{block_forward.5} parent=19 // pred_check
          %p274 = pneg %p100
        $region26: #{block_forward.5} parent=19 // pred_check_branch
          %276 = sbr.rel (%p274) target = $region28
        $region27: #{block_forward.5} parent=19 // pred_region
          %p277 = scmp.lt.s32.totalorder %s24, 1
          %s278 = scalar_select %p277, %s24, 1
          %p279 = scmp.lt.s32.totalorder %s25, 0
          %s280 = scalar_select %p279, %s25, 0
          %s281 = sadd.s32 %s280, %s278
          %s282 = smul.addr %s281, 8
          %s283 = scalar_lea.vmem %s2, %s282
        $region28: #{block_forward.5} parent=19 // pred_fallthru
          _
        // Predicated region
        $region29: #{block_forward.5} parent=19 // pred_check
          %p284 = pneg %p128
        $region30: #{block_forward.5} parent=19 // pred_check_branch
          %286 = sbr.rel (%p284) target = $region32
        $region31: #{block_forward.5} parent=19 // pred_region
          %p287 = scmp.lt.s32.totalorder %s24, 1
          %s288 = scalar_select %p287, %s24, 1
          %p289 = scmp.lt.s32.totalorder %s25, 0
          %s290 = scalar_select %p289, %s25, 0
          %s291 = sadd.s32 %s290, %s288
          %s292 = smul.addr %s291, 8
          %s293 = scalar_lea.vmem %s3, %s292
        $region32: #{block_forward.5} parent=19 // pred_fallthru
          _
        // Predicated region
        $region33: #{block_forward.5} parent=19 // pred_check
          %p294 = pneg %p156
        $region34: #{block_forward.5} parent=19 // pred_check_branch
          %296 = sbr.rel (%p294) target = $region36
        $region35: #{block_forward.5} parent=19 // pred_region
          %p297 = scmp.lt.s32.totalorder %s24, 1
          %s298 = scalar_select %p297, %s24, 1
          %p299 = scmp.lt.s32.totalorder %s25, 0
          %s300 = scalar_select %p299, %s25, 0
          %s301 = sadd.s32 %s300, %s298
          %s302 = smul.addr %s301, 8
          %s303 = scalar_lea.vmem %s4, %s302
        $region36: #{block_forward.5} parent=19 // pred_fallthru
          _
        // Predicated region
        $region37: #{block_forward.5} parent=19 // pred_check
          %p304 = pneg %p182
        $region38: #{block_forward.5} parent=19 // pred_check_branch
          %306 = sbr.rel (%p304) target = $region40
        $region39: #{block_forward.5} parent=19 // pred_region
          %p307 = scmp.lt.s32.totalorder %s24, 1
          %s308 = scalar_select %p307, %s24, 1
          %s309 = smul.addr %s308, 16
          %s310 = smul.addr %s309, 8
          %s311 = scalar_lea.vmem %s5, %s310
        $region40: #{block_forward.5} parent=19 // pred_fallthru
          _
      $region20: #{block_forward.5} parent=5 // pred_fallthru
        _
      %p312 = scmp.le.s32.totalorder 1, %s17
      %p313 = scmp.lt.s32.totalorder %s17, 3
      %p314 = pnand %p312, %p313
      %p315 = pneg %p314
      // Predicated region
      $region41: #{block_forward.5} parent=5 // pred_check
        _
      $region42: #{block_forward.5} parent=5 // pred_check_branch
        %317 = sbr.rel (%p314) target = $region44
      $region43: #{block_forward.5} parent=5 // pred_region
        %s318 = ssub.s32 %s17, 1
        %p319 = pneg %p50
        %p320 = pneg %p47
        %p321 = scmp.lt.s32.totalorder %s26, 1
        %s322 = scalar_select %p321, %s26, 1
        %p323 = scmp.lt.s32.totalorder %s27, 0
        %s324 = scalar_select %p323, %s27, 0
        %s325 = sadd.s32 %s324, %s322
        %s326 = smul.addr %s325, 8
        %s327 = scalar_lea.vmem %s1, %s326
        %p328 = pneg %p78
        %p329 = pneg %p75
        %p330 = scmp.lt.s32.totalorder %s26, 1
        %s331 = scalar_select %p330, %s26, 1
        %p332 = scmp.lt.s32.totalorder %s27, 0
        %s333 = scalar_select %p332, %s27, 0
        %s334 = sadd.s32 %s333, %s331
        %s335 = smul.addr %s334, 8
        %s336 = scalar_lea.vmem %s2, %s335
        %p337 = pneg %p106
        %p338 = pneg %p103
        %p339 = scmp.lt.s32.totalorder %s26, 1
        %s340 = scalar_select %p339, %s26, 1
        %p341 = scmp.lt.s32.totalorder %s27, 0
        %s342 = scalar_select %p341, %s27, 0
        %s343 = sadd.s32 %s342, %s340
        %s344 = smul.addr %s343, 8
        %s345 = scalar_lea.vmem %s3, %s344
        %p346 = pneg %p134
        %p347 = pneg %p131
        %p348 = scmp.lt.s32.totalorder %s26, 1
        %s349 = scalar_select %p348, %s26, 1
        %p350 = scmp.lt.s32.totalorder %s27, 0
        %s351 = scalar_select %p350, %s27, 0
        %s352 = sadd.s32 %s351, %s349
        %s353 = smul.addr %s352, 8
        %s354 = scalar_lea.vmem %s4, %s353
        %p355 = pneg %p162
        %p356 = pneg %p159
        %p357 = scmp.lt.s32.totalorder %s26, 1
        %s358 = scalar_select %p357, %s26, 1
        %s359 = smul.addr %s358, 16
        %s360 = smul.addr %s359, 8
        %s361 = scalar_lea.vmem %s5, %s360
        %p362 = pneg %p188
        %p363 = pneg %p185
        %p364 = pneg %p216
        %p365 = pneg %p213
        %p366 = scmp.lt.s32.totalorder %s26, 1
        %s367 = scalar_select %p366, %s26, 1
        %p368 = scmp.lt.s32.totalorder %s27, 0
        %s369 = scalar_select %p368, %s27, 0
        %s370 = sadd.s32 %s369, %s367
        %s371 = smul.addr %s370, 8
        %s372 = scalar_lea.vmem %s6, %s371
        %p373 = pneg %p242
        %p374 = pneg %p239
        %s375 = sand.u32 %s229, 1
        %s376 = scalar_lea.sflag [#allocation4], %s375
        %s377 = sand.u32 %s229, 1
        %s378 = smul.addr %s377, 128
        %s379 = scalar_lea.vmem [#allocation3], %s378
        %p380 = scmp.lt.s32.totalorder %s26, 1
        %s381 = scalar_select %p380, %s26, 1
        %p382 = scmp.lt.s32.totalorder %s27, 0
        %s383 = scalar_select %p382, %s27, 0
        %s384 = sadd.s32 %s383, %s381
        %s385 = smul.addr %s384, 8
        %s386 = scalar_lea.vmem %s1, %s385
        %p387 = scmp.lt.s32.totalorder %s26, 1
        %s388 = scalar_select %p387, %s26, 1
        %p389 = scmp.lt.s32.totalorder %s27, 0
        %s390 = scalar_select %p389, %s27, 0
        %s391 = sadd.s32 %s390, %s388
        %s392 = smul.addr %s391, 8
        %s393 = scalar_lea.vmem %s2, %s392
        %p394 = scmp.lt.s32.totalorder %s26, 1
        %s395 = scalar_select %p394, %s26, 1
        %p396 = scmp.lt.s32.totalorder %s27, 0
        %s397 = scalar_select %p396, %s27, 0
        %s398 = sadd.s32 %s397, %s395
        %s399 = smul.addr %s398, 8
        %s400 = scalar_lea.vmem %s3, %s399
        %p401 = scmp.lt.s32.totalorder %s26, 1
        %s402 = scalar_select %p401, %s26, 1
        %p403 = scmp.lt.s32.totalorder %s27, 0
        %s404 = scalar_select %p403, %s27, 0
        %s405 = sadd.s32 %s404, %s402
        %s406 = smul.addr %s405, 8
        %s407 = scalar_lea.vmem %s4, %s406
        %p408 = scmp.lt.s32.totalorder %s26, 1
        %s409 = scalar_select %p408, %s26, 1
        %s410 = smul.addr %s409, 16
        %s411 = smul.addr %s410, 8
        %s412 = scalar_lea.vmem %s5, %s411
        %p413 = scmp.lt.s32.totalorder %s26, 1
        %s414 = scalar_select %p413, %s26, 1
        %p415 = scmp.lt.s32.totalorder %s27, 0
        %s416 = scalar_select %p415, %s27, 0
        %s417 = sadd.s32 %s416, %s414
        %s418 = smul.addr %s417, 8
        %s419 = scalar_lea.vmem %s6, %s418
        %p420 = scmp.eq.s32.totalorder %s27, 0
        // Predicated region
        $region45: #{block_forward.5} parent=43 // pred_check
          %p421 = pneg %p420
        $region46: #{block_forward.5} parent=43 // pred_check_branch
          %423 = sbr.rel (%p421) target = $region48
        $region47: #{block_forward.5} parent=43 // pred_region
          %v424 = vld [vmem:[%s412] sm:$0xff]
          %v425 = vld [vmem:[%s412 + $0x8] sm:$0xff]
          %v426 = vld [vmem:[%s412 + $0x10] sm:$0xff]
          %v427 = vld [vmem:[%s412 + $0x18] sm:$0xff]
          %v428 = vld [vmem:[%s412 + $0x20] sm:$0xff]
          %v429 = vld [vmem:[%s412 + $0x28] sm:$0xff]
          %v430 = vld [vmem:[%s412 + $0x30] sm:$0xff]
          %v431 = vld [vmem:[%s412 + $0x38] sm:$0xff]
          %v432 = vld [vmem:[%s412 + $0x40] sm:$0xff]
          %v433 = vld [vmem:[%s412 + $0x48] sm:$0xff]
          %v434 = vld [vmem:[%s412 + $0x50] sm:$0xff]
          %v435 = vld [vmem:[%s412 + $0x58] sm:$0xff]
          %v436 = vld [vmem:[%s412 + $0x60] sm:$0xff]
          %v437 = vld [vmem:[%s412 + $0x68] sm:$0xff]
          %v438 = vld [vmem:[%s412 + $0x70] sm:$0xff]
          %v439 = vld [vmem:[%s412 + $0x78] sm:$0xff]
          %vm440 = vcmask 523264
          %441 = vst.msk [vmem:[#allocation2] sm:$0xff] %vm440, %v424
          %442 = vst.msk [vmem:[#allocation2 + $0x8] sm:$0xff] %vm440, %v425
          %443 = vst.msk [vmem:[#allocation2 + $0x10] sm:$0xff] %vm440, %v426
          %444 = vst.msk [vmem:[#allocation2 + $0x18] sm:$0xff] %vm440, %v427
          %445 = vst.msk [vmem:[#allocation2 + $0x20] sm:$0xff] %vm440, %v428
          %446 = vst.msk [vmem:[#allocation2 + $0x28] sm:$0xff] %vm440, %v429
          %447 = vst.msk [vmem:[#allocation2 + $0x30] sm:$0xff] %vm440, %v430
          %448 = vst.msk [vmem:[#allocation2 + $0x38] sm:$0xff] %vm440, %v431
          %449 = vst.msk [vmem:[#allocation2 + $0x40] sm:$0xff] %vm440, %v432
          %450 = vst.msk [vmem:[#allocation2 + $0x48] sm:$0xff] %vm440, %v433
          %451 = vst.msk [vmem:[#allocation2 + $0x50] sm:$0xff] %vm440, %v434
          %452 = vst.msk [vmem:[#allocation2 + $0x58] sm:$0xff] %vm440, %v435
          %453 = vst.msk [vmem:[#allocation2 + $0x60] sm:$0xff] %vm440, %v436
          %454 = vst.msk [vmem:[#allocation2 + $0x68] sm:$0xff] %vm440, %v437
          %455 = vst.msk [vmem:[#allocation2 + $0x70] sm:$0xff] %vm440, %v438
          %456 = vst.msk [vmem:[#allocation2 + $0x78] sm:$0xff] %vm440, %v439
        $region48: #{block_forward.5} parent=43 // pred_fallthru
          _
        %v457 = vlaneseq
        %v458 = vshrl.u32 %v457, 7
        %v459 = vlaneseq
        %v460 = vand.u32 %v459, 127
        %vm461 = vcmp.gt.s32.totalorder %v458, %v460
        %vm462 = vcmp.eq.s32.totalorder %v458, %v460
        %vm463 = vcmp.ge.s32.totalorder %v458, %v460
        %v464 = vsel %vm463, 1, 0
        %v465 = vcvt.s32.f32 %v464
        %v466 = vld [vmem:[%s386] sm:$0xff]
        %v467 = vld [vmem:[%s393] sm:$0xff]
        %v468 = vld [vmem:[%s400] sm:$0xff]
        %v469 = vld [vmem:[%s407] sm:$0xff]
        %v470 = vld [vmem:[%s0] sm:$0x1]
        %v471 = vld [vmem:[#allocation2] sm:$0xff]
        %v472 = vld [vmem:[#allocation2 + $0x8] sm:$0xff]
        %v473 = vld [vmem:[#allocation2 + $0x10] sm:$0xff]
        %v474 = vld [vmem:[#allocation2 + $0x18] sm:$0xff]
        %v475 = vld [vmem:[#allocation2 + $0x20] sm:$0xff]
        %v476 = vld [vmem:[#allocation2 + $0x28] sm:$0xff]
        %v477 = vld [vmem:[#allocation2 + $0x30] sm:$0xff]
        %v478 = vld [vmem:[#allocation2 + $0x38] sm:$0xff]
        %vm479 = vcmask 64512
        %v481 = vsel %vm479, %v465, 0
        %483 = vmatprep.subr.mxu0 0.0
        %484 = vmatpush1.msra.mxu0 %v469
        %485 = vmatprep.subr.mxu0 0.0
        %486 = vmatpush1.msra.mxu0 0.0
        %487 = vmatprep.subr.mxu0 0.0
        %488 = vmatpush1.msra.mxu0 0.0
        %489 = vmatprep.subr.mxu0 0.0
        %490 = vmatpush1.msra.mxu0 0.0
        %491 = vmatprep.subr.mxu0 0.0
        %492 = vmatpush1.msra.mxu0 0.0
        %493 = vmatprep.subr.mxu0 0.0
        %494 = vmatpush1.msra.mxu0 0.0
        %495 = vmatprep.subr.mxu0 0.0
        %496 = vmatpush1.msra.mxu0 0.0
        %497 = vmatprep.subr.mxu0 0.0
        %498 = vmatpush1.msra.mxu0 0.0
        %499 = vmatprep.subr.mxu0 0.0
        %500 = vmatpush1.msra.mxu0 0.0
        %501 = vmatprep.subr.mxu0 0.0
        %502 = vmatpush1.msra.mxu0 0.0
        %503 = vmatprep.subr.mxu0 0.0
        %504 = vmatpush1.msra.mxu0 0.0
        %505 = vmatprep.subr.mxu0 0.0
        %506 = vmatpush1.msra.mxu0 0.0
        %507 = vmatprep.subr.mxu0 0.0
        %508 = vmatpush1.msra.mxu0 0.0
        %509 = vmatprep.subr.mxu0 0.0
        %510 = vmatpush1.msra.mxu0 0.0
        %511 = vmatprep.subr.mxu0 0.0
        %512 = vmatpush1.msra.mxu0 0.0
        %513 = vmatprep.subr.mxu0 0.0
        %514 = vmatpush1.msra.mxu0 0.0
        %515 = vmatprep.subr.mxu0 0.0
        %516 = vmatpush1.msra.mxu0 0.0
        %517 = vmatprep.subr.mxu0 0.0
        %518 = vmatpush1.msra.mxu0 0.0
        %519 = vmatprep.subr.mxu0 0.0
        %520 = vmatpush1.msra.mxu0 0.0
        %521 = vmatprep.subr.mxu0 0.0
        %522 = vmatpush1.msra.mxu0 0.0
        %523 = vmatprep.subr.mxu0 0.0
        %524 = vmatpush1.msra.mxu0 0.0
        %525 = vmatprep.subr.mxu0 0.0
        %526 = vmatpush1.msra.mxu0 0.0
        %527 = vmatprep.subr.mxu0 0.0
        %528 = vmatpush1.msra.mxu0 0.0
        %529 = vmatprep.subr.mxu0 0.0
        %530 = vmatpush1.msra.mxu0 0.0
        %531 = vmatprep.subr.mxu0 0.0
        %532 = vmatpush1.msra.mxu0 0.0
        %533 = vmatprep.subr.mxu0 0.0
        %534 = vmatpush1.msra.mxu0 0.0
        %535 = vmatprep.subr.mxu0 0.0
        %536 = vmatpush1.msra.mxu0 0.0
        %537 = vmatprep.subr.mxu0 0.0
        %538 = vmatpush1.msra.mxu0 0.0
        %539 = vmatprep.subr.mxu0 0.0
        %540 = vmatpush1.msra.mxu0 0.0
        %541 = vmatprep.subr.mxu0 0.0
        %542 = vmatpush1.msra.mxu0 0.0
        %543 = vmatprep.subr.mxu0 0.0
        %544 = vmatpush1.msra.mxu0 0.0
        %545 = vmatprep.subr.mxu0 0.0
        %546 = vmatpush1.msra.mxu0 0.0
        %547 = vmatprep.mubr.f32.mxu0 0.0
        %548 = vmatmul.mubr.f32.gmra.mrb[0].mxu0 %v481
        %v549 = vpop.f32.mrb[0].mxu0
        %v550 = vadd.f32 0.0, %v549
        %v551 = vpop.f32.mrb[0].mxu0
        %552 = vdwg.mxu0
        %v553 = vsub.f32 %v550, %v469
        %v554 = vmul.f32 %v553, 1.442695
        %v555 = vpow.pop %v554
        %v556 = vmul.f32 %v466, %v555
        %v557 = vsub.f32 0.0, %v550
        %v558 = vmul.f32 %v557, 1.442695
        %v559 = vpow.pop %v558
        %v560 = vmul.f32 %v467, %v559
        %vm561 = vcmask 523264
        %v563 = vsel %vm561, %v556, 0
        %v566 = vsel %vm561, %v560, 0
        %568 = vmatprep.subr.mxu0 0.0
        %569 = vmatpush1.xpose.msra.mxu0 %v566
        %570 = vmatprep.subr.mxu0 0.0
        %571 = vmatpush1.xpose.msra.mxu0 0.0
        %572 = vmatprep.subr.mxu0 0.0
        %573 = vmatpush1.xpose.msra.mxu0 0.0
        %574 = vmatprep.subr.mxu0 0.0
        %575 = vmatpush1.xpose.msra.mxu0 0.0
        %576 = vmatprep.subr.mxu0 0.0
        %577 = vmatpush1.xpose.msra.mxu0 0.0
        %578 = vmatprep.subr.mxu0 0.0
        %579 = vmatpush1.xpose.msra.mxu0 0.0
        %580 = vmatprep.subr.mxu0 0.0
        %581 = vmatpush1.xpose.msra.mxu0 0.0
        %582 = vmatprep.subr.mxu0 0.0
        %583 = vmatpush1.xpose.msra.mxu0 0.0
        %584 = vmatprep.subr.mxu0 0.0
        %585 = vmatpush1.xpose.msra.mxu0 0.0
        %586 = vmatprep.subr.mxu0 0.0
        %587 = vmatpush1.xpose.msra.mxu0 0.0
        %588 = vmatprep.subr.mxu0 0.0
        %589 = vmatpush1.xpose.msra.mxu0 0.0
        %590 = vmatprep.subr.mxu0 0.0
        %591 = vmatpush1.xpose.msra.mxu0 0.0
        %592 = vmatprep.subr.mxu0 0.0
        %593 = vmatpush1.xpose.msra.mxu0 0.0
        %594 = vmatprep.subr.mxu0 0.0
        %595 = vmatpush1.xpose.msra.mxu0 0.0
        %596 = vmatprep.subr.mxu0 0.0
        %597 = vmatpush1.xpose.msra.mxu0 0.0
        %598 = vmatprep.subr.mxu0 0.0
        %599 = vmatpush1.xpose.msra.mxu0 0.0
        %600 = vmatprep.subr.mxu0 0.0
        %601 = vmatpush1.xpose.msra.mxu0 0.0
        %602 = vmatprep.subr.mxu0 0.0
        %603 = vmatpush1.xpose.msra.mxu0 0.0
        %604 = vmatprep.subr.mxu0 0.0
        %605 = vmatpush1.xpose.msra.mxu0 0.0
        %606 = vmatprep.subr.mxu0 0.0
        %607 = vmatpush1.xpose.msra.mxu0 0.0
        %608 = vmatprep.subr.mxu0 0.0
        %609 = vmatpush1.xpose.msra.mxu0 0.0
        %610 = vmatprep.subr.mxu0 0.0
        %611 = vmatpush1.xpose.msra.mxu0 0.0
        %612 = vmatprep.subr.mxu0 0.0
        %613 = vmatpush1.xpose.msra.mxu0 0.0
        %614 = vmatprep.subr.mxu0 0.0
        %615 = vmatpush1.xpose.msra.mxu0 0.0
        %616 = vmatprep.subr.mxu0 0.0
        %617 = vmatpush1.xpose.msra.mxu0 0.0
        %618 = vmatprep.subr.mxu0 0.0
        %619 = vmatpush1.xpose.msra.mxu0 0.0
        %620 = vmatprep.subr.mxu0 0.0
        %621 = vmatpush1.xpose.msra.mxu0 0.0
        %622 = vmatprep.subr.mxu0 0.0
        %623 = vmatpush1.xpose.msra.mxu0 0.0
        %624 = vmatprep.subr.mxu0 0.0
        %625 = vmatpush1.xpose.msra.mxu0 0.0
        %626 = vmatprep.subr.mxu0 0.0
        %627 = vmatpush1.xpose.msra.mxu0 0.0
        %628 = vmatprep.subr.mxu0 0.0
        %629 = vmatpush1.xpose.msra.mxu0 0.0
        %630 = vmatprep.subr.mxu0 0.0
        %631 = vmatpush1.xpose.msra.mxu0 0.0
        %632 = vmatprep.mubr.f32.mxu0 0.0
        %633 = vmatmul.mubr.f32.gmra.mrb[0].mxu0 %v563
        %v634 = vpop.f32.mrb[0].mxu0
        %v635 = vadd.f32 0.0, %v634
        %v636 = vpop.f32.mrb[0].mxu0
        %637 = vdwg.mxu0
        %v639 = vlaneseq
        %v640 = vshrl.u32 %v639, 7
        %v641 = vsub.s32 0, %v640
        %v642 = vrot.slane %v470, %v641
        %v644 = vmul.f32 %v466, %v642
        %v645 = vmul.f32 %v644, %v467
        %v646 = vsel %vm561, %v645, 0.0
        %647 = vadd.xlane.f32.xlu0 %v646
        %v648 = vpop.xlane.xlu0 %647
        %v649 = vsel %vm461, %v635, 0.0
        %v650 = vsel %vm462, %v648, %v649
        %651 = vmatprep.subr.mxu0 0.0
        %652 = vmatpush1.msra.mxu0 %v471
        %653 = vmatprep.subr.mxu0 0.0
        %654 = vmatpush1.msra.mxu0 %v472
        %655 = vmatprep.subr.mxu0 0.0
        %656 = vmatpush1.msra.mxu0 %v473
        %657 = vmatprep.subr.mxu0 0.0
        %658 = vmatpush1.msra.mxu0 %v474
        %659 = vmatprep.subr.mxu0 0.0
        %660 = vmatpush1.msra.mxu0 %v475
        %661 = vmatprep.subr.mxu0 0.0
        %662 = vmatpush1.msra.mxu0 %v476
        %663 = vmatprep.subr.mxu0 0.0
        %664 = vmatpush1.msra.mxu0 %v477
        %665 = vmatprep.subr.mxu0 0.0
        %666 = vmatpush1.msra.mxu0 %v478
        %667 = vmatprep.subr.mxu0 0.0
        %668 = vmatpush1.msra.mxu0 0.0
        %669 = vmatprep.subr.mxu0 0.0
        %670 = vmatpush1.msra.mxu0 0.0
        %671 = vmatprep.subr.mxu0 0.0
        %672 = vmatpush1.msra.mxu0 0.0
        %673 = vmatprep.subr.mxu0 0.0
        %674 = vmatpush1.msra.mxu0 0.0
        %675 = vmatprep.subr.mxu0 0.0
        %676 = vmatpush1.msra.mxu0 0.0
        %677 = vmatprep.subr.mxu0 0.0
        %678 = vmatpush1.msra.mxu0 0.0
        %679 = vmatprep.subr.mxu0 0.0
        %680 = vmatpush1.msra.mxu0 0.0
        %681 = vmatprep.subr.mxu0 0.0
        %682 = vmatpush1.msra.mxu0 0.0
        %683 = vmatprep.subr.mxu0 0.0
        %684 = vmatpush1.msra.mxu0 0.0
        %685 = vmatprep.subr.mxu0 0.0
        %686 = vmatpush1.msra.mxu0 0.0
        %687 = vmatprep.subr.mxu0 0.0
        %688 = vmatpush1.msra.mxu0 0.0
        %689 = vmatprep.subr.mxu0 0.0
        %690 = vmatpush1.msra.mxu0 0.0
        %691 = vmatprep.subr.mxu0 0.0
        %692 = vmatpush1.msra.mxu0 0.0
        %693 = vmatprep.subr.mxu0 0.0
        %694 = vmatpush1.msra.mxu0 0.0
        %695 = vmatprep.subr.mxu0 0.0
        %696 = vmatpush1.msra.mxu0 0.0
        %697 = vmatprep.subr.mxu0 0.0
        %698 = vmatpush1.msra.mxu0 0.0
        %699 = vmatprep.subr.mxu0 0.0
        %700 = vmatpush1.msra.mxu0 0.0
        %701 = vmatprep.subr.mxu0 0.0
        %702 = vmatpush1.msra.mxu0 0.0
        %703 = vmatprep.subr.mxu0 0.0
        %704 = vmatpush1.msra.mxu0 0.0
        %705 = vmatprep.subr.mxu0 0.0
        %706 = vmatpush1.msra.mxu0 0.0
        %707 = vmatprep.subr.mxu0 0.0
        %708 = vmatpush1.msra.mxu0 0.0
        %709 = vmatprep.subr.mxu0 0.0
        %710 = vmatpush1.msra.mxu0 0.0
        %711 = vmatprep.subr.mxu0 0.0
        %712 = vmatpush1.msra.mxu0 0.0
        %713 = vmatprep.subr.mxu0 0.0
        %714 = vmatpush1.msra.mxu0 0.0
        %715 = vmatprep.mubr.f32.mxu0 0.0
        %716 = vmatmul.mubr.f32.gmra.mrb[0].mxu0 %v563
        %v717 = vpop.f32.mrb[0].mxu0
        %v718 = vadd.f32 0.0, %v717
        %v719 = vpop.f32.mrb[0].mxu0
        %720 = vdwg.mxu0
        %v722 = vsel %vm479, %v650, 0
        %724 = vmatprep.subr.mxu0 0.0
        %725 = vmatpush1.msra.mxu0 %v468
        %726 = vmatprep.subr.mxu0 0.0
        %727 = vmatpush1.msra.mxu0 0.0
        %728 = vmatprep.subr.mxu0 0.0
        %729 = vmatpush1.msra.mxu0 0.0
        %730 = vmatprep.subr.mxu0 0.0
        %731 = vmatpush1.msra.mxu0 0.0
        %732 = vmatprep.subr.mxu0 0.0
        %733 = vmatpush1.msra.mxu0 0.0
        %734 = vmatprep.subr.mxu0 0.0
        %735 = vmatpush1.msra.mxu0 0.0
        %736 = vmatprep.subr.mxu0 0.0
        %737 = vmatpush1.msra.mxu0 0.0
        %738 = vmatprep.subr.mxu0 0.0
        %739 = vmatpush1.msra.mxu0 0.0
        %740 = vmatprep.subr.mxu0 0.0
        %741 = vmatpush1.msra.mxu0 0.0
        %742 = vmatprep.subr.mxu0 0.0
        %743 = vmatpush1.msra.mxu0 0.0
        %744 = vmatprep.subr.mxu0 0.0
        %745 = vmatpush1.msra.mxu0 0.0
        %746 = vmatprep.subr.mxu0 0.0
        %747 = vmatpush1.msra.mxu0 0.0
        %748 = vmatprep.subr.mxu0 0.0
        %749 = vmatpush1.msra.mxu0 0.0
        %750 = vmatprep.subr.mxu0 0.0
        %751 = vmatpush1.msra.mxu0 0.0
        %752 = vmatprep.subr.mxu0 0.0
        %753 = vmatpush1.msra.mxu0 0.0
        %754 = vmatprep.subr.mxu0 0.0
        %755 = vmatpush1.msra.mxu0 0.0
        %756 = vmatprep.subr.mxu0 0.0
        %757 = vmatpush1.msra.mxu0 0.0
        %758 = vmatprep.subr.mxu0 0.0
        %759 = vmatpush1.msra.mxu0 0.0
        %760 = vmatprep.subr.mxu0 0.0
        %761 = vmatpush1.msra.mxu0 0.0
        %762 = vmatprep.subr.mxu0 0.0
        %763 = vmatpush1.msra.mxu0 0.0
        %764 = vmatprep.subr.mxu0 0.0
        %765 = vmatpush1.msra.mxu0 0.0
        %766 = vmatprep.subr.mxu0 0.0
        %767 = vmatpush1.msra.mxu0 0.0
        %768 = vmatprep.subr.mxu0 0.0
        %769 = vmatpush1.msra.mxu0 0.0
        %770 = vmatprep.subr.mxu0 0.0
        %771 = vmatpush1.msra.mxu0 0.0
        %772 = vmatprep.subr.mxu0 0.0
        %773 = vmatpush1.msra.mxu0 0.0
        %774 = vmatprep.subr.mxu0 0.0
        %775 = vmatpush1.msra.mxu0 0.0
        %776 = vmatprep.subr.mxu0 0.0
        %777 = vmatpush1.msra.mxu0 0.0
        %778 = vmatprep.subr.mxu0 0.0
        %779 = vmatpush1.msra.mxu0 0.0
        %780 = vmatprep.subr.mxu0 0.0
        %781 = vmatpush1.msra.mxu0 0.0
        %782 = vmatprep.subr.mxu0 0.0
        %783 = vmatpush1.msra.mxu0 0.0
        %784 = vmatprep.subr.mxu0 0.0
        %785 = vmatpush1.msra.mxu0 0.0
        %786 = vmatprep.subr.mxu0 0.0
        %787 = vmatpush1.msra.mxu0 0.0
        %788 = vmatprep.mubr.f32.mxu0 0.0
        %789 = vmatmul.mubr.f32.gmra.mrb[0].mxu0 %v722
        %v790 = vpop.f32.mrb[0].mxu0
        %v791 = vadd.f32 %v718, %v790
        %v792 = vpop.f32.mrb[0].mxu0
        %793 = vdwg.mxu0
        %794 = vst.msk [vmem:[%s419] sm:$0xff] %vm561, %v791
        %v795 = vmul.f32 %v550, 1.442695
        %v796 = vpow.pop %v795
        %v797 = vlaneseq
        %v798 = vshrl.u32 %v797, 7
        %v799 = vsub.s32 7, %v798
        %v800 = vrot.slane %v550, %v799
        %v801 = vsub.f32 %v800, %v550
        %v802 = vmul.f32 %v801, 1.442695
        %v803 = vpow.pop %v802
        %v804 = vmul.f32 %v467, %v803
        %805 = vxpose.xlu0.b32.start [1/16] %v804, 128
        %806 = vxpose.xlu0.b32.cont [2/16] 0.0, 128
        %807 = vxpose.xlu0.b32.cont [3/16] 0.0, 128
        %808 = vxpose.xlu0.b32.cont [4/16] 0.0, 128
        %809 = vxpose.xlu0.b32.cont [5/16] 0.0, 128
        %810 = vxpose.xlu0.b32.cont [6/16] 0.0, 128
        %811 = vxpose.xlu0.b32.cont [7/16] 0.0, 128
        %812 = vxpose.xlu0.b32.cont [8/16] 0.0, 128
        %813 = vxpose.xlu0.b32.cont [9/16] 0.0, 128
        %814 = vxpose.xlu0.b32.cont [10/16] 0.0, 128
        %815 = vxpose.xlu0.b32.cont [11/16] 0.0, 128
        %816 = vxpose.xlu0.b32.cont [12/16] 0.0, 128
        %817 = vxpose.xlu0.b32.cont [13/16] 0.0, 128
        %818 = vxpose.xlu0.b32.cont [14/16] 0.0, 128
        %819 = vxpose.xlu0.b32.cont [15/16] 0.0, 128
        %820 = vxpose.xlu0.b32.end [16/16] 0.0, 128
        %v821 = vpop.trf.xlu0
        %v822 = vpop.trf.xlu0
        %v823 = vpop.trf.xlu0
        %v824 = vpop.trf.xlu0
        %v825 = vpop.trf.xlu0
        %v826 = vpop.trf.xlu0
        %v827 = vpop.trf.xlu0
        %v828 = vpop.trf.xlu0
        %v829 = vpop.trf.xlu0
        %v830 = vpop.trf.xlu0
        %v831 = vpop.trf.xlu0
        %v832 = vpop.trf.xlu0
        %v833 = vpop.trf.xlu0
        %v834 = vpop.trf.xlu0
        %v835 = vpop.trf.xlu0
        %v836 = vpop.trf.xlu0
        %v838 = vsel %vm479, %v821, 0
        %v841 = vsel %vm479, %v822, 0
        %v844 = vsel %vm479, %v823, 0
        %v847 = vsel %vm479, %v824, 0
        %v850 = vsel %vm479, %v825, 0
        %v853 = vsel %vm479, %v826, 0
        %v856 = vsel %vm479, %v827, 0
        %v859 = vsel %vm479, %v828, 0
        %861 = vmatprep.subr.mxu0 0.0
        %862 = vmatpush1.msra.mxu0 %v468
        %863 = vmatprep.subr.mxu0 0.0
        %864 = vmatpush1.msra.mxu0 0.0
        %865 = vmatprep.subr.mxu0 0.0
        %866 = vmatpush1.msra.mxu0 0.0
        %867 = vmatprep.subr.mxu0 0.0
        %868 = vmatpush1.msra.mxu0 0.0
        %869 = vmatprep.subr.mxu0 0.0
        %870 = vmatpush1.msra.mxu0 0.0
        %871 = vmatprep.subr.mxu0 0.0
        %872 = vmatpush1.msra.mxu0 0.0
        %873 = vmatprep.subr.mxu0 0.0
        %874 = vmatpush1.msra.mxu0 0.0
        %875 = vmatprep.subr.mxu0 0.0
        %876 = vmatpush1.msra.mxu0 0.0
        %877 = vmatprep.subr.mxu0 0.0
        %878 = vmatpush1.msra.mxu0 0.0
        %879 = vmatprep.subr.mxu0 0.0
        %880 = vmatpush1.msra.mxu0 0.0
        %881 = vmatprep.subr.mxu0 0.0
        %882 = vmatpush1.msra.mxu0 0.0
        %883 = vmatprep.subr.mxu0 0.0
        %884 = vmatpush1.msra.mxu0 0.0
        %885 = vmatprep.subr.mxu0 0.0
        %886 = vmatpush1.msra.mxu0 0.0
        %887 = vmatprep.subr.mxu0 0.0
        %888 = vmatpush1.msra.mxu0 0.0
        %889 = vmatprep.subr.mxu0 0.0
        %890 = vmatpush1.msra.mxu0 0.0
        %891 = vmatprep.subr.mxu0 0.0
        %892 = vmatpush1.msra.mxu0 0.0
        %893 = vmatprep.subr.mxu0 0.0
        %894 = vmatpush1.msra.mxu0 0.0
        %895 = vmatprep.subr.mxu0 0.0
        %896 = vmatpush1.msra.mxu0 0.0
        %897 = vmatprep.subr.mxu0 0.0
        %898 = vmatpush1.msra.mxu0 0.0
        %899 = vmatprep.subr.mxu0 0.0
        %900 = vmatpush1.msra.mxu0 0.0
        %901 = vmatprep.subr.mxu0 0.0
        %902 = vmatpush1.msra.mxu0 0.0
        %903 = vmatprep.subr.mxu0 0.0
        %904 = vmatpush1.msra.mxu0 0.0
        %905 = vmatprep.subr.mxu0 0.0
        %906 = vmatpush1.msra.mxu0 0.0
        %907 = vmatprep.subr.mxu0 0.0
        %908 = vmatpush1.msra.mxu0 0.0
        %909 = vmatprep.subr.mxu0 0.0
        %910 = vmatpush1.msra.mxu0 0.0
        %911 = vmatprep.subr.mxu0 0.0
        %912 = vmatpush1.msra.mxu0 0.0
        %913 = vmatprep.subr.mxu0 0.0
        %914 = vmatpush1.msra.mxu0 0.0
        %915 = vmatprep.subr.mxu0 0.0
        %916 = vmatpush1.msra.mxu0 0.0
        %917 = vmatprep.subr.mxu0 0.0
        %918 = vmatpush1.msra.mxu0 0.0
        %919 = vmatprep.subr.mxu0 0.0
        %920 = vmatpush1.msra.mxu0 0.0
        %921 = vmatprep.subr.mxu0 0.0
        %922 = vmatpush1.msra.mxu0 0.0
        %923 = vmatprep.subr.mxu0 0.0
        %924 = vmatpush1.msra.mxu0 0.0
        %925 = vmatprep.mubr.f32.mxu0 0.0
        %926 = vmatmul.mubr.f32.gmra.mrb[0].mxu0 %v838
        %v927 = vpop.f32.mrb[0].mxu0
        %v928 = vadd.f32 0.0, %v927
        %v929 = vpop.f32.mrb[0].mxu0
        %930 = vmatprep.mubr.f32.mxu0 0.0
        %931 = vmatmul.mubr.f32.gmra.mrb[0].mxu0 %v841
        %v932 = vpop.f32.mrb[0].mxu0
        %v933 = vadd.f32 0.0, %v932
        %v934 = vpop.f32.mrb[0].mxu0
        %935 = vmatprep.mubr.f32.mxu0 0.0
        %936 = vmatmul.mubr.f32.gmra.mrb[0].mxu0 %v844
        %v937 = vpop.f32.mrb[0].mxu0
        %v938 = vadd.f32 0.0, %v937
        %v939 = vpop.f32.mrb[0].mxu0
        %940 = vmatprep.mubr.f32.mxu0 0.0
        %941 = vmatmul.mubr.f32.gmra.mrb[0].mxu0 %v847
        %v942 = vpop.f32.mrb[0].mxu0
        %v943 = vadd.f32 0.0, %v942
        %v944 = vpop.f32.mrb[0].mxu0
        %945 = vmatprep.mubr.f32.mxu0 0.0
        %946 = vmatmul.mubr.f32.gmra.mrb[0].mxu0 %v850
        %v947 = vpop.f32.mrb[0].mxu0
        %v948 = vadd.f32 0.0, %v947
        %v949 = vpop.f32.mrb[0].mxu0
        %950 = vmatprep.mubr.f32.mxu0 0.0
        %951 = vmatmul.mubr.f32.gmra.mrb[0].mxu0 %v853
        %v952 = vpop.f32.mrb[0].mxu0
        %v953 = vadd.f32 0.0, %v952
        %v954 = vpop.f32.mrb[0].mxu0
        %955 = vmatprep.mubr.f32.mxu0 0.0
        %956 = vmatmul.mubr.f32.gmra.mrb[0].mxu0 %v856
        %v957 = vpop.f32.mrb[0].mxu0
        %v958 = vadd.f32 0.0, %v957
        %v959 = vpop.f32.mrb[0].mxu0
        %960 = vmatprep.mubr.f32.mxu0 0.0
        %961 = vmatmul.mubr.f32.gmra.mrb[0].mxu0 %v859
        %v962 = vpop.f32.mrb[0].mxu0
        %v963 = vadd.f32 0.0, %v962
        %v964 = vpop.f32.mrb[0].mxu0
        %965 = vdwg.mxu0
        %v967 = vrot.slane %v796, 7
        %969 = vxpose.xlu0.b32.start [1/16] %v967, 128
        %970 = vxpose.xlu0.b32.cont [2/16] 0.0, 128
        %971 = vxpose.xlu0.b32.cont [3/16] 0.0, 128
        %972 = vxpose.xlu0.b32.cont [4/16] 0.0, 128
        %973 = vxpose.xlu0.b32.cont [5/16] 0.0, 128
        %974 = vxpose.xlu0.b32.cont [6/16] 0.0, 128
        %975 = vxpose.xlu0.b32.cont [7/16] 0.0, 128
        %976 = vxpose.xlu0.b32.cont [8/16] 0.0, 128
        %977 = vxpose.xlu0.b32.cont [9/16] 0.0, 128
        %978 = vxpose.xlu0.b32.cont [10/16] 0.0, 128
        %979 = vxpose.xlu0.b32.cont [11/16] 0.0, 128
        %980 = vxpose.xlu0.b32.cont [12/16] 0.0, 128
        %981 = vxpose.xlu0.b32.cont [13/16] 0.0, 128
        %982 = vxpose.xlu0.b32.cont [14/16] 0.0, 128
        %983 = vxpose.xlu0.b32.cont [15/16] 0.0, 128
        %984 = vxpose.xlu0.b32.end [16/16] 0.0, 128
        %v985 = vpop.trf.xlu0
        %v986 = vpop.trf.xlu0
        %v987 = vpop.trf.xlu0
        %v988 = vpop.trf.xlu0
        %v989 = vpop.trf.xlu0
        %v990 = vpop.trf.xlu0
        %v991 = vpop.trf.xlu0
        %v992 = vpop.trf.xlu0
        %v993 = vpop.trf.xlu0
        %v994 = vpop.trf.xlu0
        %v995 = vpop.trf.xlu0
        %v996 = vpop.trf.xlu0
        %v997 = vpop.trf.xlu0
        %v998 = vpop.trf.xlu0
        %v999 = vpop.trf.xlu0
        %v1000 = vpop.trf.xlu0
        %vm1001 = vcmask 7168
        %v1003 = vsel %vm1001, %v985, 0
        %v1006 = vsel %vm1001, %v986, 0
        %v1009 = vsel %vm1001, %v987, 0
        %v1012 = vsel %vm1001, %v988, 0
        %v1015 = vsel %vm1001, %v989, 0
        %v1018 = vsel %vm1001, %v990, 0
        %v1021 = vsel %vm1001, %v991, 0
        %v1024 = vsel %vm1001, %v992, 0
        %vm1026 = vcmask 1040384
        %v1028 = vsel %vm1026, 1.0, 0
        %1030 = vmatprep.subr.mxu0 0.0
        %1031 = vmatpush1.msra.mxu0 %v1028
        %1032 = vmatprep.subr.mxu0 0.0
        %1033 = vmatpush1.msra.mxu0 0.0
        %1034 = vmatprep.subr.mxu0 0.0
        %1035 = vmatpush1.msra.mxu0 0.0
        %1036 = vmatprep.subr.mxu0 0.0
        %1037 = vmatpush1.msra.mxu0 0.0
        %1038 = vmatprep.subr.mxu0 0.0
        %1039 = vmatpush1.msra.mxu0 0.0
        %1040 = vmatprep.subr.mxu0 0.0
        %1041 = vmatpush1.msra.mxu0 0.0
        %1042 = vmatprep.subr.mxu0 0.0
        %1043 = vmatpush1.msra.mxu0 0.0
        %1044 = vmatprep.subr.mxu0 0.0
        %1045 = vmatpush1.msra.mxu0 0.0
        %1046 = vmatprep.subr.mxu0 0.0
        %1047 = vmatpush1.msra.mxu0 0.0
        %1048 = vmatprep.subr.mxu0 0.0
        %1049 = vmatpush1.msra.mxu0 0.0
        %1050 = vmatprep.subr.mxu0 0.0
        %1051 = vmatpush1.msra.mxu0 0.0
        %1052 = vmatprep.subr.mxu0 0.0
        %1053 = vmatpush1.msra.mxu0 0.0
        %1054 = vmatprep.subr.mxu0 0.0
        %1055 = vmatpush1.msra.mxu0 0.0
        %1056 = vmatprep.subr.mxu0 0.0
        %1057 = vmatpush1.msra.mxu0 0.0
        %1058 = vmatprep.subr.mxu0 0.0
        %1059 = vmatpush1.msra.mxu0 0.0
        %1060 = vmatprep.subr.mxu0 0.0
        %1061 = vmatpush1.msra.mxu0 0.0
        %1062 = vmatprep.subr.mxu0 0.0
        %1063 = vmatpush1.msra.mxu0 0.0
        %1064 = vmatprep.subr.mxu0 0.0
        %1065 = vmatpush1.msra.mxu0 0.0
        %1066 = vmatprep.subr.mxu0 0.0
        %1067 = vmatpush1.msra.mxu0 0.0
        %1068 = vmatprep.subr.mxu0 0.0
        %1069 = vmatpush1.msra.mxu0 0.0
        %1070 = vmatprep.subr.mxu0 0.0
        %1071 = vmatpush1.msra.mxu0 0.0
        %1072 = vmatprep.subr.mxu0 0.0
        %1073 = vmatpush1.msra.mxu0 0.0
        %1074 = vmatprep.subr.mxu0 0.0
        %1075 = vmatpush1.msra.mxu0 0.0
        %1076 = vmatprep.subr.mxu0 0.0
        %1077 = vmatpush1.msra.mxu0 0.0
        %1078 = vmatprep.subr.mxu0 0.0
        %1079 = vmatpush1.msra.mxu0 0.0
        %1080 = vmatprep.subr.mxu0 0.0
        %1081 = vmatpush1.msra.mxu0 0.0
        %1082 = vmatprep.subr.mxu0 0.0
        %1083 = vmatpush1.msra.mxu0 0.0
        %1084 = vmatprep.subr.mxu0 0.0
        %1085 = vmatpush1.msra.mxu0 0.0
        %1086 = vmatprep.subr.mxu0 0.0
        %1087 = vmatpush1.msra.mxu0 0.0
        %1088 = vmatprep.subr.mxu0 0.0
        %1089 = vmatpush1.msra.mxu0 0.0
        %1090 = vmatprep.subr.mxu0 0.0
        %1091 = vmatpush1.msra.mxu0 0.0
        %1092 = vmatprep.subr.mxu0 0.0
        %1093 = vmatpush1.msra.mxu0 0.0
        %1094 = vmatprep.mubr.f32.mxu0 0.0
        %1095 = vmatmul.mubr.f32.gmra.mrb[0].mxu0 %v1003
        %v1096 = vpop.f32.mrb[0].mxu0
        %v1097 = vadd.f32 0.0, %v1096
        %v1098 = vpop.f32.mrb[0].mxu0
        %1099 = vmatprep.mubr.f32.mxu0 0.0
        %1100 = vmatmul.mubr.f32.gmra.mrb[0].mxu0 %v1006
        %v1101 = vpop.f32.mrb[0].mxu0
        %v1102 = vadd.f32 0.0, %v1101
        %v1103 = vpop.f32.mrb[0].mxu0
        %1104 = vmatprep.mubr.f32.mxu0 0.0
        %1105 = vmatmul.mubr.f32.gmra.mrb[0].mxu0 %v1009
        %v1106 = vpop.f32.mrb[0].mxu0
        %v1107 = vadd.f32 0.0, %v1106
        %v1108 = vpop.f32.mrb[0].mxu0
        %1109 = vmatprep.mubr.f32.mxu0 0.0
        %1110 = vmatmul.mubr.f32.gmra.mrb[0].mxu0 %v1012
        %v1111 = vpop.f32.mrb[0].mxu0
        %v1112 = vadd.f32 0.0, %v1111
        %v1113 = vpop.f32.mrb[0].mxu0
        %1114 = vmatprep.mubr.f32.mxu0 0.0
        %1115 = vmatmul.mubr.f32.gmra.mrb[0].mxu0 %v1015
        %v1116 = vpop.f32.mrb[0].mxu0
        %v1117 = vadd.f32 0.0, %v1116
        %v1118 = vpop.f32.mrb[0].mxu0
        %1119 = vmatprep.mubr.f32.mxu0 0.0
        %1120 = vmatmul.mubr.f32.gmra.mrb[0].mxu0 %v1018
        %v1121 = vpop.f32.mrb[0].mxu0
        %v1122 = vadd.f32 0.0, %v1121
        %v1123 = vpop.f32.mrb[0].mxu0
        %1124 = vmatprep.mubr.f32.mxu0 0.0
        %1125 = vmatmul.mubr.f32.gmra.mrb[0].mxu0 %v1021
        %v1126 = vpop.f32.mrb[0].mxu0
        %v1127 = vadd.f32 0.0, %v1126
        %v1128 = vpop.f32.mrb[0].mxu0
        %1129 = vmatprep.mubr.f32.mxu0 0.0
        %1130 = vmatmul.mubr.f32.gmra.mrb[0].mxu0 %v1024
        %v1131 = vpop.f32.mrb[0].mxu0
        %v1132 = vadd.f32 0.0, %v1131
        %v1133 = vpop.f32.mrb[0].mxu0
        %1134 = vdwg.mxu0
        %v1135 = vmul.f32 %v1097, %v471
        %v1136 = vmul.f32 %v1102, %v472
        %v1137 = vmul.f32 %v1107, %v473
        %v1138 = vmul.f32 %v1112, %v474
        %v1139 = vmul.f32 %v1117, %v475
        %v1140 = vmul.f32 %v1122, %v476
        %v1141 = vmul.f32 %v1127, %v477
        %v1142 = vmul.f32 %v1132, %v478
        %v1143 = vadd.f32 %v1135, %v928
        %v1144 = vadd.f32 %v1136, %v933
        %v1145 = vadd.f32 %v1137, %v938
        %v1146 = vadd.f32 %v1138, %v943
        %v1147 = vadd.f32 %v1139, %v948
        %v1148 = vadd.f32 %v1140, %v953
        %v1149 = vadd.f32 %v1141, %v958
        %v1150 = vadd.f32 %v1142, %v963
        %1151 = vst.msk [vmem:[#allocation2] sm:$0xff] %vm561, %v1143
        %1152 = vst.msk [vmem:[#allocation2 + $0x8] sm:$0xff] %vm561, %v1144
        %1153 = vst.msk [vmem:[#allocation2 + $0x10] sm:$0xff] %vm561, %v1145
        %1154 = vst.msk [vmem:[#allocation2 + $0x18] sm:$0xff] %vm561, %v1146
        %1155 = vst.msk [vmem:[#allocation2 + $0x20] sm:$0xff] %vm561, %v1147
        %1156 = vst.msk [vmem:[#allocation2 + $0x28] sm:$0xff] %vm561, %v1148
        %1157 = vst.msk [vmem:[#allocation2 + $0x30] sm:$0xff] %vm561, %v1149
        %1158 = vst.msk [vmem:[#allocation2 + $0x38] sm:$0xff] %vm561, %v1150
        %s1159 = scalar_lea.vmem [#allocation2], 64
        %v1160 = vld [vmem:[%s1159] sm:$0xff]
        %v1161 = vld [vmem:[%s1159 + $0x8] sm:$0xff]
        %v1162 = vld [vmem:[%s1159 + $0x10] sm:$0xff]
        %v1163 = vld [vmem:[%s1159 + $0x18] sm:$0xff]
        %v1164 = vld [vmem:[%s1159 + $0x20] sm:$0xff]
        %v1165 = vld [vmem:[%s1159 + $0x28] sm:$0xff]
        %v1166 = vld [vmem:[%s1159 + $0x30] sm:$0xff]
        %v1167 = vld [vmem:[%s1159 + $0x38] sm:$0xff]
        %1169 = vrot.lane.b32.xlu0 %v469, 64
        %v1170 = vpop.permute.xlu0 %1169
        %1172 = vmatprep.subr.mxu0 0.0
        %1173 = vmatpush1.msra.mxu0 %v1170
        %1174 = vmatprep.subr.mxu0 0.0
        %1175 = vmatpush1.msra.mxu0 0.0
        %1176 = vmatprep.subr.mxu0 0.0
        %1177 = vmatpush1.msra.mxu0 0.0
        %1178 = vmatprep.subr.mxu0 0.0
        %1179 = vmatpush1.msra.mxu0 0.0
        %1180 = vmatprep.subr.mxu0 0.0
        %1181 = vmatpush1.msra.mxu0 0.0
        %1182 = vmatprep.subr.mxu0 0.0
        %1183 = vmatpush1.msra.mxu0 0.0
        %1184 = vmatprep.subr.mxu0 0.0
        %1185 = vmatpush1.msra.mxu0 0.0
        %1186 = vmatprep.subr.mxu0 0.0
        %1187 = vmatpush1.msra.mxu0 0.0
        %1188 = vmatprep.subr.mxu0 0.0
        %1189 = vmatpush1.msra.mxu0 0.0
        %1190 = vmatprep.subr.mxu0 0.0
        %1191 = vmatpush1.msra.mxu0 0.0
        %1192 = vmatprep.subr.mxu0 0.0
        %1193 = vmatpush1.msra.mxu0 0.0
        %1194 = vmatprep.subr.mxu0 0.0
        %1195 = vmatpush1.msra.mxu0 0.0
        %1196 = vmatprep.subr.mxu0 0.0
        %1197 = vmatpush1.msra.mxu0 0.0
        %1198 = vmatprep.subr.mxu0 0.0
        %1199 = vmatpush1.msra.mxu0 0.0
        %1200 = vmatprep.subr.mxu0 0.0
        %1201 = vmatpush1.msra.mxu0 0.0
        %1202 = vmatprep.subr.mxu0 0.0
        %1203 = vmatpush1.msra.mxu0 0.0
        %1204 = vmatprep.subr.mxu0 0.0
        %1205 = vmatpush1.msra.mxu0 0.0
        %1206 = vmatprep.subr.mxu0 0.0
        %1207 = vmatpush1.msra.mxu0 0.0
        %1208 = vmatprep.subr.mxu0 0.0
        %1209 = vmatpush1.msra.mxu0 0.0
        %1210 = vmatprep.subr.mxu0 0.0
        %1211 = vmatpush1.msra.mxu0 0.0
        %1212 = vmatprep.subr.mxu0 0.0
        %1213 = vmatpush1.msra.mxu0 0.0
        %1214 = vmatprep.subr.mxu0 0.0
        %1215 = vmatpush1.msra.mxu0 0.0
        %1216 = vmatprep.subr.mxu0 0.0
        %1217 = vmatpush1.msra.mxu0 0.0
        %1218 = vmatprep.subr.mxu0 0.0
        %1219 = vmatpush1.msra.mxu0 0.0
        %1220 = vmatprep.subr.mxu0 0.0
        %1221 = vmatpush1.msra.mxu0 0.0
        %1222 = vmatprep.subr.mxu0 0.0
        %1223 = vmatpush1.msra.mxu0 0.0
        %1224 = vmatprep.subr.mxu0 0.0
        %1225 = vmatpush1.msra.mxu0 0.0
        %1226 = vmatprep.subr.mxu0 0.0
        %1227 = vmatpush1.msra.mxu0 0.0
        %1228 = vmatprep.subr.mxu0 0.0
        %1229 = vmatpush1.msra.mxu0 0.0
        %1230 = vmatprep.subr.mxu0 0.0
        %1231 = vmatpush1.msra.mxu0 0.0
        %1232 = vmatprep.subr.mxu0 0.0
        %1233 = vmatpush1.msra.mxu0 0.0
        %1234 = vmatprep.subr.mxu0 0.0
        %1235 = vmatpush1.msra.mxu0 0.0
        %1236 = vmatprep.mubr.f32.mxu0 0.0
        %1237 = vmatmul.mubr.f32.gmra.mrb[0].mxu0 %v481
        %v1238 = vpop.f32.mrb[0].mxu0
        %v1239 = vadd.f32 0.0, %v1238
        %v1240 = vpop.f32.mrb[0].mxu0
        %1241 = vdwg.mxu0
        %v1242 = vsub.f32 %v1239, %v1170
        %v1243 = vmul.f32 %v1242, 1.442695
        %v1244 = vpow.pop %v1243
        %1246 = vrot.lane.b32.xlu0 %v1244, 64
        %v1247 = vpop.permute.xlu0 %1246
        %v1249 = vmul.f32 %v466, %v1247
        %v1250 = vsub.f32 0.0, %v1239
        %v1251 = vmul.f32 %v1250, 1.442695
        %v1252 = vpow.pop %v1251
        %1254 = vrot.lane.b32.xlu0 %v1252, 64
        %v1255 = vpop.permute.xlu0 %1254
        %v1257 = vmul.f32 %v467, %v1255
        %1259 = vrot.lane.b32.xlu0 %v1249, 64
        %v1260 = vpop.permute.xlu0 %1259
        %1262 = vrot.lane.b32.xlu0 %v1257, 64
        %v1263 = vpop.permute.xlu0 %1262
        %v1264 = vsel %vm561, %v1260, 0
        %v1266 = vsel %vm561, %v1263, 0
        %1268 = vmatprep.subr.mxu0 0.0
        %1269 = vmatpush1.xpose.msra.mxu0 %v1266
        %1270 = vmatprep.subr.mxu0 0.0
        %1271 = vmatpush1.xpose.msra.mxu0 0.0
        %1272 = vmatprep.subr.mxu0 0.0
        %1273 = vmatpush1.xpose.msra.mxu0 0.0
        %1274 = vmatprep.subr.mxu0 0.0
        %1275 = vmatpush1.xpose.msra.mxu0 0.0
        %1276 = vmatprep.subr.mxu0 0.0
        %1277 = vmatpush1.xpose.msra.mxu0 0.0
        %1278 = vmatprep.subr.mxu0 0.0
        %1279 = vmatpush1.xpose.msra.mxu0 0.0
        %1280 = vmatprep.subr.mxu0 0.0
        %1281 = vmatpush1.xpose.msra.mxu0 0.0
        %1282 = vmatprep.subr.mxu0 0.0
        %1283 = vmatpush1.xpose.msra.mxu0 0.0
        %1284 = vmatprep.subr.mxu0 0.0
        %1285 = vmatpush1.xpose.msra.mxu0 0.0
        %1286 = vmatprep.subr.mxu0 0.0
        %1287 = vmatpush1.xpose.msra.mxu0 0.0
        %1288 = vmatprep.subr.mxu0 0.0
        %1289 = vmatpush1.xpose.msra.mxu0 0.0
        %1290 = vmatprep.subr.mxu0 0.0
        %1291 = vmatpush1.xpose.msra.mxu0 0.0
        %1292 = vmatprep.subr.mxu0 0.0
        %1293 = vmatpush1.xpose.msra.mxu0 0.0
        %1294 = vmatprep.subr.mxu0 0.0
        %1295 = vmatpush1.xpose.msra.mxu0 0.0
        %1296 = vmatprep.subr.mxu0 0.0
        %1297 = vmatpush1.xpose.msra.mxu0 0.0
        %1298 = vmatprep.subr.mxu0 0.0
        %1299 = vmatpush1.xpose.msra.mxu0 0.0
        %1300 = vmatprep.subr.mxu0 0.0
        %1301 = vmatpush1.xpose.msra.mxu0 0.0
        %1302 = vmatprep.subr.mxu0 0.0
        %1303 = vmatpush1.xpose.msra.mxu0 0.0
        %1304 = vmatprep.subr.mxu0 0.0
        %1305 = vmatpush1.xpose.msra.mxu0 0.0
        %1306 = vmatprep.subr.mxu0 0.0
        %1307 = vmatpush1.xpose.msra.mxu0 0.0
        %1308 = vmatprep.subr.mxu0 0.0
        %1309 = vmatpush1.xpose.msra.mxu0 0.0
        %1310 = vmatprep.subr.mxu0 0.0
        %1311 = vmatpush1.xpose.msra.mxu0 0.0
        %1312 = vmatprep.subr.mxu0 0.0
        %1313 = vmatpush1.xpose.msra.mxu0 0.0
        %1314 = vmatprep.subr.mxu0 0.0
        %1315 = vmatpush1.xpose.msra.mxu0 0.0
        %1316 = vmatprep.subr.mxu0 0.0
        %1317 = vmatpush1.xpose.msra.mxu0 0.0
        %1318 = vmatprep.subr.mxu0 0.0
        %1319 = vmatpush1.xpose.msra.mxu0 0.0
        %1320 = vmatprep.subr.mxu0 0.0
        %1321 = vmatpush1.xpose.msra.mxu0 0.0
        %1322 = vmatprep.subr.mxu0 0.0
        %1323 = vmatpush1.xpose.msra.mxu0 0.0
        %1324 = vmatprep.subr.mxu0 0.0
        %1325 = vmatpush1.xpose.msra.mxu0 0.0
        %1326 = vmatprep.subr.mxu0 0.0
        %1327 = vmatpush1.xpose.msra.mxu0 0.0
        %1328 = vmatprep.subr.mxu0 0.0
        %1329 = vmatpush1.xpose.msra.mxu0 0.0
        %1330 = vmatprep.subr.mxu0 0.0
        %1331 = vmatpush1.xpose.msra.mxu0 0.0
        %1332 = vmatprep.mubr.f32.mxu0 0.0
        %1333 = vmatmul.mubr.f32.gmra.mrb[0].mxu0 %v1264
        %v1334 = vpop.f32.mrb[0].mxu0
        %v1335 = vadd.f32 0.0, %v1334
        %v1336 = vpop.f32.mrb[0].mxu0
        %1337 = vdwg.mxu0
        %1339 = vrot.lane.b32.xlu0 %v645, 64
        %v1340 = vpop.permute.xlu0 %1339
        %v1342 = vsel %vm561, %v1340, 0.0
        %1343 = vadd.xlane.f32.xlu0 %v1342
        %v1344 = vpop.xlane.xlu0 %1343
        %v1345 = vsel %vm461, %v1335, 0.0
        %v1346 = vsel %vm462, %v1344, %v1345
        %1347 = vmatprep.subr.mxu0 0.0
        %1348 = vmatpush1.msra.mxu0 %v1160
        %1349 = vmatprep.subr.mxu0 0.0
        %1350 = vmatpush1.msra.mxu0 %v1161
        %1351 = vmatprep.subr.mxu0 0.0
        %1352 = vmatpush1.msra.mxu0 %v1162
        %1353 = vmatprep.subr.mxu0 0.0
        %1354 = vmatpush1.msra.mxu0 %v1163
        %1355 = vmatprep.subr.mxu0 0.0
        %1356 = vmatpush1.msra.mxu0 %v1164
        %1357 = vmatprep.subr.mxu0 0.0
        %1358 = vmatpush1.msra.mxu0 %v1165
        %1359 = vmatprep.subr.mxu0 0.0
        %1360 = vmatpush1.msra.mxu0 %v1166
        %1361 = vmatprep.subr.mxu0 0.0
        %1362 = vmatpush1.msra.mxu0 %v1167
        %1363 = vmatprep.subr.mxu0 0.0
        %1364 = vmatpush1.msra.mxu0 0.0
        %1365 = vmatprep.subr.mxu0 0.0
        %1366 = vmatpush1.msra.mxu0 0.0
        %1367 = vmatprep.subr.mxu0 0.0
        %1368 = vmatpush1.msra.mxu0 0.0
        %1369 = vmatprep.subr.mxu0 0.0
        %1370 = vmatpush1.msra.mxu0 0.0
        %1371 = vmatprep.subr.mxu0 0.0
        %1372 = vmatpush1.msra.mxu0 0.0
        %1373 = vmatprep.subr.mxu0 0.0
        %1374 = vmatpush1.msra.mxu0 0.0
        %1375 = vmatprep.subr.mxu0 0.0
        %1376 = vmatpush1.msra.mxu0 0.0
        %1377 = vmatprep.subr.mxu0 0.0
        %1378 = vmatpush1.msra.mxu0 0.0
        %1379 = vmatprep.subr.mxu0 0.0
        %1380 = vmatpush1.msra.mxu0 0.0
        %1381 = vmatprep.subr.mxu0 0.0
        %1382 = vmatpush1.msra.mxu0 0.0
        %1383 = vmatprep.subr.mxu0 0.0
        %1384 = vmatpush1.msra.mxu0 0.0
        %1385 = vmatprep.subr.mxu0 0.0
        %1386 = vmatpush1.msra.mxu0 0.0
        %1387 = vmatprep.subr.mxu0 0.0
        %1388 = vmatpush1.msra.mxu0 0.0
        %1389 = vmatprep.subr.mxu0 0.0
        %1390 = vmatpush1.msra.mxu0 0.0
        %1391 = vmatprep.subr.mxu0 0.0
        %1392 = vmatpush1.msra.mxu0 0.0
        %1393 = vmatprep.subr.mxu0 0.0
        %1394 = vmatpush1.msra.mxu0 0.0
        %1395 = vmatprep.subr.mxu0 0.0
        %1396 = vmatpush1.msra.mxu0 0.0
        %1397 = vmatprep.subr.mxu0 0.0
        %1398 = vmatpush1.msra.mxu0 0.0
        %1399 = vmatprep.subr.mxu0 0.0
        %1400 = vmatpush1.msra.mxu0 0.0
        %1401 = vmatprep.subr.mxu0 0.0
        %1402 = vmatpush1.msra.mxu0 0.0
        %1403 = vmatprep.subr.mxu0 0.0
        %1404 = vmatpush1.msra.mxu0 0.0
        %1405 = vmatprep.subr.mxu0 0.0
        %1406 = vmatpush1.msra.mxu0 0.0
        %1407 = vmatprep.subr.mxu0 0.0
        %1408 = vmatpush1.msra.mxu0 0.0
        %1409 = vmatprep.subr.mxu0 0.0
        %1410 = vmatpush1.msra.mxu0 0.0
        %1411 = vmatprep.mubr.f32.mxu0 0.0
        %1412 = vmatmul.mubr.f32.gmra.mrb[0].mxu0 %v1264
        %v1413 = vpop.f32.mrb[0].mxu0
        %v1414 = vadd.f32 0.0, %v1413
        %v1415 = vpop.f32.mrb[0].mxu0
        %1416 = vdwg.mxu0
        %1418 = vrot.lane.b32.xlu0 %v468, 64
        %v1419 = vpop.permute.xlu0 %1418
        %v1422 = vsel %vm479, %v1346, 0
        %1424 = vmatprep.subr.mxu0 0.0
        %1425 = vmatpush1.msra.mxu0 %v1419
        %1426 = vmatprep.subr.mxu0 0.0
        %1427 = vmatpush1.msra.mxu0 0.0
        %1428 = vmatprep.subr.mxu0 0.0
        %1429 = vmatpush1.msra.mxu0 0.0
        %1430 = vmatprep.subr.mxu0 0.0
        %1431 = vmatpush1.msra.mxu0 0.0
        %1432 = vmatprep.subr.mxu0 0.0
        %1433 = vmatpush1.msra.mxu0 0.0
        %1434 = vmatprep.subr.mxu0 0.0
        %1435 = vmatpush1.msra.mxu0 0.0
        %1436 = vmatprep.subr.mxu0 0.0
        %1437 = vmatpush1.msra.mxu0 0.0
        %1438 = vmatprep.subr.mxu0 0.0
        %1439 = vmatpush1.msra.mxu0 0.0
        %1440 = vmatprep.subr.mxu0 0.0
        %1441 = vmatpush1.msra.mxu0 0.0
        %1442 = vmatprep.subr.mxu0 0.0
        %1443 = vmatpush1.msra.mxu0 0.0
        %1444 = vmatprep.subr.mxu0 0.0
        %1445 = vmatpush1.msra.mxu0 0.0
        %1446 = vmatprep.subr.mxu0 0.0
        %1447 = vmatpush1.msra.mxu0 0.0
        %1448 = vmatprep.subr.mxu0 0.0
        %1449 = vmatpush1.msra.mxu0 0.0
        %1450 = vmatprep.subr.mxu0 0.0
        %1451 = vmatpush1.msra.mxu0 0.0
        %1452 = vmatprep.subr.mxu0 0.0
        %1453 = vmatpush1.msra.mxu0 0.0
        %1454 = vmatprep.subr.mxu0 0.0
        %1455 = vmatpush1.msra.mxu0 0.0
        %1456 = vmatprep.subr.mxu0 0.0
        %1457 = vmatpush1.msra.mxu0 0.0
        %1458 = vmatprep.subr.mxu0 0.0
        %1459 = vmatpush1.msra.mxu0 0.0
        %1460 = vmatprep.subr.mxu0 0.0
        %1461 = vmatpush1.msra.mxu0 0.0
        %1462 = vmatprep.subr.mxu0 0.0
        %1463 = vmatpush1.msra.mxu0 0.0
        %1464 = vmatprep.subr.mxu0 0.0
        %1465 = vmatpush1.msra.mxu0 0.0
        %1466 = vmatprep.subr.mxu0 0.0
        %1467 = vmatpush1.msra.mxu0 0.0
        %1468 = vmatprep.subr.mxu0 0.0
        %1469 = vmatpush1.msra.mxu0 0.0
        %1470 = vmatprep.subr.mxu0 0.0
        %1471 = vmatpush1.msra.mxu0 0.0
        %1472 = vmatprep.subr.mxu0 0.0
        %1473 = vmatpush1.msra.mxu0 0.0
        %1474 = vmatprep.subr.mxu0 0.0
        %1475 = vmatpush1.msra.mxu0 0.0
        %1476 = vmatprep.subr.mxu0 0.0
        %1477 = vmatpush1.msra.mxu0 0.0
        %1478 = vmatprep.subr.mxu0 0.0
        %1479 = vmatpush1.msra.mxu0 0.0
        %1480 = vmatprep.subr.mxu0 0.0
        %1481 = vmatpush1.msra.mxu0 0.0
        %1482 = vmatprep.subr.mxu0 0.0
        %1483 = vmatpush1.msra.mxu0 0.0
        %1484 = vmatprep.subr.mxu0 0.0
        %1485 = vmatpush1.msra.mxu0 0.0
        %1486 = vmatprep.subr.mxu0 0.0
        %1487 = vmatpush1.msra.mxu0 0.0
        %1488 = vmatprep.mubr.f32.mxu0 0.0
        %1489 = vmatmul.mubr.f32.gmra.mrb[0].mxu0 %v1422
        %v1490 = vpop.f32.mrb[0].mxu0
        %v1491 = vadd.f32 %v1414, %v1490
        %v1492 = vpop.f32.mrb[0].mxu0
        %1493 = vdwg.mxu0
        %1495 = vrot.lane.b32.xlu0 %v1491, 64
        %v1496 = vpop.permute.xlu0 %1495
        %vm1498 = vcmask 1048064
        %1499 = vst.msk [vmem:[%s419] sm:$0xff] %vm1498, %v1496
        %v1500 = vmul.f32 %v1239, 1.442695
        %v1501 = vpow.pop %v1500
        %v1502 = vlaneseq
        %v1503 = vshrl.u32 %v1502, 7
        %v1504 = vsub.s32 7, %v1503
        %v1505 = vrot.slane %v1239, %v1504
        %v1506 = vsub.f32 %v1505, %v1239
        %v1507 = vmul.f32 %v1506, 1.442695
        %v1508 = vpow.pop %v1507
        %1510 = vrot.lane.b32.xlu0 %v1508, 64
        %v1511 = vpop.permute.xlu0 %1510
        %v1513 = vmul.f32 %v467, %v1511
        %1515 = vrot.lane.b32.xlu0 %v1513, 64
        %v1516 = vpop.permute.xlu0 %1515
        %1518 = vxpose.xlu0.b32.start [1/16] %v1516, 128
        %1519 = vxpose.xlu0.b32.cont [2/16] 0.0, 128
        %1520 = vxpose.xlu0.b32.cont [3/16] 0.0, 128
        %1521 = vxpose.xlu0.b32.cont [4/16] 0.0, 128
        %1522 = vxpose.xlu0.b32.cont [5/16] 0.0, 128
        %1523 = vxpose.xlu0.b32.cont [6/16] 0.0, 128
        %1524 = vxpose.xlu0.b32.cont [7/16] 0.0, 128
        %1525 = vxpose.xlu0.b32.cont [8/16] 0.0, 128
        %1526 = vxpose.xlu0.b32.cont [9/16] 0.0, 128
        %1527 = vxpose.xlu0.b32.cont [10/16] 0.0, 128
        %1528 = vxpose.xlu0.b32.cont [11/16] 0.0, 128
        %1529 = vxpose.xlu0.b32.cont [12/16] 0.0, 128
        %1530 = vxpose.xlu0.b32.cont [13/16] 0.0, 128
        %1531 = vxpose.xlu0.b32.cont [14/16] 0.0, 128
        %1532 = vxpose.xlu0.b32.cont [15/16] 0.0, 128
        %1533 = vxpose.xlu0.b32.end [16/16] 0.0, 128
        %v1534 = vpop.trf.xlu0
        %v1535 = vpop.trf.xlu0
        %v1536 = vpop.trf.xlu0
        %v1537 = vpop.trf.xlu0
        %v1538 = vpop.trf.xlu0
        %v1539 = vpop.trf.xlu0
        %v1540 = vpop.trf.xlu0
        %v1541 = vpop.trf.xlu0
        %v1542 = vpop.trf.xlu0
        %v1543 = vpop.trf.xlu0
        %v1544 = vpop.trf.xlu0
        %v1545 = vpop.trf.xlu0
        %v1546 = vpop.trf.xlu0
        %v1547 = vpop.trf.xlu0
        %v1548 = vpop.trf.xlu0
        %v1549 = vpop.trf.xlu0
        %v1551 = vsel %vm479, %v1534, 0
        %v1554 = vsel %vm479, %v1535, 0
        %v1557 = vsel %vm479, %v1536, 0
        %v1560 = vsel %vm479, %v1537, 0
        %v1563 = vsel %vm479, %v1538, 0
        %v1566 = vsel %vm479, %v1539, 0
        %v1569 = vsel %vm479, %v1540, 0
        %v1572 = vsel %vm479, %v1541, 0
        %1574 = vmatprep.subr.mxu0 0.0
        %1575 = vmatpush1.msra.mxu0 %v1419
        %1576 = vmatprep.subr.mxu0 0.0
        %1577 = vmatpush1.msra.mxu0 0.0
        %1578 = vmatprep.subr.mxu0 0.0
        %1579 = vmatpush1.msra.mxu0 0.0
        %1580 = vmatprep.subr.mxu0 0.0
        %1581 = vmatpush1.msra.mxu0 0.0
        %1582 = vmatprep.subr.mxu0 0.0
        %1583 = vmatpush1.msra.mxu0 0.0
        %1584 = vmatprep.subr.mxu0 0.0
        %1585 = vmatpush1.msra.mxu0 0.0
        %1586 = vmatprep.subr.mxu0 0.0
        %1587 = vmatpush1.msra.mxu0 0.0
        %1588 = vmatprep.subr.mxu0 0.0
        %1589 = vmatpush1.msra.mxu0 0.0
        %1590 = vmatprep.subr.mxu0 0.0
        %1591 = vmatpush1.msra.mxu0 0.0
        %1592 = vmatprep.subr.mxu0 0.0
        %1593 = vmatpush1.msra.mxu0 0.0
        %1594 = vmatprep.subr.mxu0 0.0
        %1595 = vmatpush1.msra.mxu0 0.0
        %1596 = vmatprep.subr.mxu0 0.0
        %1597 = vmatpush1.msra.mxu0 0.0
        %1598 = vmatprep.subr.mxu0 0.0
        %1599 = vmatpush1.msra.mxu0 0.0
        %1600 = vmatprep.subr.mxu0 0.0
        %1601 = vmatpush1.msra.mxu0 0.0
        %1602 = vmatprep.subr.mxu0 0.0
        %1603 = vmatpush1.msra.mxu0 0.0
        %1604 = vmatprep.subr.mxu0 0.0
        %1605 = vmatpush1.msra.mxu0 0.0
        %1606 = vmatprep.subr.mxu0 0.0
        %1607 = vmatpush1.msra.mxu0 0.0
        %1608 = vmatprep.subr.mxu0 0.0
        %1609 = vmatpush1.msra.mxu0 0.0
        %1610 = vmatprep.subr.mxu0 0.0
        %1611 = vmatpush1.msra.mxu0 0.0
        %1612 = vmatprep.subr.mxu0 0.0
        %1613 = vmatpush1.msra.mxu0 0.0
        %1614 = vmatprep.subr.mxu0 0.0
        %1615 = vmatpush1.msra.mxu0 0.0
        %1616 = vmatprep.subr.mxu0 0.0
        %1617 = vmatpush1.msra.mxu0 0.0
        %1618 = vmatprep.subr.mxu0 0.0
        %1619 = vmatpush1.msra.mxu0 0.0
        %1620 = vmatprep.subr.mxu0 0.0
        %1621 = vmatpush1.msra.mxu0 0.0
        %1622 = vmatprep.subr.mxu0 0.0
        %1623 = vmatpush1.msra.mxu0 0.0
        %1624 = vmatprep.subr.mxu0 0.0
        %1625 = vmatpush1.msra.mxu0 0.0
        %1626 = vmatprep.subr.mxu0 0.0
        %1627 = vmatpush1.msra.mxu0 0.0
        %1628 = vmatprep.subr.mxu0 0.0
        %1629 = vmatpush1.msra.mxu0 0.0
        %1630 = vmatprep.subr.mxu0 0.0
        %1631 = vmatpush1.msra.mxu0 0.0
        %1632 = vmatprep.subr.mxu0 0.0
        %1633 = vmatpush1.msra.mxu0 0.0
        %1634 = vmatprep.subr.mxu0 0.0
        %1635 = vmatpush1.msra.mxu0 0.0
        %1636 = vmatprep.subr.mxu0 0.0
        %1637 = vmatpush1.msra.mxu0 0.0
        %1638 = vmatprep.mubr.f32.mxu0 0.0
        %1639 = vmatmul.mubr.f32.gmra.mrb[0].mxu0 %v1551
        %v1640 = vpop.f32.mrb[0].mxu0
        %v1641 = vadd.f32 0.0, %v1640
        %v1642 = vpop.f32.mrb[0].mxu0
        %1643 = vmatprep.mubr.f32.mxu0 0.0
        %1644 = vmatmul.mubr.f32.gmra.mrb[0].mxu0 %v1554
        %v1645 = vpop.f32.mrb[0].mxu0
        %v1646 = vadd.f32 0.0, %v1645
        %v1647 = vpop.f32.mrb[0].mxu0
        %1648 = vmatprep.mubr.f32.mxu0 0.0
        %1649 = vmatmul.mubr.f32.gmra.mrb[0].mxu0 %v1557
        %v1650 = vpop.f32.mrb[0].mxu0
        %v1651 = vadd.f32 0.0, %v1650
        %v1652 = vpop.f32.mrb[0].mxu0
        %1653 = vmatprep.mubr.f32.mxu0 0.0
        %1654 = vmatmul.mubr.f32.gmra.mrb[0].mxu0 %v1560
        %v1655 = vpop.f32.mrb[0].mxu0
        %v1656 = vadd.f32 0.0, %v1655
        %v1657 = vpop.f32.mrb[0].mxu0
        %1658 = vmatprep.mubr.f32.mxu0 0.0
        %1659 = vmatmul.mubr.f32.gmra.mrb[0].mxu0 %v1563
        %v1660 = vpop.f32.mrb[0].mxu0
        %v1661 = vadd.f32 0.0, %v1660
        %v1662 = vpop.f32.mrb[0].mxu0
        %1663 = vmatprep.mubr.f32.mxu0 0.0
        %1664 = vmatmul.mubr.f32.gmra.mrb[0].mxu0 %v1566
        %v1665 = vpop.f32.mrb[0].mxu0
        %v1666 = vadd.f32 0.0, %v1665
        %v1667 = vpop.f32.mrb[0].mxu0
        %1668 = vmatprep.mubr.f32.mxu0 0.0
        %1669 = vmatmul.mubr.f32.gmra.mrb[0].mxu0 %v1569
        %v1670 = vpop.f32.mrb[0].mxu0
        %v1671 = vadd.f32 0.0, %v1670
        %v1672 = vpop.f32.mrb[0].mxu0
        %1673 = vmatprep.mubr.f32.mxu0 0.0
        %1674 = vmatmul.mubr.f32.gmra.mrb[0].mxu0 %v1572
        %v1675 = vpop.f32.mrb[0].mxu0
        %v1676 = vadd.f32 0.0, %v1675
        %v1677 = vpop.f32.mrb[0].mxu0
        %1678 = vdwg.mxu0
        %v1680 = vrot.slane %v1501, 7
        %1682 = vxpose.xlu0.b32.start [1/16] %v1680, 128
        %1683 = vxpose.xlu0.b32.cont [2/16] 0.0, 128
        %1684 = vxpose.xlu0.b32.cont [3/16] 0.0, 128
        %1685 = vxpose.xlu0.b32.cont [4/16] 0.0, 128
        %1686 = vxpose.xlu0.b32.cont [5/16] 0.0, 128
        %1687 = vxpose.xlu0.b32.cont [6/16] 0.0, 128
        %1688 = vxpose.xlu0.b32.cont [7/16] 0.0, 128
        %1689 = vxpose.xlu0.b32.cont [8/16] 0.0, 128
        %1690 = vxpose.xlu0.b32.cont [9/16] 0.0, 128
        %1691 = vxpose.xlu0.b32.cont [10/16] 0.0, 128
        %1692 = vxpose.xlu0.b32.cont [11/16] 0.0, 128
        %1693 = vxpose.xlu0.b32.cont [12/16] 0.0, 128
        %1694 = vxpose.xlu0.b32.cont [13/16] 0.0, 128
        %1695 = vxpose.xlu0.b32.cont [14/16] 0.0, 128
        %1696 = vxpose.xlu0.b32.cont [15/16] 0.0, 128
        %1697 = vxpose.xlu0.b32.end [16/16] 0.0, 128
        %v1698 = vpop.trf.xlu0
        %v1699 = vpop.trf.xlu0
        %v1700 = vpop.trf.xlu0
        %v1701 = vpop.trf.xlu0
        %v1702 = vpop.trf.xlu0
        %v1703 = vpop.trf.xlu0
        %v1704 = vpop.trf.xlu0
        %v1705 = vpop.trf.xlu0
        %v1706 = vpop.trf.xlu0
        %v1707 = vpop.trf.xlu0
        %v1708 = vpop.trf.xlu0
        %v1709 = vpop.trf.xlu0
        %v1710 = vpop.trf.xlu0
        %v1711 = vpop.trf.xlu0
        %v1712 = vpop.trf.xlu0
        %v1713 = vpop.trf.xlu0
        %v1715 = vsel %vm1001, %v1698, 0
        %v1718 = vsel %vm1001, %v1699, 0
        %v1721 = vsel %vm1001, %v1700, 0
        %v1724 = vsel %vm1001, %v1701, 0
        %v1727 = vsel %vm1001, %v1702, 0
        %v1730 = vsel %vm1001, %v1703, 0
        %v1733 = vsel %vm1001, %v1704, 0
        %v1736 = vsel %vm1001, %v1705, 0
        %1738 = vmatprep.subr.mxu0 0.0
        %1739 = vmatpush1.msra.mxu0 %v1028
        %1740 = vmatprep.subr.mxu0 0.0
        %1741 = vmatpush1.msra.mxu0 0.0
        %1742 = vmatprep.subr.mxu0 0.0
        %1743 = vmatpush1.msra.mxu0 0.0
        %1744 = vmatprep.subr.mxu0 0.0
        %1745 = vmatpush1.msra.mxu0 0.0
        %1746 = vmatprep.subr.mxu0 0.0
        %1747 = vmatpush1.msra.mxu0 0.0
        %1748 = vmatprep.subr.mxu0 0.0
        %1749 = vmatpush1.msra.mxu0 0.0
        %1750 = vmatprep.subr.mxu0 0.0
        %1751 = vmatpush1.msra.mxu0 0.0
        %1752 = vmatprep.subr.mxu0 0.0
        %1753 = vmatpush1.msra.mxu0 0.0
        %1754 = vmatprep.subr.mxu0 0.0
        %1755 = vmatpush1.msra.mxu0 0.0
        %1756 = vmatprep.subr.mxu0 0.0
        %1757 = vmatpush1.msra.mxu0 0.0
        %1758 = vmatprep.subr.mxu0 0.0
        %1759 = vmatpush1.msra.mxu0 0.0
        %1760 = vmatprep.subr.mxu0 0.0
        %1761 = vmatpush1.msra.mxu0 0.0
        %1762 = vmatprep.subr.mxu0 0.0
        %1763 = vmatpush1.msra.mxu0 0.0
        %1764 = vmatprep.subr.mxu0 0.0
        %1765 = vmatpush1.msra.mxu0 0.0
        %1766 = vmatprep.subr.mxu0 0.0
        %1767 = vmatpush1.msra.mxu0 0.0
        %1768 = vmatprep.subr.mxu0 0.0
        %1769 = vmatpush1.msra.mxu0 0.0
        %1770 = vmatprep.subr.mxu0 0.0
        %1771 = vmatpush1.msra.mxu0 0.0
        %1772 = vmatprep.subr.mxu0 0.0
        %1773 = vmatpush1.msra.mxu0 0.0
        %1774 = vmatprep.subr.mxu0 0.0
        %1775 = vmatpush1.msra.mxu0 0.0
        %1776 = vmatprep.subr.mxu0 0.0
        %1777 = vmatpush1.msra.mxu0 0.0
        %1778 = vmatprep.subr.mxu0 0.0
        %1779 = vmatpush1.msra.mxu0 0.0
        %1780 = vmatprep.subr.mxu0 0.0
        %1781 = vmatpush1.msra.mxu0 0.0
        %1782 = vmatprep.subr.mxu0 0.0
        %1783 = vmatpush1.msra.mxu0 0.0
        %1784 = vmatprep.subr.mxu0 0.0
        %1785 = vmatpush1.msra.mxu0 0.0
        %1786 = vmatprep.subr.mxu0 0.0
        %1787 = vmatpush1.msra.mxu0 0.0
        %1788 = vmatprep.subr.mxu0 0.0
        %1789 = vmatpush1.msra.mxu0 0.0
        %1790 = vmatprep.subr.mxu0 0.0
        %1791 = vmatpush1.msra.mxu0 0.0
        %1792 = vmatprep.subr.mxu0 0.0
        %1793 = vmatpush1.msra.mxu0 0.0
        %1794 = vmatprep.subr.mxu0 0.0
        %1795 = vmatpush1.msra.mxu0 0.0
        %1796 = vmatprep.subr.mxu0 0.0
        %1797 = vmatpush1.msra.mxu0 0.0
        %1798 = vmatprep.subr.mxu0 0.0
        %1799 = vmatpush1.msra.mxu0 0.0
        %1800 = vmatprep.subr.mxu0 0.0
        %1801 = vmatpush1.msra.mxu0 0.0
        %1802 = vmatprep.mubr.f32.mxu0 0.0
        %1803 = vmatmul.mubr.f32.gmra.mrb[0].mxu0 %v1715
        %v1804 = vpop.f32.mrb[0].mxu0
        %v1805 = vadd.f32 0.0, %v1804
        %v1806 = vpop.f32.mrb[0].mxu0
        %1807 = vmatprep.mubr.f32.mxu0 0.0
        %1808 = vmatmul.mubr.f32.gmra.mrb[0].mxu0 %v1718
        %v1809 = vpop.f32.mrb[0].mxu0
        %v1810 = vadd.f32 0.0, %v1809
        %v1811 = vpop.f32.mrb[0].mxu0
        %1812 = vmatprep.mubr.f32.mxu0 0.0
        %1813 = vmatmul.mubr.f32.gmra.mrb[0].mxu0 %v1721
        %v1814 = vpop.f32.mrb[0].mxu0
        %v1815 = vadd.f32 0.0, %v1814
        %v1816 = vpop.f32.mrb[0].mxu0
        %1817 = vmatprep.mubr.f32.mxu0 0.0
        %1818 = vmatmul.mubr.f32.gmra.mrb[0].mxu0 %v1724
        %v1819 = vpop.f32.mrb[0].mxu0
        %v1820 = vadd.f32 0.0, %v1819
        %v1821 = vpop.f32.mrb[0].mxu0
        %1822 = vmatprep.mubr.f32.mxu0 0.0
        %1823 = vmatmul.mubr.f32.gmra.mrb[0].mxu0 %v1727
        %v1824 = vpop.f32.mrb[0].mxu0
        %v1825 = vadd.f32 0.0, %v1824
        %v1826 = vpop.f32.mrb[0].mxu0
        %1827 = vmatprep.mubr.f32.mxu0 0.0
        %1828 = vmatmul.mubr.f32.gmra.mrb[0].mxu0 %v1730
        %v1829 = vpop.f32.mrb[0].mxu0
        %v1830 = vadd.f32 0.0, %v1829
        %v1831 = vpop.f32.mrb[0].mxu0
        %1832 = vmatprep.mubr.f32.mxu0 0.0
        %1833 = vmatmul.mubr.f32.gmra.mrb[0].mxu0 %v1733
        %v1834 = vpop.f32.mrb[0].mxu0
        %v1835 = vadd.f32 0.0, %v1834
        %v1836 = vpop.f32.mrb[0].mxu0
        %1837 = vmatprep.mubr.f32.mxu0 0.0
        %1838 = vmatmul.mubr.f32.gmra.mrb[0].mxu0 %v1736
        %v1839 = vpop.f32.mrb[0].mxu0
        %v1840 = vadd.f32 0.0, %v1839
        %v1841 = vpop.f32.mrb[0].mxu0
        %1842 = vdwg.mxu0
        %v1843 = vmul.f32 %v1805, %v1160
        %v1844 = vmul.f32 %v1810, %v1161
        %v1845 = vmul.f32 %v1815, %v1162
        %v1846 = vmul.f32 %v1820, %v1163
        %v1847 = vmul.f32 %v1825, %v1164
        %v1848 = vmul.f32 %v1830, %v1165
        %v1849 = vmul.f32 %v1835, %v1166
        %v1850 = vmul.f32 %v1840, %v1167
        %v1851 = vadd.f32 %v1843, %v1641
        %v1852 = vadd.f32 %v1844, %v1646
        %v1853 = vadd.f32 %v1845, %v1651
        %v1854 = vadd.f32 %v1846, %v1656
        %v1855 = vadd.f32 %v1847, %v1661
        %v1856 = vadd.f32 %v1848, %v1666
        %v1857 = vadd.f32 %v1849, %v1671
        %v1858 = vadd.f32 %v1850, %v1676
        %1859 = vst.msk [vmem:[%s1159] sm:$0xff] %vm561, %v1851
        %1860 = vst.msk [vmem:[%s1159 + $0x8] sm:$0xff] %vm561, %v1852
        %1861 = vst.msk [vmem:[%s1159 + $0x10] sm:$0xff] %vm561, %v1853
        %1862 = vst.msk [vmem:[%s1159 + $0x18] sm:$0xff] %vm561, %v1854
        %1863 = vst.msk [vmem:[%s1159 + $0x20] sm:$0xff] %vm561, %v1855
        %1864 = vst.msk [vmem:[%s1159 + $0x28] sm:$0xff] %vm561, %v1856
        %1865 = vst.msk [vmem:[%s1159 + $0x30] sm:$0xff] %vm561, %v1857
        %1866 = vst.msk [vmem:[%s1159 + $0x38] sm:$0xff] %vm561, %v1858
        %v1867 = vld [vmem:[#allocation2] sm:$0xff]
        %v1868 = vld [vmem:[#allocation2 + $0x8] sm:$0xff]
        %v1869 = vld [vmem:[#allocation2 + $0x10] sm:$0xff]
        %v1870 = vld [vmem:[#allocation2 + $0x18] sm:$0xff]
        %v1871 = vld [vmem:[#allocation2 + $0x20] sm:$0xff]
        %v1872 = vld [vmem:[#allocation2 + $0x28] sm:$0xff]
        %v1873 = vld [vmem:[#allocation2 + $0x30] sm:$0xff]
        %v1874 = vld [vmem:[#allocation2 + $0x38] sm:$0xff]
        %v1875 = vld [vmem:[#allocation2 + $0x40] sm:$0xff]
        %v1876 = vld [vmem:[#allocation2 + $0x48] sm:$0xff]
        %v1877 = vld [vmem:[#allocation2 + $0x50] sm:$0xff]
        %v1878 = vld [vmem:[#allocation2 + $0x58] sm:$0xff]
        %v1879 = vld [vmem:[#allocation2 + $0x60] sm:$0xff]
        %v1880 = vld [vmem:[#allocation2 + $0x68] sm:$0xff]
        %v1881 = vld [vmem:[#allocation2 + $0x70] sm:$0xff]
        %v1882 = vld [vmem:[#allocation2 + $0x78] sm:$0xff]
        %1883 = vst.msk [vmem:[%s379] sm:$0xff] %vm561, %v1867
        %1884 = vst.msk [vmem:[%s379 + $0x8] sm:$0xff] %vm561, %v1868
        %1885 = vst.msk [vmem:[%s379 + $0x10] sm:$0xff] %vm561, %v1869
        %1886 = vst.msk [vmem:[%s379 + $0x18] sm:$0xff] %vm561, %v1870
        %1887 = vst.msk [vmem:[%s379 + $0x20] sm:$0xff] %vm561, %v1871
        %1888 = vst.msk [vmem:[%s379 + $0x28] sm:$0xff] %vm561, %v1872
        %1889 = vst.msk [vmem:[%s379 + $0x30] sm:$0xff] %vm561, %v1873
        %1890 = vst.msk [vmem:[%s379 + $0x38] sm:$0xff] %vm561, %v1874
        %1891 = vst.msk [vmem:[%s379 + $0x40] sm:$0xff] %vm561, %v1875
        %1892 = vst.msk [vmem:[%s379 + $0x48] sm:$0xff] %vm561, %v1876
        %1893 = vst.msk [vmem:[%s379 + $0x50] sm:$0xff] %vm561, %v1877
        %1894 = vst.msk [vmem:[%s379 + $0x58] sm:$0xff] %vm561, %v1878
        %1895 = vst.msk [vmem:[%s379 + $0x60] sm:$0xff] %vm561, %v1879
        %1896 = vst.msk [vmem:[%s379 + $0x68] sm:$0xff] %vm561, %v1880
        %1897 = vst.msk [vmem:[%s379 + $0x70] sm:$0xff] %vm561, %v1881
        %1898 = vst.msk [vmem:[%s379 + $0x78] sm:$0xff] %vm561, %v1882
        %p1899 = scmp.lt.s32.totalorder %s26, 1
        %s1900 = scalar_select %p1899, %s26, 1
        %p1901 = scmp.lt.s32.totalorder %s27, 0
        %s1902 = scalar_select %p1901, %s27, 0
        %s1903 = sadd.s32 %s1902, %s1900
        %s1904 = smul.addr %s1903, 8
        %s1905 = scalar_lea.vmem %s6, %s1904
        %s1906 = sand.u32 %s229, 1
        %s1907 = scalar_lea.sflag [#allocation4], %s1906
        %s1908 = sand.u32 %s229, 1
        %s1909 = smul.addr %s1908, 128
        %s1910 = scalar_lea.vmem [#allocation3], %s1909
        // Predicated region
        $region49: #{block_forward.5} parent=43 // pred_check
          %p1911 = pneg %p213
        $region50: #{block_forward.5} parent=43 // pred_check_branch
          %1913 = sbr.rel (%p1911) target = $region52
        $region51: #{block_forward.5} parent=43 // pred_region
          _
        $region52: #{block_forward.5} parent=43 // pred_fallthru
          _
        // Predicated region
        $region53: #{block_forward.5} parent=43 // pred_check
          %p1914 = pneg %p239
        $region54: #{block_forward.5} parent=43 // pred_check_branch
          %1916 = sbr.rel (%p1914) target = $region56
        $region55: #{block_forward.5} parent=43 // pred_region
          %s1918 = ssub.s32 2048, 2048
          %1919 = vsyncadd %s1907, %s1918
          %s1920 = smul.addr %s26, 16
          %s1921 = smul.addr %s1920, 128
          %s1922 = scalar_lea.hbm %s7, %s1921
          %s1923 = sshll.u32 %s1910, 4
          %s1924 = int_to_ptr.vmem [resolvable:$true] %s1923
          %1929 = dma.vmem_to_hbm [thread:$0]  %s1924, 2048, %s1922, %s1907, 128, 128, 8
        $region56: #{block_forward.5} parent=43 // pred_fallthru
          _
      $region44: #{block_forward.5} parent=5 // pred_fallthru
        _
      %p1930 = scmp.le.s32.totalorder 2, %s17
      // Predicated region
      $region57: #{block_forward.5} parent=5 // pred_check
        %p1931 = pneg %p1930
      $region58: #{block_forward.5} parent=5 // pred_check_branch
        %1933 = sbr.rel (%p1931) target = $region60
      $region59: #{block_forward.5} parent=5 // pred_region
        %s1934 = ssub.s32 %s17, 2
        // Predicated region
        $region61: #{block_forward.5} parent=59 // pred_check
          %p1935 = pneg %p219
        $region62: #{block_forward.5} parent=59 // pred_check_branch
          %1937 = sbr.rel (%p1935) target = $region64
        $region63: #{block_forward.5} parent=59 // pred_region
          %p1938 = scmp.lt.s32.totalorder %s28, 1
          %s1939 = scalar_select %p1938, %s28, 1
          %p1940 = scmp.lt.s32.totalorder %s29, 0
          %s1941 = scalar_select %p1940, %s29, 0
          %s1942 = sadd.s32 %s1941, %s1939
          %s1943 = smul.addr %s1942, 8
          %s1944 = scalar_lea.vmem %s6, %s1943
        $region64: #{block_forward.5} parent=59 // pred_fallthru
          _
        // Predicated region
        $region65: #{block_forward.5} parent=59 // pred_check
          %p1945 = pneg %p245
        $region66: #{block_forward.5} parent=59 // pred_check_branch
          %1947 = sbr.rel (%p1945) target = $region68
        $region67: #{block_forward.5} parent=59 // pred_region
          %s1948 = sand.u32 %s230, 1
          %s1949 = scalar_lea.sflag [#allocation4], %s1948
          %s1950 = sand.u32 %s230, 1
          %s1951 = smul.addr %s1950, 128
          %s1952 = scalar_lea.vmem [#allocation3], %s1951
          %1953 = dma.done %s1949, 2048
        $region68: #{block_forward.5} parent=59 // pred_fallthru
          _
      $region60: #{block_forward.5} parent=5 // pred_fallthru
        _
    $region6: #{block_forward.5} parent=1 // loop_footer
      %s21 = sadd.s32 1, %s17
    $region7: #{block_forward.5} parent=1 // loop_footer_branch
      %16 = sbr.rel target = $region3
    $region8: #{block_forward.5} parent=1 // loop_exit
      _
    %1954 = vsyncpa [#allocation4], 1
    %s1955 = scalar_lea.sflag [#allocation4], 1
    %1956 = vsyncpa %s1955, 1

// kernel: block_forward.7
$region0: #{block_forward.7}
  #allocation0 [shape = 'u32[]', space=smem, size = 0x4, offset = 0x4, fixed_abs, tag = 'smem constant byte address 0x4 - core index']
  #allocation1 [shape = 'u32[144,128]{1,0:T(1,128)}', space=vmem, size = 0x12000, scoped, tag = 'internal scratch']
  %s0 = inlined_call_operand.vmem [shape: f32[2,8,128], index: 0, kind: input, shape index: {}]
  %s1 = inlined_call_operand.vmem [shape: f32[2,1,128], index: 1, kind: input, shape index: {}]
  %s2 = inlined_call_operand.vmem [shape: f32[1,128], index: 2, kind: input, shape index: {}]
  %s3 = inlined_call_operand.vmem [shape: f32[1,128], index: 3, kind: input, shape index: {}]
  %s4 = inlined_call_operand.vmem [shape: f32[1,128], index: 4, kind: input, shape index: {}]
  %s5 = inlined_call_operand.vmem [shape: f32[1,128], index: 5, kind: input, shape index: {}]
  %s6 = inlined_call_operand.vmem [shape: bf16[128,448], index: 6, kind: input, shape index: {}]
  %s7 = inlined_call_operand.vmem [shape: bf16[448,128], index: 7, kind: input, shape index: {}]
  %s8 = inlined_call_operand.vmem [shape: bf16[128,128], index: 8, kind: input, shape index: {}]
  %s9 = inlined_call_operand.hbm [shape: f32[2,8,128], index: 9, kind: output, shape index: {0}]
  %s10 = inlined_call_operand.hbm [shape: f32[2,1,128], index: 10, kind: output, shape index: {1}]
  %11 = xla_tuple %s9, %s10
  %s12 = sld [smem:[#allocation0]]
  $region77: #{block_forward.7} parent=0
    _
  %s14 = ssub.s32 1, %s12
  %s15 = scalar_select 0, %s14, %s12
  $region1: #{block_forward.7} parent=0
    #allocation2 [shape = 'u8[8192]{0}', space=vmem, size = 0x2000, scoped, tag = 'output window, operand 0']
    #allocation3 [shape = 's32[2]{0}', space=sflag, size = 0x8, scoped, tag = 'scoped memory for block_forward.7']
    #allocation4 [shape = 'u8[1024]{0}', space=vmem, size = 0x400, scoped, tag = 'output window, operand 1']
    #allocation5 [shape = 's32[2]{0}', space=sflag, size = 0x8, scoped, tag = 'scoped memory for block_forward.7']
    %16 = vsyncpa [#allocation3], 0
    %s17 = scalar_lea.sflag [#allocation3], 1
    %18 = vsyncpa %s17, 0
    %19 = vsyncpa [#allocation5], 0
    %s20 = scalar_lea.sflag [#allocation5], 1
    %21 = vsyncpa %s20, 0
    loop: start=0, step=1, limit=4
    $region2: #{block_forward.7} parent=1 // loop_pre_header
      _
    $region3: #{block_forward.7} parent=1 // loop_header
      %s23 = sphi 0, %s27
      %p24 = scmp.ge.s32.totalorder %s23, 4
      %s33 = sphi 0, %s35
      %s36 = sphi 0, %s33
      %s37 = sphi 0, %s36
      %s53 = sphi 0, %s37
      %s59 = sphi 0, %s61
      %s62 = sphi 0, %s59
      %s63 = sphi 0, %s62
      %s79 = sphi 0, %s63
      %s83 = sphi 0, %s83
      %s85 = sphi 0, %s83
      %s86 = sphi 0, %s85
      %s100 = sphi 0, %s86
      %s104 = sphi 0, %s104
      %s106 = sphi 0, %s104
      %s107 = sphi 0, %s106
      %s121 = sphi 0, %s107
      %s125 = sphi 0, %s125
      %s127 = sphi 0, %s125
      %s128 = sphi 0, %s127
      %s142 = sphi 0, %s128
      %s146 = sphi 0, %s146
      %s148 = sphi 0, %s146
      %s149 = sphi 0, %s148
      %s163 = sphi 0, %s149
      %s167 = sphi 0, %s167
      %s169 = sphi 0, %s167
      %s170 = sphi 0, %s169
      %s184 = sphi 0, %s170
      %s188 = sphi 0, %s188
      %s190 = sphi 0, %s188
      %s191 = sphi 0, %s190
      %s205 = sphi 0, %s191
      %s209 = sphi 0, %s209
      %s211 = sphi 0, %s209
      %s212 = sphi 0, %s211
      %s226 = sphi 0, %s212
      %s232 = sphi 0, %s234
      %s235 = sphi 0, %s232
      %s236 = sphi 0, %s235
      %s252 = sphi 0, %s236
      %s258 = sphi 0, %s260
      %s261 = sphi 0, %s258
      %s262 = sphi 0, %s261
      %s278 = sphi 0, %s262
    $region4: #{block_forward.7} parent=1 // loop_header_branch
      %26 = sbr.rel (%p24) target = $region8
    $region5: #{block_forward.7} parent=1 // loop_body
      %s28 = ssub.s32 %s23, 1
      %s29 = ssub.s32 %s23, 2
      %s30 = sadd.s32 %s23, 1
      %s31 = ssub.s32 %s23, %s30
      %p32 = scmp.eq.s32.totalorder %s31, 0
      %s34 = sadd.s32 %s33, 1
      %s35 = scalar_select %p32, %s33, %s34
      %p38 = pneg %p32
      %p39 = scmp.eq.s32.totalorder %s23, 1
      %p40 = por %p38, %p39
      %p41 = scmp.ne.s32.totalorder %s33, %s36
      %p42 = scmp.eq.s32.totalorder %s23, 0
      %p43 = por %p41, %p42
      %p44 = scmp.ne.s32.totalorder %s33, %s36
      %p45 = scmp.eq.s32.totalorder %s28, 1
      %p46 = por %p44, %p45
      %p47 = scmp.ne.s32.totalorder %s36, %s37
      %p48 = scmp.eq.s32.totalorder %s28, 0
      %p49 = por %p47, %p48
      %p50 = scmp.ne.s32.totalorder %s36, %s37
      %p51 = scmp.eq.s32.totalorder %s29, 1
      %p52 = por %p50, %p51
      %p54 = scmp.ne.s32.totalorder %s37, %s53
      %p55 = scmp.eq.s32.totalorder %s29, 0
      %p56 = por %p54, %p55
      %s57 = ssub.s32 %s23, %s30
      %p58 = scmp.eq.s32.totalorder %s57, 0
      %s60 = sadd.s32 %s59, 1
      %s61 = scalar_select %p58, %s59, %s60
      %p64 = pneg %p58
      %p65 = scmp.eq.s32.totalorder %s23, 1
      %p66 = por %p64, %p65
      %p67 = scmp.ne.s32.totalorder %s59, %s62
      %p68 = scmp.eq.s32.totalorder %s23, 0
      %p69 = por %p67, %p68
      %p70 = scmp.ne.s32.totalorder %s59, %s62
      %p71 = scmp.eq.s32.totalorder %s28, 1
      %p72 = por %p70, %p71
      %p73 = scmp.ne.s32.totalorder %s62, %s63
      %p74 = scmp.eq.s32.totalorder %s28, 0
      %p75 = por %p73, %p74
      %p76 = scmp.ne.s32.totalorder %s62, %s63
      %p77 = scmp.eq.s32.totalorder %s29, 1
      %p78 = por %p76, %p77
      %p80 = scmp.ne.s32.totalorder %s63, %s79
      %p81 = scmp.eq.s32.totalorder %s29, 0
      %p82 = por %p80, %p81
      %s84 = sadd.s32 %s83, 1
      %p87 = scmp.eq.s32.totalorder %s23, 1
      %p88 = scmp.ne.s32.totalorder %s83, %s85
      %p89 = scmp.eq.s32.totalorder %s23, 0
      %p90 = por %p88, %p89
      %p91 = scmp.ne.s32.totalorder %s83, %s85
      %p92 = scmp.eq.s32.totalorder %s28, 1
      %p93 = por %p91, %p92
      %p94 = scmp.ne.s32.totalorder %s85, %s86
      %p95 = scmp.eq.s32.totalorder %s28, 0
      %p96 = por %p94, %p95
      %p97 = scmp.ne.s32.totalorder %s85, %s86
      %p98 = scmp.eq.s32.totalorder %s29, 1
      %p99 = por %p97, %p98
      %p101 = scmp.ne.s32.totalorder %s86, %s100
      %p102 = scmp.eq.s32.totalorder %s29, 0
      %p103 = por %p101, %p102
      %s105 = sadd.s32 %s104, 1
      %p108 = scmp.eq.s32.totalorder %s23, 1
      %p109 = scmp.ne.s32.totalorder %s104, %s106
      %p110 = scmp.eq.s32.totalorder %s23, 0
      %p111 = por %p109, %p110
      %p112 = scmp.ne.s32.totalorder %s104, %s106
      %p113 = scmp.eq.s32.totalorder %s28, 1
      %p114 = por %p112, %p113
      %p115 = scmp.ne.s32.totalorder %s106, %s107
      %p116 = scmp.eq.s32.totalorder %s28, 0
      %p117 = por %p115, %p116
      %p118 = scmp.ne.s32.totalorder %s106, %s107
      %p119 = scmp.eq.s32.totalorder %s29, 1
      %p120 = por %p118, %p119
      %p122 = scmp.ne.s32.totalorder %s107, %s121
      %p123 = scmp.eq.s32.totalorder %s29, 0
      %p124 = por %p122, %p123
      %s126 = sadd.s32 %s125, 1
      %p129 = scmp.eq.s32.totalorder %s23, 1
      %p130 = scmp.ne.s32.totalorder %s125, %s127
      %p131 = scmp.eq.s32.totalorder %s23, 0
      %p132 = por %p130, %p131
      %p133 = scmp.ne.s32.totalorder %s125, %s127
      %p134 = scmp.eq.s32.totalorder %s28, 1
      %p135 = por %p133, %p134
      %p136 = scmp.ne.s32.totalorder %s127, %s128
      %p137 = scmp.eq.s32.totalorder %s28, 0
      %p138 = por %p136, %p137
      %p139 = scmp.ne.s32.totalorder %s127, %s128
      %p140 = scmp.eq.s32.totalorder %s29, 1
      %p141 = por %p139, %p140
      %p143 = scmp.ne.s32.totalorder %s128, %s142
      %p144 = scmp.eq.s32.totalorder %s29, 0
      %p145 = por %p143, %p144
      %s147 = sadd.s32 %s146, 1
      %p150 = scmp.eq.s32.totalorder %s23, 1
      %p151 = scmp.ne.s32.totalorder %s146, %s148
      %p152 = scmp.eq.s32.totalorder %s23, 0
      %p153 = por %p151, %p152
      %p154 = scmp.ne.s32.totalorder %s146, %s148
      %p155 = scmp.eq.s32.totalorder %s28, 1
      %p156 = por %p154, %p155
      %p157 = scmp.ne.s32.totalorder %s148, %s149
      %p158 = scmp.eq.s32.totalorder %s28, 0
      %p159 = por %p157, %p158
      %p160 = scmp.ne.s32.totalorder %s148, %s149
      %p161 = scmp.eq.s32.totalorder %s29, 1
      %p162 = por %p160, %p161
      %p164 = scmp.ne.s32.totalorder %s149, %s163
      %p165 = scmp.eq.s32.totalorder %s29, 0
      %p166 = por %p164, %p165
      %s168 = sadd.s32 %s167, 1
      %p171 = scmp.eq.s32.totalorder %s23, 1
      %p172 = scmp.ne.s32.totalorder %s167, %s169
      %p173 = scmp.eq.s32.totalorder %s23, 0
      %p174 = por %p172, %p173
      %p175 = scmp.ne.s32.totalorder %s167, %s169
      %p176 = scmp.eq.s32.totalorder %s28, 1
      %p177 = por %p175, %p176
      %p178 = scmp.ne.s32.totalorder %s169, %s170
      %p179 = scmp.eq.s32.totalorder %s28, 0
      %p180 = por %p178, %p179
      %p181 = scmp.ne.s32.totalorder %s169, %s170
      %p182 = scmp.eq.s32.totalorder %s29, 1
      %p183 = por %p181, %p182
      %p185 = scmp.ne.s32.totalorder %s170, %s184
      %p186 = scmp.eq.s32.totalorder %s29, 0
      %p187 = por %p185, %p186
      %s189 = sadd.s32 %s188, 1
      %p192 = scmp.eq.s32.totalorder %s23, 1
      %p193 = scmp.ne.s32.totalorder %s188, %s190
      %p194 = scmp.eq.s32.totalorder %s23, 0
      %p195 = por %p193, %p194
      %p196 = scmp.ne.s32.totalorder %s188, %s190
      %p197 = scmp.eq.s32.totalorder %s28, 1
      %p198 = por %p196, %p197
      %p199 = scmp.ne.s32.totalorder %s190, %s191
      %p200 = scmp.eq.s32.totalorder %s28, 0
      %p201 = por %p199, %p200
      %p202 = scmp.ne.s32.totalorder %s190, %s191
      %p203 = scmp.eq.s32.totalorder %s29, 1
      %p204 = por %p202, %p203
      %p206 = scmp.ne.s32.totalorder %s191, %s205
      %p207 = scmp.eq.s32.totalorder %s29, 0
      %p208 = por %p206, %p207
      %s210 = sadd.s32 %s209, 1
      %p213 = scmp.eq.s32.totalorder %s23, 1
      %p214 = scmp.ne.s32.totalorder %s209, %s211
      %p215 = scmp.eq.s32.totalorder %s23, 0
      %p216 = por %p214, %p215
      %p217 = scmp.ne.s32.totalorder %s209, %s211
      %p218 = scmp.eq.s32.totalorder %s28, 1
      %p219 = por %p217, %p218
      %p220 = scmp.ne.s32.totalorder %s211, %s212
      %p221 = scmp.eq.s32.totalorder %s28, 0
      %p222 = por %p220, %p221
      %p223 = scmp.ne.s32.totalorder %s211, %s212
      %p224 = scmp.eq.s32.totalorder %s29, 1
      %p225 = por %p223, %p224
      %p227 = scmp.ne.s32.totalorder %s212, %s226
      %p228 = scmp.eq.s32.totalorder %s29, 0
      %p229 = por %p227, %p228
      %s230 = ssub.s32 %s23, %s30
      %p231 = scmp.eq.s32.totalorder %s230, 0
      %s233 = sadd.s32 %s232, 1
      %s234 = scalar_select %p231, %s232, %s233
      %p237 = pneg %p231
      %p238 = scmp.eq.s32.totalorder %s23, 1
      %p239 = por %p237, %p238
      %p240 = scmp.ne.s32.totalorder %s232, %s235
      %p241 = scmp.eq.s32.totalorder %s23, 0
      %p242 = por %p240, %p241
      %p243 = scmp.ne.s32.totalorder %s232, %s235
      %p244 = scmp.eq.s32.totalorder %s28, 1
      %p245 = por %p243, %p244
      %p246 = scmp.ne.s32.totalorder %s235, %s236
      %p247 = scmp.eq.s32.totalorder %s28, 0
      %p248 = por %p246, %p247
      %p249 = scmp.ne.s32.totalorder %s235, %s236
      %p250 = scmp.eq.s32.totalorder %s29, 1
      %p251 = por %p249, %p250
      %p253 = scmp.ne.s32.totalorder %s236, %s252
      %p254 = scmp.eq.s32.totalorder %s29, 0
      %p255 = por %p253, %p254
      %s256 = ssub.s32 %s23, %s30
      %p257 = scmp.eq.s32.totalorder %s256, 0
      %s259 = sadd.s32 %s258, 1
      %s260 = scalar_select %p257, %s258, %s259
      %p263 = pneg %p257
      %p264 = scmp.eq.s32.totalorder %s23, 1
      %p265 = por %p263, %p264
      %p266 = scmp.ne.s32.totalorder %s258, %s261
      %p267 = scmp.eq.s32.totalorder %s23, 0
      %p268 = por %p266, %p267
      %p269 = scmp.ne.s32.totalorder %s258, %s261
      %p270 = scmp.eq.s32.totalorder %s28, 1
      %p271 = por %p269, %p270
      %p272 = scmp.ne.s32.totalorder %s261, %s262
      %p273 = scmp.eq.s32.totalorder %s28, 0
      %p274 = por %p272, %p273
      %p275 = scmp.ne.s32.totalorder %s261, %s262
      %p276 = scmp.eq.s32.totalorder %s29, 1
      %p277 = por %p275, %p276
      %p279 = scmp.ne.s32.totalorder %s262, %s278
      %p280 = scmp.eq.s32.totalorder %s29, 0
      %p281 = por %p279, %p280
      %p282 = scmp.le.s32.totalorder 1, %s23
      %p283 = scmp.lt.s32.totalorder %s23, 3
      %p284 = pnand %p282, %p283
      %p285 = pneg %p284
      // Predicated region
      $region9: #{block_forward.7} parent=5 // pred_check
        _
      $region10: #{block_forward.7} parent=5 // pred_check_branch
        %287 = sbr.rel (%p284) target = $region12
      $region11: #{block_forward.7} parent=5 // pred_region
        %s288 = ssub.s32 %s23, 1
        // Predicated region
        $region13: #{block_forward.7} parent=11 // pred_check
          %p289 = pneg %p96
        $region14: #{block_forward.7} parent=11 // pred_check_branch
          %291 = sbr.rel (%p289) target = $region16
        $region15: #{block_forward.7} parent=11 // pred_region
          _
        $region16: #{block_forward.7} parent=11 // pred_fallthru
          _
        // Predicated region
        $region17: #{block_forward.7} parent=11 // pred_check
          %p292 = pneg %p117
        $region18: #{block_forward.7} parent=11 // pred_check_branch
          %294 = sbr.rel (%p292) target = $region20
        $region19: #{block_forward.7} parent=11 // pred_region
          _
        $region20: #{block_forward.7} parent=11 // pred_fallthru
          _
        // Predicated region
        $region21: #{block_forward.7} parent=11 // pred_check
          %p295 = pneg %p138
        $region22: #{block_forward.7} parent=11 // pred_check_branch
          %297 = sbr.rel (%p295) target = $region24
        $region23: #{block_forward.7} parent=11 // pred_region
          _
        $region24: #{block_forward.7} parent=11 // pred_fallthru
          _
        // Predicated region
        $region25: #{block_forward.7} parent=11 // pred_check
          %p298 = pneg %p159
        $region26: #{block_forward.7} parent=11 // pred_check_branch
          %300 = sbr.rel (%p298) target = $region28
        $region27: #{block_forward.7} parent=11 // pred_region
          _
        $region28: #{block_forward.7} parent=11 // pred_fallthru
          _
        // Predicated region
        $region29: #{block_forward.7} parent=11 // pred_check
          %p301 = pneg %p180
        $region30: #{block_forward.7} parent=11 // pred_check_branch
          %303 = sbr.rel (%p301) target = $region32
        $region31: #{block_forward.7} parent=11 // pred_region
          _
        $region32: #{block_forward.7} parent=11 // pred_fallthru
          _
        // Predicated region
        $region33: #{block_forward.7} parent=11 // pred_check
          %p304 = pneg %p201
        $region34: #{block_forward.7} parent=11 // pred_check_branch
          %306 = sbr.rel (%p304) target = $region36
        $region35: #{block_forward.7} parent=11 // pred_region
          _
        $region36: #{block_forward.7} parent=11 // pred_fallthru
          _
        // Predicated region
        $region37: #{block_forward.7} parent=11 // pred_check
          %p307 = pneg %p222
        $region38: #{block_forward.7} parent=11 // pred_check_branch
          %309 = sbr.rel (%p307) target = $region40
        $region39: #{block_forward.7} parent=11 // pred_region
          _
        $region40: #{block_forward.7} parent=11 // pred_fallthru
          _
      $region12: #{block_forward.7} parent=5 // pred_fallthru
        _
      %p310 = scmp.lt.s32.totalorder %s23, 2
      // Predicated region
      $region41: #{block_forward.7} parent=5 // pred_check
        %p311 = pneg %p310
      $region42: #{block_forward.7} parent=5 // pred_check_branch
        %313 = sbr.rel (%p311) target = $region44
      $region43: #{block_forward.7} parent=5 // pred_region
        // Predicated region
        $region45: #{block_forward.7} parent=43 // pred_check
          %p314 = pneg %p43
        $region46: #{block_forward.7} parent=43 // pred_check_branch
          %316 = sbr.rel (%p314) target = $region48
        $region47: #{block_forward.7} parent=43 // pred_region
          %p317 = scmp.lt.s32.totalorder %s23, 1
          %s318 = scalar_select %p317, %s23, 1
          %s319 = smul.addr %s318, 8
          %s320 = scalar_lea.vmem %s0, %s319
        $region48: #{block_forward.7} parent=43 // pred_fallthru
          _
        // Predicated region
        $region49: #{block_forward.7} parent=43 // pred_check
          %p321 = pneg %p69
        $region50: #{block_forward.7} parent=43 // pred_check_branch
          %323 = sbr.rel (%p321) target = $region52
        $region51: #{block_forward.7} parent=43 // pred_region
          %p324 = scmp.lt.s32.totalorder %s23, 1
          %s325 = scalar_select %p324, %s23, 1
          %s326 = scalar_lea.vmem %s1, %s325
        $region52: #{block_forward.7} parent=43 // pred_fallthru
          _
      $region44: #{block_forward.7} parent=5 // pred_fallthru
        _
      %p327 = scmp.le.s32.totalorder 1, %s23
      %p328 = scmp.lt.s32.totalorder %s23, 3
      %p329 = pnand %p327, %p328
      %p330 = pneg %p329
      // Predicated region
      $region53: #{block_forward.7} parent=5 // pred_check
        _
      $region54: #{block_forward.7} parent=5 // pred_check_branch
        %332 = sbr.rel (%p329) target = $region56
      $region55: #{block_forward.7} parent=5 // pred_region
        %s333 = ssub.s32 %s23, 1
        %p334 = scmp.lt.s32.totalorder %s28, 1
        %s335 = scalar_select %p334, %s28, 1
        %s336 = smul.addr %s335, 8
        %s337 = scalar_lea.vmem %s0, %s336
        %p338 = pneg %p49
        %p339 = pneg %p46
        %p340 = scmp.lt.s32.totalorder %s28, 1
        %s341 = scalar_select %p340, %s28, 1
        %s342 = scalar_lea.vmem %s1, %s341
        %p343 = pneg %p75
        %p344 = pneg %p72
        %p345 = pneg %p96
        %p346 = pneg %p93
        %p347 = pneg %p117
        %p348 = pneg %p114
        %p349 = pneg %p138
        %p350 = pneg %p135
        %p351 = pneg %p159
        %p352 = pneg %p156
        %p353 = pneg %p180
        %p354 = pneg %p177
        %p355 = pneg %p201
        %p356 = pneg %p198
        %p357 = pneg %p222
        %p358 = pneg %p219
        %p359 = pneg %p248
        %p360 = pneg %p245
        %s361 = sand.u32 %s235, 1
        %s362 = scalar_lea.sflag [#allocation3], %s361
        %s363 = sand.u32 %s235, 1
        %s364 = smul.addr %s363, 8
        %s365 = scalar_lea.vmem [#allocation2], %s364
        %p366 = pneg %p274
        %p367 = pneg %p271
        %s368 = sand.u32 %s261, 1
        %s369 = scalar_lea.sflag [#allocation5], %s368
        %s370 = sand.u32 %s261, 1
        %s371 = scalar_lea.vmem [#allocation4], %s370
        %p372 = scmp.lt.s32.totalorder %s28, 1
        %s373 = scalar_select %p372, %s28, 1
        %s374 = smul.addr %s373, 8
        %s375 = scalar_lea.vmem %s0, %s374
        %p376 = scmp.lt.s32.totalorder %s28, 1
        %s377 = scalar_select %p376, %s28, 1
        %s378 = scalar_lea.vmem %s1, %s377
        %v380 = vld [vmem:[%s375] sm:$0xff]
        %v381 = vld [vmem:[%s2] sm:$0x1]
        %v382 = vld [vmem:[%s3] sm:$0x1]
        %383 = vadd.xlane.f32.xlu0 %v380
        %v384 = vpop.xlane.xlu0 %383
        %v385 = vrcp.pop 128.0
        %v386 = vmul.f32 %v384, %v385
        %v387 = vsub.f32 %v380, %v386
        %v388 = vmul.f32 %v387, %v387
        %389 = vadd.xlane.f32.xlu0 %v388
        %v390 = vpop.xlane.xlu0 %389
        %v391 = vmul.f32 %v390, %v385
        %v392 = vadd.f32 %v391, 1e-05
        %v393 = vrsqrt.pop %v392
        %v394 = vmul.f32 %v387, %v393
        %v396 = vlaneseq
        %v397 = vshrl.u32 %v396, 7
        %v398 = vsub.s32 0, %v397
        %v399 = vrot.slane %v381, %v398
        %v401 = vmul.f32 %v394, %v399
        %v403 = vlaneseq
        %v404 = vshrl.u32 %v403, 7
        %v405 = vsub.s32 0, %v404
        %v406 = vrot.slane %v382, %v405
        %v408 = vadd.f32 %v401, %v406
        %v409 = vld [vmem:[%s378] sm:$0x1]
        %v410 = vrot.slane %v408, 7
        %v411 = vlaneseq
        %v412 = vshrl.u32 %v411, 7
        %vm413 = vcmp.eq.s32.totalorder %v412, 0
        %v415 = vlaneseq
        %v416 = vshrl.u32 %v415, 7
        %v417 = vsub.s32 0, %v416
        %v418 = vrot.slane %v409, %v417
        %v420 = vsel %vm413, %v418, %v410
        %v421 = vsub.f32 %v420, %v408
        %422 = vst [vmem:[%s371 - $0x7] sm:$0x80] %v408
        %v423 = vld [vmem:[%s4] sm:$0x1]
        %v425 = vlaneseq
        %v426 = vshrl.u32 %v425, 7
        %v427 = vsub.s32 0, %v426
        %v428 = vrot.slane %v423, %v427
        %v430 = vmul.f32 %v421, %v428
        %v431 = vadd.f32 %v408, %v430
        %v432 = vpack.c.bf16 %v431, %v431
        %v433 = vld [vmem:[%s5] sm:$0x1]
        %v435 = vlaneseq
        %v436 = vshrl.u32 %v435, 7
        %v437 = vsub.s32 0, %v436
        %v438 = vrot.slane %v433, %v437
        %v440 = vmul.f32 %v421, %v438
        %v441 = vadd.f32 %v408, %v440
        %v442 = vpack.c.bf16 %v441, %v441
        %v443 = vld [vmem:[%s6] sm:$0xff]
        %v444 = vld [vmem:[%s6 + $0x8] sm:$0xff]
        %v445 = vld [vmem:[%s6 + $0x10] sm:$0xff]
        %v446 = vld [vmem:[%s6 + $0x18] sm:$0xff]
        %v447 = vld [vmem:[%s6 + $0x20] sm:$0xff]
        %v448 = vld [vmem:[%s6 + $0x28] sm:$0xff]
        %v449 = vld [vmem:[%s6 + $0x30] sm:$0xff]
        %v450 = vld [vmem:[%s6 + $0x38] sm:$0xff]
        %v451 = vld [vmem:[%s6 + $0x40] sm:$0xff]
        %v452 = vld [vmem:[%s6 + $0x48] sm:$0xff]
        %v453 = vld [vmem:[%s6 + $0x50] sm:$0xff]
        %v454 = vld [vmem:[%s6 + $0x58] sm:$0xff]
        %v455 = vld [vmem:[%s6 + $0x60] sm:$0xff]
        %v456 = vld [vmem:[%s6 + $0x68] sm:$0xff]
        %v457 = vld [vmem:[%s6 + $0x70] sm:$0xff]
        %v458 = vld [vmem:[%s6 + $0x78] sm:$0xff]
        %v459 = vld [vmem:[%s6 + $0x80] sm:$0xff]
        %v460 = vld [vmem:[%s6 + $0x88] sm:$0xff]
        %v461 = vld [vmem:[%s6 + $0x90] sm:$0xff]
        %v462 = vld [vmem:[%s6 + $0x98] sm:$0xff]
        %v463 = vld [vmem:[%s6 + $0xa0] sm:$0xff]
        %v464 = vld [vmem:[%s6 + $0xa8] sm:$0xff]
        %v465 = vld [vmem:[%s6 + $0xb0] sm:$0xff]
        %v466 = vld [vmem:[%s6 + $0xb8] sm:$0xff]
        %v467 = vld [vmem:[%s6 + $0xc0] sm:$0xff]
        %v468 = vld [vmem:[%s6 + $0xc8] sm:$0xff]
        %v469 = vld [vmem:[%s6 + $0xd0] sm:$0xff]
        %v470 = vld [vmem:[%s6 + $0xd8] sm:$0xff]
        %v471 = vld [vmem:[%s6 + $0xe0] sm:$0xff]
        %v472 = vld [vmem:[%s6 + $0xe8] sm:$0xff]
        %v473 = vld [vmem:[%s6 + $0xf0] sm:$0xff]
        %v474 = vld [vmem:[%s6 + $0xf8] sm:$0xff]
        %v507 = vunpack.c.l.b16 %v443
        %v508 = vunpack.c.h.b16 %v443
        %v509 = vunpack.c.l.b16 %v444
        %v510 = vunpack.c.h.b16 %v444
        %v511 = vunpack.c.l.b16 %v445
        %v512 = vunpack.c.h.b16 %v445
        %v513 = vunpack.c.l.b16 %v446
        %v514 = vunpack.c.h.b16 %v446
        %v515 = vunpack.c.l.b16 %v447
        %v516 = vunpack.c.h.b16 %v447
        %v517 = vunpack.c.l.b16 %v448
        %v518 = vunpack.c.h.b16 %v448
        %v519 = vunpack.c.l.b16 %v449
        %v520 = vunpack.c.h.b16 %v449
        %v521 = vunpack.c.l.b16 %v450
        %v522 = vunpack.c.h.b16 %v450
        %v523 = vunpack.c.l.b16 %v451
        %v524 = vunpack.c.h.b16 %v451
        %v525 = vunpack.c.l.b16 %v452
        %v526 = vunpack.c.h.b16 %v452
        %v527 = vunpack.c.l.b16 %v453
        %v528 = vunpack.c.h.b16 %v453
        %v529 = vunpack.c.l.b16 %v454
        %v530 = vunpack.c.h.b16 %v454
        %v531 = vunpack.c.l.b16 %v455
        %v532 = vunpack.c.h.b16 %v455
        %v533 = vunpack.c.l.b16 %v456
        %v534 = vunpack.c.h.b16 %v456
        %v535 = vunpack.c.l.b16 %v457
        %v536 = vunpack.c.h.b16 %v457
        %v537 = vunpack.c.l.b16 %v458
        %v538 = vunpack.c.h.b16 %v458
        %v539 = vunpack.c.l.b16 %v459
        %v540 = vunpack.c.h.b16 %v459
        %v541 = vunpack.c.l.b16 %v460
        %v542 = vunpack.c.h.b16 %v460
        %v543 = vunpack.c.l.b16 %v461
        %v544 = vunpack.c.h.b16 %v461
        %v545 = vunpack.c.l.b16 %v462
        %v546 = vunpack.c.h.b16 %v462
        %v547 = vunpack.c.l.b16 %v463
        %v548 = vunpack.c.h.b16 %v463
        %v549 = vunpack.c.l.b16 %v464
        %v550 = vunpack.c.h.b16 %v464
        %v551 = vunpack.c.l.b16 %v465
        %v552 = vunpack.c.h.b16 %v465
        %v553 = vunpack.c.l.b16 %v466
        %v554 = vunpack.c.h.b16 %v466
        %v555 = vunpack.c.l.b16 %v467
        %v556 = vunpack.c.h.b16 %v467
        %v557 = vunpack.c.l.b16 %v468
        %v558 = vunpack.c.h.b16 %v468
        %v559 = vunpack.c.l.b16 %v469
        %v560 = vunpack.c.h.b16 %v469
        %v561 = vunpack.c.l.b16 %v470
        %v562 = vunpack.c.h.b16 %v470
        %v563 = vunpack.c.l.b16 %v471
        %v564 = vunpack.c.h.b16 %v471
        %v565 = vunpack.c.l.b16 %v472
        %v566 = vunpack.c.h.b16 %v472
        %v567 = vunpack.c.l.b16 %v473
        %v568 = vunpack.c.h.b16 %v473
        %v569 = vunpack.c.l.b16 %v474
        %v570 = vunpack.c.h.b16 %v474
        %v571 = vpack.c.b16 %v511, %v507
        %v572 = vpack.c.b16 %v512, %v508
        %v573 = vpack.c.b16 %v513, %v509
        %v574 = vpack.c.b16 %v514, %v510
        %v575 = vpack.c.b16 %v519, %v515
        %v576 = vpack.c.b16 %v520, %v516
        %v577 = vpack.c.b16 %v521, %v517
        %v578 = vpack.c.b16 %v522, %v518
        %v579 = vpack.c.b16 %v527, %v523
        %v580 = vpack.c.b16 %v528, %v524
        %v581 = vpack.c.b16 %v529, %v525
        %v582 = vpack.c.b16 %v530, %v526
        %v583 = vpack.c.b16 %v535, %v531
        %v584 = vpack.c.b16 %v536, %v532
        %v585 = vpack.c.b16 %v537, %v533
        %v586 = vpack.c.b16 %v538, %v534
        %v587 = vpack.c.b16 %v543, %v539
        %v588 = vpack.c.b16 %v544, %v540
        %v589 = vpack.c.b16 %v545, %v541
        %v590 = vpack.c.b16 %v546, %v542
        %v591 = vpack.c.b16 %v551, %v547
        %v592 = vpack.c.b16 %v552, %v548
        %v593 = vpack.c.b16 %v553, %v549
        %v594 = vpack.c.b16 %v554, %v550
        %v595 = vpack.c.b16 %v559, %v555
        %v596 = vpack.c.b16 %v560, %v556
        %v597 = vpack.c.b16 %v561, %v557
        %v598 = vpack.c.b16 %v562, %v558
        %v599 = vpack.c.b16 %v567, %v563
        %v600 = vpack.c.b16 %v568, %v564
        %v601 = vpack.c.b16 %v569, %v565
        %v602 = vpack.c.b16 %v570, %v566
        %635 = vmatprep.subr.bf16.mxu0 %v572
        %636 = vmatpush1.bf16.msra.mxu0 %v571
        %637 = vmatprep.subr.bf16.mxu0 %v576
        %638 = vmatpush1.bf16.msra.mxu0 %v575
        %639 = vmatprep.subr.bf16.mxu0 %v580
        %640 = vmatpush1.bf16.msra.mxu0 %v579
        %641 = vmatprep.subr.bf16.mxu0 %v584
        %642 = vmatpush1.bf16.msra.mxu0 %v583
        %643 = vmatprep.subr.bf16.mxu0 %v588
        %644 = vmatpush1.bf16.msra.mxu0 %v587
        %645 = vmatprep.subr.bf16.mxu0 %v592
        %646 = vmatpush1.bf16.msra.mxu0 %v591
        %647 = vmatprep.subr.bf16.mxu0 %v596
        %648 = vmatpush1.bf16.msra.mxu0 %v595
        %649 = vmatprep.subr.bf16.mxu0 %v600
        %650 = vmatpush1.bf16.msra.mxu0 %v599
        %651 = vmatprep.subr.bf16.mxu0 0
        %652 = vmatpush1.bf16.msra.mxu0 0
        %653 = vmatprep.subr.bf16.mxu0 0
        %654 = vmatpush1.bf16.msra.mxu0 0
        %655 = vmatprep.subr.bf16.mxu0 0
        %656 = vmatpush1.bf16.msra.mxu0 0
        %657 = vmatprep.subr.bf16.mxu0 0
        %658 = vmatpush1.bf16.msra.mxu0 0
        %659 = vmatprep.subr.bf16.mxu0 0
        %660 = vmatpush1.bf16.msra.mxu0 0
        %661 = vmatprep.subr.bf16.mxu0 0
        %662 = vmatpush1.bf16.msra.mxu0 0
        %663 = vmatprep.subr.bf16.mxu0 0
        %664 = vmatpush1.bf16.msra.mxu0 0
        %665 = vmatprep.subr.bf16.mxu0 0
        %666 = vmatpush1.bf16.msra.mxu0 0
        %667 = vmatprep.mubr.bf16.mxu0 0
        %668 = vmatmul.mubr.bf16.gmra.mrb[0].mxu0 %v432
        %v669 = vpop.f32.mrb[0].mxu0
        %v670 = vadd.f32 0.0, %v669
        %v671 = vpop.f32.mrb[0].mxu0
        %v672 = vadd.f32 0.0, %v671
        %v673 = vpop.f32.mrb[0].mxu0
        %v674 = vpop.f32.mrb[0].mxu0
        %675 = vdwg.mxu0
        %676 = vmatprep.subr.bf16.mxu0 %v574
        %677 = vmatpush1.bf16.msra.mxu0 %v573
        %678 = vmatprep.subr.bf16.mxu0 %v578
        %679 = vmatpush1.bf16.msra.mxu0 %v577
        %680 = vmatprep.subr.bf16.mxu0 %v582
        %681 = vmatpush1.bf16.msra.mxu0 %v581
        %682 = vmatprep.subr.bf16.mxu0 %v586
        %683 = vmatpush1.bf16.msra.mxu0 %v585
        %684 = vmatprep.subr.bf16.mxu0 %v590
        %685 = vmatpush1.bf16.msra.mxu0 %v589
        %686 = vmatprep.subr.bf16.mxu0 %v594
        %687 = vmatpush1.bf16.msra.mxu0 %v593
        %688 = vmatprep.subr.bf16.mxu0 %v598
        %689 = vmatpush1.bf16.msra.mxu0 %v597
        %690 = vmatprep.subr.bf16.mxu0 %v602
        %691 = vmatpush1.bf16.msra.mxu0 %v601
        %692 = vmatprep.subr.bf16.mxu0 0
        %693 = vmatpush1.bf16.msra.mxu0 0
        %694 = vmatprep.subr.bf16.mxu0 0
        %695 = vmatpush1.bf16.msra.mxu0 0
        %696 = vmatprep.subr.bf16.mxu0 0
        %697 = vmatpush1.bf16.msra.mxu0 0
        %698 = vmatprep.subr.bf16.mxu0 0
        %699 = vmatpush1.bf16.msra.mxu0 0
        %700 = vmatprep.subr.bf16.mxu0 0
        %701 = vmatpush1.bf16.msra.mxu0 0
        %702 = vmatprep.subr.bf16.mxu0 0
        %703 = vmatpush1.bf16.msra.mxu0 0
        %704 = vmatprep.subr.bf16.mxu0 0
        %705 = vmatpush1.bf16.msra.mxu0 0
        %706 = vmatprep.subr.bf16.mxu0 0
        %707 = vmatpush1.bf16.msra.mxu0 0
        %708 = vmatprep.mubr.bf16.mxu0 0
        %709 = vmatmul.mubr.bf16.gmra.mrb[0].mxu0 %v432
        %v710 = vpop.f32.mrb[0].mxu0
        %v711 = vadd.f32 0.0, %v710
        %v712 = vpop.f32.mrb[0].mxu0
        %v713 = vadd.f32 0.0, %v712
        %v714 = vpop.f32.mrb[0].mxu0
        %v715 = vpop.f32.mrb[0].mxu0
        %716 = vdwg.mxu0
        %v717 = vmax.f32 %v670, 0.0
        %v718 = vmax.f32 %v672, 0.0
        %v719 = vmax.f32 %v711, 0.0
        %v720 = vmax.f32 %v713, 0.0
        %v721 = vmul.f32 %v717, %v717
        %v722 = vmul.f32 %v718, %v718
        %v723 = vmul.f32 %v719, %v719
        %v724 = vmul.f32 %v720, %v720
        %v725 = vpack.c.bf16 %v721, %v721
        %v726 = vpack.c.bf16 %v722, %v722
        %v727 = vpack.c.bf16 %v723, %v723
        %v728 = vpack.c.bf16 %v724, %v724
        %v729 = vld [vmem:[%s7] sm:$0xf]
        %v730 = vld [vmem:[%s7 + $0x4] sm:$0xf]
        %v731 = vld [vmem:[%s7 + $0x8] sm:$0xf]
        %v732 = vld [vmem:[%s7 + $0xc] sm:$0xf]
        %v733 = vld [vmem:[%s7 + $0x10] sm:$0xf]
        %v734 = vld [vmem:[%s7 + $0x14] sm:$0xf]
        %v735 = vld [vmem:[%s7 + $0x18] sm:$0xf]
        %v736 = vld [vmem:[%s7 + $0x1c] sm:$0xf]
        %v737 = vld [vmem:[%s7 + $0x20] sm:$0xf]
        %v738 = vld [vmem:[%s7 + $0x24] sm:$0xf]
        %v739 = vld [vmem:[%s7 + $0x28] sm:$0xf]
        %v740 = vld [vmem:[%s7 + $0x2c] sm:$0xf]
        %v741 = vld [vmem:[%s7 + $0x30] sm:$0xf]
        %v742 = vld [vmem:[%s7 + $0x34] sm:$0xf]
        %v743 = vld [vmem:[%s7 + $0x38] sm:$0xf]
        %v744 = vld [vmem:[%s7 + $0x3c] sm:$0xf]
        %v745 = vld [vmem:[%s7 + $0x40] sm:$0xf]
        %v746 = vld [vmem:[%s7 + $0x44] sm:$0xf]
        %v747 = vld [vmem:[%s7 + $0x48] sm:$0xf]
        %v748 = vld [vmem:[%s7 + $0x4c] sm:$0xf]
        %v749 = vld [vmem:[%s7 + $0x50] sm:$0xf]
        %v750 = vld [vmem:[%s7 + $0x54] sm:$0xf]
        %v751 = vld [vmem:[%s7 + $0x58] sm:$0xf]
        %v752 = vld [vmem:[%s7 + $0x5c] sm:$0xf]
        %v753 = vld [vmem:[%s7 + $0x60] sm:$0xf]
        %v754 = vld [vmem:[%s7 + $0x64] sm:$0xf]
        %v755 = vld [vmem:[%s7 + $0x68] sm:$0xf]
        %v756 = vld [vmem:[%s7 + $0x6c] sm:$0xf]
        %v757 = vld [vmem:[%s7 + $0x70] sm:$0xf]
        %v758 = vld [vmem:[%s7 + $0x74] sm:$0xf]
        %v759 = vld [vmem:[%s7 + $0x78] sm:$0xf]
        %v760 = vld [vmem:[%s7 + $0x7c] sm:$0xf]
        %v761 = vld [vmem:[%s7 + $0x80] sm:$0xf]
        %v762 = vld [vmem:[%s7 + $0x84] sm:$0xf]
        %v763 = vld [vmem:[%s7 + $0x88] sm:$0xf]
        %v764 = vld [vmem:[%s7 + $0x8c] sm:$0xf]
        %v765 = vld [vmem:[%s7 + $0x90] sm:$0xf]
        %v766 = vld [vmem:[%s7 + $0x94] sm:$0xf]
        %v767 = vld [vmem:[%s7 + $0x98] sm:$0xf]
        %v768 = vld [vmem:[%s7 + $0x9c] sm:$0xf]
        %v769 = vld [vmem:[%s7 + $0xa0] sm:$0xf]
        %v770 = vld [vmem:[%s7 + $0xa4] sm:$0xf]
        %v771 = vld [vmem:[%s7 + $0xa8] sm:$0xf]
        %v772 = vld [vmem:[%s7 + $0xac] sm:$0xf]
        %v773 = vld [vmem:[%s7 + $0xb0] sm:$0xf]
        %v774 = vld [vmem:[%s7 + $0xb4] sm:$0xf]
        %v775 = vld [vmem:[%s7 + $0xb8] sm:$0xf]
        %v776 = vld [vmem:[%s7 + $0xbc] sm:$0xf]
        %v777 = vld [vmem:[%s7 + $0xc0] sm:$0xf]
        %v778 = vld [vmem:[%s7 + $0xc4] sm:$0xf]
        %v779 = vld [vmem:[%s7 + $0xc8] sm:$0xf]
        %v780 = vld [vmem:[%s7 + $0xcc] sm:$0xf]
        %v781 = vld [vmem:[%s7 + $0xd0] sm:$0xf]
        %v782 = vld [vmem:[%s7 + $0xd4] sm:$0xf]
        %v783 = vld [vmem:[%s7 + $0xd8] sm:$0xf]
        %v784 = vld [vmem:[%s7 + $0xdc] sm:$0xf]
        %v841 = vunpack.c.l.b16 %v729
        %v842 = vunpack.c.l.b16 %v730
        %v843 = vunpack.c.l.b16 %v731
        %v844 = vunpack.c.l.b16 %v732
        %v845 = vunpack.c.l.b16 %v733
        %v846 = vunpack.c.l.b16 %v734
        %v847 = vunpack.c.l.b16 %v735
        %v848 = vunpack.c.l.b16 %v736
        %v849 = vunpack.c.l.b16 %v737
        %v850 = vunpack.c.l.b16 %v738
        %v851 = vunpack.c.l.b16 %v739
        %v852 = vunpack.c.l.b16 %v740
        %v853 = vunpack.c.l.b16 %v741
        %v854 = vunpack.c.l.b16 %v742
        %v855 = vunpack.c.l.b16 %v743
        %v856 = vunpack.c.l.b16 %v744
        %v857 = vunpack.c.l.b16 %v745
        %v858 = vunpack.c.l.b16 %v746
        %v859 = vunpack.c.l.b16 %v747
        %v860 = vunpack.c.l.b16 %v748
        %v861 = vunpack.c.l.b16 %v749
        %v862 = vunpack.c.l.b16 %v750
        %v863 = vunpack.c.l.b16 %v751
        %v864 = vunpack.c.l.b16 %v752
        %v865 = vunpack.c.l.b16 %v753
        %v866 = vunpack.c.l.b16 %v754
        %v867 = vunpack.c.l.b16 %v755
        %v868 = vunpack.c.l.b16 %v756
        %v869 = vunpack.c.l.b16 %v757
        %v870 = vunpack.c.l.b16 %v758
        %v871 = vunpack.c.l.b16 %v759
        %v872 = vunpack.c.l.b16 %v760
        %v873 = vunpack.c.l.b16 %v761
        %v874 = vunpack.c.l.b16 %v762
        %v875 = vunpack.c.l.b16 %v763
        %v876 = vunpack.c.l.b16 %v764
        %v877 = vunpack.c.l.b16 %v765
        %v878 = vunpack.c.l.b16 %v766
        %v879 = vunpack.c.l.b16 %v767
        %v880 = vunpack.c.l.b16 %v768
        %v881 = vunpack.c.l.b16 %v769
        %v882 = vunpack.c.l.b16 %v770
        %v883 = vunpack.c.l.b16 %v771
        %v884 = vunpack.c.l.b16 %v772
        %v885 = vunpack.c.l.b16 %v773
        %v886 = vunpack.c.l.b16 %v774
        %v887 = vunpack.c.l.b16 %v775
        %v888 = vunpack.c.l.b16 %v776
        %v889 = vunpack.c.l.b16 %v777
        %v890 = vunpack.c.l.b16 %v778
        %v891 = vunpack.c.l.b16 %v779
        %v892 = vunpack.c.l.b16 %v780
        %v893 = vunpack.c.l.b16 %v781
        %v894 = vunpack.c.l.b16 %v782
        %v895 = vunpack.c.l.b16 %v783
        %v896 = vunpack.c.l.b16 %v784
        %v897 = vpack.c.b16 %v842, %v841
        %v898 = vpack.c.b16 %v844, %v843
        %v899 = vpack.c.b16 %v846, %v845
        %v900 = vpack.c.b16 %v848, %v847
        %v901 = vpack.c.b16 %v850, %v849
        %v902 = vpack.c.b16 %v852, %v851
        %v903 = vpack.c.b16 %v854, %v853
        %v904 = vpack.c.b16 %v856, %v855
        %v905 = vpack.c.b16 %v858, %v857
        %v906 = vpack.c.b16 %v860, %v859
        %v907 = vpack.c.b16 %v862, %v861
        %v908 = vpack.c.b16 %v864, %v863
        %v909 = vpack.c.b16 %v866, %v865
        %v910 = vpack.c.b16 %v868, %v867
        %v911 = vpack.c.b16 %v870, %v869
        %v912 = vpack.c.b16 %v872, %v871
        %v913 = vpack.c.b16 %v874, %v873
        %v914 = vpack.c.b16 %v876, %v875
        %v915 = vpack.c.b16 %v878, %v877
        %v916 = vpack.c.b16 %v880, %v879
        %v917 = vpack.c.b16 %v882, %v881
        %v918 = vpack.c.b16 %v884, %v883
        %v919 = vpack.c.b16 %v886, %v885
        %v920 = vpack.c.b16 %v888, %v887
        %v921 = vpack.c.b16 %v890, %v889
        %v922 = vpack.c.b16 %v892, %v891
        %v923 = vpack.c.b16 %v894, %v893
        %v924 = vpack.c.b16 %v896, %v895
        %vm953 = vcmask 523264
        %v955 = vsel %vm953, %v728, 0
        %957 = vmatprep.subr.bf16.mxu0 0
        %958 = vmatpush1.bf16.msra.mxu0 %v897
        %959 = vmatprep.subr.bf16.mxu0 0
        %960 = vmatpush1.bf16.msra.mxu0 %v898
        %961 = vmatprep.subr.bf16.mxu0 0
        %962 = vmatpush1.bf16.msra.mxu0 %v899
        %963 = vmatprep.subr.bf16.mxu0 0
        %964 = vmatpush1.bf16.msra.mxu0 %v900
        %965 = vmatprep.subr.bf16.mxu0 0
        %966 = vmatpush1.bf16.msra.mxu0 %v901
        %967 = vmatprep.subr.bf16.mxu0 0
        %968 = vmatpush1.bf16.msra.mxu0 %v902
        %969 = vmatprep.subr.bf16.mxu0 0
        %970 = vmatpush1.bf16.msra.mxu0 %v903
        %971 = vmatprep.subr.bf16.mxu0 0
        %972 = vmatpush1.bf16.msra.mxu0 %v904
        %973 = vmatprep.subr.bf16.mxu0 0
        %974 = vmatpush1.bf16.msra.mxu0 %v905
        %975 = vmatprep.subr.bf16.mxu0 0
        %976 = vmatpush1.bf16.msra.mxu0 %v906
        %977 = vmatprep.subr.bf16.mxu0 0
        %978 = vmatpush1.bf16.msra.mxu0 %v907
        %979 = vmatprep.subr.bf16.mxu0 0
        %980 = vmatpush1.bf16.msra.mxu0 %v908
        %981 = vmatprep.subr.bf16.mxu0 0
        %982 = vmatpush1.bf16.msra.mxu0 %v909
        %983 = vmatprep.subr.bf16.mxu0 0
        %984 = vmatpush1.bf16.msra.mxu0 %v910
        %985 = vmatprep.subr.bf16.mxu0 0
        %986 = vmatpush1.bf16.msra.mxu0 %v911
        %987 = vmatprep.subr.bf16.mxu0 0
        %988 = vmatpush1.bf16.msra.mxu0 %v912
        %989 = vmatprep.mubr.bf16.mxu0 %v726
        %990 = vmatmul.mubr.bf16.gmra.mrb[0].mxu0 %v725
        %v991 = vpop.f32.mrb[0].mxu0
        %v992 = vadd.f32 0.0, %v991
        %v993 = vpop.f32.mrb[0].mxu0
        %v994 = vpop.f32.mrb[0].mxu0
        %v995 = vpop.f32.mrb[0].mxu0
        %996 = vdwg.mxu0
        %997 = vmatprep.subr.bf16.mxu0 0
        %998 = vmatpush1.bf16.msra.mxu0 %v913
        %999 = vmatprep.subr.bf16.mxu0 0
        %1000 = vmatpush1.bf16.msra.mxu0 %v914
        %1001 = vmatprep.subr.bf16.mxu0 0
        %1002 = vmatpush1.bf16.msra.mxu0 %v915
        %1003 = vmatprep.subr.bf16.mxu0 0
        %1004 = vmatpush1.bf16.msra.mxu0 %v916
        %1005 = vmatprep.subr.bf16.mxu0 0
        %1006 = vmatpush1.bf16.msra.mxu0 %v917
        %1007 = vmatprep.subr.bf16.mxu0 0
        %1008 = vmatpush1.bf16.msra.mxu0 %v918
        %1009 = vmatprep.subr.bf16.mxu0 0
        %1010 = vmatpush1.bf16.msra.mxu0 %v919
        %1011 = vmatprep.subr.bf16.mxu0 0
        %1012 = vmatpush1.bf16.msra.mxu0 %v920
        %1013 = vmatprep.subr.bf16.mxu0 0
        %1014 = vmatpush1.bf16.msra.mxu0 %v921
        %1015 = vmatprep.subr.bf16.mxu0 0
        %1016 = vmatpush1.bf16.msra.mxu0 %v922
        %1017 = vmatprep.subr.bf16.mxu0 0
        %1018 = vmatpush1.bf16.msra.mxu0 %v923
        %1019 = vmatprep.subr.bf16.mxu0 0
        %1020 = vmatpush1.bf16.msra.mxu0 %v924
        %1021 = vmatprep.subr.bf16.mxu0 0
        %1022 = vmatpush1.bf16.msra.mxu0 0
        %1023 = vmatprep.subr.bf16.mxu0 0
        %1024 = vmatpush1.bf16.msra.mxu0 0
        %1025 = vmatprep.subr.bf16.mxu0 0
        %1026 = vmatpush1.bf16.msra.mxu0 0
        %1027 = vmatprep.subr.bf16.mxu0 0
        %1028 = vmatpush1.bf16.msra.mxu0 0
        %1029 = vmatprep.mubr.bf16.mxu0 %v955
        %1030 = vmatmul.mubr.bf16.gmra.mrb[0].mxu0 %v727
        %v1031 = vpop.f32.mrb[0].mxu0
        %v1032 = vadd.f32 %v992, %v1031
        %v1033 = vpop.f32.mrb[0].mxu0
        %v1034 = vpop.f32.mrb[0].mxu0
        %v1035 = vpop.f32.mrb[0].mxu0
        %1036 = vdwg.mxu0
        %v1037 = vld [vmem:[%s8] sm:$0xf]
        %v1038 = vld [vmem:[%s8 + $0x4] sm:$0xf]
        %v1039 = vld [vmem:[%s8 + $0x8] sm:$0xf]
        %v1040 = vld [vmem:[%s8 + $0xc] sm:$0xf]
        %v1041 = vld [vmem:[%s8 + $0x10] sm:$0xf]
        %v1042 = vld [vmem:[%s8 + $0x14] sm:$0xf]
        %v1043 = vld [vmem:[%s8 + $0x18] sm:$0xf]
        %v1044 = vld [vmem:[%s8 + $0x1c] sm:$0xf]
        %v1045 = vld [vmem:[%s8 + $0x20] sm:$0xf]
        %v1046 = vld [vmem:[%s8 + $0x24] sm:$0xf]
        %v1047 = vld [vmem:[%s8 + $0x28] sm:$0xf]
        %v1048 = vld [vmem:[%s8 + $0x2c] sm:$0xf]
        %v1049 = vld [vmem:[%s8 + $0x30] sm:$0xf]
        %v1050 = vld [vmem:[%s8 + $0x34] sm:$0xf]
        %v1051 = vld [vmem:[%s8 + $0x38] sm:$0xf]
        %v1052 = vld [vmem:[%s8 + $0x3c] sm:$0xf]
        %v1069 = vunpack.c.l.b16 %v1037
        %v1070 = vunpack.c.l.b16 %v1038
        %v1071 = vunpack.c.l.b16 %v1039
        %v1072 = vunpack.c.l.b16 %v1040
        %v1073 = vunpack.c.l.b16 %v1041
        %v1074 = vunpack.c.l.b16 %v1042
        %v1075 = vunpack.c.l.b16 %v1043
        %v1076 = vunpack.c.l.b16 %v1044
        %v1077 = vunpack.c.l.b16 %v1045
        %v1078 = vunpack.c.l.b16 %v1046
        %v1079 = vunpack.c.l.b16 %v1047
        %v1080 = vunpack.c.l.b16 %v1048
        %v1081 = vunpack.c.l.b16 %v1049
        %v1082 = vunpack.c.l.b16 %v1050
        %v1083 = vunpack.c.l.b16 %v1051
        %v1084 = vunpack.c.l.b16 %v1052
        %v1085 = vpack.c.b16 %v1070, %v1069
        %v1086 = vpack.c.b16 %v1072, %v1071
        %v1087 = vpack.c.b16 %v1074, %v1073
        %v1088 = vpack.c.b16 %v1076, %v1075
        %v1089 = vpack.c.b16 %v1078, %v1077
        %v1090 = vpack.c.b16 %v1080, %v1079
        %v1091 = vpack.c.b16 %v1082, %v1081
        %v1092 = vpack.c.b16 %v1084, %v1083
        %1101 = vmatprep.subr.bf16.mxu0 0
        %1102 = vmatpush1.bf16.msra.mxu0 %v1085
        %1103 = vmatprep.subr.bf16.mxu0 0
        %1104 = vmatpush1.bf16.msra.mxu0 %v1086
        %1105 = vmatprep.subr.bf16.mxu0 0
        %1106 = vmatpush1.bf16.msra.mxu0 %v1087
        %1107 = vmatprep.subr.bf16.mxu0 0
        %1108 = vmatpush1.bf16.msra.mxu0 %v1088
        %1109 = vmatprep.subr.bf16.mxu0 0
        %1110 = vmatpush1.bf16.msra.mxu0 %v1089
        %1111 = vmatprep.subr.bf16.mxu0 0
        %1112 = vmatpush1.bf16.msra.mxu0 %v1090
        %1113 = vmatprep.subr.bf16.mxu0 0
        %1114 = vmatpush1.bf16.msra.mxu0 %v1091
        %1115 = vmatprep.subr.bf16.mxu0 0
        %1116 = vmatpush1.bf16.msra.mxu0 %v1092
        %1117 = vmatprep.subr.bf16.mxu0 0
        %1118 = vmatpush1.bf16.msra.mxu0 0
        %1119 = vmatprep.subr.bf16.mxu0 0
        %1120 = vmatpush1.bf16.msra.mxu0 0
        %1121 = vmatprep.subr.bf16.mxu0 0
        %1122 = vmatpush1.bf16.msra.mxu0 0
        %1123 = vmatprep.subr.bf16.mxu0 0
        %1124 = vmatpush1.bf16.msra.mxu0 0
        %1125 = vmatprep.subr.bf16.mxu0 0
        %1126 = vmatpush1.bf16.msra.mxu0 0
        %1127 = vmatprep.subr.bf16.mxu0 0
        %1128 = vmatpush1.bf16.msra.mxu0 0
        %1129 = vmatprep.subr.bf16.mxu0 0
        %1130 = vmatpush1.bf16.msra.mxu0 0
        %1131 = vmatprep.subr.bf16.mxu0 0
        %1132 = vmatpush1.bf16.msra.mxu0 0
        %1133 = vmatprep.mubr.bf16.mxu0 0
        %1134 = vmatmul.mubr.bf16.gmra.mrb[0].mxu0 %v442
        %v1135 = vpop.f32.mrb[0].mxu0
        %v1136 = vadd.f32 0.0, %v1135
        %v1137 = vpop.f32.mrb[0].mxu0
        %v1138 = vpop.f32.mrb[0].mxu0
        %v1139 = vpop.f32.mrb[0].mxu0
        %1140 = vdwg.mxu0
        %v1141 = vxor.u32 %v1136, 2147483648
        %v1142 = vmul.f32 %v1141, 1.442695
        %v1143 = vpow.pop %v1142
        %v1144 = vadd.f32 %v1143, 1.0
        %v1145 = vrcp.pop %v1144
        %v1146 = vmul.f32 1.0, %v1145
        %v1147 = vmul.f32 %v1146, %v1032
        %v1148 = vadd.f32 %v380, %v1147
        %1149 = vst [vmem:[%s365] sm:$0xff] %v1148
        %s1150 = sand.u32 %s235, 1
        %s1151 = scalar_lea.sflag [#allocation3], %s1150
        %s1152 = sand.u32 %s235, 1
        %s1153 = smul.addr %s1152, 8
        %s1154 = scalar_lea.vmem [#allocation2], %s1153
        %s1155 = sand.u32 %s261, 1
        %s1156 = scalar_lea.sflag [#allocation5], %s1155
        %s1157 = sand.u32 %s261, 1
        %s1158 = scalar_lea.vmem [#allocation4], %s1157
        // Predicated region
        $region57: #{block_forward.7} parent=55 // pred_check
          %p1159 = pneg %p245
        $region58: #{block_forward.7} parent=55 // pred_check_branch
          %1161 = sbr.rel (%p1159) target = $region60
        $region59: #{block_forward.7} parent=55 // pred_region
          %s1163 = ssub.s32 128, 128
          %1164 = vsyncadd %s1151, %s1163
          %s1165 = smul.addr %s28, 128
          %s1166 = scalar_lea.hbm %s9, %s1165
          %s1168 = sshll.u32 %s1154, 4
          %s1169 = int_to_ptr.vmem [resolvable:$true] %s1168
          %1171 = dma.vmem_to_hbm [thread:$0]  %s1169, 128, %s1166, %s1151
        $region60: #{block_forward.7} parent=55 // pred_fallthru
          _
        // Predicated region
        $region61: #{block_forward.7} parent=55 // pred_check
          %p1172 = pneg %p271
        $region62: #{block_forward.7} parent=55 // pred_check_branch
          %1174 = sbr.rel (%p1172) target = $region64
        $region63: #{block_forward.7} parent=55 // pred_region
          %s1176 = ssub.s32 16, 16
          %1177 = vsyncadd %s1156, %s1176
          %s1178 = smul.addr %s28, 16
          %s1179 = scalar_lea.hbm %s10, %s1178
          %s1181 = sshll.u32 %s1158, 4
          %s1182 = int_to_ptr.vmem [resolvable:$true] %s1181
          %1184 = dma.vmem_to_hbm [thread:$0]  %s1182, 16, %s1179, %s1156
        $region64: #{block_forward.7} parent=55 // pred_fallthru
          _
      $region56: #{block_forward.7} parent=5 // pred_fallthru
        _
      %p1185 = scmp.le.s32.totalorder 2, %s23
      // Predicated region
      $region65: #{block_forward.7} parent=5 // pred_check
        %p1186 = pneg %p1185
      $region66: #{block_forward.7} parent=5 // pred_check_branch
        %1188 = sbr.rel (%p1186) target = $region68
      $region67: #{block_forward.7} parent=5 // pred_region
        %s1189 = ssub.s32 %s23, 2
        // Predicated region
        $region69: #{block_forward.7} parent=67 // pred_check
          %p1190 = pneg %p251
        $region70: #{block_forward.7} parent=67 // pred_check_branch
          %1192 = sbr.rel (%p1190) target = $region72
        $region71: #{block_forward.7} parent=67 // pred_region
          %s1193 = sand.u32 %s236, 1
          %s1194 = scalar_lea.sflag [#allocation3], %s1193
          %s1195 = sand.u32 %s236, 1
          %s1196 = smul.addr %s1195, 8
          %s1197 = scalar_lea.vmem [#allocation2], %s1196
          %1198 = dma.done %s1194, 128
        $region72: #{block_forward.7} parent=67 // pred_fallthru
          _
        // Predicated region
        $region73: #{block_forward.7} parent=67 // pred_check
          %p1199 = pneg %p277
        $region74: #{block_forward.7} parent=67 // pred_check_branch
          %1201 = sbr.rel (%p1199) target = $region76
        $region75: #{block_forward.7} parent=67 // pred_region
          %s1202 = sand.u32 %s262, 1
          %s1203 = scalar_lea.sflag [#allocation5], %s1202
          %s1204 = sand.u32 %s262, 1
          %s1205 = scalar_lea.vmem [#allocation4], %s1204
          %1206 = dma.done %s1203, 16
        $region76: #{block_forward.7} parent=67 // pred_fallthru
          _
      $region68: #{block_forward.7} parent=5 // pred_fallthru
        _
    $region6: #{block_forward.7} parent=1 // loop_footer
      %s27 = sadd.s32 1, %s23
    $region7: #{block_forward.7} parent=1 // loop_footer_branch
      %22 = sbr.rel target = $region3
    $region8: #{block_forward.7} parent=1 // loop_exit
      _
    %1207 = vsyncpa [#allocation3], 1
    %s1208 = scalar_lea.sflag [#allocation3], 1
    %1209 = vsyncpa %s1208, 1
    %1210 = vsyncpa [#allocation5], 1
    %s1211 = scalar_lea.sflag [#allocation5], 1
    %1212 = vsyncpa %s1211, 1

// kernel: block_forward.4
$region0: #{block_forward.4}
  #allocation0 [shape = 'u32[]', space=smem, size = 0x4, offset = 0x4, fixed_abs, tag = 'smem constant byte address 0x4 - core index']
  #allocation1 [shape = 'u32[144,128]{1,0:T(1,128)}', space=vmem, size = 0x12000, scoped, tag = 'internal scratch']
  %s0 = inlined_call_operand.vmem [shape: f32[2,8,128], index: 0, kind: input, shape index: {}]
  %s1 = inlined_call_operand.vmem [shape: f32[2,1,128], index: 1, kind: input, shape index: {}]
  %s2 = inlined_call_operand.vmem [shape: f32[1,128], index: 2, kind: input, shape index: {}]
  %s3 = inlined_call_operand.vmem [shape: f32[1,128], index: 3, kind: input, shape index: {}]
  %s4 = inlined_call_operand.vmem [shape: f32[1,128], index: 4, kind: input, shape index: {}]
  %s5 = inlined_call_operand.vmem [shape: f32[1,128], index: 5, kind: input, shape index: {}]
  %s6 = inlined_call_operand.vmem [shape: f32[1,128], index: 6, kind: input, shape index: {}]
  %s7 = inlined_call_operand.vmem [shape: f32[5,128], index: 7, kind: input, shape index: {}]
  %s8 = inlined_call_operand.vmem [shape: bf16[5,128,32], index: 8, kind: input, shape index: {}]
  %s9 = inlined_call_operand.vmem [shape: bf16[5,32,128], index: 9, kind: input, shape index: {}]
  %s10 = inlined_call_operand.vmem [shape: bf16[128,128], index: 10, kind: input, shape index: {}]
  %s11 = inlined_call_operand.vmem [shape: bf16[128,128], index: 11, kind: input, shape index: {}]
  %s12 = inlined_call_operand.vmem [shape: bf16[128,128], index: 12, kind: input, shape index: {}]
  %s13 = inlined_call_operand.vmem [shape: bf16[128,128], index: 13, kind: input, shape index: {}]
  %s14 = inlined_call_operand.vmem [shape: f32[128,64], index: 14, kind: input, shape index: {}]
  %s15 = inlined_call_operand.vmem [shape: f32[64,128], index: 15, kind: input, shape index: {}]
  %s16 = inlined_call_operand.vmem [shape: f32[1,128], index: 16, kind: input, shape index: {}]
  %s17 = inlined_call_operand.vmem [shape: f32[2,8,128], index: 17, kind: output, shape index: {0}]
  %s18 = inlined_call_operand.vmem [shape: f32[2,8,128], index: 18, kind: output, shape index: {1}]
  %s19 = inlined_call_operand.vmem [shape: f32[2,8,128], index: 19, kind: output, shape index: {2}]
  %s20 = inlined_call_operand.vmem [shape: f32[2,8,128], index: 20, kind: output, shape index: {3}]
  %s21 = inlined_call_operand.vmem [shape: f32[2,8,128], index: 21, kind: output, shape index: {4}]
  %s22 = inlined_call_operand.vmem [shape: f32[2,8,128], index: 22, kind: output, shape index: {5}]
  %s23 = inlined_call_operand.hbm [shape: f32[2,1,128], index: 23, kind: output, shape index: {6}]
  %24 = xla_tuple %s17, %s18, %s19, %s20, %s21, %s22, %s23
  %s25 = sld [smem:[#allocation0]]
  $region149: #{block_forward.4} parent=0
    _
  %s27 = ssub.s32 1, %s25
  %s28 = scalar_select 0, %s27, %s25
  $region1: #{block_forward.4} parent=0
    #allocation2 [shape = 'u8[1024]{0}', space=vmem, size = 0x400, scoped, tag = 'output window, operand 6']
    #allocation3 [shape = 's32[2]{0}', space=sflag, size = 0x8, scoped, tag = 'scoped memory for block_forward.4']
    %29 = vsyncpa [#allocation3], 0
    %s30 = scalar_lea.sflag [#allocation3], 1
    %31 = vsyncpa %s30, 0
    loop: start=0, step=1, limit=4
    $region2: #{block_forward.4} parent=1 // loop_pre_header
      _
    $region3: #{block_forward.4} parent=1 // loop_header
      %s33 = sphi 0, %s37
      %p34 = scmp.ge.s32.totalorder %s33, 4
      %s43 = sphi 0, %s45
      %s46 = sphi 0, %s43
      %s47 = sphi 0, %s46
      %s63 = sphi 0, %s47
      %s69 = sphi 0, %s71
      %s72 = sphi 0, %s69
      %s73 = sphi 0, %s72
      %s89 = sphi 0, %s73
      %s93 = sphi 0, %s93
      %s95 = sphi 0, %s93
      %s96 = sphi 0, %s95
      %s110 = sphi 0, %s96
      %s114 = sphi 0, %s114
      %s116 = sphi 0, %s114
      %s117 = sphi 0, %s116
      %s131 = sphi 0, %s117
      %s135 = sphi 0, %s135
      %s137 = sphi 0, %s135
      %s138 = sphi 0, %s137
      %s152 = sphi 0, %s138
      %s156 = sphi 0, %s156
      %s158 = sphi 0, %s156
      %s159 = sphi 0, %s158
      %s173 = sphi 0, %s159
      %s177 = sphi 0, %s177
      %s179 = sphi 0, %s177
      %s180 = sphi 0, %s179
      %s194 = sphi 0, %s180
      %s198 = sphi 0, %s198
      %s200 = sphi 0, %s198
      %s201 = sphi 0, %s200
      %s215 = sphi 0, %s201
      %s219 = sphi 0, %s219
      %s221 = sphi 0, %s219
      %s222 = sphi 0, %s221
      %s236 = sphi 0, %s222
      %s240 = sphi 0, %s240
      %s242 = sphi 0, %s240
      %s243 = sphi 0, %s242
      %s257 = sphi 0, %s243
      %s261 = sphi 0, %s261
      %s263 = sphi 0, %s261
      %s264 = sphi 0, %s263
      %s278 = sphi 0, %s264
      %s282 = sphi 0, %s282
      %s284 = sphi 0, %s282
      %s285 = sphi 0, %s284
      %s299 = sphi 0, %s285
      %s303 = sphi 0, %s303
      %s305 = sphi 0, %s303
      %s306 = sphi 0, %s305
      %s320 = sphi 0, %s306
      %s324 = sphi 0, %s324
      %s326 = sphi 0, %s324
      %s327 = sphi 0, %s326
      %s341 = sphi 0, %s327
      %s345 = sphi 0, %s345
      %s347 = sphi 0, %s345
      %s348 = sphi 0, %s347
      %s362 = sphi 0, %s348
      %s366 = sphi 0, %s366
      %s368 = sphi 0, %s366
      %s369 = sphi 0, %s368
      %s383 = sphi 0, %s369
      %s387 = sphi 0, %s387
      %s389 = sphi 0, %s387
      %s390 = sphi 0, %s389
      %s404 = sphi 0, %s390
      %s410 = sphi 0, %s412
      %s413 = sphi 0, %s410
      %s414 = sphi 0, %s413
      %s430 = sphi 0, %s414
      %s436 = sphi 0, %s438
      %s439 = sphi 0, %s436
      %s440 = sphi 0, %s439
      %s456 = sphi 0, %s440
      %s462 = sphi 0, %s464
      %s465 = sphi 0, %s462
      %s466 = sphi 0, %s465
      %s482 = sphi 0, %s466
      %s488 = sphi 0, %s490
      %s491 = sphi 0, %s488
      %s492 = sphi 0, %s491
      %s508 = sphi 0, %s492
      %s514 = sphi 0, %s516
      %s517 = sphi 0, %s514
      %s518 = sphi 0, %s517
      %s534 = sphi 0, %s518
      %s540 = sphi 0, %s542
      %s543 = sphi 0, %s540
      %s544 = sphi 0, %s543
      %s560 = sphi 0, %s544
      %s566 = sphi 0, %s568
      %s569 = sphi 0, %s566
      %s570 = sphi 0, %s569
      %s586 = sphi 0, %s570
    $region4: #{block_forward.4} parent=1 // loop_header_branch
      %36 = sbr.rel (%p34) target = $region8
    $region5: #{block_forward.4} parent=1 // loop_body
      %s38 = ssub.s32 %s33, 1
      %s39 = ssub.s32 %s33, 2
      %s40 = sadd.s32 %s33, 1
      %s41 = ssub.s32 %s33, %s40
      %p42 = scmp.eq.s32.totalorder %s41, 0
      %s44 = sadd.s32 %s43, 1
      %s45 = scalar_select %p42, %s43, %s44
      %p48 = pneg %p42
      %p49 = scmp.eq.s32.totalorder %s33, 1
      %p50 = por %p48, %p49
      %p51 = scmp.ne.s32.totalorder %s43, %s46
      %p52 = scmp.eq.s32.totalorder %s33, 0
      %p53 = por %p51, %p52
      %p54 = scmp.ne.s32.totalorder %s43, %s46
      %p55 = scmp.eq.s32.totalorder %s38, 1
      %p56 = por %p54, %p55
      %p57 = scmp.ne.s32.totalorder %s46, %s47
      %p58 = scmp.eq.s32.totalorder %s38, 0
      %p59 = por %p57, %p58
      %p60 = scmp.ne.s32.totalorder %s46, %s47
      %p61 = scmp.eq.s32.totalorder %s39, 1
      %p62 = por %p60, %p61
      %p64 = scmp.ne.s32.totalorder %s47, %s63
      %p65 = scmp.eq.s32.totalorder %s39, 0
      %p66 = por %p64, %p65
      %s67 = ssub.s32 %s33, %s40
      %p68 = scmp.eq.s32.totalorder %s67, 0
      %s70 = sadd.s32 %s69, 1
      %s71 = scalar_select %p68, %s69, %s70
      %p74 = pneg %p68
      %p75 = scmp.eq.s32.totalorder %s33, 1
      %p76 = por %p74, %p75
      %p77 = scmp.ne.s32.totalorder %s69, %s72
      %p78 = scmp.eq.s32.totalorder %s33, 0
      %p79 = por %p77, %p78
      %p80 = scmp.ne.s32.totalorder %s69, %s72
      %p81 = scmp.eq.s32.totalorder %s38, 1
      %p82 = por %p80, %p81
      %p83 = scmp.ne.s32.totalorder %s72, %s73
      %p84 = scmp.eq.s32.totalorder %s38, 0
      %p85 = por %p83, %p84
      %p86 = scmp.ne.s32.totalorder %s72, %s73
      %p87 = scmp.eq.s32.totalorder %s39, 1
      %p88 = por %p86, %p87
      %p90 = scmp.ne.s32.totalorder %s73, %s89
      %p91 = scmp.eq.s32.totalorder %s39, 0
      %p92 = por %p90, %p91
      %s94 = sadd.s32 %s93, 1
      %p97 = scmp.eq.s32.totalorder %s33, 1
      %p98 = scmp.ne.s32.totalorder %s93, %s95
      %p99 = scmp.eq.s32.totalorder %s33, 0
      %p100 = por %p98, %p99
      %p101 = scmp.ne.s32.totalorder %s93, %s95
      %p102 = scmp.eq.s32.totalorder %s38, 1
      %p103 = por %p101, %p102
      %p104 = scmp.ne.s32.totalorder %s95, %s96
      %p105 = scmp.eq.s32.totalorder %s38, 0
      %p106 = por %p104, %p105
      %p107 = scmp.ne.s32.totalorder %s95, %s96
      %p108 = scmp.eq.s32.totalorder %s39, 1
      %p109 = por %p107, %p108
      %p111 = scmp.ne.s32.totalorder %s96, %s110
      %p112 = scmp.eq.s32.totalorder %s39, 0
      %p113 = por %p111, %p112
      %s115 = sadd.s32 %s114, 1
      %p118 = scmp.eq.s32.totalorder %s33, 1
      %p119 = scmp.ne.s32.totalorder %s114, %s116
      %p120 = scmp.eq.s32.totalorder %s33, 0
      %p121 = por %p119, %p120
      %p122 = scmp.ne.s32.totalorder %s114, %s116
      %p123 = scmp.eq.s32.totalorder %s38, 1
      %p124 = por %p122, %p123
      %p125 = scmp.ne.s32.totalorder %s116, %s117
      %p126 = scmp.eq.s32.totalorder %s38, 0
      %p127 = por %p125, %p126
      %p128 = scmp.ne.s32.totalorder %s116, %s117
      %p129 = scmp.eq.s32.totalorder %s39, 1
      %p130 = por %p128, %p129
      %p132 = scmp.ne.s32.totalorder %s117, %s131
      %p133 = scmp.eq.s32.totalorder %s39, 0
      %p134 = por %p132, %p133
      %s136 = sadd.s32 %s135, 1
      %p139 = scmp.eq.s32.totalorder %s33, 1
      %p140 = scmp.ne.s32.totalorder %s135, %s137
      %p141 = scmp.eq.s32.totalorder %s33, 0
      %p142 = por %p140, %p141
      %p143 = scmp.ne.s32.totalorder %s135, %s137
      %p144 = scmp.eq.s32.totalorder %s38, 1
      %p145 = por %p143, %p144
      %p146 = scmp.ne.s32.totalorder %s137, %s138
      %p147 = scmp.eq.s32.totalorder %s38, 0
      %p148 = por %p146, %p147
      %p149 = scmp.ne.s32.totalorder %s137, %s138
      %p150 = scmp.eq.s32.totalorder %s39, 1
      %p151 = por %p149, %p150
      %p153 = scmp.ne.s32.totalorder %s138, %s152
      %p154 = scmp.eq.s32.totalorder %s39, 0
      %p155 = por %p153, %p154
      %s157 = sadd.s32 %s156, 1
      %p160 = scmp.eq.s32.totalorder %s33, 1
      %p161 = scmp.ne.s32.totalorder %s156, %s158
      %p162 = scmp.eq.s32.totalorder %s33, 0
      %p163 = por %p161, %p162
      %p164 = scmp.ne.s32.totalorder %s156, %s158
      %p165 = scmp.eq.s32.totalorder %s38, 1
      %p166 = por %p164, %p165
      %p167 = scmp.ne.s32.totalorder %s158, %s159
      %p168 = scmp.eq.s32.totalorder %s38, 0
      %p169 = por %p167, %p168
      %p170 = scmp.ne.s32.totalorder %s158, %s159
      %p171 = scmp.eq.s32.totalorder %s39, 1
      %p172 = por %p170, %p171
      %p174 = scmp.ne.s32.totalorder %s159, %s173
      %p175 = scmp.eq.s32.totalorder %s39, 0
      %p176 = por %p174, %p175
      %s178 = sadd.s32 %s177, 1
      %p181 = scmp.eq.s32.totalorder %s33, 1
      %p182 = scmp.ne.s32.totalorder %s177, %s179
      %p183 = scmp.eq.s32.totalorder %s33, 0
      %p184 = por %p182, %p183
      %p185 = scmp.ne.s32.totalorder %s177, %s179
      %p186 = scmp.eq.s32.totalorder %s38, 1
      %p187 = por %p185, %p186
      %p188 = scmp.ne.s32.totalorder %s179, %s180
      %p189 = scmp.eq.s32.totalorder %s38, 0
      %p190 = por %p188, %p189
      %p191 = scmp.ne.s32.totalorder %s179, %s180
      %p192 = scmp.eq.s32.totalorder %s39, 1
      %p193 = por %p191, %p192
      %p195 = scmp.ne.s32.totalorder %s180, %s194
      %p196 = scmp.eq.s32.totalorder %s39, 0
      %p197 = por %p195, %p196
      %s199 = sadd.s32 %s198, 1
      %p202 = scmp.eq.s32.totalorder %s33, 1
      %p203 = scmp.ne.s32.totalorder %s198, %s200
      %p204 = scmp.eq.s32.totalorder %s33, 0
      %p205 = por %p203, %p204
      %p206 = scmp.ne.s32.totalorder %s198, %s200
      %p207 = scmp.eq.s32.totalorder %s38, 1
      %p208 = por %p206, %p207
      %p209 = scmp.ne.s32.totalorder %s200, %s201
      %p210 = scmp.eq.s32.totalorder %s38, 0
      %p211 = por %p209, %p210
      %p212 = scmp.ne.s32.totalorder %s200, %s201
      %p213 = scmp.eq.s32.totalorder %s39, 1
      %p214 = por %p212, %p213
      %p216 = scmp.ne.s32.totalorder %s201, %s215
      %p217 = scmp.eq.s32.totalorder %s39, 0
      %p218 = por %p216, %p217
      %s220 = sadd.s32 %s219, 1
      %p223 = scmp.eq.s32.totalorder %s33, 1
      %p224 = scmp.ne.s32.totalorder %s219, %s221
      %p225 = scmp.eq.s32.totalorder %s33, 0
      %p226 = por %p224, %p225
      %p227 = scmp.ne.s32.totalorder %s219, %s221
      %p228 = scmp.eq.s32.totalorder %s38, 1
      %p229 = por %p227, %p228
      %p230 = scmp.ne.s32.totalorder %s221, %s222
      %p231 = scmp.eq.s32.totalorder %s38, 0
      %p232 = por %p230, %p231
      %p233 = scmp.ne.s32.totalorder %s221, %s222
      %p234 = scmp.eq.s32.totalorder %s39, 1
      %p235 = por %p233, %p234
      %p237 = scmp.ne.s32.totalorder %s222, %s236
      %p238 = scmp.eq.s32.totalorder %s39, 0
      %p239 = por %p237, %p238
      %s241 = sadd.s32 %s240, 1
      %p244 = scmp.eq.s32.totalorder %s33, 1
      %p245 = scmp.ne.s32.totalorder %s240, %s242
      %p246 = scmp.eq.s32.totalorder %s33, 0
      %p247 = por %p245, %p246
      %p248 = scmp.ne.s32.totalorder %s240, %s242
      %p249 = scmp.eq.s32.totalorder %s38, 1
      %p250 = por %p248, %p249
      %p251 = scmp.ne.s32.totalorder %s242, %s243
      %p252 = scmp.eq.s32.totalorder %s38, 0
      %p253 = por %p251, %p252
      %p254 = scmp.ne.s32.totalorder %s242, %s243
      %p255 = scmp.eq.s32.totalorder %s39, 1
      %p256 = por %p254, %p255
      %p258 = scmp.ne.s32.totalorder %s243, %s257
      %p259 = scmp.eq.s32.totalorder %s39, 0
      %p260 = por %p258, %p259
      %s262 = sadd.s32 %s261, 1
      %p265 = scmp.eq.s32.totalorder %s33, 1
      %p266 = scmp.ne.s32.totalorder %s261, %s263
      %p267 = scmp.eq.s32.totalorder %s33, 0
      %p268 = por %p266, %p267
      %p269 = scmp.ne.s32.totalorder %s261, %s263
      %p270 = scmp.eq.s32.totalorder %s38, 1
      %p271 = por %p269, %p270
      %p272 = scmp.ne.s32.totalorder %s263, %s264
      %p273 = scmp.eq.s32.totalorder %s38, 0
      %p274 = por %p272, %p273
      %p275 = scmp.ne.s32.totalorder %s263, %s264
      %p276 = scmp.eq.s32.totalorder %s39, 1
      %p277 = por %p275, %p276
      %p279 = scmp.ne.s32.totalorder %s264, %s278
      %p280 = scmp.eq.s32.totalorder %s39, 0
      %p281 = por %p279, %p280
      %s283 = sadd.s32 %s282, 1
      %p286 = scmp.eq.s32.totalorder %s33, 1
      %p287 = scmp.ne.s32.totalorder %s282, %s284
      %p288 = scmp.eq.s32.totalorder %s33, 0
      %p289 = por %p287, %p288
      %p290 = scmp.ne.s32.totalorder %s282, %s284
      %p291 = scmp.eq.s32.totalorder %s38, 1
      %p292 = por %p290, %p291
      %p293 = scmp.ne.s32.totalorder %s284, %s285
      %p294 = scmp.eq.s32.totalorder %s38, 0
      %p295 = por %p293, %p294
      %p296 = scmp.ne.s32.totalorder %s284, %s285
      %p297 = scmp.eq.s32.totalorder %s39, 1
      %p298 = por %p296, %p297
      %p300 = scmp.ne.s32.totalorder %s285, %s299
      %p301 = scmp.eq.s32.totalorder %s39, 0
      %p302 = por %p300, %p301
      %s304 = sadd.s32 %s303, 1
      %p307 = scmp.eq.s32.totalorder %s33, 1
      %p308 = scmp.ne.s32.totalorder %s303, %s305
      %p309 = scmp.eq.s32.totalorder %s33, 0
      %p310 = por %p308, %p309
      %p311 = scmp.ne.s32.totalorder %s303, %s305
      %p312 = scmp.eq.s32.totalorder %s38, 1
      %p313 = por %p311, %p312
      %p314 = scmp.ne.s32.totalorder %s305, %s306
      %p315 = scmp.eq.s32.totalorder %s38, 0
      %p316 = por %p314, %p315
      %p317 = scmp.ne.s32.totalorder %s305, %s306
      %p318 = scmp.eq.s32.totalorder %s39, 1
      %p319 = por %p317, %p318
      %p321 = scmp.ne.s32.totalorder %s306, %s320
      %p322 = scmp.eq.s32.totalorder %s39, 0
      %p323 = por %p321, %p322
      %s325 = sadd.s32 %s324, 1
      %p328 = scmp.eq.s32.totalorder %s33, 1
      %p329 = scmp.ne.s32.totalorder %s324, %s326
      %p330 = scmp.eq.s32.totalorder %s33, 0
      %p331 = por %p329, %p330
      %p332 = scmp.ne.s32.totalorder %s324, %s326
      %p333 = scmp.eq.s32.totalorder %s38, 1
      %p334 = por %p332, %p333
      %p335 = scmp.ne.s32.totalorder %s326, %s327
      %p336 = scmp.eq.s32.totalorder %s38, 0
      %p337 = por %p335, %p336
      %p338 = scmp.ne.s32.totalorder %s326, %s327
      %p339 = scmp.eq.s32.totalorder %s39, 1
      %p340 = por %p338, %p339
      %p342 = scmp.ne.s32.totalorder %s327, %s341
      %p343 = scmp.eq.s32.totalorder %s39, 0
      %p344 = por %p342, %p343
      %s346 = sadd.s32 %s345, 1
      %p349 = scmp.eq.s32.totalorder %s33, 1
      %p350 = scmp.ne.s32.totalorder %s345, %s347
      %p351 = scmp.eq.s32.totalorder %s33, 0
      %p352 = por %p350, %p351
      %p353 = scmp.ne.s32.totalorder %s345, %s347
      %p354 = scmp.eq.s32.totalorder %s38, 1
      %p355 = por %p353, %p354
      %p356 = scmp.ne.s32.totalorder %s347, %s348
      %p357 = scmp.eq.s32.totalorder %s38, 0
      %p358 = por %p356, %p357
      %p359 = scmp.ne.s32.totalorder %s347, %s348
      %p360 = scmp.eq.s32.totalorder %s39, 1
      %p361 = por %p359, %p360
      %p363 = scmp.ne.s32.totalorder %s348, %s362
      %p364 = scmp.eq.s32.totalorder %s39, 0
      %p365 = por %p363, %p364
      %s367 = sadd.s32 %s366, 1
      %p370 = scmp.eq.s32.totalorder %s33, 1
      %p371 = scmp.ne.s32.totalorder %s366, %s368
      %p372 = scmp.eq.s32.totalorder %s33, 0
      %p373 = por %p371, %p372
      %p374 = scmp.ne.s32.totalorder %s366, %s368
      %p375 = scmp.eq.s32.totalorder %s38, 1
      %p376 = por %p374, %p375
      %p377 = scmp.ne.s32.totalorder %s368, %s369
      %p378 = scmp.eq.s32.totalorder %s38, 0
      %p379 = por %p377, %p378
      %p380 = scmp.ne.s32.totalorder %s368, %s369
      %p381 = scmp.eq.s32.totalorder %s39, 1
      %p382 = por %p380, %p381
      %p384 = scmp.ne.s32.totalorder %s369, %s383
      %p385 = scmp.eq.s32.totalorder %s39, 0
      %p386 = por %p384, %p385
      %s388 = sadd.s32 %s387, 1
      %p391 = scmp.eq.s32.totalorder %s33, 1
      %p392 = scmp.ne.s32.totalorder %s387, %s389
      %p393 = scmp.eq.s32.totalorder %s33, 0
      %p394 = por %p392, %p393
      %p395 = scmp.ne.s32.totalorder %s387, %s389
      %p396 = scmp.eq.s32.totalorder %s38, 1
      %p397 = por %p395, %p396
      %p398 = scmp.ne.s32.totalorder %s389, %s390
      %p399 = scmp.eq.s32.totalorder %s38, 0
      %p400 = por %p398, %p399
      %p401 = scmp.ne.s32.totalorder %s389, %s390
      %p402 = scmp.eq.s32.totalorder %s39, 1
      %p403 = por %p401, %p402
      %p405 = scmp.ne.s32.totalorder %s390, %s404
      %p406 = scmp.eq.s32.totalorder %s39, 0
      %p407 = por %p405, %p406
      %s408 = ssub.s32 %s33, %s40
      %p409 = scmp.eq.s32.totalorder %s408, 0
      %s411 = sadd.s32 %s410, 1
      %s412 = scalar_select %p409, %s410, %s411
      %p415 = pneg %p409
      %p416 = scmp.eq.s32.totalorder %s33, 1
      %p417 = por %p415, %p416
      %p418 = scmp.ne.s32.totalorder %s410, %s413
      %p419 = scmp.eq.s32.totalorder %s33, 0
      %p420 = por %p418, %p419
      %p421 = scmp.ne.s32.totalorder %s410, %s413
      %p422 = scmp.eq.s32.totalorder %s38, 1
      %p423 = por %p421, %p422
      %p424 = scmp.ne.s32.totalorder %s413, %s414
      %p425 = scmp.eq.s32.totalorder %s38, 0
      %p426 = por %p424, %p425
      %p427 = scmp.ne.s32.totalorder %s413, %s414
      %p428 = scmp.eq.s32.totalorder %s39, 1
      %p429 = por %p427, %p428
      %p431 = scmp.ne.s32.totalorder %s414, %s430
      %p432 = scmp.eq.s32.totalorder %s39, 0
      %p433 = por %p431, %p432
      %s434 = ssub.s32 %s33, %s40
      %p435 = scmp.eq.s32.totalorder %s434, 0
      %s437 = sadd.s32 %s436, 1
      %s438 = scalar_select %p435, %s436, %s437
      %p441 = pneg %p435
      %p442 = scmp.eq.s32.totalorder %s33, 1
      %p443 = por %p441, %p442
      %p444 = scmp.ne.s32.totalorder %s436, %s439
      %p445 = scmp.eq.s32.totalorder %s33, 0
      %p446 = por %p444, %p445
      %p447 = scmp.ne.s32.totalorder %s436, %s439
      %p448 = scmp.eq.s32.totalorder %s38, 1
      %p449 = por %p447, %p448
      %p450 = scmp.ne.s32.totalorder %s439, %s440
      %p451 = scmp.eq.s32.totalorder %s38, 0
      %p452 = por %p450, %p451
      %p453 = scmp.ne.s32.totalorder %s439, %s440
      %p454 = scmp.eq.s32.totalorder %s39, 1
      %p455 = por %p453, %p454
      %p457 = scmp.ne.s32.totalorder %s440, %s456
      %p458 = scmp.eq.s32.totalorder %s39, 0
      %p459 = por %p457, %p458
      %s460 = ssub.s32 %s33, %s40
      %p461 = scmp.eq.s32.totalorder %s460, 0
      %s463 = sadd.s32 %s462, 1
      %s464 = scalar_select %p461, %s462, %s463
      %p467 = pneg %p461
      %p468 = scmp.eq.s32.totalorder %s33, 1
      %p469 = por %p467, %p468
      %p470 = scmp.ne.s32.totalorder %s462, %s465
      %p471 = scmp.eq.s32.totalorder %s33, 0
      %p472 = por %p470, %p471
      %p473 = scmp.ne.s32.totalorder %s462, %s465
      %p474 = scmp.eq.s32.totalorder %s38, 1
      %p475 = por %p473, %p474
      %p476 = scmp.ne.s32.totalorder %s465, %s466
      %p477 = scmp.eq.s32.totalorder %s38, 0
      %p478 = por %p476, %p477
      %p479 = scmp.ne.s32.totalorder %s465, %s466
      %p480 = scmp.eq.s32.totalorder %s39, 1
      %p481 = por %p479, %p480
      %p483 = scmp.ne.s32.totalorder %s466, %s482
      %p484 = scmp.eq.s32.totalorder %s39, 0
      %p485 = por %p483, %p484
      %s486 = ssub.s32 %s33, %s40
      %p487 = scmp.eq.s32.totalorder %s486, 0
      %s489 = sadd.s32 %s488, 1
      %s490 = scalar_select %p487, %s488, %s489
      %p493 = pneg %p487
      %p494 = scmp.eq.s32.totalorder %s33, 1
      %p495 = por %p493, %p494
      %p496 = scmp.ne.s32.totalorder %s488, %s491
      %p497 = scmp.eq.s32.totalorder %s33, 0
      %p498 = por %p496, %p497
      %p499 = scmp.ne.s32.totalorder %s488, %s491
      %p500 = scmp.eq.s32.totalorder %s38, 1
      %p501 = por %p499, %p500
      %p502 = scmp.ne.s32.totalorder %s491, %s492
      %p503 = scmp.eq.s32.totalorder %s38, 0
      %p504 = por %p502, %p503
      %p505 = scmp.ne.s32.totalorder %s491, %s492
      %p506 = scmp.eq.s32.totalorder %s39, 1
      %p507 = por %p505, %p506
      %p509 = scmp.ne.s32.totalorder %s492, %s508
      %p510 = scmp.eq.s32.totalorder %s39, 0
      %p511 = por %p509, %p510
      %s512 = ssub.s32 %s33, %s40
      %p513 = scmp.eq.s32.totalorder %s512, 0
      %s515 = sadd.s32 %s514, 1
      %s516 = scalar_select %p513, %s514, %s515
      %p519 = pneg %p513
      %p520 = scmp.eq.s32.totalorder %s33, 1
      %p521 = por %p519, %p520
      %p522 = scmp.ne.s32.totalorder %s514, %s517
      %p523 = scmp.eq.s32.totalorder %s33, 0
      %p524 = por %p522, %p523
      %p525 = scmp.ne.s32.totalorder %s514, %s517
      %p526 = scmp.eq.s32.totalorder %s38, 1
      %p527 = por %p525, %p526
      %p528 = scmp.ne.s32.totalorder %s517, %s518
      %p529 = scmp.eq.s32.totalorder %s38, 0
      %p530 = por %p528, %p529
      %p531 = scmp.ne.s32.totalorder %s517, %s518
      %p532 = scmp.eq.s32.totalorder %s39, 1
      %p533 = por %p531, %p532
      %p535 = scmp.ne.s32.totalorder %s518, %s534
      %p536 = scmp.eq.s32.totalorder %s39, 0
      %p537 = por %p535, %p536
      %s538 = ssub.s32 %s33, %s40
      %p539 = scmp.eq.s32.totalorder %s538, 0
      %s541 = sadd.s32 %s540, 1
      %s542 = scalar_select %p539, %s540, %s541
      %p545 = pneg %p539
      %p546 = scmp.eq.s32.totalorder %s33, 1
      %p547 = por %p545, %p546
      %p548 = scmp.ne.s32.totalorder %s540, %s543
      %p549 = scmp.eq.s32.totalorder %s33, 0
      %p550 = por %p548, %p549
      %p551 = scmp.ne.s32.totalorder %s540, %s543
      %p552 = scmp.eq.s32.totalorder %s38, 1
      %p553 = por %p551, %p552
      %p554 = scmp.ne.s32.totalorder %s543, %s544
      %p555 = scmp.eq.s32.totalorder %s38, 0
      %p556 = por %p554, %p555
      %p557 = scmp.ne.s32.totalorder %s543, %s544
      %p558 = scmp.eq.s32.totalorder %s39, 1
      %p559 = por %p557, %p558
      %p561 = scmp.ne.s32.totalorder %s544, %s560
      %p562 = scmp.eq.s32.totalorder %s39, 0
      %p563 = por %p561, %p562
      %s564 = ssub.s32 %s33, %s40
      %p565 = scmp.eq.s32.totalorder %s564, 0
      %s567 = sadd.s32 %s566, 1
      %s568 = scalar_select %p565, %s566, %s567
      %p571 = pneg %p565
      %p572 = scmp.eq.s32.totalorder %s33, 1
      %p573 = por %p571, %p572
      %p574 = scmp.ne.s32.totalorder %s566, %s569
      %p575 = scmp.eq.s32.totalorder %s33, 0
      %p576 = por %p574, %p575
      %p577 = scmp.ne.s32.totalorder %s566, %s569
      %p578 = scmp.eq.s32.totalorder %s38, 1
      %p579 = por %p577, %p578
      %p580 = scmp.ne.s32.totalorder %s569, %s570
      %p581 = scmp.eq.s32.totalorder %s38, 0
      %p582 = por %p580, %p581
      %p583 = scmp.ne.s32.totalorder %s569, %s570
      %p584 = scmp.eq.s32.totalorder %s39, 1
      %p585 = por %p583, %p584
      %p587 = scmp.ne.s32.totalorder %s570, %s586
      %p588 = scmp.eq.s32.totalorder %s39, 0
      %p589 = por %p587, %p588
      %p590 = scmp.le.s32.totalorder 1, %s33
      %p591 = scmp.lt.s32.totalorder %s33, 3
      %p592 = pnand %p590, %p591
      %p593 = pneg %p592
      // Predicated region
      $region9: #{block_forward.4} parent=5 // pred_check
        _
      $region10: #{block_forward.4} parent=5 // pred_check_branch
        %595 = sbr.rel (%p592) target = $region12
      $region11: #{block_forward.4} parent=5 // pred_region
        %s596 = ssub.s32 %s33, 1
        // Predicated region
        $region13: #{block_forward.4} parent=11 // pred_check
          %p597 = pneg %p106
        $region14: #{block_forward.4} parent=11 // pred_check_branch
          %599 = sbr.rel (%p597) target = $region16
        $region15: #{block_forward.4} parent=11 // pred_region
          _
        $region16: #{block_forward.4} parent=11 // pred_fallthru
          _
        // Predicated region
        $region17: #{block_forward.4} parent=11 // pred_check
          %p600 = pneg %p127
        $region18: #{block_forward.4} parent=11 // pred_check_branch
          %602 = sbr.rel (%p600) target = $region20
        $region19: #{block_forward.4} parent=11 // pred_region
          _
        $region20: #{block_forward.4} parent=11 // pred_fallthru
          _
        // Predicated region
        $region21: #{block_forward.4} parent=11 // pred_check
          %p603 = pneg %p148
        $region22: #{block_forward.4} parent=11 // pred_check_branch
          %605 = sbr.rel (%p603) target = $region24
        $region23: #{block_forward.4} parent=11 // pred_region
          _
        $region24: #{block_forward.4} parent=11 // pred_fallthru
          _
        // Predicated region
        $region25: #{block_forward.4} parent=11 // pred_check
          %p606 = pneg %p169
        $region26: #{block_forward.4} parent=11 // pred_check_branch
          %608 = sbr.rel (%p606) target = $region28
        $region27: #{block_forward.4} parent=11 // pred_region
          _
        $region28: #{block_forward.4} parent=11 // pred_fallthru
          _
        // Predicated region
        $region29: #{block_forward.4} parent=11 // pred_check
          %p609 = pneg %p190
        $region30: #{block_forward.4} parent=11 // pred_check_branch
          %611 = sbr.rel (%p609) target = $region32
        $region31: #{block_forward.4} parent=11 // pred_region
          _
        $region32: #{block_forward.4} parent=11 // pred_fallthru
          _
        // Predicated region
        $region33: #{block_forward.4} parent=11 // pred_check
          %p612 = pneg %p211
        $region34: #{block_forward.4} parent=11 // pred_check_branch
          %614 = sbr.rel (%p612) target = $region36
        $region35: #{block_forward.4} parent=11 // pred_region
          _
        $region36: #{block_forward.4} parent=11 // pred_fallthru
          _
        // Predicated region
        $region37: #{block_forward.4} parent=11 // pred_check
          %p615 = pneg %p232
        $region38: #{block_forward.4} parent=11 // pred_check_branch
          %617 = sbr.rel (%p615) target = $region40
        $region39: #{block_forward.4} parent=11 // pred_region
          _
        $region40: #{block_forward.4} parent=11 // pred_fallthru
          _
        // Predicated region
        $region41: #{block_forward.4} parent=11 // pred_check
          %p618 = pneg %p253
        $region42: #{block_forward.4} parent=11 // pred_check_branch
          %620 = sbr.rel (%p618) target = $region44
        $region43: #{block_forward.4} parent=11 // pred_region
          _
        $region44: #{block_forward.4} parent=11 // pred_fallthru
          _
        // Predicated region
        $region45: #{block_forward.4} parent=11 // pred_check
          %p621 = pneg %p274
        $region46: #{block_forward.4} parent=11 // pred_check_branch
          %623 = sbr.rel (%p621) target = $region48
        $region47: #{block_forward.4} parent=11 // pred_region
          _
        $region48: #{block_forward.4} parent=11 // pred_fallthru
          _
        // Predicated region
        $region49: #{block_forward.4} parent=11 // pred_check
          %p624 = pneg %p295
        $region50: #{block_forward.4} parent=11 // pred_check_branch
          %626 = sbr.rel (%p624) target = $region52
        $region51: #{block_forward.4} parent=11 // pred_region
          _
        $region52: #{block_forward.4} parent=11 // pred_fallthru
          _
        // Predicated region
        $region53: #{block_forward.4} parent=11 // pred_check
          %p627 = pneg %p316
        $region54: #{block_forward.4} parent=11 // pred_check_branch
          %629 = sbr.rel (%p627) target = $region56
        $region55: #{block_forward.4} parent=11 // pred_region
          _
        $region56: #{block_forward.4} parent=11 // pred_fallthru
          _
        // Predicated region
        $region57: #{block_forward.4} parent=11 // pred_check
          %p630 = pneg %p337
        $region58: #{block_forward.4} parent=11 // pred_check_branch
          %632 = sbr.rel (%p630) target = $region60
        $region59: #{block_forward.4} parent=11 // pred_region
          _
        $region60: #{block_forward.4} parent=11 // pred_fallthru
          _
        // Predicated region
        $region61: #{block_forward.4} parent=11 // pred_check
          %p633 = pneg %p358
        $region62: #{block_forward.4} parent=11 // pred_check_branch
          %635 = sbr.rel (%p633) target = $region64
        $region63: #{block_forward.4} parent=11 // pred_region
          _
        $region64: #{block_forward.4} parent=11 // pred_fallthru
          _
        // Predicated region
        $region65: #{block_forward.4} parent=11 // pred_check
          %p636 = pneg %p379
        $region66: #{block_forward.4} parent=11 // pred_check_branch
          %638 = sbr.rel (%p636) target = $region68
        $region67: #{block_forward.4} parent=11 // pred_region
          _
        $region68: #{block_forward.4} parent=11 // pred_fallthru
          _
        // Predicated region
        $region69: #{block_forward.4} parent=11 // pred_check
          %p639 = pneg %p400
        $region70: #{block_forward.4} parent=11 // pred_check_branch
          %641 = sbr.rel (%p639) target = $region72
        $region71: #{block_forward.4} parent=11 // pred_region
          _
        $region72: #{block_forward.4} parent=11 // pred_fallthru
          _
      $region12: #{block_forward.4} parent=5 // pred_fallthru
        _
      %p642 = scmp.lt.s32.totalorder %s33, 2
      // Predicated region
      $region73: #{block_forward.4} parent=5 // pred_check
        %p643 = pneg %p642
      $region74: #{block_forward.4} parent=5 // pred_check_branch
        %645 = sbr.rel (%p643) target = $region76
      $region75: #{block_forward.4} parent=5 // pred_region
        // Predicated region
        $region77: #{block_forward.4} parent=75 // pred_check
          %p646 = pneg %p53
        $region78: #{block_forward.4} parent=75 // pred_check_branch
          %648 = sbr.rel (%p646) target = $region80
        $region79: #{block_forward.4} parent=75 // pred_region
          %p649 = scmp.lt.s32.totalorder %s33, 1
          %s650 = scalar_select %p649, %s33, 1
          %s651 = smul.addr %s650, 8
          %s652 = scalar_lea.vmem %s0, %s651
        $region80: #{block_forward.4} parent=75 // pred_fallthru
          _
        // Predicated region
        $region81: #{block_forward.4} parent=75 // pred_check
          %p653 = pneg %p79
        $region82: #{block_forward.4} parent=75 // pred_check_branch
          %655 = sbr.rel (%p653) target = $region84
        $region83: #{block_forward.4} parent=75 // pred_region
          %p656 = scmp.lt.s32.totalorder %s33, 1
          %s657 = scalar_select %p656, %s33, 1
          %s658 = scalar_lea.vmem %s1, %s657
        $region84: #{block_forward.4} parent=75 // pred_fallthru
          _
      $region76: #{block_forward.4} parent=5 // pred_fallthru
        _
      %p659 = scmp.le.s32.totalorder 1, %s33
      %p660 = scmp.lt.s32.totalorder %s33, 3
      %p661 = pnand %p659, %p660
      %p662 = pneg %p661
      // Predicated region
      $region85: #{block_forward.4} parent=5 // pred_check
        _
      $region86: #{block_forward.4} parent=5 // pred_check_branch
        %664 = sbr.rel (%p661) target = $region88
      $region87: #{block_forward.4} parent=5 // pred_region
        %s665 = ssub.s32 %s33, 1
        %p666 = scmp.lt.s32.totalorder %s38, 1
        %s667 = scalar_select %p666, %s38, 1
        %s668 = smul.addr %s667, 8
        %s669 = scalar_lea.vmem %s0, %s668
        %p670 = pneg %p59
        %p671 = pneg %p56
        %p672 = scmp.lt.s32.totalorder %s38, 1
        %s673 = scalar_select %p672, %s38, 1
        %s674 = scalar_lea.vmem %s1, %s673
        %p675 = pneg %p85
        %p676 = pneg %p82
        %p677 = pneg %p106
        %p678 = pneg %p103
        %p679 = pneg %p127
        %p680 = pneg %p124
        %p681 = pneg %p148
        %p682 = pneg %p145
        %p683 = pneg %p169
        %p684 = pneg %p166
        %p685 = pneg %p190
        %p686 = pneg %p187
        %p687 = pneg %p211
        %p688 = pneg %p208
        %p689 = pneg %p232
        %p690 = pneg %p229
        %p691 = pneg %p253
        %p692 = pneg %p250
        %p693 = pneg %p274
        %p694 = pneg %p271
        %p695 = pneg %p295
        %p696 = pneg %p292
        %p697 = pneg %p316
        %p698 = pneg %p313
        %p699 = pneg %p337
        %p700 = pneg %p334
        %p701 = pneg %p358
        %p702 = pneg %p355
        %p703 = pneg %p379
        %p704 = pneg %p376
        %p705 = pneg %p400
        %p706 = pneg %p397
        %p707 = pneg %p426
        %p708 = pneg %p423
        %p709 = scmp.lt.s32.totalorder %s38, 1
        %s710 = scalar_select %p709, %s38, 1
        %s711 = smul.addr %s710, 8
        %s712 = scalar_lea.vmem %s17, %s711
        %p713 = pneg %p452
        %p714 = pneg %p449
        %p715 = scmp.lt.s32.totalorder %s38, 1
        %s716 = scalar_select %p715, %s38, 1
        %s717 = smul.addr %s716, 8
        %s718 = scalar_lea.vmem %s18, %s717
        %p719 = pneg %p478
        %p720 = pneg %p475
        %p721 = scmp.lt.s32.totalorder %s38, 1
        %s722 = scalar_select %p721, %s38, 1
        %s723 = smul.addr %s722, 8
        %s724 = scalar_lea.vmem %s19, %s723
        %p725 = pneg %p504
        %p726 = pneg %p501
        %p727 = scmp.lt.s32.totalorder %s38, 1
        %s728 = scalar_select %p727, %s38, 1
        %s729 = smul.addr %s728, 8
        %s730 = scalar_lea.vmem %s20, %s729
        %p731 = pneg %p530
        %p732 = pneg %p527
        %p733 = scmp.lt.s32.totalorder %s38, 1
        %s734 = scalar_select %p733, %s38, 1
        %s735 = smul.addr %s734, 8
        %s736 = scalar_lea.vmem %s21, %s735
        %p737 = pneg %p556
        %p738 = pneg %p553
        %p739 = scmp.lt.s32.totalorder %s38, 1
        %s740 = scalar_select %p739, %s38, 1
        %s741 = smul.addr %s740, 8
        %s742 = scalar_lea.vmem %s22, %s741
        %p743 = pneg %p582
        %p744 = pneg %p579
        %s745 = sand.u32 %s569, 1
        %s746 = scalar_lea.sflag [#allocation3], %s745
        %s747 = sand.u32 %s569, 1
        %s748 = scalar_lea.vmem [#allocation2], %s747
        %p749 = scmp.lt.s32.totalorder %s38, 1
        %s750 = scalar_select %p749, %s38, 1
        %s751 = smul.addr %s750, 8
        %s752 = scalar_lea.vmem %s0, %s751
        %p753 = scmp.lt.s32.totalorder %s38, 1
        %s754 = scalar_select %p753, %s38, 1
        %s755 = scalar_lea.vmem %s1, %s754
        %p756 = scmp.lt.s32.totalorder %s38, 1
        %s757 = scalar_select %p756, %s38, 1
        %s758 = smul.addr %s757, 8
        %s759 = scalar_lea.vmem %s17, %s758
        %p760 = scmp.lt.s32.totalorder %s38, 1
        %s761 = scalar_select %p760, %s38, 1
        %s762 = smul.addr %s761, 8
        %s763 = scalar_lea.vmem %s18, %s762
        %p764 = scmp.lt.s32.totalorder %s38, 1
        %s765 = scalar_select %p764, %s38, 1
        %s766 = smul.addr %s765, 8
        %s767 = scalar_lea.vmem %s19, %s766
        %p768 = scmp.lt.s32.totalorder %s38, 1
        %s769 = scalar_select %p768, %s38, 1
        %s770 = smul.addr %s769, 8
        %s771 = scalar_lea.vmem %s20, %s770
        %p772 = scmp.lt.s32.totalorder %s38, 1
        %s773 = scalar_select %p772, %s38, 1
        %s774 = smul.addr %s773, 8
        %s775 = scalar_lea.vmem %s21, %s774
        %p776 = scmp.lt.s32.totalorder %s38, 1
        %s777 = scalar_select %p776, %s38, 1
        %s778 = smul.addr %s777, 8
        %s779 = scalar_lea.vmem %s22, %s778
        %v781 = vld [vmem:[%s752] sm:$0xff]
        %v782 = vld [vmem:[%s2] sm:$0x1]
        %v783 = vld [vmem:[%s3] sm:$0x1]
        %784 = vadd.xlane.f32.xlu0 %v781
        %v785 = vpop.xlane.xlu0 %784
        %v786 = vrcp.pop 128.0
        %v787 = vmul.f32 %v785, %v786
        %v788 = vsub.f32 %v781, %v787
        %v789 = vmul.f32 %v788, %v788
        %790 = vadd.xlane.f32.xlu0 %v789
        %v791 = vpop.xlane.xlu0 %790
        %v792 = vmul.f32 %v791, %v786
        %v793 = vadd.f32 %v792, 1e-05
        %v794 = vrsqrt.pop %v793
        %v795 = vmul.f32 %v788, %v794
        %v797 = vlaneseq
        %v798 = vshrl.u32 %v797, 7
        %v799 = vsub.s32 0, %v798
        %v800 = vrot.slane %v782, %v799
        %v802 = vmul.f32 %v795, %v800
        %v804 = vlaneseq
        %v805 = vshrl.u32 %v804, 7
        %v806 = vsub.s32 0, %v805
        %v807 = vrot.slane %v783, %v806
        %v809 = vadd.f32 %v802, %v807
        %810 = vst [vmem:[%s759] sm:$0xff] %v809
        %v811 = vld [vmem:[%s4] sm:$0x1]
        %v812 = vld [vmem:[%s5] sm:$0x1]
        %813 = vadd.xlane.f32.xlu0 %v809
        %v814 = vpop.xlane.xlu0 %813
        %v815 = vmul.f32 %v814, %v786
        %v816 = vsub.f32 %v809, %v815
        %v817 = vmul.f32 %v816, %v816
        %818 = vadd.xlane.f32.xlu0 %v817
        %v819 = vpop.xlane.xlu0 %818
        %v820 = vmul.f32 %v819, %v786
        %v821 = vadd.f32 %v820, 1e-05
        %v822 = vrsqrt.pop %v821
        %v823 = vmul.f32 %v816, %v822
        %v825 = vlaneseq
        %v826 = vshrl.u32 %v825, 7
        %v827 = vsub.s32 0, %v826
        %v828 = vrot.slane %v811, %v827
        %v830 = vmul.f32 %v823, %v828
        %v832 = vlaneseq
        %v833 = vshrl.u32 %v832, 7
        %v834 = vsub.s32 0, %v833
        %v835 = vrot.slane %v812, %v834
        %v837 = vadd.f32 %v830, %v835
        %v838 = vld [vmem:[%s755] sm:$0x1]
        %v839 = vrot.slane %v837, 7
        %v840 = vlaneseq
        %v841 = vshrl.u32 %v840, 7
        %vm842 = vcmp.eq.s32.totalorder %v841, 0
        %v844 = vlaneseq
        %v845 = vshrl.u32 %v844, 7
        %v846 = vsub.s32 0, %v845
        %v847 = vrot.slane %v838, %v846
        %v849 = vsel %vm842, %v847, %v839
        %v850 = vsub.f32 %v849, %v837
        %851 = vst [vmem:[%s748 - $0x7] sm:$0x80] %v837
        %v852 = vld [vmem:[%s6] sm:$0x1]
        %v854 = vlaneseq
        %v855 = vshrl.u32 %v854, 7
        %v856 = vsub.s32 0, %v855
        %v857 = vrot.slane %v852, %v856
        %v859 = vmul.f32 %v850, %v857
        %v860 = vadd.f32 %v837, %v859
        %v861 = vpack.c.bf16 %v860, %v860
        %v862 = vld [vmem:[%s8] sm:$0xf]
        %v863 = vld [vmem:[%s8 + $0x4] sm:$0xf]
        %v864 = vld [vmem:[%s8 + $0x8] sm:$0xf]
        %v865 = vld [vmem:[%s8 + $0xc] sm:$0xf]
        %v866 = vld [vmem:[%s8 + $0x10] sm:$0xf]
        %v867 = vld [vmem:[%s8 + $0x14] sm:$0xf]
        %v868 = vld [vmem:[%s8 + $0x18] sm:$0xf]
        %v869 = vld [vmem:[%s8 + $0x1c] sm:$0xf]
        %v870 = vld [vmem:[%s8 + $0x20] sm:$0xf]
        %v871 = vld [vmem:[%s8 + $0x24] sm:$0xf]
        %v872 = vld [vmem:[%s8 + $0x28] sm:$0xf]
        %v873 = vld [vmem:[%s8 + $0x2c] sm:$0xf]
        %v874 = vld [vmem:[%s8 + $0x30] sm:$0xf]
        %v875 = vld [vmem:[%s8 + $0x34] sm:$0xf]
        %v876 = vld [vmem:[%s8 + $0x38] sm:$0xf]
        %v877 = vld [vmem:[%s8 + $0x3c] sm:$0xf]
        %v894 = vunpack.c.l.b16 %v862
        %v895 = vunpack.c.l.b16 %v863
        %v896 = vunpack.c.l.b16 %v864
        %v897 = vunpack.c.l.b16 %v865
        %v898 = vunpack.c.l.b16 %v866
        %v899 = vunpack.c.l.b16 %v867
        %v900 = vunpack.c.l.b16 %v868
        %v901 = vunpack.c.l.b16 %v869
        %v902 = vunpack.c.l.b16 %v870
        %v903 = vunpack.c.l.b16 %v871
        %v904 = vunpack.c.l.b16 %v872
        %v905 = vunpack.c.l.b16 %v873
        %v906 = vunpack.c.l.b16 %v874
        %v907 = vunpack.c.l.b16 %v875
        %v908 = vunpack.c.l.b16 %v876
        %v909 = vunpack.c.l.b16 %v877
        %v910 = vpack.c.b16 %v895, %v894
        %v911 = vpack.c.b16 %v897, %v896
        %v912 = vpack.c.b16 %v899, %v898
        %v913 = vpack.c.b16 %v901, %v900
        %v914 = vpack.c.b16 %v903, %v902
        %v915 = vpack.c.b16 %v905, %v904
        %v916 = vpack.c.b16 %v907, %v906
        %v917 = vpack.c.b16 %v909, %v908
        %926 = vmatprep.subr.bf16.mxu0 0
        %927 = vmatpush1.bf16.msra.mxu0 %v910
        %928 = vmatprep.subr.bf16.mxu0 0
        %929 = vmatpush1.bf16.msra.mxu0 %v911
        %930 = vmatprep.subr.bf16.mxu0 0
        %931 = vmatpush1.bf16.msra.mxu0 %v912
        %932 = vmatprep.subr.bf16.mxu0 0
        %933 = vmatpush1.bf16.msra.mxu0 %v913
        %934 = vmatprep.subr.bf16.mxu0 0
        %935 = vmatpush1.bf16.msra.mxu0 %v914
        %936 = vmatprep.subr.bf16.mxu0 0
        %937 = vmatpush1.bf16.msra.mxu0 %v915
        %938 = vmatprep.subr.bf16.mxu0 0
        %939 = vmatpush1.bf16.msra.mxu0 %v916
        %940 = vmatprep.subr.bf16.mxu0 0
        %941 = vmatpush1.bf16.msra.mxu0 %v917
        %942 = vmatprep.subr.bf16.mxu0 0
        %943 = vmatpush1.bf16.msra.mxu0 0
        %944 = vmatprep.subr.bf16.mxu0 0
        %945 = vmatpush1.bf16.msra.mxu0 0
        %946 = vmatprep.subr.bf16.mxu0 0
        %947 = vmatpush1.bf16.msra.mxu0 0
        %948 = vmatprep.subr.bf16.mxu0 0
        %949 = vmatpush1.bf16.msra.mxu0 0
        %950 = vmatprep.subr.bf16.mxu0 0
        %951 = vmatpush1.bf16.msra.mxu0 0
        %952 = vmatprep.subr.bf16.mxu0 0
        %953 = vmatpush1.bf16.msra.mxu0 0
        %954 = vmatprep.subr.bf16.mxu0 0
        %955 = vmatpush1.bf16.msra.mxu0 0
        %956 = vmatprep.subr.bf16.mxu0 0
        %957 = vmatpush1.bf16.msra.mxu0 0
        %958 = vmatprep.mubr.bf16.mxu0 0
        %959 = vmatmul.mubr.bf16.gmra.mrb[0].mxu0 %v861
        %v960 = vpop.f32.mrb[0].mxu0
        %v961 = vadd.f32 0.0, %v960
        %v962 = vpop.f32.mrb[0].mxu0
        %v963 = vpop.f32.mrb[0].mxu0
        %v964 = vpop.f32.mrb[0].mxu0
        %965 = vdwg.mxu0
        %v966 = vtanh.pop %v961
        %v967 = vpack.c.bf16 %v966, %v966
        %v968 = vld [vmem:[%s9] sm:$0xf]
        %v969 = vld [vmem:[%s9 + $0x4] sm:$0xf]
        %v970 = vld [vmem:[%s9 + $0x8] sm:$0xf]
        %v971 = vld [vmem:[%s9 + $0xc] sm:$0xf]
        %v976 = vunpack.c.l.b16 %v968
        %v977 = vunpack.c.l.b16 %v969
        %v978 = vunpack.c.l.b16 %v970
        %v979 = vunpack.c.l.b16 %v971
        %v980 = vpack.c.b16 %v977, %v976
        %v981 = vpack.c.b16 %v979, %v978
        %vm984 = vcmask 261120
        %v986 = vsel %vm984, %v967, 0
        %988 = vmatprep.subr.bf16.mxu0 0
        %989 = vmatpush1.bf16.msra.mxu0 %v980
        %990 = vmatprep.subr.bf16.mxu0 0
        %991 = vmatpush1.bf16.msra.mxu0 %v981
        %992 = vmatprep.subr.bf16.mxu0 0
        %993 = vmatpush1.bf16.msra.mxu0 0
        %994 = vmatprep.subr.bf16.mxu0 0
        %995 = vmatpush1.bf16.msra.mxu0 0
        %996 = vmatprep.subr.bf16.mxu0 0
        %997 = vmatpush1.bf16.msra.mxu0 0
        %998 = vmatprep.subr.bf16.mxu0 0
        %999 = vmatpush1.bf16.msra.mxu0 0
        %1000 = vmatprep.subr.bf16.mxu0 0
        %1001 = vmatpush1.bf16.msra.mxu0 0
        %1002 = vmatprep.subr.bf16.mxu0 0
        %1003 = vmatpush1.bf16.msra.mxu0 0
        %1004 = vmatprep.subr.bf16.mxu0 0
        %1005 = vmatpush1.bf16.msra.mxu0 0
        %1006 = vmatprep.subr.bf16.mxu0 0
        %1007 = vmatpush1.bf16.msra.mxu0 0
        %1008 = vmatprep.subr.bf16.mxu0 0
        %1009 = vmatpush1.bf16.msra.mxu0 0
        %1010 = vmatprep.subr.bf16.mxu0 0
        %1011 = vmatpush1.bf16.msra.mxu0 0
        %1012 = vmatprep.subr.bf16.mxu0 0
        %1013 = vmatpush1.bf16.msra.mxu0 0
        %1014 = vmatprep.subr.bf16.mxu0 0
        %1015 = vmatpush1.bf16.msra.mxu0 0
        %1016 = vmatprep.subr.bf16.mxu0 0
        %1017 = vmatpush1.bf16.msra.mxu0 0
        %1018 = vmatprep.subr.bf16.mxu0 0
        %1019 = vmatpush1.bf16.msra.mxu0 0
        %1020 = vmatprep.mubr.bf16.mxu0 0
        %1021 = vmatmul.mubr.bf16.gmra.mrb[0].mxu0 %v986
        %v1022 = vpop.f32.mrb[0].mxu0
        %v1023 = vadd.f32 0.0, %v1022
        %v1024 = vpop.f32.mrb[0].mxu0
        %v1025 = vpop.f32.mrb[0].mxu0
        %v1026 = vpop.f32.mrb[0].mxu0
        %1027 = vdwg.mxu0
        %v1028 = vld [vmem:[%s7] sm:$0x1]
        %v1029 = vlaneseq
        %v1030 = vshrl.u32 %v1029, 7
        %v1031 = vsub.s32 0, %v1030
        %v1032 = vrot.slane %v1028, %v1031
        %v1033 = vadd.f32 %v1032, %v1023
        %v1034 = vmul.f32 %v850, %v1033
        %v1035 = vadd.f32 %v837, %v1034
        %s1036 = scalar_lea.vmem %s8, 64
        %v1037 = vld [vmem:[%s1036] sm:$0xf]
        %v1038 = vld [vmem:[%s1036 + $0x4] sm:$0xf]
        %v1039 = vld [vmem:[%s1036 + $0x8] sm:$0xf]
        %v1040 = vld [vmem:[%s1036 + $0xc] sm:$0xf]
        %v1041 = vld [vmem:[%s1036 + $0x10] sm:$0xf]
        %v1042 = vld [vmem:[%s1036 + $0x14] sm:$0xf]
        %v1043 = vld [vmem:[%s1036 + $0x18] sm:$0xf]
        %v1044 = vld [vmem:[%s1036 + $0x1c] sm:$0xf]
        %v1045 = vld [vmem:[%s1036 + $0x20] sm:$0xf]
        %v1046 = vld [vmem:[%s1036 + $0x24] sm:$0xf]
        %v1047 = vld [vmem:[%s1036 + $0x28] sm:$0xf]
        %v1048 = vld [vmem:[%s1036 + $0x2c] sm:$0xf]
        %v1049 = vld [vmem:[%s1036 + $0x30] sm:$0xf]
        %v1050 = vld [vmem:[%s1036 + $0x34] sm:$0xf]
        %v1051 = vld [vmem:[%s1036 + $0x38] sm:$0xf]
        %v1052 = vld [vmem:[%s1036 + $0x3c] sm:$0xf]
        %v1069 = vunpack.c.l.b16 %v1037
        %v1070 = vunpack.c.l.b16 %v1038
        %v1071 = vunpack.c.l.b16 %v1039
        %v1072 = vunpack.c.l.b16 %v1040
        %v1073 = vunpack.c.l.b16 %v1041
        %v1074 = vunpack.c.l.b16 %v1042
        %v1075 = vunpack.c.l.b16 %v1043
        %v1076 = vunpack.c.l.b16 %v1044
        %v1077 = vunpack.c.l.b16 %v1045
        %v1078 = vunpack.c.l.b16 %v1046
        %v1079 = vunpack.c.l.b16 %v1047
        %v1080 = vunpack.c.l.b16 %v1048
        %v1081 = vunpack.c.l.b16 %v1049
        %v1082 = vunpack.c.l.b16 %v1050
        %v1083 = vunpack.c.l.b16 %v1051
        %v1084 = vunpack.c.l.b16 %v1052
        %v1085 = vpack.c.b16 %v1070, %v1069
        %v1086 = vpack.c.b16 %v1072, %v1071
        %v1087 = vpack.c.b16 %v1074, %v1073
        %v1088 = vpack.c.b16 %v1076, %v1075
        %v1089 = vpack.c.b16 %v1078, %v1077
        %v1090 = vpack.c.b16 %v1080, %v1079
        %v1091 = vpack.c.b16 %v1082, %v1081
        %v1092 = vpack.c.b16 %v1084, %v1083
        %1101 = vmatprep.subr.bf16.mxu0 0
        %1102 = vmatpush1.bf16.msra.mxu0 %v1085
        %1103 = vmatprep.subr.bf16.mxu0 0
        %1104 = vmatpush1.bf16.msra.mxu0 %v1086
        %1105 = vmatprep.subr.bf16.mxu0 0
        %1106 = vmatpush1.bf16.msra.mxu0 %v1087
        %1107 = vmatprep.subr.bf16.mxu0 0
        %1108 = vmatpush1.bf16.msra.mxu0 %v1088
        %1109 = vmatprep.subr.bf16.mxu0 0
        %1110 = vmatpush1.bf16.msra.mxu0 %v1089
        %1111 = vmatprep.subr.bf16.mxu0 0
        %1112 = vmatpush1.bf16.msra.mxu0 %v1090
        %1113 = vmatprep.subr.bf16.mxu0 0
        %1114 = vmatpush1.bf16.msra.mxu0 %v1091
        %1115 = vmatprep.subr.bf16.mxu0 0
        %1116 = vmatpush1.bf16.msra.mxu0 %v1092
        %1117 = vmatprep.subr.bf16.mxu0 0
        %1118 = vmatpush1.bf16.msra.mxu0 0
        %1119 = vmatprep.subr.bf16.mxu0 0
        %1120 = vmatpush1.bf16.msra.mxu0 0
        %1121 = vmatprep.subr.bf16.mxu0 0
        %1122 = vmatpush1.bf16.msra.mxu0 0
        %1123 = vmatprep.subr.bf16.mxu0 0
        %1124 = vmatpush1.bf16.msra.mxu0 0
        %1125 = vmatprep.subr.bf16.mxu0 0
        %1126 = vmatpush1.bf16.msra.mxu0 0
        %1127 = vmatprep.subr.bf16.mxu0 0
        %1128 = vmatpush1.bf16.msra.mxu0 0
        %1129 = vmatprep.subr.bf16.mxu0 0
        %1130 = vmatpush1.bf16.msra.mxu0 0
        %1131 = vmatprep.subr.bf16.mxu0 0
        %1132 = vmatpush1.bf16.msra.mxu0 0
        %1133 = vmatprep.mubr.bf16.mxu0 0
        %1134 = vmatmul.mubr.bf16.gmra.mrb[0].mxu0 %v861
        %v1135 = vpop.f32.mrb[0].mxu0
        %v1136 = vadd.f32 0.0, %v1135
        %v1137 = vpop.f32.mrb[0].mxu0
        %v1138 = vpop.f32.mrb[0].mxu0
        %v1139 = vpop.f32.mrb[0].mxu0
        %1140 = vdwg.mxu0
        %v1141 = vtanh.pop %v1136
        %v1142 = vpack.c.bf16 %v1141, %v1141
        %s1143 = scalar_lea.vmem %s9, 16
        %v1144 = vld [vmem:[%s1143] sm:$0xf]
        %v1145 = vld [vmem:[%s1143 + $0x4] sm:$0xf]
        %v1146 = vld [vmem:[%s1143 + $0x8] sm:$0xf]
        %v1147 = vld [vmem:[%s1143 + $0xc] sm:$0xf]
        %v1152 = vunpack.c.l.b16 %v1144
        %v1153 = vunpack.c.l.b16 %v1145
        %v1154 = vunpack.c.l.b16 %v1146
        %v1155 = vunpack.c.l.b16 %v1147
        %v1156 = vpack.c.b16 %v1153, %v1152
        %v1157 = vpack.c.b16 %v1155, %v1154
        %v1161 = vsel %vm984, %v1142, 0
        %1163 = vmatprep.subr.bf16.mxu0 0
        %1164 = vmatpush1.bf16.msra.mxu0 %v1156
        %1165 = vmatprep.subr.bf16.mxu0 0
        %1166 = vmatpush1.bf16.msra.mxu0 %v1157
        %1167 = vmatprep.subr.bf16.mxu0 0
        %1168 = vmatpush1.bf16.msra.mxu0 0
        %1169 = vmatprep.subr.bf16.mxu0 0
        %1170 = vmatpush1.bf16.msra.mxu0 0
        %1171 = vmatprep.subr.bf16.mxu0 0
        %1172 = vmatpush1.bf16.msra.mxu0 0
        %1173 = vmatprep.subr.bf16.mxu0 0
        %1174 = vmatpush1.bf16.msra.mxu0 0
        %1175 = vmatprep.subr.bf16.mxu0 0
        %1176 = vmatpush1.bf16.msra.mxu0 0
        %1177 = vmatprep.subr.bf16.mxu0 0
        %1178 = vmatpush1.bf16.msra.mxu0 0
        %1179 = vmatprep.subr.bf16.mxu0 0
        %1180 = vmatpush1.bf16.msra.mxu0 0
        %1181 = vmatprep.subr.bf16.mxu0 0
        %1182 = vmatpush1.bf16.msra.mxu0 0
        %1183 = vmatprep.subr.bf16.mxu0 0
        %1184 = vmatpush1.bf16.msra.mxu0 0
        %1185 = vmatprep.subr.bf16.mxu0 0
        %1186 = vmatpush1.bf16.msra.mxu0 0
        %1187 = vmatprep.subr.bf16.mxu0 0
        %1188 = vmatpush1.bf16.msra.mxu0 0
        %1189 = vmatprep.subr.bf16.mxu0 0
        %1190 = vmatpush1.bf16.msra.mxu0 0
        %1191 = vmatprep.subr.bf16.mxu0 0
        %1192 = vmatpush1.bf16.msra.mxu0 0
        %1193 = vmatprep.subr.bf16.mxu0 0
        %1194 = vmatpush1.bf16.msra.mxu0 0
        %1195 = vmatprep.mubr.bf16.mxu0 0
        %1196 = vmatmul.mubr.bf16.gmra.mrb[0].mxu0 %v1161
        %v1197 = vpop.f32.mrb[0].mxu0
        %v1198 = vadd.f32 0.0, %v1197
        %v1199 = vpop.f32.mrb[0].mxu0
        %v1200 = vpop.f32.mrb[0].mxu0
        %v1201 = vpop.f32.mrb[0].mxu0
        %1202 = vdwg.mxu0
        %v1203 = vld [vmem:[%s7 + $0x1] sm:$0x1]
        %v1204 = vlaneseq
        %v1205 = vshrl.u32 %v1204, 7
        %v1206 = vsub.s32 0, %v1205
        %v1207 = vrot.slane %v1203, %v1206
        %v1208 = vadd.f32 %v1207, %v1198
        %v1209 = vmul.f32 %v850, %v1208
        %v1210 = vadd.f32 %v837, %v1209
        %s1211 = scalar_lea.vmem %s8, 128
        %v1212 = vld [vmem:[%s1211] sm:$0xf]
        %v1213 = vld [vmem:[%s1211 + $0x4] sm:$0xf]
        %v1214 = vld [vmem:[%s1211 + $0x8] sm:$0xf]
        %v1215 = vld [vmem:[%s1211 + $0xc] sm:$0xf]
        %v1216 = vld [vmem:[%s1211 + $0x10] sm:$0xf]
        %v1217 = vld [vmem:[%s1211 + $0x14] sm:$0xf]
        %v1218 = vld [vmem:[%s1211 + $0x18] sm:$0xf]
        %v1219 = vld [vmem:[%s1211 + $0x1c] sm:$0xf]
        %v1220 = vld [vmem:[%s1211 + $0x20] sm:$0xf]
        %v1221 = vld [vmem:[%s1211 + $0x24] sm:$0xf]
        %v1222 = vld [vmem:[%s1211 + $0x28] sm:$0xf]
        %v1223 = vld [vmem:[%s1211 + $0x2c] sm:$0xf]
        %v1224 = vld [vmem:[%s1211 + $0x30] sm:$0xf]
        %v1225 = vld [vmem:[%s1211 + $0x34] sm:$0xf]
        %v1226 = vld [vmem:[%s1211 + $0x38] sm:$0xf]
        %v1227 = vld [vmem:[%s1211 + $0x3c] sm:$0xf]
        %v1244 = vunpack.c.l.b16 %v1212
        %v1245 = vunpack.c.l.b16 %v1213
        %v1246 = vunpack.c.l.b16 %v1214
        %v1247 = vunpack.c.l.b16 %v1215
        %v1248 = vunpack.c.l.b16 %v1216
        %v1249 = vunpack.c.l.b16 %v1217
        %v1250 = vunpack.c.l.b16 %v1218
        %v1251 = vunpack.c.l.b16 %v1219
        %v1252 = vunpack.c.l.b16 %v1220
        %v1253 = vunpack.c.l.b16 %v1221
        %v1254 = vunpack.c.l.b16 %v1222
        %v1255 = vunpack.c.l.b16 %v1223
        %v1256 = vunpack.c.l.b16 %v1224
        %v1257 = vunpack.c.l.b16 %v1225
        %v1258 = vunpack.c.l.b16 %v1226
        %v1259 = vunpack.c.l.b16 %v1227
        %v1260 = vpack.c.b16 %v1245, %v1244
        %v1261 = vpack.c.b16 %v1247, %v1246
        %v1262 = vpack.c.b16 %v1249, %v1248
        %v1263 = vpack.c.b16 %v1251, %v1250
        %v1264 = vpack.c.b16 %v1253, %v1252
        %v1265 = vpack.c.b16 %v1255, %v1254
        %v1266 = vpack.c.b16 %v1257, %v1256
        %v1267 = vpack.c.b16 %v1259, %v1258
        %1276 = vmatprep.subr.bf16.mxu0 0
        %1277 = vmatpush1.bf16.msra.mxu0 %v1260
        %1278 = vmatprep.subr.bf16.mxu0 0
        %1279 = vmatpush1.bf16.msra.mxu0 %v1261
        %1280 = vmatprep.subr.bf16.mxu0 0
        %1281 = vmatpush1.bf16.msra.mxu0 %v1262
        %1282 = vmatprep.subr.bf16.mxu0 0
        %1283 = vmatpush1.bf16.msra.mxu0 %v1263
        %1284 = vmatprep.subr.bf16.mxu0 0
        %1285 = vmatpush1.bf16.msra.mxu0 %v1264
        %1286 = vmatprep.subr.bf16.mxu0 0
        %1287 = vmatpush1.bf16.msra.mxu0 %v1265
        %1288 = vmatprep.subr.bf16.mxu0 0
        %1289 = vmatpush1.bf16.msra.mxu0 %v1266
        %1290 = vmatprep.subr.bf16.mxu0 0
        %1291 = vmatpush1.bf16.msra.mxu0 %v1267
        %1292 = vmatprep.subr.bf16.mxu0 0
        %1293 = vmatpush1.bf16.msra.mxu0 0
        %1294 = vmatprep.subr.bf16.mxu0 0
        %1295 = vmatpush1.bf16.msra.mxu0 0
        %1296 = vmatprep.subr.bf16.mxu0 0
        %1297 = vmatpush1.bf16.msra.mxu0 0
        %1298 = vmatprep.subr.bf16.mxu0 0
        %1299 = vmatpush1.bf16.msra.mxu0 0
        %1300 = vmatprep.subr.bf16.mxu0 0
        %1301 = vmatpush1.bf16.msra.mxu0 0
        %1302 = vmatprep.subr.bf16.mxu0 0
        %1303 = vmatpush1.bf16.msra.mxu0 0
        %1304 = vmatprep.subr.bf16.mxu0 0
        %1305 = vmatpush1.bf16.msra.mxu0 0
        %1306 = vmatprep.subr.bf16.mxu0 0
        %1307 = vmatpush1.bf16.msra.mxu0 0
        %1308 = vmatprep.mubr.bf16.mxu0 0
        %1309 = vmatmul.mubr.bf16.gmra.mrb[0].mxu0 %v861
        %v1310 = vpop.f32.mrb[0].mxu0
        %v1311 = vadd.f32 0.0, %v1310
        %v1312 = vpop.f32.mrb[0].mxu0
        %v1313 = vpop.f32.mrb[0].mxu0
        %v1314 = vpop.f32.mrb[0].mxu0
        %1315 = vdwg.mxu0
        %v1316 = vtanh.pop %v1311
        %v1317 = vpack.c.bf16 %v1316, %v1316
        %s1318 = scalar_lea.vmem %s9, 32
        %v1319 = vld [vmem:[%s1318] sm:$0xf]
        %v1320 = vld [vmem:[%s1318 + $0x4] sm:$0xf]
        %v1321 = vld [vmem:[%s1318 + $0x8] sm:$0xf]
        %v1322 = vld [vmem:[%s1318 + $0xc] sm:$0xf]
        %v1327 = vunpack.c.l.b16 %v1319
        %v1328 = vunpack.c.l.b16 %v1320
        %v1329 = vunpack.c.l.b16 %v1321
        %v1330 = vunpack.c.l.b16 %v1322
        %v1331 = vpack.c.b16 %v1328, %v1327
        %v1332 = vpack.c.b16 %v1330, %v1329
        %v1336 = vsel %vm984, %v1317, 0
        %1338 = vmatprep.subr.bf16.mxu0 0
        %1339 = vmatpush1.bf16.msra.mxu0 %v1331
        %1340 = vmatprep.subr.bf16.mxu0 0
        %1341 = vmatpush1.bf16.msra.mxu0 %v1332
        %1342 = vmatprep.subr.bf16.mxu0 0
        %1343 = vmatpush1.bf16.msra.mxu0 0
        %1344 = vmatprep.subr.bf16.mxu0 0
        %1345 = vmatpush1.bf16.msra.mxu0 0
        %1346 = vmatprep.subr.bf16.mxu0 0
        %1347 = vmatpush1.bf16.msra.mxu0 0
        %1348 = vmatprep.subr.bf16.mxu0 0
        %1349 = vmatpush1.bf16.msra.mxu0 0
        %1350 = vmatprep.subr.bf16.mxu0 0
        %1351 = vmatpush1.bf16.msra.mxu0 0
        %1352 = vmatprep.subr.bf16.mxu0 0
        %1353 = vmatpush1.bf16.msra.mxu0 0
        %1354 = vmatprep.subr.bf16.mxu0 0
        %1355 = vmatpush1.bf16.msra.mxu0 0
        %1356 = vmatprep.subr.bf16.mxu0 0
        %1357 = vmatpush1.bf16.msra.mxu0 0
        %1358 = vmatprep.subr.bf16.mxu0 0
        %1359 = vmatpush1.bf16.msra.mxu0 0
        %1360 = vmatprep.subr.bf16.mxu0 0
        %1361 = vmatpush1.bf16.msra.mxu0 0
        %1362 = vmatprep.subr.bf16.mxu0 0
        %1363 = vmatpush1.bf16.msra.mxu0 0
        %1364 = vmatprep.subr.bf16.mxu0 0
        %1365 = vmatpush1.bf16.msra.mxu0 0
        %1366 = vmatprep.subr.bf16.mxu0 0
        %1367 = vmatpush1.bf16.msra.mxu0 0
        %1368 = vmatprep.subr.bf16.mxu0 0
        %1369 = vmatpush1.bf16.msra.mxu0 0
        %1370 = vmatprep.mubr.bf16.mxu0 0
        %1371 = vmatmul.mubr.bf16.gmra.mrb[0].mxu0 %v1336
        %v1372 = vpop.f32.mrb[0].mxu0
        %v1373 = vadd.f32 0.0, %v1372
        %v1374 = vpop.f32.mrb[0].mxu0
        %v1375 = vpop.f32.mrb[0].mxu0
        %v1376 = vpop.f32.mrb[0].mxu0
        %1377 = vdwg.mxu0
        %v1378 = vld [vmem:[%s7 + $0x2] sm:$0x1]
        %v1379 = vlaneseq
        %v1380 = vshrl.u32 %v1379, 7
        %v1381 = vsub.s32 0, %v1380
        %v1382 = vrot.slane %v1378, %v1381
        %v1383 = vadd.f32 %v1382, %v1373
        %v1384 = vmul.f32 %v850, %v1383
        %v1385 = vadd.f32 %v837, %v1384
        %s1386 = scalar_lea.vmem %s8, 192
        %v1387 = vld [vmem:[%s1386] sm:$0xf]
        %v1388 = vld [vmem:[%s1386 + $0x4] sm:$0xf]
        %v1389 = vld [vmem:[%s1386 + $0x8] sm:$0xf]
        %v1390 = vld [vmem:[%s1386 + $0xc] sm:$0xf]
        %v1391 = vld [vmem:[%s1386 + $0x10] sm:$0xf]
        %v1392 = vld [vmem:[%s1386 + $0x14] sm:$0xf]
        %v1393 = vld [vmem:[%s1386 + $0x18] sm:$0xf]
        %v1394 = vld [vmem:[%s1386 + $0x1c] sm:$0xf]
        %v1395 = vld [vmem:[%s1386 + $0x20] sm:$0xf]
        %v1396 = vld [vmem:[%s1386 + $0x24] sm:$0xf]
        %v1397 = vld [vmem:[%s1386 + $0x28] sm:$0xf]
        %v1398 = vld [vmem:[%s1386 + $0x2c] sm:$0xf]
        %v1399 = vld [vmem:[%s1386 + $0x30] sm:$0xf]
        %v1400 = vld [vmem:[%s1386 + $0x34] sm:$0xf]
        %v1401 = vld [vmem:[%s1386 + $0x38] sm:$0xf]
        %v1402 = vld [vmem:[%s1386 + $0x3c] sm:$0xf]
        %v1419 = vunpack.c.l.b16 %v1387
        %v1420 = vunpack.c.l.b16 %v1388
        %v1421 = vunpack.c.l.b16 %v1389
        %v1422 = vunpack.c.l.b16 %v1390
        %v1423 = vunpack.c.l.b16 %v1391
        %v1424 = vunpack.c.l.b16 %v1392
        %v1425 = vunpack.c.l.b16 %v1393
        %v1426 = vunpack.c.l.b16 %v1394
        %v1427 = vunpack.c.l.b16 %v1395
        %v1428 = vunpack.c.l.b16 %v1396
        %v1429 = vunpack.c.l.b16 %v1397
        %v1430 = vunpack.c.l.b16 %v1398
        %v1431 = vunpack.c.l.b16 %v1399
        %v1432 = vunpack.c.l.b16 %v1400
        %v1433 = vunpack.c.l.b16 %v1401
        %v1434 = vunpack.c.l.b16 %v1402
        %v1435 = vpack.c.b16 %v1420, %v1419
        %v1436 = vpack.c.b16 %v1422, %v1421
        %v1437 = vpack.c.b16 %v1424, %v1423
        %v1438 = vpack.c.b16 %v1426, %v1425
        %v1439 = vpack.c.b16 %v1428, %v1427
        %v1440 = vpack.c.b16 %v1430, %v1429
        %v1441 = vpack.c.b16 %v1432, %v1431
        %v1442 = vpack.c.b16 %v1434, %v1433
        %1451 = vmatprep.subr.bf16.mxu0 0
        %1452 = vmatpush1.bf16.msra.mxu0 %v1435
        %1453 = vmatprep.subr.bf16.mxu0 0
        %1454 = vmatpush1.bf16.msra.mxu0 %v1436
        %1455 = vmatprep.subr.bf16.mxu0 0
        %1456 = vmatpush1.bf16.msra.mxu0 %v1437
        %1457 = vmatprep.subr.bf16.mxu0 0
        %1458 = vmatpush1.bf16.msra.mxu0 %v1438
        %1459 = vmatprep.subr.bf16.mxu0 0
        %1460 = vmatpush1.bf16.msra.mxu0 %v1439
        %1461 = vmatprep.subr.bf16.mxu0 0
        %1462 = vmatpush1.bf16.msra.mxu0 %v1440
        %1463 = vmatprep.subr.bf16.mxu0 0
        %1464 = vmatpush1.bf16.msra.mxu0 %v1441
        %1465 = vmatprep.subr.bf16.mxu0 0
        %1466 = vmatpush1.bf16.msra.mxu0 %v1442
        %1467 = vmatprep.subr.bf16.mxu0 0
        %1468 = vmatpush1.bf16.msra.mxu0 0
        %1469 = vmatprep.subr.bf16.mxu0 0
        %1470 = vmatpush1.bf16.msra.mxu0 0
        %1471 = vmatprep.subr.bf16.mxu0 0
        %1472 = vmatpush1.bf16.msra.mxu0 0
        %1473 = vmatprep.subr.bf16.mxu0 0
        %1474 = vmatpush1.bf16.msra.mxu0 0
        %1475 = vmatprep.subr.bf16.mxu0 0
        %1476 = vmatpush1.bf16.msra.mxu0 0
        %1477 = vmatprep.subr.bf16.mxu0 0
        %1478 = vmatpush1.bf16.msra.mxu0 0
        %1479 = vmatprep.subr.bf16.mxu0 0
        %1480 = vmatpush1.bf16.msra.mxu0 0
        %1481 = vmatprep.subr.bf16.mxu0 0
        %1482 = vmatpush1.bf16.msra.mxu0 0
        %1483 = vmatprep.mubr.bf16.mxu0 0
        %1484 = vmatmul.mubr.bf16.gmra.mrb[0].mxu0 %v861
        %v1485 = vpop.f32.mrb[0].mxu0
        %v1486 = vadd.f32 0.0, %v1485
        %v1487 = vpop.f32.mrb[0].mxu0
        %v1488 = vpop.f32.mrb[0].mxu0
        %v1489 = vpop.f32.mrb[0].mxu0
        %1490 = vdwg.mxu0
        %v1491 = vtanh.pop %v1486
        %v1492 = vpack.c.bf16 %v1491, %v1491
        %s1493 = scalar_lea.vmem %s9, 48
        %v1494 = vld [vmem:[%s1493] sm:$0xf]
        %v1495 = vld [vmem:[%s1493 + $0x4] sm:$0xf]
        %v1496 = vld [vmem:[%s1493 + $0x8] sm:$0xf]
        %v1497 = vld [vmem:[%s1493 + $0xc] sm:$0xf]
        %v1502 = vunpack.c.l.b16 %v1494
        %v1503 = vunpack.c.l.b16 %v1495
        %v1504 = vunpack.c.l.b16 %v1496
        %v1505 = vunpack.c.l.b16 %v1497
        %v1506 = vpack.c.b16 %v1503, %v1502
        %v1507 = vpack.c.b16 %v1505, %v1504
        %v1511 = vsel %vm984, %v1492, 0
        %1513 = vmatprep.subr.bf16.mxu0 0
        %1514 = vmatpush1.bf16.msra.mxu0 %v1506
        %1515 = vmatprep.subr.bf16.mxu0 0
        %1516 = vmatpush1.bf16.msra.mxu0 %v1507
        %1517 = vmatprep.subr.bf16.mxu0 0
        %1518 = vmatpush1.bf16.msra.mxu0 0
        %1519 = vmatprep.subr.bf16.mxu0 0
        %1520 = vmatpush1.bf16.msra.mxu0 0
        %1521 = vmatprep.subr.bf16.mxu0 0
        %1522 = vmatpush1.bf16.msra.mxu0 0
        %1523 = vmatprep.subr.bf16.mxu0 0
        %1524 = vmatpush1.bf16.msra.mxu0 0
        %1525 = vmatprep.subr.bf16.mxu0 0
        %1526 = vmatpush1.bf16.msra.mxu0 0
        %1527 = vmatprep.subr.bf16.mxu0 0
        %1528 = vmatpush1.bf16.msra.mxu0 0
        %1529 = vmatprep.subr.bf16.mxu0 0
        %1530 = vmatpush1.bf16.msra.mxu0 0
        %1531 = vmatprep.subr.bf16.mxu0 0
        %1532 = vmatpush1.bf16.msra.mxu0 0
        %1533 = vmatprep.subr.bf16.mxu0 0
        %1534 = vmatpush1.bf16.msra.mxu0 0
        %1535 = vmatprep.subr.bf16.mxu0 0
        %1536 = vmatpush1.bf16.msra.mxu0 0
        %1537 = vmatprep.subr.bf16.mxu0 0
        %1538 = vmatpush1.bf16.msra.mxu0 0
        %1539 = vmatprep.subr.bf16.mxu0 0
        %1540 = vmatpush1.bf16.msra.mxu0 0
        %1541 = vmatprep.subr.bf16.mxu0 0
        %1542 = vmatpush1.bf16.msra.mxu0 0
        %1543 = vmatprep.subr.bf16.mxu0 0
        %1544 = vmatpush1.bf16.msra.mxu0 0
        %1545 = vmatprep.mubr.bf16.mxu0 0
        %1546 = vmatmul.mubr.bf16.gmra.mrb[0].mxu0 %v1511
        %v1547 = vpop.f32.mrb[0].mxu0
        %v1548 = vadd.f32 0.0, %v1547
        %v1549 = vpop.f32.mrb[0].mxu0
        %v1550 = vpop.f32.mrb[0].mxu0
        %v1551 = vpop.f32.mrb[0].mxu0
        %1552 = vdwg.mxu0
        %v1553 = vld [vmem:[%s7 + $0x3] sm:$0x1]
        %v1554 = vlaneseq
        %v1555 = vshrl.u32 %v1554, 7
        %v1556 = vsub.s32 0, %v1555
        %v1557 = vrot.slane %v1553, %v1556
        %v1558 = vadd.f32 %v1557, %v1548
        %v1559 = vmul.f32 %v850, %v1558
        %v1560 = vadd.f32 %v837, %v1559
        %s1561 = scalar_lea.vmem %s8, 256
        %v1562 = vld [vmem:[%s1561] sm:$0xf]
        %v1563 = vld [vmem:[%s1561 + $0x4] sm:$0xf]
        %v1564 = vld [vmem:[%s1561 + $0x8] sm:$0xf]
        %v1565 = vld [vmem:[%s1561 + $0xc] sm:$0xf]
        %v1566 = vld [vmem:[%s1561 + $0x10] sm:$0xf]
        %v1567 = vld [vmem:[%s1561 + $0x14] sm:$0xf]
        %v1568 = vld [vmem:[%s1561 + $0x18] sm:$0xf]
        %v1569 = vld [vmem:[%s1561 + $0x1c] sm:$0xf]
        %v1570 = vld [vmem:[%s1561 + $0x20] sm:$0xf]
        %v1571 = vld [vmem:[%s1561 + $0x24] sm:$0xf]
        %v1572 = vld [vmem:[%s1561 + $0x28] sm:$0xf]
        %v1573 = vld [vmem:[%s1561 + $0x2c] sm:$0xf]
        %v1574 = vld [vmem:[%s1561 + $0x30] sm:$0xf]
        %v1575 = vld [vmem:[%s1561 + $0x34] sm:$0xf]
        %v1576 = vld [vmem:[%s1561 + $0x38] sm:$0xf]
        %v1577 = vld [vmem:[%s1561 + $0x3c] sm:$0xf]
        %v1594 = vunpack.c.l.b16 %v1562
        %v1595 = vunpack.c.l.b16 %v1563
        %v1596 = vunpack.c.l.b16 %v1564
        %v1597 = vunpack.c.l.b16 %v1565
        %v1598 = vunpack.c.l.b16 %v1566
        %v1599 = vunpack.c.l.b16 %v1567
        %v1600 = vunpack.c.l.b16 %v1568
        %v1601 = vunpack.c.l.b16 %v1569
        %v1602 = vunpack.c.l.b16 %v1570
        %v1603 = vunpack.c.l.b16 %v1571
        %v1604 = vunpack.c.l.b16 %v1572
        %v1605 = vunpack.c.l.b16 %v1573
        %v1606 = vunpack.c.l.b16 %v1574
        %v1607 = vunpack.c.l.b16 %v1575
        %v1608 = vunpack.c.l.b16 %v1576
        %v1609 = vunpack.c.l.b16 %v1577
        %v1610 = vpack.c.b16 %v1595, %v1594
        %v1611 = vpack.c.b16 %v1597, %v1596
        %v1612 = vpack.c.b16 %v1599, %v1598
        %v1613 = vpack.c.b16 %v1601, %v1600
        %v1614 = vpack.c.b16 %v1603, %v1602
        %v1615 = vpack.c.b16 %v1605, %v1604
        %v1616 = vpack.c.b16 %v1607, %v1606
        %v1617 = vpack.c.b16 %v1609, %v1608
        %1626 = vmatprep.subr.bf16.mxu0 0
        %1627 = vmatpush1.bf16.msra.mxu0 %v1610
        %1628 = vmatprep.subr.bf16.mxu0 0
        %1629 = vmatpush1.bf16.msra.mxu0 %v1611
        %1630 = vmatprep.subr.bf16.mxu0 0
        %1631 = vmatpush1.bf16.msra.mxu0 %v1612
        %1632 = vmatprep.subr.bf16.mxu0 0
        %1633 = vmatpush1.bf16.msra.mxu0 %v1613
        %1634 = vmatprep.subr.bf16.mxu0 0
        %1635 = vmatpush1.bf16.msra.mxu0 %v1614
        %1636 = vmatprep.subr.bf16.mxu0 0
        %1637 = vmatpush1.bf16.msra.mxu0 %v1615
        %1638 = vmatprep.subr.bf16.mxu0 0
        %1639 = vmatpush1.bf16.msra.mxu0 %v1616
        %1640 = vmatprep.subr.bf16.mxu0 0
        %1641 = vmatpush1.bf16.msra.mxu0 %v1617
        %1642 = vmatprep.subr.bf16.mxu0 0
        %1643 = vmatpush1.bf16.msra.mxu0 0
        %1644 = vmatprep.subr.bf16.mxu0 0
        %1645 = vmatpush1.bf16.msra.mxu0 0
        %1646 = vmatprep.subr.bf16.mxu0 0
        %1647 = vmatpush1.bf16.msra.mxu0 0
        %1648 = vmatprep.subr.bf16.mxu0 0
        %1649 = vmatpush1.bf16.msra.mxu0 0
        %1650 = vmatprep.subr.bf16.mxu0 0
        %1651 = vmatpush1.bf16.msra.mxu0 0
        %1652 = vmatprep.subr.bf16.mxu0 0
        %1653 = vmatpush1.bf16.msra.mxu0 0
        %1654 = vmatprep.subr.bf16.mxu0 0
        %1655 = vmatpush1.bf16.msra.mxu0 0
        %1656 = vmatprep.subr.bf16.mxu0 0
        %1657 = vmatpush1.bf16.msra.mxu0 0
        %1658 = vmatprep.mubr.bf16.mxu0 0
        %1659 = vmatmul.mubr.bf16.gmra.mrb[0].mxu0 %v861
        %v1660 = vpop.f32.mrb[0].mxu0
        %v1661 = vadd.f32 0.0, %v1660
        %v1662 = vpop.f32.mrb[0].mxu0
        %v1663 = vpop.f32.mrb[0].mxu0
        %v1664 = vpop.f32.mrb[0].mxu0
        %1665 = vdwg.mxu0
        %v1666 = vtanh.pop %v1661
        %v1667 = vpack.c.bf16 %v1666, %v1666
        %s1668 = scalar_lea.vmem %s9, 64
        %v1669 = vld [vmem:[%s1668] sm:$0xf]
        %v1670 = vld [vmem:[%s1668 + $0x4] sm:$0xf]
        %v1671 = vld [vmem:[%s1668 + $0x8] sm:$0xf]
        %v1672 = vld [vmem:[%s1668 + $0xc] sm:$0xf]
        %v1677 = vunpack.c.l.b16 %v1669
        %v1678 = vunpack.c.l.b16 %v1670
        %v1679 = vunpack.c.l.b16 %v1671
        %v1680 = vunpack.c.l.b16 %v1672
        %v1681 = vpack.c.b16 %v1678, %v1677
        %v1682 = vpack.c.b16 %v1680, %v1679
        %v1686 = vsel %vm984, %v1667, 0
        %1688 = vmatprep.subr.bf16.mxu0 0
        %1689 = vmatpush1.bf16.msra.mxu0 %v1681
        %1690 = vmatprep.subr.bf16.mxu0 0
        %1691 = vmatpush1.bf16.msra.mxu0 %v1682
        %1692 = vmatprep.subr.bf16.mxu0 0
        %1693 = vmatpush1.bf16.msra.mxu0 0
        %1694 = vmatprep.subr.bf16.mxu0 0
        %1695 = vmatpush1.bf16.msra.mxu0 0
        %1696 = vmatprep.subr.bf16.mxu0 0
        %1697 = vmatpush1.bf16.msra.mxu0 0
        %1698 = vmatprep.subr.bf16.mxu0 0
        %1699 = vmatpush1.bf16.msra.mxu0 0
        %1700 = vmatprep.subr.bf16.mxu0 0
        %1701 = vmatpush1.bf16.msra.mxu0 0
        %1702 = vmatprep.subr.bf16.mxu0 0
        %1703 = vmatpush1.bf16.msra.mxu0 0
        %1704 = vmatprep.subr.bf16.mxu0 0
        %1705 = vmatpush1.bf16.msra.mxu0 0
        %1706 = vmatprep.subr.bf16.mxu0 0
        %1707 = vmatpush1.bf16.msra.mxu0 0
        %1708 = vmatprep.subr.bf16.mxu0 0
        %1709 = vmatpush1.bf16.msra.mxu0 0
        %1710 = vmatprep.subr.bf16.mxu0 0
        %1711 = vmatpush1.bf16.msra.mxu0 0
        %1712 = vmatprep.subr.bf16.mxu0 0
        %1713 = vmatpush1.bf16.msra.mxu0 0
        %1714 = vmatprep.subr.bf16.mxu0 0
        %1715 = vmatpush1.bf16.msra.mxu0 0
        %1716 = vmatprep.subr.bf16.mxu0 0
        %1717 = vmatpush1.bf16.msra.mxu0 0
        %1718 = vmatprep.subr.bf16.mxu0 0
        %1719 = vmatpush1.bf16.msra.mxu0 0
        %1720 = vmatprep.mubr.bf16.mxu0 0
        %1721 = vmatmul.mubr.bf16.gmra.mrb[0].mxu0 %v1686
        %v1722 = vpop.f32.mrb[0].mxu0
        %v1723 = vadd.f32 0.0, %v1722
        %v1724 = vpop.f32.mrb[0].mxu0
        %v1725 = vpop.f32.mrb[0].mxu0
        %v1726 = vpop.f32.mrb[0].mxu0
        %1727 = vdwg.mxu0
        %v1728 = vld [vmem:[%s7 + $0x4] sm:$0x1]
        %v1729 = vlaneseq
        %v1730 = vshrl.u32 %v1729, 7
        %v1731 = vsub.s32 0, %v1730
        %v1732 = vrot.slane %v1728, %v1731
        %v1733 = vadd.f32 %v1732, %v1723
        %v1734 = vmul.f32 %v850, %v1733
        %v1735 = vadd.f32 %v837, %v1734
        %v1736 = vpack.c.bf16 %v1560, %v1560
        %v1737 = vld [vmem:[%s10] sm:$0xf]
        %v1738 = vld [vmem:[%s10 + $0x4] sm:$0xf]
        %v1739 = vld [vmem:[%s10 + $0x8] sm:$0xf]
        %v1740 = vld [vmem:[%s10 + $0xc] sm:$0xf]
        %v1741 = vld [vmem:[%s10 + $0x10] sm:$0xf]
        %v1742 = vld [vmem:[%s10 + $0x14] sm:$0xf]
        %v1743 = vld [vmem:[%s10 + $0x18] sm:$0xf]
        %v1744 = vld [vmem:[%s10 + $0x1c] sm:$0xf]
        %v1745 = vld [vmem:[%s10 + $0x20] sm:$0xf]
        %v1746 = vld [vmem:[%s10 + $0x24] sm:$0xf]
        %v1747 = vld [vmem:[%s10 + $0x28] sm:$0xf]
        %v1748 = vld [vmem:[%s10 + $0x2c] sm:$0xf]
        %v1749 = vld [vmem:[%s10 + $0x30] sm:$0xf]
        %v1750 = vld [vmem:[%s10 + $0x34] sm:$0xf]
        %v1751 = vld [vmem:[%s10 + $0x38] sm:$0xf]
        %v1752 = vld [vmem:[%s10 + $0x3c] sm:$0xf]
        %v1769 = vunpack.c.l.b16 %v1737
        %v1770 = vunpack.c.l.b16 %v1738
        %v1771 = vunpack.c.l.b16 %v1739
        %v1772 = vunpack.c.l.b16 %v1740
        %v1773 = vunpack.c.l.b16 %v1741
        %v1774 = vunpack.c.l.b16 %v1742
        %v1775 = vunpack.c.l.b16 %v1743
        %v1776 = vunpack.c.l.b16 %v1744
        %v1777 = vunpack.c.l.b16 %v1745
        %v1778 = vunpack.c.l.b16 %v1746
        %v1779 = vunpack.c.l.b16 %v1747
        %v1780 = vunpack.c.l.b16 %v1748
        %v1781 = vunpack.c.l.b16 %v1749
        %v1782 = vunpack.c.l.b16 %v1750
        %v1783 = vunpack.c.l.b16 %v1751
        %v1784 = vunpack.c.l.b16 %v1752
        %v1785 = vpack.c.b16 %v1770, %v1769
        %v1786 = vpack.c.b16 %v1772, %v1771
        %v1787 = vpack.c.b16 %v1774, %v1773
        %v1788 = vpack.c.b16 %v1776, %v1775
        %v1789 = vpack.c.b16 %v1778, %v1777
        %v1790 = vpack.c.b16 %v1780, %v1779
        %v1791 = vpack.c.b16 %v1782, %v1781
        %v1792 = vpack.c.b16 %v1784, %v1783
        %1801 = vmatprep.subr.bf16.mxu0 0
        %1802 = vmatpush1.bf16.msra.mxu0 %v1785
        %1803 = vmatprep.subr.bf16.mxu0 0
        %1804 = vmatpush1.bf16.msra.mxu0 %v1786
        %1805 = vmatprep.subr.bf16.mxu0 0
        %1806 = vmatpush1.bf16.msra.mxu0 %v1787
        %1807 = vmatprep.subr.bf16.mxu0 0
        %1808 = vmatpush1.bf16.msra.mxu0 %v1788
        %1809 = vmatprep.subr.bf16.mxu0 0
        %1810 = vmatpush1.bf16.msra.mxu0 %v1789
        %1811 = vmatprep.subr.bf16.mxu0 0
        %1812 = vmatpush1.bf16.msra.mxu0 %v1790
        %1813 = vmatprep.subr.bf16.mxu0 0
        %1814 = vmatpush1.bf16.msra.mxu0 %v1791
        %1815 = vmatprep.subr.bf16.mxu0 0
        %1816 = vmatpush1.bf16.msra.mxu0 %v1792
        %1817 = vmatprep.subr.bf16.mxu0 0
        %1818 = vmatpush1.bf16.msra.mxu0 0
        %1819 = vmatprep.subr.bf16.mxu0 0
        %1820 = vmatpush1.bf16.msra.mxu0 0
        %1821 = vmatprep.subr.bf16.mxu0 0
        %1822 = vmatpush1.bf16.msra.mxu0 0
        %1823 = vmatprep.subr.bf16.mxu0 0
        %1824 = vmatpush1.bf16.msra.mxu0 0
        %1825 = vmatprep.subr.bf16.mxu0 0
        %1826 = vmatpush1.bf16.msra.mxu0 0
        %1827 = vmatprep.subr.bf16.mxu0 0
        %1828 = vmatpush1.bf16.msra.mxu0 0
        %1829 = vmatprep.subr.bf16.mxu0 0
        %1830 = vmatpush1.bf16.msra.mxu0 0
        %1831 = vmatprep.subr.bf16.mxu0 0
        %1832 = vmatpush1.bf16.msra.mxu0 0
        %1833 = vmatprep.mubr.bf16.mxu0 0
        %1834 = vmatmul.mubr.bf16.gmra.mrb[0].mxu0 %v1736
        %v1835 = vpop.f32.mrb[0].mxu0
        %v1836 = vadd.f32 0.0, %v1835
        %v1837 = vpop.f32.mrb[0].mxu0
        %v1838 = vpop.f32.mrb[0].mxu0
        %v1839 = vpop.f32.mrb[0].mxu0
        %1840 = vdwg.mxu0
        %1841 = vst [vmem:[%s763] sm:$0xff] %v1836
        %v1842 = vpack.c.bf16 %v1210, %v1210
        %v1843 = vld [vmem:[%s11] sm:$0xf]
        %v1844 = vld [vmem:[%s11 + $0x4] sm:$0xf]
        %v1845 = vld [vmem:[%s11 + $0x8] sm:$0xf]
        %v1846 = vld [vmem:[%s11 + $0xc] sm:$0xf]
        %v1847 = vld [vmem:[%s11 + $0x10] sm:$0xf]
        %v1848 = vld [vmem:[%s11 + $0x14] sm:$0xf]
        %v1849 = vld [vmem:[%s11 + $0x18] sm:$0xf]
        %v1850 = vld [vmem:[%s11 + $0x1c] sm:$0xf]
        %v1851 = vld [vmem:[%s11 + $0x20] sm:$0xf]
        %v1852 = vld [vmem:[%s11 + $0x24] sm:$0xf]
        %v1853 = vld [vmem:[%s11 + $0x28] sm:$0xf]
        %v1854 = vld [vmem:[%s11 + $0x2c] sm:$0xf]
        %v1855 = vld [vmem:[%s11 + $0x30] sm:$0xf]
        %v1856 = vld [vmem:[%s11 + $0x34] sm:$0xf]
        %v1857 = vld [vmem:[%s11 + $0x38] sm:$0xf]
        %v1858 = vld [vmem:[%s11 + $0x3c] sm:$0xf]
        %v1875 = vunpack.c.l.b16 %v1843
        %v1876 = vunpack.c.l.b16 %v1844
        %v1877 = vunpack.c.l.b16 %v1845
        %v1878 = vunpack.c.l.b16 %v1846
        %v1879 = vunpack.c.l.b16 %v1847
        %v1880 = vunpack.c.l.b16 %v1848
        %v1881 = vunpack.c.l.b16 %v1849
        %v1882 = vunpack.c.l.b16 %v1850
        %v1883 = vunpack.c.l.b16 %v1851
        %v1884 = vunpack.c.l.b16 %v1852
        %v1885 = vunpack.c.l.b16 %v1853
        %v1886 = vunpack.c.l.b16 %v1854
        %v1887 = vunpack.c.l.b16 %v1855
        %v1888 = vunpack.c.l.b16 %v1856
        %v1889 = vunpack.c.l.b16 %v1857
        %v1890 = vunpack.c.l.b16 %v1858
        %v1891 = vpack.c.b16 %v1876, %v1875
        %v1892 = vpack.c.b16 %v1878, %v1877
        %v1893 = vpack.c.b16 %v1880, %v1879
        %v1894 = vpack.c.b16 %v1882, %v1881
        %v1895 = vpack.c.b16 %v1884, %v1883
        %v1896 = vpack.c.b16 %v1886, %v1885
        %v1897 = vpack.c.b16 %v1888, %v1887
        %v1898 = vpack.c.b16 %v1890, %v1889
        %1907 = vmatprep.subr.bf16.mxu0 0
        %1908 = vmatpush1.bf16.msra.mxu0 %v1891
        %1909 = vmatprep.subr.bf16.mxu0 0
        %1910 = vmatpush1.bf16.msra.mxu0 %v1892
        %1911 = vmatprep.subr.bf16.mxu0 0
        %1912 = vmatpush1.bf16.msra.mxu0 %v1893
        %1913 = vmatprep.subr.bf16.mxu0 0
        %1914 = vmatpush1.bf16.msra.mxu0 %v1894
        %1915 = vmatprep.subr.bf16.mxu0 0
        %1916 = vmatpush1.bf16.msra.mxu0 %v1895
        %1917 = vmatprep.subr.bf16.mxu0 0
        %1918 = vmatpush1.bf16.msra.mxu0 %v1896
        %1919 = vmatprep.subr.bf16.mxu0 0
        %1920 = vmatpush1.bf16.msra.mxu0 %v1897
        %1921 = vmatprep.subr.bf16.mxu0 0
        %1922 = vmatpush1.bf16.msra.mxu0 %v1898
        %1923 = vmatprep.subr.bf16.mxu0 0
        %1924 = vmatpush1.bf16.msra.mxu0 0
        %1925 = vmatprep.subr.bf16.mxu0 0
        %1926 = vmatpush1.bf16.msra.mxu0 0
        %1927 = vmatprep.subr.bf16.mxu0 0
        %1928 = vmatpush1.bf16.msra.mxu0 0
        %1929 = vmatprep.subr.bf16.mxu0 0
        %1930 = vmatpush1.bf16.msra.mxu0 0
        %1931 = vmatprep.subr.bf16.mxu0 0
        %1932 = vmatpush1.bf16.msra.mxu0 0
        %1933 = vmatprep.subr.bf16.mxu0 0
        %1934 = vmatpush1.bf16.msra.mxu0 0
        %1935 = vmatprep.subr.bf16.mxu0 0
        %1936 = vmatpush1.bf16.msra.mxu0 0
        %1937 = vmatprep.subr.bf16.mxu0 0
        %1938 = vmatpush1.bf16.msra.mxu0 0
        %1939 = vmatprep.mubr.bf16.mxu0 0
        %1940 = vmatmul.mubr.bf16.gmra.mrb[0].mxu0 %v1842
        %v1941 = vpop.f32.mrb[0].mxu0
        %v1942 = vadd.f32 0.0, %v1941
        %v1943 = vpop.f32.mrb[0].mxu0
        %v1944 = vpop.f32.mrb[0].mxu0
        %v1945 = vpop.f32.mrb[0].mxu0
        %1946 = vdwg.mxu0
        %1947 = vst [vmem:[%s767] sm:$0xff] %v1942
        %v1948 = vpack.c.bf16 %v1385, %v1385
        %v1949 = vld [vmem:[%s12] sm:$0xf]
        %v1950 = vld [vmem:[%s12 + $0x4] sm:$0xf]
        %v1951 = vld [vmem:[%s12 + $0x8] sm:$0xf]
        %v1952 = vld [vmem:[%s12 + $0xc] sm:$0xf]
        %v1953 = vld [vmem:[%s12 + $0x10] sm:$0xf]
        %v1954 = vld [vmem:[%s12 + $0x14] sm:$0xf]
        %v1955 = vld [vmem:[%s12 + $0x18] sm:$0xf]
        %v1956 = vld [vmem:[%s12 + $0x1c] sm:$0xf]
        %v1957 = vld [vmem:[%s12 + $0x20] sm:$0xf]
        %v1958 = vld [vmem:[%s12 + $0x24] sm:$0xf]
        %v1959 = vld [vmem:[%s12 + $0x28] sm:$0xf]
        %v1960 = vld [vmem:[%s12 + $0x2c] sm:$0xf]
        %v1961 = vld [vmem:[%s12 + $0x30] sm:$0xf]
        %v1962 = vld [vmem:[%s12 + $0x34] sm:$0xf]
        %v1963 = vld [vmem:[%s12 + $0x38] sm:$0xf]
        %v1964 = vld [vmem:[%s12 + $0x3c] sm:$0xf]
        %v1981 = vunpack.c.l.b16 %v1949
        %v1982 = vunpack.c.l.b16 %v1950
        %v1983 = vunpack.c.l.b16 %v1951
        %v1984 = vunpack.c.l.b16 %v1952
        %v1985 = vunpack.c.l.b16 %v1953
        %v1986 = vunpack.c.l.b16 %v1954
        %v1987 = vunpack.c.l.b16 %v1955
        %v1988 = vunpack.c.l.b16 %v1956
        %v1989 = vunpack.c.l.b16 %v1957
        %v1990 = vunpack.c.l.b16 %v1958
        %v1991 = vunpack.c.l.b16 %v1959
        %v1992 = vunpack.c.l.b16 %v1960
        %v1993 = vunpack.c.l.b16 %v1961
        %v1994 = vunpack.c.l.b16 %v1962
        %v1995 = vunpack.c.l.b16 %v1963
        %v1996 = vunpack.c.l.b16 %v1964
        %v1997 = vpack.c.b16 %v1982, %v1981
        %v1998 = vpack.c.b16 %v1984, %v1983
        %v1999 = vpack.c.b16 %v1986, %v1985
        %v2000 = vpack.c.b16 %v1988, %v1987
        %v2001 = vpack.c.b16 %v1990, %v1989
        %v2002 = vpack.c.b16 %v1992, %v1991
        %v2003 = vpack.c.b16 %v1994, %v1993
        %v2004 = vpack.c.b16 %v1996, %v1995
        %2013 = vmatprep.subr.bf16.mxu0 0
        %2014 = vmatpush1.bf16.msra.mxu0 %v1997
        %2015 = vmatprep.subr.bf16.mxu0 0
        %2016 = vmatpush1.bf16.msra.mxu0 %v1998
        %2017 = vmatprep.subr.bf16.mxu0 0
        %2018 = vmatpush1.bf16.msra.mxu0 %v1999
        %2019 = vmatprep.subr.bf16.mxu0 0
        %2020 = vmatpush1.bf16.msra.mxu0 %v2000
        %2021 = vmatprep.subr.bf16.mxu0 0
        %2022 = vmatpush1.bf16.msra.mxu0 %v2001
        %2023 = vmatprep.subr.bf16.mxu0 0
        %2024 = vmatpush1.bf16.msra.mxu0 %v2002
        %2025 = vmatprep.subr.bf16.mxu0 0
        %2026 = vmatpush1.bf16.msra.mxu0 %v2003
        %2027 = vmatprep.subr.bf16.mxu0 0
        %2028 = vmatpush1.bf16.msra.mxu0 %v2004
        %2029 = vmatprep.subr.bf16.mxu0 0
        %2030 = vmatpush1.bf16.msra.mxu0 0
        %2031 = vmatprep.subr.bf16.mxu0 0
        %2032 = vmatpush1.bf16.msra.mxu0 0
        %2033 = vmatprep.subr.bf16.mxu0 0
        %2034 = vmatpush1.bf16.msra.mxu0 0
        %2035 = vmatprep.subr.bf16.mxu0 0
        %2036 = vmatpush1.bf16.msra.mxu0 0
        %2037 = vmatprep.subr.bf16.mxu0 0
        %2038 = vmatpush1.bf16.msra.mxu0 0
        %2039 = vmatprep.subr.bf16.mxu0 0
        %2040 = vmatpush1.bf16.msra.mxu0 0
        %2041 = vmatprep.subr.bf16.mxu0 0
        %2042 = vmatpush1.bf16.msra.mxu0 0
        %2043 = vmatprep.subr.bf16.mxu0 0
        %2044 = vmatpush1.bf16.msra.mxu0 0
        %2045 = vmatprep.mubr.bf16.mxu0 0
        %2046 = vmatmul.mubr.bf16.gmra.mrb[0].mxu0 %v1948
        %v2047 = vpop.f32.mrb[0].mxu0
        %v2048 = vadd.f32 0.0, %v2047
        %v2049 = vpop.f32.mrb[0].mxu0
        %v2050 = vpop.f32.mrb[0].mxu0
        %v2051 = vpop.f32.mrb[0].mxu0
        %2052 = vdwg.mxu0
        %2053 = vst [vmem:[%s771] sm:$0xff] %v2048
        %v2054 = vpack.c.bf16 %v1735, %v1735
        %v2055 = vld [vmem:[%s13] sm:$0xf]
        %v2056 = vld [vmem:[%s13 + $0x4] sm:$0xf]
        %v2057 = vld [vmem:[%s13 + $0x8] sm:$0xf]
        %v2058 = vld [vmem:[%s13 + $0xc] sm:$0xf]
        %v2059 = vld [vmem:[%s13 + $0x10] sm:$0xf]
        %v2060 = vld [vmem:[%s13 + $0x14] sm:$0xf]
        %v2061 = vld [vmem:[%s13 + $0x18] sm:$0xf]
        %v2062 = vld [vmem:[%s13 + $0x1c] sm:$0xf]
        %v2063 = vld [vmem:[%s13 + $0x20] sm:$0xf]
        %v2064 = vld [vmem:[%s13 + $0x24] sm:$0xf]
        %v2065 = vld [vmem:[%s13 + $0x28] sm:$0xf]
        %v2066 = vld [vmem:[%s13 + $0x2c] sm:$0xf]
        %v2067 = vld [vmem:[%s13 + $0x30] sm:$0xf]
        %v2068 = vld [vmem:[%s13 + $0x34] sm:$0xf]
        %v2069 = vld [vmem:[%s13 + $0x38] sm:$0xf]
        %v2070 = vld [vmem:[%s13 + $0x3c] sm:$0xf]
        %v2087 = vunpack.c.l.b16 %v2055
        %v2088 = vunpack.c.l.b16 %v2056
        %v2089 = vunpack.c.l.b16 %v2057
        %v2090 = vunpack.c.l.b16 %v2058
        %v2091 = vunpack.c.l.b16 %v2059
        %v2092 = vunpack.c.l.b16 %v2060
        %v2093 = vunpack.c.l.b16 %v2061
        %v2094 = vunpack.c.l.b16 %v2062
        %v2095 = vunpack.c.l.b16 %v2063
        %v2096 = vunpack.c.l.b16 %v2064
        %v2097 = vunpack.c.l.b16 %v2065
        %v2098 = vunpack.c.l.b16 %v2066
        %v2099 = vunpack.c.l.b16 %v2067
        %v2100 = vunpack.c.l.b16 %v2068
        %v2101 = vunpack.c.l.b16 %v2069
        %v2102 = vunpack.c.l.b16 %v2070
        %v2103 = vpack.c.b16 %v2088, %v2087
        %v2104 = vpack.c.b16 %v2090, %v2089
        %v2105 = vpack.c.b16 %v2092, %v2091
        %v2106 = vpack.c.b16 %v2094, %v2093
        %v2107 = vpack.c.b16 %v2096, %v2095
        %v2108 = vpack.c.b16 %v2098, %v2097
        %v2109 = vpack.c.b16 %v2100, %v2099
        %v2110 = vpack.c.b16 %v2102, %v2101
        %2119 = vmatprep.subr.bf16.mxu0 0
        %2120 = vmatpush1.bf16.msra.mxu0 %v2103
        %2121 = vmatprep.subr.bf16.mxu0 0
        %2122 = vmatpush1.bf16.msra.mxu0 %v2104
        %2123 = vmatprep.subr.bf16.mxu0 0
        %2124 = vmatpush1.bf16.msra.mxu0 %v2105
        %2125 = vmatprep.subr.bf16.mxu0 0
        %2126 = vmatpush1.bf16.msra.mxu0 %v2106
        %2127 = vmatprep.subr.bf16.mxu0 0
        %2128 = vmatpush1.bf16.msra.mxu0 %v2107
        %2129 = vmatprep.subr.bf16.mxu0 0
        %2130 = vmatpush1.bf16.msra.mxu0 %v2108
        %2131 = vmatprep.subr.bf16.mxu0 0
        %2132 = vmatpush1.bf16.msra.mxu0 %v2109
        %2133 = vmatprep.subr.bf16.mxu0 0
        %2134 = vmatpush1.bf16.msra.mxu0 %v2110
        %2135 = vmatprep.subr.bf16.mxu0 0
        %2136 = vmatpush1.bf16.msra.mxu0 0
        %2137 = vmatprep.subr.bf16.mxu0 0
        %2138 = vmatpush1.bf16.msra.mxu0 0
        %2139 = vmatprep.subr.bf16.mxu0 0
        %2140 = vmatpush1.bf16.msra.mxu0 0
        %2141 = vmatprep.subr.bf16.mxu0 0
        %2142 = vmatpush1.bf16.msra.mxu0 0
        %2143 = vmatprep.subr.bf16.mxu0 0
        %2144 = vmatpush1.bf16.msra.mxu0 0
        %2145 = vmatprep.subr.bf16.mxu0 0
        %2146 = vmatpush1.bf16.msra.mxu0 0
        %2147 = vmatprep.subr.bf16.mxu0 0
        %2148 = vmatpush1.bf16.msra.mxu0 0
        %2149 = vmatprep.subr.bf16.mxu0 0
        %2150 = vmatpush1.bf16.msra.mxu0 0
        %2151 = vmatprep.mubr.bf16.mxu0 0
        %2152 = vmatmul.mubr.bf16.gmra.mrb[0].mxu0 %v2054
        %v2153 = vpop.f32.mrb[0].mxu0
        %v2154 = vadd.f32 0.0, %v2153
        %v2155 = vpop.f32.mrb[0].mxu0
        %v2156 = vpop.f32.mrb[0].mxu0
        %v2157 = vpop.f32.mrb[0].mxu0
        %2158 = vdwg.mxu0
        %v2159 = vxor.u32 %v2154, 2147483648
        %v2160 = vmul.f32 %v2159, 1.442695
        %v2161 = vpow.pop %v2160
        %v2162 = vadd.f32 %v2161, 1.0
        %v2163 = vrcp.pop %v2162
        %v2164 = vmul.f32 1.0, %v2163
        %v2165 = vmul.f32 %v2154, %v2164
        %2166 = vst [vmem:[%s775] sm:$0xff] %v2165
        %v2167 = vld [vmem:[%s14] sm:$0xff]
        %v2168 = vld [vmem:[%s14 + $0x8] sm:$0xff]
        %v2169 = vld [vmem:[%s14 + $0x10] sm:$0xff]
        %v2170 = vld [vmem:[%s14 + $0x18] sm:$0xff]
        %v2171 = vld [vmem:[%s14 + $0x20] sm:$0xff]
        %v2172 = vld [vmem:[%s14 + $0x28] sm:$0xff]
        %v2173 = vld [vmem:[%s14 + $0x30] sm:$0xff]
        %v2174 = vld [vmem:[%s14 + $0x38] sm:$0xff]
        %v2175 = vld [vmem:[%s14 + $0x40] sm:$0xff]
        %v2176 = vld [vmem:[%s14 + $0x48] sm:$0xff]
        %v2177 = vld [vmem:[%s14 + $0x50] sm:$0xff]
        %v2178 = vld [vmem:[%s14 + $0x58] sm:$0xff]
        %v2179 = vld [vmem:[%s14 + $0x60] sm:$0xff]
        %v2180 = vld [vmem:[%s14 + $0x68] sm:$0xff]
        %v2181 = vld [vmem:[%s14 + $0x70] sm:$0xff]
        %v2182 = vld [vmem:[%s14 + $0x78] sm:$0xff]
        %2183 = vmatprep.subr.mxu0 0.0
        %2184 = vmatpush1.msra.mxu0 %v2167
        %2185 = vmatprep.subr.mxu0 0.0
        %2186 = vmatpush1.msra.mxu0 %v2168
        %2187 = vmatprep.subr.mxu0 0.0
        %2188 = vmatpush1.msra.mxu0 %v2169
        %2189 = vmatprep.subr.mxu0 0.0
        %2190 = vmatpush1.msra.mxu0 %v2170
        %2191 = vmatprep.subr.mxu0 0.0
        %2192 = vmatpush1.msra.mxu0 %v2171
        %2193 = vmatprep.subr.mxu0 0.0
        %2194 = vmatpush1.msra.mxu0 %v2172
        %2195 = vmatprep.subr.mxu0 0.0
        %2196 = vmatpush1.msra.mxu0 %v2173
        %2197 = vmatprep.subr.mxu0 0.0
        %2198 = vmatpush1.msra.mxu0 %v2174
        %2199 = vmatprep.subr.mxu0 0.0
        %2200 = vmatpush1.msra.mxu0 %v2175
        %2201 = vmatprep.subr.mxu0 0.0
        %2202 = vmatpush1.msra.mxu0 %v2176
        %2203 = vmatprep.subr.mxu0 0.0
        %2204 = vmatpush1.msra.mxu0 %v2177
        %2205 = vmatprep.subr.mxu0 0.0
        %2206 = vmatpush1.msra.mxu0 %v2178
        %2207 = vmatprep.subr.mxu0 0.0
        %2208 = vmatpush1.msra.mxu0 %v2179
        %2209 = vmatprep.subr.mxu0 0.0
        %2210 = vmatpush1.msra.mxu0 %v2180
        %2211 = vmatprep.subr.mxu0 0.0
        %2212 = vmatpush1.msra.mxu0 %v2181
        %2213 = vmatprep.subr.mxu0 0.0
        %2214 = vmatpush1.msra.mxu0 %v2182
        %2215 = vmatprep.subr.mxu0 0.0
        %2216 = vmatpush1.msra.mxu0 0.0
        %2217 = vmatprep.subr.mxu0 0.0
        %2218 = vmatpush1.msra.mxu0 0.0
        %2219 = vmatprep.subr.mxu0 0.0
        %2220 = vmatpush1.msra.mxu0 0.0
        %2221 = vmatprep.subr.mxu0 0.0
        %2222 = vmatpush1.msra.mxu0 0.0
        %2223 = vmatprep.subr.mxu0 0.0
        %2224 = vmatpush1.msra.mxu0 0.0
        %2225 = vmatprep.subr.mxu0 0.0
        %2226 = vmatpush1.msra.mxu0 0.0
        %2227 = vmatprep.subr.mxu0 0.0
        %2228 = vmatpush1.msra.mxu0 0.0
        %2229 = vmatprep.subr.mxu0 0.0
        %2230 = vmatpush1.msra.mxu0 0.0
        %2231 = vmatprep.subr.mxu0 0.0
        %2232 = vmatpush1.msra.mxu0 0.0
        %2233 = vmatprep.subr.mxu0 0.0
        %2234 = vmatpush1.msra.mxu0 0.0
        %2235 = vmatprep.subr.mxu0 0.0
        %2236 = vmatpush1.msra.mxu0 0.0
        %2237 = vmatprep.subr.mxu0 0.0
        %2238 = vmatpush1.msra.mxu0 0.0
        %2239 = vmatprep.subr.mxu0 0.0
        %2240 = vmatpush1.msra.mxu0 0.0
        %2241 = vmatprep.subr.mxu0 0.0
        %2242 = vmatpush1.msra.mxu0 0.0
        %2243 = vmatprep.subr.mxu0 0.0
        %2244 = vmatpush1.msra.mxu0 0.0
        %2245 = vmatprep.subr.mxu0 0.0
        %2246 = vmatpush1.msra.mxu0 0.0
        %2247 = vmatprep.mubr.f32.mxu0 0.0
        %2248 = vmatmul.mubr.f32.gmra.mrb[0].mxu0 %v1035
        %v2249 = vpop.f32.mrb[0].mxu0
        %v2250 = vadd.f32 0.0, %v2249
        %v2251 = vpop.f32.mrb[0].mxu0
        %2252 = vdwg.mxu0
        %v2253 = vtanh.pop %v2250
        %v2254 = vld [vmem:[%s15] sm:$0xff]
        %v2255 = vld [vmem:[%s15 + $0x8] sm:$0xff]
        %v2256 = vld [vmem:[%s15 + $0x10] sm:$0xff]
        %v2257 = vld [vmem:[%s15 + $0x18] sm:$0xff]
        %v2258 = vld [vmem:[%s15 + $0x20] sm:$0xff]
        %v2259 = vld [vmem:[%s15 + $0x28] sm:$0xff]
        %v2260 = vld [vmem:[%s15 + $0x30] sm:$0xff]
        %v2261 = vld [vmem:[%s15 + $0x38] sm:$0xff]
        %vm2262 = vcmask 523264
        %v2264 = vsel %vm2262, %v2253, 0
        %2266 = vmatprep.subr.mxu0 0.0
        %2267 = vmatpush1.msra.mxu0 %v2254
        %2268 = vmatprep.subr.mxu0 0.0
        %2269 = vmatpush1.msra.mxu0 %v2255
        %2270 = vmatprep.subr.mxu0 0.0
        %2271 = vmatpush1.msra.mxu0 %v2256
        %2272 = vmatprep.subr.mxu0 0.0
        %2273 = vmatpush1.msra.mxu0 %v2257
        %2274 = vmatprep.subr.mxu0 0.0
        %2275 = vmatpush1.msra.mxu0 %v2258
        %2276 = vmatprep.subr.mxu0 0.0
        %2277 = vmatpush1.msra.mxu0 %v2259
        %2278 = vmatprep.subr.mxu0 0.0
        %2279 = vmatpush1.msra.mxu0 %v2260
        %2280 = vmatprep.subr.mxu0 0.0
        %2281 = vmatpush1.msra.mxu0 %v2261
        %2282 = vmatprep.subr.mxu0 0.0
        %2283 = vmatpush1.msra.mxu0 0.0
        %2284 = vmatprep.subr.mxu0 0.0
        %2285 = vmatpush1.msra.mxu0 0.0
        %2286 = vmatprep.subr.mxu0 0.0
        %2287 = vmatpush1.msra.mxu0 0.0
        %2288 = vmatprep.subr.mxu0 0.0
        %2289 = vmatpush1.msra.mxu0 0.0
        %2290 = vmatprep.subr.mxu0 0.0
        %2291 = vmatpush1.msra.mxu0 0.0
        %2292 = vmatprep.subr.mxu0 0.0
        %2293 = vmatpush1.msra.mxu0 0.0
        %2294 = vmatprep.subr.mxu0 0.0
        %2295 = vmatpush1.msra.mxu0 0.0
        %2296 = vmatprep.subr.mxu0 0.0
        %2297 = vmatpush1.msra.mxu0 0.0
        %2298 = vmatprep.subr.mxu0 0.0
        %2299 = vmatpush1.msra.mxu0 0.0
        %2300 = vmatprep.subr.mxu0 0.0
        %2301 = vmatpush1.msra.mxu0 0.0
        %2302 = vmatprep.subr.mxu0 0.0
        %2303 = vmatpush1.msra.mxu0 0.0
        %2304 = vmatprep.subr.mxu0 0.0
        %2305 = vmatpush1.msra.mxu0 0.0
        %2306 = vmatprep.subr.mxu0 0.0
        %2307 = vmatpush1.msra.mxu0 0.0
        %2308 = vmatprep.subr.mxu0 0.0
        %2309 = vmatpush1.msra.mxu0 0.0
        %2310 = vmatprep.subr.mxu0 0.0
        %2311 = vmatpush1.msra.mxu0 0.0
        %2312 = vmatprep.subr.mxu0 0.0
        %2313 = vmatpush1.msra.mxu0 0.0
        %2314 = vmatprep.subr.mxu0 0.0
        %2315 = vmatpush1.msra.mxu0 0.0
        %2316 = vmatprep.subr.mxu0 0.0
        %2317 = vmatpush1.msra.mxu0 0.0
        %2318 = vmatprep.subr.mxu0 0.0
        %2319 = vmatpush1.msra.mxu0 0.0
        %2320 = vmatprep.subr.mxu0 0.0
        %2321 = vmatpush1.msra.mxu0 0.0
        %2322 = vmatprep.subr.mxu0 0.0
        %2323 = vmatpush1.msra.mxu0 0.0
        %2324 = vmatprep.subr.mxu0 0.0
        %2325 = vmatpush1.msra.mxu0 0.0
        %2326 = vmatprep.subr.mxu0 0.0
        %2327 = vmatpush1.msra.mxu0 0.0
        %2328 = vmatprep.subr.mxu0 0.0
        %2329 = vmatpush1.msra.mxu0 0.0
        %2330 = vmatprep.mubr.f32.mxu0 0.0
        %2331 = vmatmul.mubr.f32.gmra.mrb[0].mxu0 %v2264
        %v2332 = vpop.f32.mrb[0].mxu0
        %v2333 = vadd.f32 0.0, %v2332
        %v2334 = vpop.f32.mrb[0].mxu0
        %2335 = vdwg.mxu0
        %v2336 = vld [vmem:[%s16] sm:$0x1]
        %v2338 = vlaneseq
        %v2339 = vshrl.u32 %v2338, 7
        %v2340 = vsub.s32 0, %v2339
        %v2341 = vrot.slane %v2336, %v2340
        %v2343 = vadd.f32 %v2341, %v2333
        %v2344 = vmul.f32 %v2343, 1.442695
        %v2345 = vpow.pop %v2344
        %v2346 = vsub.f32 0.0, %v2345
        %2347 = vst [vmem:[%s779] sm:$0xff] %v2346
        %p2348 = scmp.lt.s32.totalorder %s38, 1
        %s2349 = scalar_select %p2348, %s38, 1
        %s2350 = smul.addr %s2349, 8
        %s2351 = scalar_lea.vmem %s17, %s2350
        %p2352 = scmp.lt.s32.totalorder %s38, 1
        %s2353 = scalar_select %p2352, %s38, 1
        %s2354 = smul.addr %s2353, 8
        %s2355 = scalar_lea.vmem %s18, %s2354
        %p2356 = scmp.lt.s32.totalorder %s38, 1
        %s2357 = scalar_select %p2356, %s38, 1
        %s2358 = smul.addr %s2357, 8
        %s2359 = scalar_lea.vmem %s19, %s2358
        %p2360 = scmp.lt.s32.totalorder %s38, 1
        %s2361 = scalar_select %p2360, %s38, 1
        %s2362 = smul.addr %s2361, 8
        %s2363 = scalar_lea.vmem %s20, %s2362
        %p2364 = scmp.lt.s32.totalorder %s38, 1
        %s2365 = scalar_select %p2364, %s38, 1
        %s2366 = smul.addr %s2365, 8
        %s2367 = scalar_lea.vmem %s21, %s2366
        %p2368 = scmp.lt.s32.totalorder %s38, 1
        %s2369 = scalar_select %p2368, %s38, 1
        %s2370 = smul.addr %s2369, 8
        %s2371 = scalar_lea.vmem %s22, %s2370
        %s2372 = sand.u32 %s569, 1
        %s2373 = scalar_lea.sflag [#allocation3], %s2372
        %s2374 = sand.u32 %s569, 1
        %s2375 = scalar_lea.vmem [#allocation2], %s2374
        // Predicated region
        $region89: #{block_forward.4} parent=87 // pred_check
          %p2376 = pneg %p423
        $region90: #{block_forward.4} parent=87 // pred_check_branch
          %2378 = sbr.rel (%p2376) target = $region92
        $region91: #{block_forward.4} parent=87 // pred_region
          _
        $region92: #{block_forward.4} parent=87 // pred_fallthru
          _
        // Predicated region
        $region93: #{block_forward.4} parent=87 // pred_check
          %p2379 = pneg %p449
        $region94: #{block_forward.4} parent=87 // pred_check_branch
          %2381 = sbr.rel (%p2379) target = $region96
        $region95: #{block_forward.4} parent=87 // pred_region
          _
        $region96: #{block_forward.4} parent=87 // pred_fallthru
          _
        // Predicated region
        $region97: #{block_forward.4} parent=87 // pred_check
          %p2382 = pneg %p475
        $region98: #{block_forward.4} parent=87 // pred_check_branch
          %2384 = sbr.rel (%p2382) target = $region100
        $region99: #{block_forward.4} parent=87 // pred_region
          _
        $region100: #{block_forward.4} parent=87 // pred_fallthru
          _
        // Predicated region
        $region101: #{block_forward.4} parent=87 // pred_check
          %p2385 = pneg %p501
        $region102: #{block_forward.4} parent=87 // pred_check_branch
          %2387 = sbr.rel (%p2385) target = $region104
        $region103: #{block_forward.4} parent=87 // pred_region
          _
        $region104: #{block_forward.4} parent=87 // pred_fallthru
          _
        // Predicated region
        $region105: #{block_forward.4} parent=87 // pred_check
          %p2388 = pneg %p527
        $region106: #{block_forward.4} parent=87 // pred_check_branch
          %2390 = sbr.rel (%p2388) target = $region108
        $region107: #{block_forward.4} parent=87 // pred_region
          _
        $region108: #{block_forward.4} parent=87 // pred_fallthru
          _
        // Predicated region
        $region109: #{block_forward.4} parent=87 // pred_check
          %p2391 = pneg %p553
        $region110: #{block_forward.4} parent=87 // pred_check_branch
          %2393 = sbr.rel (%p2391) target = $region112
        $region111: #{block_forward.4} parent=87 // pred_region
          _
        $region112: #{block_forward.4} parent=87 // pred_fallthru
          _
        // Predicated region
        $region113: #{block_forward.4} parent=87 // pred_check
          %p2394 = pneg %p579
        $region114: #{block_forward.4} parent=87 // pred_check_branch
          %2396 = sbr.rel (%p2394) target = $region116
        $region115: #{block_forward.4} parent=87 // pred_region
          %s2398 = ssub.s32 16, 16
          %2399 = vsyncadd %s2373, %s2398
          %s2400 = smul.addr %s38, 16
          %s2401 = scalar_lea.hbm %s23, %s2400
          %s2403 = sshll.u32 %s2375, 4
          %s2404 = int_to_ptr.vmem [resolvable:$true] %s2403
          %2406 = dma.vmem_to_hbm [thread:$0]  %s2404, 16, %s2401, %s2373
        $region116: #{block_forward.4} parent=87 // pred_fallthru
          _
      $region88: #{block_forward.4} parent=5 // pred_fallthru
        _
      %p2407 = scmp.le.s32.totalorder 2, %s33
      // Predicated region
      $region117: #{block_forward.4} parent=5 // pred_check
        %p2408 = pneg %p2407
      $region118: #{block_forward.4} parent=5 // pred_check_branch
        %2410 = sbr.rel (%p2408) target = $region120
      $region119: #{block_forward.4} parent=5 // pred_region
        %s2411 = ssub.s32 %s33, 2
        // Predicated region
        $region121: #{block_forward.4} parent=119 // pred_check
          %p2412 = pneg %p429
        $region122: #{block_forward.4} parent=119 // pred_check_branch
          %2414 = sbr.rel (%p2412) target = $region124
        $region123: #{block_forward.4} parent=119 // pred_region
          %p2415 = scmp.lt.s32.totalorder %s39, 1
          %s2416 = scalar_select %p2415, %s39, 1
          %s2417 = smul.addr %s2416, 8
          %s2418 = scalar_lea.vmem %s17, %s2417
        $region124: #{block_forward.4} parent=119 // pred_fallthru
          _
        // Predicated region
        $region125: #{block_forward.4} parent=119 // pred_check
          %p2419 = pneg %p455
        $region126: #{block_forward.4} parent=119 // pred_check_branch
          %2421 = sbr.rel (%p2419) target = $region128
        $region127: #{block_forward.4} parent=119 // pred_region
          %p2422 = scmp.lt.s32.totalorder %s39, 1
          %s2423 = scalar_select %p2422, %s39, 1
          %s2424 = smul.addr %s2423, 8
          %s2425 = scalar_lea.vmem %s18, %s2424
        $region128: #{block_forward.4} parent=119 // pred_fallthru
          _
        // Predicated region
        $region129: #{block_forward.4} parent=119 // pred_check
          %p2426 = pneg %p481
        $region130: #{block_forward.4} parent=119 // pred_check_branch
          %2428 = sbr.rel (%p2426) target = $region132
        $region131: #{block_forward.4} parent=119 // pred_region
          %p2429 = scmp.lt.s32.totalorder %s39, 1
          %s2430 = scalar_select %p2429, %s39, 1
          %s2431 = smul.addr %s2430, 8
          %s2432 = scalar_lea.vmem %s19, %s2431
        $region132: #{block_forward.4} parent=119 // pred_fallthru
          _
        // Predicated region
        $region133: #{block_forward.4} parent=119 // pred_check
          %p2433 = pneg %p507
        $region134: #{block_forward.4} parent=119 // pred_check_branch
          %2435 = sbr.rel (%p2433) target = $region136
        $region135: #{block_forward.4} parent=119 // pred_region
          %p2436 = scmp.lt.s32.totalorder %s39, 1
          %s2437 = scalar_select %p2436, %s39, 1
          %s2438 = smul.addr %s2437, 8
          %s2439 = scalar_lea.vmem %s20, %s2438
        $region136: #{block_forward.4} parent=119 // pred_fallthru
          _
        // Predicated region
        $region137: #{block_forward.4} parent=119 // pred_check
          %p2440 = pneg %p533
        $region138: #{block_forward.4} parent=119 // pred_check_branch
          %2442 = sbr.rel (%p2440) target = $region140
        $region139: #{block_forward.4} parent=119 // pred_region
          %p2443 = scmp.lt.s32.totalorder %s39, 1
          %s2444 = scalar_select %p2443, %s39, 1
          %s2445 = smul.addr %s2444, 8
          %s2446 = scalar_lea.vmem %s21, %s2445
        $region140: #{block_forward.4} parent=119 // pred_fallthru
          _
        // Predicated region
        $region141: #{block_forward.4} parent=119 // pred_check
          %p2447 = pneg %p559
        $region142: #{block_forward.4} parent=119 // pred_check_branch
          %2449 = sbr.rel (%p2447) target = $region144
        $region143: #{block_forward.4} parent=119 // pred_region
          %p2450 = scmp.lt.s32.totalorder %s39, 1
          %s2451 = scalar_select %p2450, %s39, 1
          %s2452 = smul.addr %s2451, 8
          %s2453 = scalar_lea.vmem %s22, %s2452
        $region144: #{block_forward.4} parent=119 // pred_fallthru
          _
        // Predicated region
        $region145: #{block_forward.4} parent=119 // pred_check
          %p2454 = pneg %p585
        $region146: #{block_forward.4} parent=119 // pred_check_branch
          %2456 = sbr.rel (%p2454) target = $region148
        $region147: #{block_forward.4} parent=119 // pred_region
          %s2457 = sand.u32 %s570, 1
          %s2458 = scalar_lea.sflag [#allocation3], %s2457
          %s2459 = sand.u32 %s570, 1
          %s2460 = scalar_lea.vmem [#allocation2], %s2459
          %2461 = dma.done %s2458, 16
        $region148: #{block_forward.4} parent=119 // pred_fallthru
          _
      $region120: #{block_forward.4} parent=5 // pred_fallthru
        _
    $region6: #{block_forward.4} parent=1 // loop_footer
      %s37 = sadd.s32 1, %s33
    $region7: #{block_forward.4} parent=1 // loop_footer_branch
      %32 = sbr.rel target = $region3
    $region8: #{block_forward.4} parent=1 // loop_exit
      _
    %2462 = vsyncpa [#allocation3], 1
    %s2463 = scalar_lea.sflag [#allocation3], 1
    %2464 = vsyncpa %s2463, 1

</llo_original>
